<compile_context>
chip_gen: v7x
topology: tpu7x:2x2x1
jax: 0.10.0
libtpu: 0.0.40
codegen_flags: <defaults>
</compile_context>

<pallas_src>
import jax
import jax.numpy as jnp
from jax import lax
from jax.experimental import pallas as pl
from jax.experimental.pallas import tpu as pltpu


# --------------------------------------------------------------------------- #
# Parameter preparation (run ONCE, outside jit: every transpose / fold / cast  #
# here is amortized and never shows up as per-call XLA work).                  #
# --------------------------------------------------------------------------- #
def _fold_bn(gamma, beta, mean, var, eps=1e-5):
    a = gamma / jnp.sqrt(var + eps)
    return a, beta - mean * a


def prepare_params(params, H, W):
    f32, bf16 = jnp.float32, jnp.bfloat16
    HW = H * W
    a1, b1 = _fold_bn(*params["bn1"])
    a2, b2 = _fold_bn(*params["bn2"])
    a3, b3 = _fold_bn(*params["bn3"])

    nC = params["conv1"].shape[1]
    C1 = params["conv1"].shape[0]            # 64
    C3 = params["conv3"].shape[0]            # 256
    w1t = params["conv1"].reshape(C1, nC).T  # (nC, 64)
    w2 = params["conv2"]                     # (64co, 64ci, 3, 3)
    w3m = params["conv3"].reshape(C3, C1)    # (co, ci)
    fw1, fb1, fw2, fb2, fw3, fb3 = params["fc"]
    n1 = fw1.shape[0]

    # ---- conv2 (3x3 on the padded map) as one (HW*C1, HW*C1) matrix acting on
    #      channels-last position slabs; out-of-range taps are zero blocks. -----
    W2_big = jnp.zeros((HW * C1, HW * C1), f32)
    for hi in range(H):
        for wi in range(W):
            for ho in range(H):
                for wo in range(W):
                    kh, kw = hi - ho + 1, wi - wo + 1
                    if 0 <= kh < 3 and 0 <= kw < 3:
                        r0 = (hi * W + wi) * C1
                        c0 = (ho * W + wo) * C1
                        W2_big = W2_big.at[r0:r0 + C1, c0:c0 + C1].set(w2[:, :, kh, kw].T)

    # Border of conv2's input is relu(bn2(conv1(zero-pad))) = relu(b2) because
    # conv1 has no bias; fold its contribution into a per-output-position bias.
    relu_b2 = jnp.maximum(b2, 0.0)
    bias_blocks = []
    for ho in range(H):
        for wo in range(W):
            acc = jnp.zeros((C1,), f32)
            for kh in range(3):
                for kw in range(3):
                    r, c = ho + kh, wo + kw
                    if not (1 <= r <= H and 1 <= c <= W):
                        acc = acc + relu_b2 @ w2[:, :, kh, kw].T
            bias_blocks.append(acc)
    conv2_bias = jnp.concatenate(bias_blocks)[None, :]            # (1, HW*C1)

    # ---- FC1 split: x-part re-ordered to x's channels-last flatten; conv3
    #      folded into the out-part (two back-to-back linear maps). -------------
    wx = jnp.transpose(fw1[:, :nC * HW].reshape(n1, nC, HW), (2, 1, 0))
    wx = jnp.asarray(wx.reshape(HW * nC, n1), bf16)               # rows (hw, c)
    fw1_out = fw1[:, nC * HW:].reshape(n1, C3, HW)                # [n, co, hw]
    wc = jnp.einsum("oc,noh->hcn", w3m, fw1_out).reshape(HW * C1, n1)
    wc = jnp.asarray(wc, bf16)                                    # rows (hw, ci)

    return {
        "a1s": jnp.tile(a1, HW)[None, :], "b1s": jnp.tile(b1, HW)[None, :],
        "a2": a2[None, :], "b2": b2[None, :],
        "a3s": jnp.tile(a3, HW)[None, :], "b3s": jnp.tile(b3, HW)[None, :],
        "w1t": w1t, "w2big": W2_big, "cbias2": conv2_bias,
        "wx": wx, "wc": wc, "fb1": fb1[None, :],
        "wf2": jnp.asarray(fw2.T, bf16), "fb2": fb2[None, :],
        "wf3": fw3.T, "fb3": fb3[None, :],                        # wf3 tiny -> keep f32
    }


# --------------------------------------------------------------------------- #
# Fused forward                                                                 #
# --------------------------------------------------------------------------- #
def bottleneck_forward(x, prep):
    B, nC, H, W = x.shape
    HW = H * W
    C1 = prep["w1t"].shape[1]            # 64
    NO = prep["wf3"].shape[1]            # 10

    # Only per-call XLA glue: one tiny channels-last transpose/flatten of x.
    x_slab = jnp.transpose(x, (0, 2, 3, 1)).reshape(B, HW * nC)

    def kernel(x_ref, a1_ref, b1_ref, w1_ref, a2_ref, b2_ref,
               w2_ref, cb2_ref, a3_ref, b3_ref,
               fb1_ref, fb2_ref, fb3_ref, wf3_ref,
               wx_hbm, wc_hbm, wf2_hbm,
               o_ref, wx_buf, wc_buf, wf2_buf, sem):
        f32, bf16 = jnp.float32, jnp.bfloat16

        # Start the large FC-weight DMAs immediately (they are ~90% of the HBM
        # traffic); the conv/BN stage below runs while they are in flight.
        cp_wx = pltpu.make_async_copy(wx_hbm, wx_buf, sem.at[0]); cp_wx.start()
        cp_wc = pltpu.make_async_copy(wc_hbm, wc_buf, sem.at[1]); cp_wc.start()
        cp_wf = pltpu.make_async_copy(wf2_hbm, wf2_buf, sem.at[2]); cp_wf.start()

        xv = x_ref[...]                                            # (B, HW*nC)

        # ---- relu(bn1(x)) in channels-last position-slab layout -------------
        act1 = jnp.maximum(xv * a1_ref[...] + b1_ref[...], 0.0)

        # ---- conv1(1x1) -> relu(bn2) -> conv2(3x3 on the padded map) --------
        # Spatial mixing is pre-folded into w2_ref; the zero-pad border into
        # cb2_ref.  Per spatial position: two aligned matmuls, no scatter/gather.
        w1 = w1_ref[...]
        a2 = a2_ref[...]
        b2 = b2_ref[...]
        acc = None
        for p in range(HW):
            s1 = jnp.dot(act1[:, p * nC:(p + 1) * nC], w1,
                         preferred_element_type=f32)               # (B, C1)
            s1 = jnp.maximum(s1 * a2 + b2, 0.0)
            part = jnp.dot(s1, w2_ref[p * C1:(p + 1) * C1, :],
                           preferred_element_type=f32)             # (B, HW*C1)
            acc = part if acc is None else acc + part
        y2 = acc + cb2_ref[...]
        act3 = jnp.maximum(y2 * a3_ref[...] + b3_ref[...], 0.0)    # (B, HW*C1)

        # ---- FC head; conv3(1x1) is folded into the FC1 out-part weight ------
        cp_wx.wait(); cp_wc.wait()
        h1 = (jnp.dot(xv.astype(bf16), wx_buf[...], preferred_element_type=f32)
              + jnp.dot(act3.astype(bf16), wc_buf[...], preferred_element_type=f32)
              + fb1_ref[...])
        h1 = jnp.maximum(h1, 0.0)
        cp_wf.wait()
        h2 = jnp.maximum(
            jnp.dot(h1.astype(bf16), wf2_buf[...], preferred_element_type=f32)
            + fb2_ref[...], 0.0)
        # Dropout(p=0.2) is identity in eval mode.
        o_ref[...] = (jnp.dot(h2, wf3_ref[...], preferred_element_type=f32)
                      + fb3_ref[...])

    vmem = pl.BlockSpec(memory_space=pltpu.MemorySpace.VMEM)
    hbm = pl.BlockSpec(memory_space=pl.ANY)
    args = (x_slab, prep["a1s"], prep["b1s"], prep["w1t"], prep["a2"], prep["b2"],
            prep["w2big"], prep["cbias2"], prep["a3s"], prep["b3s"],
            prep["fb1"], prep["fb2"], prep["fb3"], prep["wf3"],
            prep["wx"], prep["wc"], prep["wf2"])

    return pl.pallas_call(
        kernel,
        out_shape=jax.ShapeDtypeStruct((B, NO), jnp.float32),
        in_specs=[vmem] * 14 + [hbm] * 3,
        out_specs=vmem,
        scratch_shapes=[pltpu.VMEM(prep["wx"].shape, jnp.bfloat16),
                        pltpu.VMEM(prep["wc"].shape, jnp.bfloat16),
                        pltpu.VMEM(prep["wf2"].shape, jnp.bfloat16),
                        pltpu.SemaphoreType.DMA((3,))],
        compiler_params=pltpu.CompilerParams(vmem_limit_bytes=24 * 1024 * 1024),
        cost_estimate=pl.CostEstimate(flops=13_000_000, transcendentals=0,
                                      bytes_accessed=6_200_000),
    )(*args)


# --------------------------------------------------------------------------- #
# Pure-JAX reference (faithful to the PyTorch module, f32 everywhere)           #
# --------------------------------------------------------------------------- #
def _bn_nchw(v, gamma, beta, mean, var, eps=1e-5):
    inv = (gamma / jnp.sqrt(var + eps))[None, :, None, None]
    return (v - mean[None, :, None, None]) * inv + beta[None, :, None, None]


def reference_forward(x, params):
    dn = ("NCHW", "OIHW", "NCHW")
    out = jax.nn.relu(_bn_nchw(x, *params["bn1"]))
    out = lax.conv_general_dilated(out, params["conv1"], (1, 1),
                                   ((1, 1), (1, 1)), dimension_numbers=dn)
    out = jax.nn.relu(_bn_nchw(out, *params["bn2"]))
    out = lax.conv_general_dilated(out, params["conv2"], (1, 1),
                                   "VALID", dimension_numbers=dn)
    out = jax.nn.relu(_bn_nchw(out, *params["bn3"]))
    out = lax.conv_general_dilated(out, params["conv3"], (1, 1),
                                   "VALID", dimension_numbers=dn)
    feat = jnp.concatenate([x, out], axis=1).reshape(x.shape[0], -1)
    fw1, fb1, fw2, fb2, fw3, fb3 = params["fc"]
    h = jax.nn.relu(feat @ fw1.T + fb1)
    h = jax.nn.relu(h @ fw2.T + fb2)
    return h @ fw3.T + fb3


# --------------------------------------------------------------------------- #
# Deterministic test parameters                                                 #
# --------------------------------------------------------------------------- #
def make_params(key, n_channels, H, W):
    ks = jax.random.split(key, 16)
    fc_in = (n_channels + 256) * H * W

    def bn(k, c):
        k1, k2, k3, k4 = jax.random.split(k, 4)
        gamma = 1.0 + 0.1 * jax.random.normal(k1, (c,), jnp.float32)
        beta = 0.1 * jax.random.normal(k2, (c,), jnp.float32)
        mean = 0.1 * jax.random.normal(k3, (c,), jnp.float32)
        var = jax.random.uniform(k4, (c,), jnp.float32, 0.5, 1.5)
        return gamma, beta, mean, var

    return {
        "bn1": bn(ks[0], n_channels),
        "conv1": 0.05 * jax.random.normal(ks[1], (64, n_channels, 1, 1), jnp.float32),
        "bn2": bn(ks[2], 64),
        "conv2": 0.05 * jax.random.normal(ks[3], (64, 64, 3, 3), jnp.float32),
        "bn3": bn(ks[4], 64),
        "conv3": 0.05 * jax.random.normal(ks[5], (256, 64, 1, 1), jnp.float32),
        "fc": (
            0.02 * jax.random.normal(ks[6], (1024, fc_in), jnp.float32),
            0.01 * jax.random.normal(ks[7], (1024,), jnp.float32),
            0.02 * jax.random.normal(ks[8], (512, 1024), jnp.float32),
            0.01 * jax.random.normal(ks[9], (512,), jnp.float32),
            0.02 * jax.random.normal(ks[10], (10, 512), jnp.float32),
            0.01 * jax.random.normal(ks[11], (10,), jnp.float32),
        ),
    }


if __name__ == "__main__":
    # fc_layers starts with Linear(3072, ...), so (nChannels + 256) * H * W must
    # equal 3072; the smallest square-spatial choice is nChannels=512, H=W=2.
    B, nC, H, W = 2, 512, 2, 2
    key = jax.random.PRNGKey(0)
    k_param, k_x = jax.random.split(key)
    params = make_params(k_param, nC, H, W)
    x = jax.random.normal(k_x, (B, nC, H, W), jnp.float32)

    prep = prepare_params(params, H, W)          # one-time weight prep (outside jit)
    fwd = jax.jit(bottleneck_forward)
    out = jax.block_until_ready(fwd(x, prep))

    ref = reference_forward(x, params)
    assert out.shape == (B, 10) and out.dtype == jnp.float32
    # bf16 FC weights/activations -> loose tolerance vs. the f32 reference.
    assert jnp.allclose(out, ref, rtol=5e-2, atol=5e-2), float(jnp.max(jnp.abs(out - ref)))
    print("KERNEL_OK")
</pallas_src>

<mosaic_0001>
module attributes {stable_mosaic.version = 11 : i64} {
  func.func @kernel(%arg0: memref<2x2048xf32, #tpu.memory_space<vmem>>, %arg1: memref<1x2048xf32, #tpu.memory_space<vmem>>, %arg2: memref<1x2048xf32, #tpu.memory_space<vmem>>, %arg3: memref<512x64xf32, #tpu.memory_space<vmem>>, %arg4: memref<1x64xf32, #tpu.memory_space<vmem>>, %arg5: memref<1x64xf32, #tpu.memory_space<vmem>>, %arg6: memref<256x256xf32, #tpu.memory_space<vmem>>, %arg7: memref<1x256xf32, #tpu.memory_space<vmem>>, %arg8: memref<1x256xf32, #tpu.memory_space<vmem>>, %arg9: memref<1x256xf32, #tpu.memory_space<vmem>>, %arg10: memref<1x1024xf32, #tpu.memory_space<vmem>>, %arg11: memref<1x512xf32, #tpu.memory_space<vmem>>, %arg12: memref<1x10xf32, #tpu.memory_space<vmem>>, %arg13: memref<512x10xf32, #tpu.memory_space<vmem>>, %arg14: memref<2048x1024xbf16, #tpu.memory_space<any>>, %arg15: memref<256x1024xbf16, #tpu.memory_space<any>>, %arg16: memref<1024x512xbf16, #tpu.memory_space<any>>, %arg17: memref<2x10xf32, #tpu.memory_space<vmem>>, %arg18: memref<2048x1024xbf16, #tpu.memory_space<vmem>>, %arg19: memref<256x1024xbf16, #tpu.memory_space<vmem>>, %arg20: memref<1024x512xbf16, #tpu.memory_space<vmem>>, %arg21: memref<3x!tpu.dma_semaphore, #tpu.memory_space<semaphore_mem>>) attributes {dimension_semantics = [], scalar_prefetch = 0 : i64, scratch_operands = 4 : i64, tpu.core_type = #tpu.core_type<tc>} {
    %c0_i32 = arith.constant 0 : i32
    %0 = tpu.memref_slice %arg21[%c0_i32] : memref<3x!tpu.dma_semaphore, #tpu.memory_space<semaphore_mem>> -> memref<1x!tpu.dma_semaphore, #tpu.memory_space<semaphore_mem>>
    %1 = tpu.memref_squeeze %0 : memref<1x!tpu.dma_semaphore, #tpu.memory_space<semaphore_mem>> -> memref<!tpu.dma_semaphore, #tpu.memory_space<semaphore_mem>>
    tpu.enqueue_dma source(%arg14 : memref<2048x1024xbf16, #tpu.memory_space<any>>) target(%arg18 : memref<2048x1024xbf16, #tpu.memory_space<vmem>>) target_semaphore(%1 : memref<!tpu.dma_semaphore, #tpu.memory_space<semaphore_mem>>)
    %c1_i32 = arith.constant 1 : i32
    %2 = tpu.memref_slice %arg21[%c1_i32] : memref<3x!tpu.dma_semaphore, #tpu.memory_space<semaphore_mem>> -> memref<1x!tpu.dma_semaphore, #tpu.memory_space<semaphore_mem>>
    %3 = tpu.memref_squeeze %2 : memref<1x!tpu.dma_semaphore, #tpu.memory_space<semaphore_mem>> -> memref<!tpu.dma_semaphore, #tpu.memory_space<semaphore_mem>>
    tpu.enqueue_dma source(%arg15 : memref<256x1024xbf16, #tpu.memory_space<any>>) target(%arg19 : memref<256x1024xbf16, #tpu.memory_space<vmem>>) target_semaphore(%3 : memref<!tpu.dma_semaphore, #tpu.memory_space<semaphore_mem>>)
    %c2_i32 = arith.constant 2 : i32
    %4 = tpu.memref_slice %arg21[%c2_i32] : memref<3x!tpu.dma_semaphore, #tpu.memory_space<semaphore_mem>> -> memref<1x!tpu.dma_semaphore, #tpu.memory_space<semaphore_mem>>
    %5 = tpu.memref_squeeze %4 : memref<1x!tpu.dma_semaphore, #tpu.memory_space<semaphore_mem>> -> memref<!tpu.dma_semaphore, #tpu.memory_space<semaphore_mem>>
    tpu.enqueue_dma source(%arg16 : memref<1024x512xbf16, #tpu.memory_space<any>>) target(%arg20 : memref<1024x512xbf16, #tpu.memory_space<vmem>>) target_semaphore(%5 : memref<!tpu.dma_semaphore, #tpu.memory_space<semaphore_mem>>)
    %c0 = arith.constant 0 : index
    %c0_0 = arith.constant 0 : index
    %6 = vector.load %arg0[%c0, %c0_0] : memref<2x2048xf32, #tpu.memory_space<vmem>>, vector<2x2048xf32>
    %c0_1 = arith.constant 0 : index
    %c0_2 = arith.constant 0 : index
    %7 = vector.load %arg1[%c0_1, %c0_2] : memref<1x2048xf32, #tpu.memory_space<vmem>>, vector<1x2048xf32>
    %8 = vector.broadcast %7 : vector<1x2048xf32> to vector<2x2048xf32>
    %9 = arith.mulf %6, %8 : vector<2x2048xf32>
    %c0_3 = arith.constant 0 : index
    %c0_4 = arith.constant 0 : index
    %10 = vector.load %arg2[%c0_3, %c0_4] : memref<1x2048xf32, #tpu.memory_space<vmem>>, vector<1x2048xf32>
    %11 = vector.broadcast %10 : vector<1x2048xf32> to vector<2x2048xf32>
    %12 = arith.addf %9, %11 : vector<2x2048xf32>
    %cst = arith.constant 0.000000e+00 : f32
    %13 = vector.broadcast %cst : f32 to vector<2x2048xf32>
    %14 = arith.maximumf %12, %13 : vector<2x2048xf32>
    %c0_5 = arith.constant 0 : index
    %c0_6 = arith.constant 0 : index
    %15 = vector.load %arg3[%c0_5, %c0_6] : memref<512x64xf32, #tpu.memory_space<vmem>>, vector<512x64xf32>
    %c0_7 = arith.constant 0 : index
    %c0_8 = arith.constant 0 : index
    %16 = vector.load %arg4[%c0_7, %c0_8] : memref<1x64xf32, #tpu.memory_space<vmem>>, vector<1x64xf32>
    %c0_9 = arith.constant 0 : index
    %c0_10 = arith.constant 0 : index
    %17 = vector.load %arg5[%c0_9, %c0_10] : memref<1x64xf32, #tpu.memory_space<vmem>>, vector<1x64xf32>
    %18 = vector.extract_strided_slice %14 {offsets = [0, 0], sizes = [2, 512], strides = [1, 1]} : vector<2x2048xf32> to vector<2x512xf32>
    %cst_11 = arith.constant dense<0.000000e+00> : vector<2x64xf32>
    %19 = tpu.matmul %18, %15, %cst_11 {dimension_numbers = #tpu.dot_dimension_numbers<[1], [0], [0], [1], [0, 0, 1, 1], [], []>} : vector<2x512xf32>, vector<512x64xf32>, vector<2x64xf32> -> vector<2x64xf32>
    %20 = vector.broadcast %16 : vector<1x64xf32> to vector<2x64xf32>
    %21 = arith.mulf %19, %20 : vector<2x64xf32>
    %22 = vector.broadcast %17 : vector<1x64xf32> to vector<2x64xf32>
    %23 = arith.addf %21, %22 : vector<2x64xf32>
    %cst_12 = arith.constant 0.000000e+00 : f32
    %24 = vector.broadcast %cst_12 : f32 to vector<2x64xf32>
    %25 = arith.maximumf %23, %24 : vector<2x64xf32>
    %c0_13 = arith.constant 0 : index
    %c0_14 = arith.constant 0 : index
    %26 = vector.load %arg6[%c0_13, %c0_14] : memref<256x256xf32, #tpu.memory_space<vmem>>, vector<64x256xf32>
    %cst_15 = arith.constant dense<0.000000e+00> : vector<2x256xf32>
    %27 = tpu.matmul %25, %26, %cst_15 {dimension_numbers = #tpu.dot_dimension_numbers<[1], [0], [0], [1], [0, 0, 1, 1], [], []>} : vector<2x64xf32>, vector<64x256xf32>, vector<2x256xf32> -> vector<2x256xf32>
    %28 = vector.extract_strided_slice %14 {offsets = [0, 512], sizes = [2, 512], strides = [1, 1]} : vector<2x2048xf32> to vector<2x512xf32>
    %cst_16 = arith.constant dense<0.000000e+00> : vector<2x64xf32>
    %29 = tpu.matmul %28, %15, %cst_16 {dimension_numbers = #tpu.dot_dimension_numbers<[1], [0], [0], [1], [0, 0, 1, 1], [], []>} : vector<2x512xf32>, vector<512x64xf32>, vector<2x64xf32> -> vector<2x64xf32>
    %30 = vector.broadcast %16 : vector<1x64xf32> to vector<2x64xf32>
    %31 = arith.mulf %29, %30 : vector<2x64xf32>
    %32 = vector.broadcast %17 : vector<1x64xf32> to vector<2x64xf32>
    %33 = arith.addf %31, %32 : vector<2x64xf32>
    %cst_17 = arith.constant 0.000000e+00 : f32
    %34 = vector.broadcast %cst_17 : f32 to vector<2x64xf32>
    %35 = arith.maximumf %33, %34 : vector<2x64xf32>
    %c64 = arith.constant 64 : index
    %c0_18 = arith.constant 0 : index
    %36 = vector.load %arg6[%c64, %c0_18] : memref<256x256xf32, #tpu.memory_space<vmem>>, vector<64x256xf32>
    %cst_19 = arith.constant dense<0.000000e+00> : vector<2x256xf32>
    %37 = tpu.matmul %35, %36, %cst_19 {dimension_numbers = #tpu.dot_dimension_numbers<[1], [0], [0], [1], [0, 0, 1, 1], [], []>} : vector<2x64xf32>, vector<64x256xf32>, vector<2x256xf32> -> vector<2x256xf32>
    %38 = arith.addf %27, %37 : vector<2x256xf32>
    %39 = vector.extract_strided_slice %14 {offsets = [0, 1024], sizes = [2, 512], strides = [1, 1]} : vector<2x2048xf32> to vector<2x512xf32>
    %cst_20 = arith.constant dense<0.000000e+00> : vector<2x64xf32>
    %40 = tpu.matmul %39, %15, %cst_20 {dimension_numbers = #tpu.dot_dimension_numbers<[1], [0], [0], [1], [0, 0, 1, 1], [], []>} : vector<2x512xf32>, vector<512x64xf32>, vector<2x64xf32> -> vector<2x64xf32>
    %41 = vector.broadcast %16 : vector<1x64xf32> to vector<2x64xf32>
    %42 = arith.mulf %40, %41 : vector<2x64xf32>
    %43 = vector.broadcast %17 : vector<1x64xf32> to vector<2x64xf32>
    %44 = arith.addf %42, %43 : vector<2x64xf32>
    %cst_21 = arith.constant 0.000000e+00 : f32
    %45 = vector.broadcast %cst_21 : f32 to vector<2x64xf32>
    %46 = arith.maximumf %44, %45 : vector<2x64xf32>
    %c128 = arith.constant 128 : index
    %c0_22 = arith.constant 0 : index
    %47 = vector.load %arg6[%c128, %c0_22] : memref<256x256xf32, #tpu.memory_space<vmem>>, vector<64x256xf32>
    %cst_23 = arith.constant dense<0.000000e+00> : vector<2x256xf32>
    %48 = tpu.matmul %46, %47, %cst_23 {dimension_numbers = #tpu.dot_dimension_numbers<[1], [0], [0], [1], [0, 0, 1, 1], [], []>} : vector<2x64xf32>, vector<64x256xf32>, vector<2x256xf32> -> vector<2x256xf32>
    %49 = arith.addf %38, %48 : vector<2x256xf32>
    %50 = vector.extract_strided_slice %14 {offsets = [0, 1536], sizes = [2, 512], strides = [1, 1]} : vector<2x2048xf32> to vector<2x512xf32>
    %cst_24 = arith.constant dense<0.000000e+00> : vector<2x64xf32>
    %51 = tpu.matmul %50, %15, %cst_24 {dimension_numbers = #tpu.dot_dimension_numbers<[1], [0], [0], [1], [0, 0, 1, 1], [], []>} : vector<2x512xf32>, vector<512x64xf32>, vector<2x64xf32> -> vector<2x64xf32>
    %52 = vector.broadcast %16 : vector<1x64xf32> to vector<2x64xf32>
    %53 = arith.mulf %51, %52 : vector<2x64xf32>
    %54 = vector.broadcast %17 : vector<1x64xf32> to vector<2x64xf32>
    %55 = arith.addf %53, %54 : vector<2x64xf32>
    %cst_25 = arith.constant 0.000000e+00 : f32
    %56 = vector.broadcast %cst_25 : f32 to vector<2x64xf32>
    %57 = arith.maximumf %55, %56 : vector<2x64xf32>
    %c192 = arith.constant 192 : index
    %c0_26 = arith.constant 0 : index
    %58 = vector.load %arg6[%c192, %c0_26] : memref<256x256xf32, #tpu.memory_space<vmem>>, vector<64x256xf32>
    %cst_27 = arith.constant dense<0.000000e+00> : vector<2x256xf32>
    %59 = tpu.matmul %57, %58, %cst_27 {dimension_numbers = #tpu.dot_dimension_numbers<[1], [0], [0], [1], [0, 0, 1, 1], [], []>} : vector<2x64xf32>, vector<64x256xf32>, vector<2x256xf32> -> vector<2x256xf32>
    %60 = arith.addf %49, %59 : vector<2x256xf32>
    %c0_28 = arith.constant 0 : index
    %c0_29 = arith.constant 0 : index
    %61 = vector.load %arg7[%c0_28, %c0_29] : memref<1x256xf32, #tpu.memory_space<vmem>>, vector<1x256xf32>
    %62 = vector.broadcast %61 : vector<1x256xf32> to vector<2x256xf32>
    %63 = arith.addf %60, %62 : vector<2x256xf32>
    %c0_30 = arith.constant 0 : index
    %c0_31 = arith.constant 0 : index
    %64 = vector.load %arg8[%c0_30, %c0_31] : memref<1x256xf32, #tpu.memory_space<vmem>>, vector<1x256xf32>
    %65 = vector.broadcast %64 : vector<1x256xf32> to vector<2x256xf32>
    %66 = arith.mulf %63, %65 : vector<2x256xf32>
    %c0_32 = arith.constant 0 : index
    %c0_33 = arith.constant 0 : index
    %67 = vector.load %arg9[%c0_32, %c0_33] : memref<1x256xf32, #tpu.memory_space<vmem>>, vector<1x256xf32>
    %68 = vector.broadcast %67 : vector<1x256xf32> to vector<2x256xf32>
    %69 = arith.addf %66, %68 : vector<2x256xf32>
    %cst_34 = arith.constant 0.000000e+00 : f32
    %70 = vector.broadcast %cst_34 : f32 to vector<2x256xf32>
    %71 = arith.maximumf %69, %70 : vector<2x256xf32>
    %c0_i32_35 = arith.constant 0 : i32
    %72 = tpu.memref_slice %arg21[%c0_i32_35] : memref<3x!tpu.dma_semaphore, #tpu.memory_space<semaphore_mem>> -> memref<1x!tpu.dma_semaphore, #tpu.memory_space<semaphore_mem>>
    %73 = tpu.memref_squeeze %72 : memref<1x!tpu.dma_semaphore, #tpu.memory_space<semaphore_mem>> -> memref<!tpu.dma_semaphore, #tpu.memory_space<semaphore_mem>>
    tpu.wait_dma2 semaphore(%73 : memref<!tpu.dma_semaphore, #tpu.memory_space<semaphore_mem>>) src(%arg14 : memref<2048x1024xbf16, #tpu.memory_space<any>>) dst(%arg18 : memref<2048x1024xbf16, #tpu.memory_space<vmem>>)
    %c1_i32_36 = arith.constant 1 : i32
    %74 = tpu.memref_slice %arg21[%c1_i32_36] : memref<3x!tpu.dma_semaphore, #tpu.memory_space<semaphore_mem>> -> memref<1x!tpu.dma_semaphore, #tpu.memory_space<semaphore_mem>>
    %75 = tpu.memref_squeeze %74 : memref<1x!tpu.dma_semaphore, #tpu.memory_space<semaphore_mem>> -> memref<!tpu.dma_semaphore, #tpu.memory_space<semaphore_mem>>
    tpu.wait_dma2 semaphore(%75 : memref<!tpu.dma_semaphore, #tpu.memory_space<semaphore_mem>>) src(%arg15 : memref<256x1024xbf16, #tpu.memory_space<any>>) dst(%arg19 : memref<256x1024xbf16, #tpu.memory_space<vmem>>)
    %76 = arith.truncf %6 : vector<2x2048xf32> to vector<2x2048xbf16>
    %c0_37 = arith.constant 0 : index
    %c0_38 = arith.constant 0 : index
    %77 = vector.load %arg18[%c0_37, %c0_38] : memref<2048x1024xbf16, #tpu.memory_space<vmem>>, vector<2048x1024xbf16>
    %cst_39 = arith.constant dense<0.000000e+00> : vector<2x1024xf32>
    %78 = tpu.matmul %76, %77, %cst_39 {dimension_numbers = #tpu.dot_dimension_numbers<[1], [0], [0], [1], [0, 0, 1, 1], [], []>} : vector<2x2048xbf16>, vector<2048x1024xbf16>, vector<2x1024xf32> -> vector<2x1024xf32>
    %79 = arith.truncf %71 : vector<2x256xf32> to vector<2x256xbf16>
    %c0_40 = arith.constant 0 : index
    %c0_41 = arith.constant 0 : index
    %80 = vector.load %arg19[%c0_40, %c0_41] : memref<256x1024xbf16, #tpu.memory_space<vmem>>, vector<256x1024xbf16>
    %cst_42 = arith.constant dense<0.000000e+00> : vector<2x1024xf32>
    %81 = tpu.matmul %79, %80, %cst_42 {dimension_numbers = #tpu.dot_dimension_numbers<[1], [0], [0], [1], [0, 0, 1, 1], [], []>} : vector<2x256xbf16>, vector<256x1024xbf16>, vector<2x1024xf32> -> vector<2x1024xf32>
    %82 = arith.addf %78, %81 : vector<2x1024xf32>
    %c0_43 = arith.constant 0 : index
    %c0_44 = arith.constant 0 : index
    %83 = vector.load %arg10[%c0_43, %c0_44] : memref<1x1024xf32, #tpu.memory_space<vmem>>, vector<1x1024xf32>
    %84 = vector.broadcast %83 : vector<1x1024xf32> to vector<2x1024xf32>
    %85 = arith.addf %82, %84 : vector<2x1024xf32>
    %cst_45 = arith.constant 0.000000e+00 : f32
    %86 = vector.broadcast %cst_45 : f32 to vector<2x1024xf32>
    %87 = arith.maximumf %85, %86 : vector<2x1024xf32>
    %c2_i32_46 = arith.constant 2 : i32
    %88 = tpu.memref_slice %arg21[%c2_i32_46] : memref<3x!tpu.dma_semaphore, #tpu.memory_space<semaphore_mem>> -> memref<1x!tpu.dma_semaphore, #tpu.memory_space<semaphore_mem>>
    %89 = tpu.memref_squeeze %88 : memref<1x!tpu.dma_semaphore, #tpu.memory_space<semaphore_mem>> -> memref<!tpu.dma_semaphore, #tpu.memory_space<semaphore_mem>>
    tpu.wait_dma2 semaphore(%89 : memref<!tpu.dma_semaphore, #tpu.memory_space<semaphore_mem>>) src(%arg16 : memref<1024x512xbf16, #tpu.memory_space<any>>) dst(%arg20 : memref<1024x512xbf16, #tpu.memory_space<vmem>>)
    %90 = arith.truncf %87 : vector<2x1024xf32> to vector<2x1024xbf16>
    %c0_47 = arith.constant 0 : index
    %c0_48 = arith.constant 0 : index
    %91 = vector.load %arg20[%c0_47, %c0_48] : memref<1024x512xbf16, #tpu.memory_space<vmem>>, vector<1024x512xbf16>
    %cst_49 = arith.constant dense<0.000000e+00> : vector<2x512xf32>
    %92 = tpu.matmul %90, %91, %cst_49 {dimension_numbers = #tpu.dot_dimension_numbers<[1], [0], [0], [1], [0, 0, 1, 1], [], []>} : vector<2x1024xbf16>, vector<1024x512xbf16>, vector<2x512xf32> -> vector<2x512xf32>
    %c0_50 = arith.constant 0 : index
    %c0_51 = arith.constant 0 : index
    %93 = vector.load %arg11[%c0_50, %c0_51] : memref<1x512xf32, #tpu.memory_space<vmem>>, vector<1x512xf32>
    %94 = vector.broadcast %93 : vector<1x512xf32> to vector<2x512xf32>
    %95 = arith.addf %92, %94 : vector<2x512xf32>
    %cst_52 = arith.constant 0.000000e+00 : f32
    %96 = vector.broadcast %cst_52 : f32 to vector<2x512xf32>
    %97 = arith.maximumf %95, %96 : vector<2x512xf32>
    %c0_53 = arith.constant 0 : index
    %c0_54 = arith.constant 0 : index
    %98 = vector.load %arg13[%c0_53, %c0_54] : memref<512x10xf32, #tpu.memory_space<vmem>>, vector<512x10xf32>
    %cst_55 = arith.constant dense<0.000000e+00> : vector<2x10xf32>
    %99 = tpu.matmul %97, %98, %cst_55 {dimension_numbers = #tpu.dot_dimension_numbers<[1], [0], [0], [1], [0, 0, 1, 1], [], []>} : vector<2x512xf32>, vector<512x10xf32>, vector<2x10xf32> -> vector<2x10xf32>
    %c0_56 = arith.constant 0 : index
    %c0_57 = arith.constant 0 : index
    %100 = vector.load %arg12[%c0_56, %c0_57] : memref<1x10xf32, #tpu.memory_space<vmem>>, vector<1x10xf32>
    %101 = vector.broadcast %100 : vector<1x10xf32> to vector<2x10xf32>
    %102 = arith.addf %99, %101 : vector<2x10xf32>
    %c0_58 = arith.constant 0 : index
    %c0_59 = arith.constant 0 : index
    %103 = vector.load %arg17[%c0_58, %c0_59] : memref<2x10xf32, #tpu.memory_space<vmem>>, vector<2x10xf32>
    tpu.vector_store %arg17[%c0_58, %c0_59], %102 {strides = array<i32>} : memref<2x10xf32, #tpu.memory_space<vmem>>, vector<2x10xf32>,
    return
  }
}

</mosaic_0001>

<llo_original>
// kernel: bottleneck_forward.1
$region0: #{bottleneck_forward.1}
  #allocation0 [shape = 'u32[]', space=smem, size = 0x4, offset = 0x4, fixed_abs, tag = 'smem constant byte address 0x4 - core index']
  #allocation1 [shape = 'u32[144,128]{1,0:T(1,128)}', space=vmem, size = 0x12000, scoped, tag = 'internal scratch']
  #allocation2 [shape = 'bf16[2048,1024]{1,0:T(16,128)(2,1)}', space=vmem, size = 0x400000, scoped, tag = 'scratch operand']
  #allocation3 [shape = 'bf16[256,1024]{1,0:T(16,128)(2,1)}', space=vmem, size = 0x80000, scoped, tag = 'scratch operand']
  #allocation4 [shape = 'bf16[1024,512]{1,0:T(16,128)(2,1)}', space=vmem, size = 0x100000, scoped, tag = 'scratch operand']
  #allocation5 [shape = 's32[3]{0}', space=sflag, size = 0xc, scoped, tag = 'scratch operand']
  #allocation25 [shape = 's32[]', space=sflag, size = 0x4, offset = 0, fixed_abs, tag = 'sflag constant byte address 0x0 - dummy sync flag']
  #allocation27 [shape = 's32[]', space=sflag, size = 0x4, offset = 0, fixed_abs, tag = 'sflag constant byte address 0x0 - dummy sync flag']
  #allocation29 [shape = 's32[]', space=sflag, size = 0x4, offset = 0, fixed_abs, tag = 'sflag constant byte address 0x0 - dummy sync flag']
  %s0 = inlined_call_operand.vmem [shape: f32[2,2048], index: 0, kind: input, shape index: {}]
  %s1 = inlined_call_operand.hbm [shape: f32[1,2048], index: 1, kind: input, shape index: {}]
  %s2 = inlined_call_operand.hbm [shape: f32[1,2048], index: 2, kind: input, shape index: {}]
  %s3 = inlined_call_operand.vmem [shape: f32[512,64], index: 3, kind: input, shape index: {}]
  %s4 = inlined_call_operand.hbm [shape: f32[1,64], index: 4, kind: input, shape index: {}]
  %s5 = inlined_call_operand.hbm [shape: f32[1,64], index: 5, kind: input, shape index: {}]
  %s6 = inlined_call_operand.hbm [shape: f32[256,256], index: 6, kind: input, shape index: {}]
  %s7 = inlined_call_operand.hbm [shape: f32[1,256], index: 7, kind: input, shape index: {}]
  %s8 = inlined_call_operand.hbm [shape: f32[1,256], index: 8, kind: input, shape index: {}]
  %s9 = inlined_call_operand.hbm [shape: f32[1,256], index: 9, kind: input, shape index: {}]
  %s10 = inlined_call_operand.hbm [shape: f32[1,1024], index: 10, kind: input, shape index: {}]
  %s11 = inlined_call_operand.hbm [shape: f32[1,512], index: 11, kind: input, shape index: {}]
  %s12 = inlined_call_operand.hbm [shape: f32[1,10], index: 12, kind: input, shape index: {}]
  %s13 = inlined_call_operand.vmem [shape: f32[512,10], index: 13, kind: input, shape index: {}]
  %s14 = inlined_call_operand.hbm [shape: bf16[2048,1024], index: 14, kind: input, shape index: {}]
  %s15 = inlined_call_operand.hbm [shape: bf16[256,1024], index: 15, kind: input, shape index: {}]
  %s16 = inlined_call_operand.hbm [shape: bf16[1024,512], index: 16, kind: input, shape index: {}]
  %s17 = inlined_call_operand.hbm [shape: f32[2,10], index: 17, kind: output, shape index: {}]
  %s18 = sld [smem:[#allocation0]]
  $region110: #{bottleneck_forward.1} parent=0
    _
  %s20 = ssub.s32 1, %s18
  %s21 = scalar_select 0, %s20, %s18
  $region1: #{bottleneck_forward.1} parent=0
    #allocation6 [shape = 'u8[8192]{0}', space=vmem, size = 0x2000, scoped, tag = 'input window, operand 1, single buffered']
    #allocation7 [shape = 's32[1]{0}', space=sflag, size = 0x4, scoped, tag = 'scoped memory for bottleneck_forward.1']
    #allocation8 [shape = 's32[1]{0}', space=sflag, size = 0x4, scoped, tag = 'scoped memory for bottleneck_forward.1']
    #allocation9 [shape = 'u8[8192]{0}', space=vmem, size = 0x2000, scoped, tag = 'input window, operand 2, single buffered']
    #allocation10 [shape = 's32[1]{0}', space=sflag, size = 0x4, scoped, tag = 'scoped memory for bottleneck_forward.1']
    #allocation11 [shape = 'u8[512]{0}', space=vmem, size = 0x400, scoped, tag = 'input window, operand 4, single buffered']
    #allocation12 [shape = 'u8[512]{0}', space=vmem, size = 0x400, scoped, tag = 'input window, operand 5, single buffered']
    #allocation13 [shape = 's32[1]{0}', space=sflag, size = 0x4, scoped, tag = 'scoped memory for bottleneck_forward.1']
    #allocation14 [shape = 'u8[262144]{0}', space=vmem, size = 0x40000, scoped, tag = 'input window, operand 6, single buffered']
    #allocation15 [shape = 'u8[1024]{0}', space=vmem, size = 0x400, scoped, tag = 'input window, operand 7, single buffered']
    #allocation16 [shape = 's32[1]{0}', space=sflag, size = 0x4, scoped, tag = 'scoped memory for bottleneck_forward.1']
    #allocation17 [shape = 'u8[1024]{0}', space=vmem, size = 0x400, scoped, tag = 'input window, operand 8, single buffered']
    #allocation18 [shape = 'u8[1024]{0}', space=vmem, size = 0x400, scoped, tag = 'input window, operand 9, single buffered']
    #allocation19 [shape = 's32[1]{0}', space=sflag, size = 0x4, scoped, tag = 'scoped memory for bottleneck_forward.1']
    #allocation20 [shape = 'u8[4096]{0}', space=vmem, size = 0x1000, scoped, tag = 'input window, operand 10, single buffered']
    #allocation21 [shape = 'u8[2048]{0}', space=vmem, size = 0x800, scoped, tag = 'input window, operand 11, single buffered']
    #allocation22 [shape = 's32[1]{0}', space=sflag, size = 0x4, scoped, tag = 'scoped memory for bottleneck_forward.1']
    #allocation23 [shape = 'u8[512]{0}', space=vmem, size = 0x400, scoped, tag = 'input window, operand 12, single buffered']
    #allocation24 [shape = 'u8[1024]{0}', space=vmem, size = 0x400, scoped, tag = 'output window, operand 0, single buffered']
    #allocation26 [shape = 'u32[9]{0}', space=smem, size = 0x24, scoped, tag = 'DMA stride descriptor']
    #allocation28 [shape = 'u32[9]{0}', space=smem, size = 0x24, scoped, tag = 'DMA stride descriptor']
    #allocation30 [shape = 'u32[9]{0}', space=smem, size = 0x24, scoped, tag = 'DMA stride descriptor']
    %22 = vsyncpa [#allocation7], 0
    %23 = vsyncpa [#allocation10], 0
    %24 = vsyncpa [#allocation13], 0
    %25 = vsyncpa [#allocation16], 0
    %26 = vsyncpa [#allocation19], 0
    %27 = vsyncpa [#allocation22], 0
    %28 = vsyncpa [#allocation8], 0
    // Predicated region
    $region2: #{bottleneck_forward.1} parent=1 // pred_check
      _
    $region3: #{bottleneck_forward.1} parent=1 // pred_check_branch
      %30 = sbr.rel (0) target = $region5
    $region4: #{bottleneck_forward.1} parent=1 // pred_region
      _
    $region5: #{bottleneck_forward.1} parent=1 // pred_fallthru
      _
    // Predicated region
    $region6: #{bottleneck_forward.1} parent=1 // pred_check
      _
    $region7: #{bottleneck_forward.1} parent=1 // pred_check_branch
      %32 = sbr.rel (0) target = $region9
    $region8: #{bottleneck_forward.1} parent=1 // pred_region
      %s34 = ssub.s32 256, 256
      %35 = vsyncadd [#allocation7], %s34
      %s37 = sshll.u32 [#allocation6], 4
      %s38 = int_to_ptr.vmem [resolvable:$true] %s37
      %40 = dma.hbm_to_vmem [thread:$0]  %s1, 256, %s38, [#allocation7]
    $region9: #{bottleneck_forward.1} parent=1 // pred_fallthru
      _
    // Predicated region
    $region10: #{bottleneck_forward.1} parent=1 // pred_check
      _
    $region11: #{bottleneck_forward.1} parent=1 // pred_check_branch
      %42 = sbr.rel (0) target = $region13
    $region12: #{bottleneck_forward.1} parent=1 // pred_region
      %s44 = ssub.s32 256, 256
      %45 = vsyncadd [#allocation10], %s44
      %s47 = sshll.u32 [#allocation9], 4
      %s48 = int_to_ptr.vmem [resolvable:$true] %s47
      %50 = dma.hbm_to_vmem [thread:$0]  %s2, 256, %s48, [#allocation10]
    $region13: #{bottleneck_forward.1} parent=1 // pred_fallthru
      _
    // Predicated region
    $region14: #{bottleneck_forward.1} parent=1 // pred_check
      _
    $region15: #{bottleneck_forward.1} parent=1 // pred_check_branch
      %52 = sbr.rel (0) target = $region17
    $region16: #{bottleneck_forward.1} parent=1 // pred_region
      _
    $region17: #{bottleneck_forward.1} parent=1 // pred_fallthru
      _
    // Predicated region
    $region18: #{bottleneck_forward.1} parent=1 // pred_check
      _
    $region19: #{bottleneck_forward.1} parent=1 // pred_check_branch
      %54 = sbr.rel (0) target = $region21
    $region20: #{bottleneck_forward.1} parent=1 // pred_region
      %s56 = ssub.s32 16, 16
      %57 = vsyncadd [#allocation10], %s56
      %s59 = sshll.u32 [#allocation11], 4
      %s60 = int_to_ptr.vmem [resolvable:$true] %s59
      %62 = dma.hbm_to_vmem [thread:$0]  %s4, 16, %s60, [#allocation10]
    $region21: #{bottleneck_forward.1} parent=1 // pred_fallthru
      _
    // Predicated region
    $region22: #{bottleneck_forward.1} parent=1 // pred_check
      _
    $region23: #{bottleneck_forward.1} parent=1 // pred_check_branch
      %64 = sbr.rel (0) target = $region25
    $region24: #{bottleneck_forward.1} parent=1 // pred_region
      %s66 = ssub.s32 16, 16
      %67 = vsyncadd [#allocation13], %s66
      %s69 = sshll.u32 [#allocation12], 4
      %s70 = int_to_ptr.vmem [resolvable:$true] %s69
      %72 = dma.hbm_to_vmem [thread:$0]  %s5, 16, %s70, [#allocation13]
    $region25: #{bottleneck_forward.1} parent=1 // pred_fallthru
      _
    // Predicated region
    $region26: #{bottleneck_forward.1} parent=1 // pred_check
      _
    $region27: #{bottleneck_forward.1} parent=1 // pred_check_branch
      %74 = sbr.rel (0) target = $region29
    $region28: #{bottleneck_forward.1} parent=1 // pred_region
      %s76 = ssub.s32 8192, 8192
      %77 = vsyncadd [#allocation13], %s76
      %s78 = sshll.u32 [#allocation14], 4
      %s79 = int_to_ptr.vmem [resolvable:$true] %s78
      %84 = dma.hbm_to_vmem [thread:$0]  %s6, 8192, %s79, [#allocation13], 256, 256, 16
    $region29: #{bottleneck_forward.1} parent=1 // pred_fallthru
      _
    // Predicated region
    $region30: #{bottleneck_forward.1} parent=1 // pred_check
      _
    $region31: #{bottleneck_forward.1} parent=1 // pred_check_branch
      %86 = sbr.rel (0) target = $region33
    $region32: #{bottleneck_forward.1} parent=1 // pred_region
      %s88 = ssub.s32 32, 32
      %89 = vsyncadd [#allocation16], %s88
      %s91 = sshll.u32 [#allocation15], 4
      %s92 = int_to_ptr.vmem [resolvable:$true] %s91
      %94 = dma.hbm_to_vmem [thread:$0]  %s7, 32, %s92, [#allocation16]
    $region33: #{bottleneck_forward.1} parent=1 // pred_fallthru
      _
    // Predicated region
    $region34: #{bottleneck_forward.1} parent=1 // pred_check
      _
    $region35: #{bottleneck_forward.1} parent=1 // pred_check_branch
      %96 = sbr.rel (0) target = $region37
    $region36: #{bottleneck_forward.1} parent=1 // pred_region
      %s98 = ssub.s32 32, 32
      %99 = vsyncadd [#allocation16], %s98
      %s101 = sshll.u32 [#allocation17], 4
      %s102 = int_to_ptr.vmem [resolvable:$true] %s101
      %104 = dma.hbm_to_vmem [thread:$0]  %s8, 32, %s102, [#allocation16]
    $region37: #{bottleneck_forward.1} parent=1 // pred_fallthru
      _
    // Predicated region
    $region38: #{bottleneck_forward.1} parent=1 // pred_check
      _
    $region39: #{bottleneck_forward.1} parent=1 // pred_check_branch
      %106 = sbr.rel (0) target = $region41
    $region40: #{bottleneck_forward.1} parent=1 // pred_region
      %s108 = ssub.s32 32, 32
      %109 = vsyncadd [#allocation19], %s108
      %s111 = sshll.u32 [#allocation18], 4
      %s112 = int_to_ptr.vmem [resolvable:$true] %s111
      %114 = dma.hbm_to_vmem [thread:$0]  %s9, 32, %s112, [#allocation19]
    $region41: #{bottleneck_forward.1} parent=1 // pred_fallthru
      _
    // Predicated region
    $region42: #{bottleneck_forward.1} parent=1 // pred_check
      _
    $region43: #{bottleneck_forward.1} parent=1 // pred_check_branch
      %116 = sbr.rel (0) target = $region45
    $region44: #{bottleneck_forward.1} parent=1 // pred_region
      %s118 = ssub.s32 128, 128
      %119 = vsyncadd [#allocation19], %s118
      %s121 = sshll.u32 [#allocation20], 4
      %s122 = int_to_ptr.vmem [resolvable:$true] %s121
      %124 = dma.hbm_to_vmem [thread:$0]  %s10, 128, %s122, [#allocation19]
    $region45: #{bottleneck_forward.1} parent=1 // pred_fallthru
      _
    // Predicated region
    $region46: #{bottleneck_forward.1} parent=1 // pred_check
      _
    $region47: #{bottleneck_forward.1} parent=1 // pred_check_branch
      %126 = sbr.rel (0) target = $region49
    $region48: #{bottleneck_forward.1} parent=1 // pred_region
      %s128 = ssub.s32 64, 64
      %129 = vsyncadd [#allocation22], %s128
      %s131 = sshll.u32 [#allocation21], 4
      %s132 = int_to_ptr.vmem [resolvable:$true] %s131
      %134 = dma.hbm_to_vmem [thread:$0]  %s11, 64, %s132, [#allocation22]
    $region49: #{bottleneck_forward.1} parent=1 // pred_fallthru
      _
    // Predicated region
    $region50: #{bottleneck_forward.1} parent=1 // pred_check
      _
    $region51: #{bottleneck_forward.1} parent=1 // pred_check_branch
      %136 = sbr.rel (0) target = $region53
    $region52: #{bottleneck_forward.1} parent=1 // pred_region
      %s138 = ssub.s32 16, 16
      %139 = vsyncadd [#allocation22], %s138
      %s141 = sshll.u32 [#allocation23], 4
      %s142 = int_to_ptr.vmem [resolvable:$true] %s141
      %144 = dma.hbm_to_vmem [thread:$0]  %s12, 16, %s142, [#allocation22]
    $region53: #{bottleneck_forward.1} parent=1 // pred_fallthru
      _
    // Predicated region
    $region54: #{bottleneck_forward.1} parent=1 // pred_check
      _
    $region55: #{bottleneck_forward.1} parent=1 // pred_check_branch
      %146 = sbr.rel (0) target = $region57
    $region56: #{bottleneck_forward.1} parent=1 // pred_region
      _
    $region57: #{bottleneck_forward.1} parent=1 // pred_fallthru
      _
    // Predicated region
    $region58: #{bottleneck_forward.1} parent=1 // pred_check
      _
    $region59: #{bottleneck_forward.1} parent=1 // pred_check_branch
      %148 = sbr.rel (0) target = $region61
    $region60: #{bottleneck_forward.1} parent=1 // pred_region
      %149 = dma.done [#allocation7], 256
    $region61: #{bottleneck_forward.1} parent=1 // pred_fallthru
      _
    // Predicated region
    $region62: #{bottleneck_forward.1} parent=1 // pred_check
      _
    $region63: #{bottleneck_forward.1} parent=1 // pred_check_branch
      %151 = sbr.rel (0) target = $region65
    $region64: #{bottleneck_forward.1} parent=1 // pred_region
      %152 = dma.done [#allocation10], 256
    $region65: #{bottleneck_forward.1} parent=1 // pred_fallthru
      _
    // Predicated region
    $region66: #{bottleneck_forward.1} parent=1 // pred_check
      _
    $region67: #{bottleneck_forward.1} parent=1 // pred_check_branch
      %154 = sbr.rel (0) target = $region69
    $region68: #{bottleneck_forward.1} parent=1 // pred_region
      %155 = dma.done [#allocation10], 16
    $region69: #{bottleneck_forward.1} parent=1 // pred_fallthru
      _
    // Predicated region
    $region70: #{bottleneck_forward.1} parent=1 // pred_check
      _
    $region71: #{bottleneck_forward.1} parent=1 // pred_check_branch
      %157 = sbr.rel (0) target = $region73
    $region72: #{bottleneck_forward.1} parent=1 // pred_region
      %158 = dma.done [#allocation13], 16
    $region73: #{bottleneck_forward.1} parent=1 // pred_fallthru
      _
    // Predicated region
    $region74: #{bottleneck_forward.1} parent=1 // pred_check
      _
    $region75: #{bottleneck_forward.1} parent=1 // pred_check_branch
      %160 = sbr.rel (0) target = $region77
    $region76: #{bottleneck_forward.1} parent=1 // pred_region
      %161 = dma.done [#allocation13], 8192
    $region77: #{bottleneck_forward.1} parent=1 // pred_fallthru
      _
    // Predicated region
    $region78: #{bottleneck_forward.1} parent=1 // pred_check
      _
    $region79: #{bottleneck_forward.1} parent=1 // pred_check_branch
      %163 = sbr.rel (0) target = $region81
    $region80: #{bottleneck_forward.1} parent=1 // pred_region
      %164 = dma.done [#allocation16], 32
    $region81: #{bottleneck_forward.1} parent=1 // pred_fallthru
      _
    // Predicated region
    $region82: #{bottleneck_forward.1} parent=1 // pred_check
      _
    $region83: #{bottleneck_forward.1} parent=1 // pred_check_branch
      %166 = sbr.rel (0) target = $region85
    $region84: #{bottleneck_forward.1} parent=1 // pred_region
      %167 = dma.done [#allocation16], 32
    $region85: #{bottleneck_forward.1} parent=1 // pred_fallthru
      _
    // Predicated region
    $region86: #{bottleneck_forward.1} parent=1 // pred_check
      _
    $region87: #{bottleneck_forward.1} parent=1 // pred_check_branch
      %169 = sbr.rel (0) target = $region89
    $region88: #{bottleneck_forward.1} parent=1 // pred_region
      %170 = dma.done [#allocation19], 32
    $region89: #{bottleneck_forward.1} parent=1 // pred_fallthru
      _
    // Predicated region
    $region90: #{bottleneck_forward.1} parent=1 // pred_check
      _
    $region91: #{bottleneck_forward.1} parent=1 // pred_check_branch
      %172 = sbr.rel (0) target = $region93
    $region92: #{bottleneck_forward.1} parent=1 // pred_region
      %173 = dma.done [#allocation19], 128
    $region93: #{bottleneck_forward.1} parent=1 // pred_fallthru
      _
    // Predicated region
    $region94: #{bottleneck_forward.1} parent=1 // pred_check
      _
    $region95: #{bottleneck_forward.1} parent=1 // pred_check_branch
      %175 = sbr.rel (0) target = $region97
    $region96: #{bottleneck_forward.1} parent=1 // pred_region
      %176 = dma.done [#allocation22], 64
    $region97: #{bottleneck_forward.1} parent=1 // pred_fallthru
      _
    // Predicated region
    $region98: #{bottleneck_forward.1} parent=1 // pred_check
      _
    $region99: #{bottleneck_forward.1} parent=1 // pred_check_branch
      %178 = sbr.rel (0) target = $region101
    $region100: #{bottleneck_forward.1} parent=1 // pred_region
      %179 = dma.done [#allocation22], 16
    $region101: #{bottleneck_forward.1} parent=1 // pred_fallthru
      _
    %s181 = sshll.u32 1, 14
    %s182 = sxor.u32 4294967295, %s181
    %s184 = sld [smem:[#allocation0]]
    %s185 = sadd.s32 2, %s184
    %s187 = sshll.u32 7, 26
    %s188 = sxor.u32 4294967295, %s187
    %s189 = sand.u32 0, %s188
    %s190 = sshll.u32 %s185, 26
    %s191 = sor.u32 %s189, %s190
    %s192 = sshll.u32 [#allocation2], 4
    %s193 = int_to_ptr.vmem [resolvable:$true] %s192
    %196 = sst [smem:[#allocation26]] 1024
    %s197 = scalar_lea.smem [#allocation26], 1
    %198 = sst [smem:[%s197]] 1024
    %s199 = scalar_lea.smem [#allocation26], 2
    %200 = sst [smem:[%s199]] 8
    %s201 = scalar_lea.smem [#allocation26], 3
    %202 = sst [smem:[%s201]] 64
    %s203 = scalar_lea.smem [#allocation26], 4
    %204 = sst [smem:[%s203]] 128
    %s205 = scalar_lea.smem [#allocation26], 5
    %206 = sst [smem:[%s205]] 2
    %s207 = scalar_lea.smem [#allocation26], 6
    %208 = sst [smem:[%s207]] 512
    %s209 = scalar_lea.smem [#allocation26], 7
    %210 = sst [smem:[%s209]] 64
    %s211 = scalar_lea.smem [#allocation26], 8
    %212 = sst [smem:[%s211]] 4
    %214 = dma.general %s14, 131072, %s193, [#allocation5], [#allocation25], [#allocation26], %s191, 0
    %s215 = scalar_lea.sflag [#allocation5], 1
    %s217 = sshll.u32 1, 14
    %s218 = sxor.u32 4294967295, %s217
    %s220 = sadd.s32 2, %s184
    %s222 = sshll.u32 7, 26
    %s223 = sxor.u32 4294967295, %s222
    %s224 = sand.u32 0, %s223
    %s225 = sshll.u32 %s220, 26
    %s226 = sor.u32 %s224, %s225
    %s227 = sshll.u32 [#allocation3], 4
    %s228 = int_to_ptr.vmem [resolvable:$true] %s227
    %231 = sst [smem:[#allocation28]] 1024
    %s232 = scalar_lea.smem [#allocation28], 1
    %233 = sst [smem:[%s232]] 1024
    %s234 = scalar_lea.smem [#allocation28], 2
    %235 = sst [smem:[%s234]] 8
    %s236 = scalar_lea.smem [#allocation28], 3
    %237 = sst [smem:[%s236]] 64
    %s238 = scalar_lea.smem [#allocation28], 4
    %239 = sst [smem:[%s238]] 128
    %s240 = scalar_lea.smem [#allocation28], 5
    %241 = sst [smem:[%s240]] 2
    %s242 = scalar_lea.smem [#allocation28], 6
    %243 = sst [smem:[%s242]] 512
    %s244 = scalar_lea.smem [#allocation28], 7
    %245 = sst [smem:[%s244]] 64
    %s246 = scalar_lea.smem [#allocation28], 8
    %247 = sst [smem:[%s246]] 4
    %249 = dma.general %s15, 16384, %s228, %s215, [#allocation27], [#allocation28], %s226, 0
    %s250 = scalar_lea.sflag [#allocation5], 2
    %s252 = sshll.u32 1, 14
    %s253 = sxor.u32 4294967295, %s252
    %s255 = sadd.s32 2, %s184
    %s257 = sshll.u32 7, 26
    %s258 = sxor.u32 4294967295, %s257
    %s259 = sand.u32 0, %s258
    %s260 = sshll.u32 %s255, 26
    %s261 = sor.u32 %s259, %s260
    %s262 = sshll.u32 [#allocation4], 4
    %s263 = int_to_ptr.vmem [resolvable:$true] %s262
    %266 = sst [smem:[#allocation30]] 512
    %s267 = scalar_lea.smem [#allocation30], 1
    %268 = sst [smem:[%s267]] 512
    %s269 = scalar_lea.smem [#allocation30], 2
    %270 = sst [smem:[%s269]] 4
    %s271 = scalar_lea.smem [#allocation30], 3
    %272 = sst [smem:[%s271]] 64
    %s273 = scalar_lea.smem [#allocation30], 4
    %274 = sst [smem:[%s273]] 128
    %s275 = scalar_lea.smem [#allocation30], 5
    %276 = sst [smem:[%s275]] 2
    %s277 = scalar_lea.smem [#allocation30], 6
    %278 = sst [smem:[%s277]] 256
    %s279 = scalar_lea.smem [#allocation30], 7
    %280 = sst [smem:[%s279]] 64
    %s281 = scalar_lea.smem [#allocation30], 8
    %282 = sst [smem:[%s281]] 4
    %284 = dma.general %s16, 32768, %s263, %s250, [#allocation29], [#allocation30], %s261, 0
    %v285 = vld [vmem:[%s0] sm:$0xff]
    %v286 = vld [vmem:[%s0 + $0x8] sm:$0xff]
    %v287 = vld [vmem:[%s0 + $0x10] sm:$0xff]
    %v288 = vld [vmem:[%s0 + $0x18] sm:$0xff]
    %v289 = vld [vmem:[#allocation6] sm:$0xff]
    %v290 = vld [vmem:[#allocation6 + $0x8] sm:$0xff]
    %v293 = vlaneseq
    %v294 = vshrl.u32 %v293, 7
    %v295 = vsub.s32 0, %v294
    %v296 = vrot.slane %v289, %v295
    %v297 = vlaneseq
    %v298 = vshrl.u32 %v297, 7
    %v299 = vsub.s32 1, %v298
    %v300 = vrot.slane %v289, %v299
    %v301 = vlaneseq
    %v302 = vshrl.u32 %v301, 7
    %v303 = vsub.s32 2, %v302
    %v304 = vrot.slane %v289, %v303
    %v305 = vlaneseq
    %v306 = vshrl.u32 %v305, 7
    %v307 = vsub.s32 3, %v306
    %v308 = vrot.slane %v289, %v307
    %v309 = vlaneseq
    %v310 = vshrl.u32 %v309, 7
    %v311 = vsub.s32 4, %v310
    %v312 = vrot.slane %v289, %v311
    %v313 = vlaneseq
    %v314 = vshrl.u32 %v313, 7
    %v315 = vsub.s32 5, %v314
    %v316 = vrot.slane %v289, %v315
    %v317 = vlaneseq
    %v318 = vshrl.u32 %v317, 7
    %v319 = vsub.s32 6, %v318
    %v320 = vrot.slane %v289, %v319
    %v321 = vlaneseq
    %v322 = vshrl.u32 %v321, 7
    %v323 = vsub.s32 7, %v322
    %v324 = vrot.slane %v289, %v323
    %v325 = vlaneseq
    %v326 = vshrl.u32 %v325, 7
    %v327 = vsub.s32 0, %v326
    %v328 = vrot.slane %v290, %v327
    %v329 = vlaneseq
    %v330 = vshrl.u32 %v329, 7
    %v331 = vsub.s32 1, %v330
    %v332 = vrot.slane %v290, %v331
    %v333 = vlaneseq
    %v334 = vshrl.u32 %v333, 7
    %v335 = vsub.s32 2, %v334
    %v336 = vrot.slane %v290, %v335
    %v337 = vlaneseq
    %v338 = vshrl.u32 %v337, 7
    %v339 = vsub.s32 3, %v338
    %v340 = vrot.slane %v290, %v339
    %v341 = vlaneseq
    %v342 = vshrl.u32 %v341, 7
    %v343 = vsub.s32 4, %v342
    %v344 = vrot.slane %v290, %v343
    %v345 = vlaneseq
    %v346 = vshrl.u32 %v345, 7
    %v347 = vsub.s32 5, %v346
    %v348 = vrot.slane %v290, %v347
    %v349 = vlaneseq
    %v350 = vshrl.u32 %v349, 7
    %v351 = vsub.s32 6, %v350
    %v352 = vrot.slane %v290, %v351
    %v353 = vlaneseq
    %v354 = vshrl.u32 %v353, 7
    %v355 = vsub.s32 7, %v354
    %v356 = vrot.slane %v290, %v355
    %v357 = vcombine.low %v296, %v300
    %v358 = vcombine.low %v304, %v308
    %v360 = vunpack.c.l.s4 1983009808
    %v361 = vunpack.c.0.s8 %v360
    %v362 = vlaneseq
    %v363 = vshrl.u32 %v362, 7
    %v364 = vsub.s32 %v361, %v363
    %v365 = vrot.slane %v357, %v364
    %v367 = vunpack.c.l.s4 1983009808
    %v368 = vunpack.c.0.s8 %v367
    %v369 = vlaneseq
    %v370 = vshrl.u32 %v369, 7
    %v371 = vsub.s32 %v368, %v370
    %v372 = vrot.slane %v358, %v371
    %v373 = vcombine.low %v365, %v372
    %v374 = vcombine.low %v312, %v316
    %v375 = vcombine.low %v320, %v324
    %v377 = vunpack.c.l.s4 1983009808
    %v378 = vunpack.c.0.s8 %v377
    %v379 = vlaneseq
    %v380 = vshrl.u32 %v379, 7
    %v381 = vsub.s32 %v378, %v380
    %v382 = vrot.slane %v374, %v381
    %v384 = vunpack.c.l.s4 1983009808
    %v385 = vunpack.c.0.s8 %v384
    %v386 = vlaneseq
    %v387 = vshrl.u32 %v386, 7
    %v388 = vsub.s32 %v385, %v387
    %v389 = vrot.slane %v375, %v388
    %v390 = vcombine.low %v382, %v389
    %v391 = vcombine.low %v328, %v332
    %v392 = vcombine.low %v336, %v340
    %v394 = vunpack.c.l.s4 1983009808
    %v395 = vunpack.c.0.s8 %v394
    %v396 = vlaneseq
    %v397 = vshrl.u32 %v396, 7
    %v398 = vsub.s32 %v395, %v397
    %v399 = vrot.slane %v391, %v398
    %v401 = vunpack.c.l.s4 1983009808
    %v402 = vunpack.c.0.s8 %v401
    %v403 = vlaneseq
    %v404 = vshrl.u32 %v403, 7
    %v405 = vsub.s32 %v402, %v404
    %v406 = vrot.slane %v392, %v405
    %v407 = vcombine.low %v399, %v406
    %v408 = vcombine.low %v344, %v348
    %v409 = vcombine.low %v352, %v356
    %v411 = vunpack.c.l.s4 1983009808
    %v412 = vunpack.c.0.s8 %v411
    %v413 = vlaneseq
    %v414 = vshrl.u32 %v413, 7
    %v415 = vsub.s32 %v412, %v414
    %v416 = vrot.slane %v408, %v415
    %v418 = vunpack.c.l.s4 1983009808
    %v419 = vunpack.c.0.s8 %v418
    %v420 = vlaneseq
    %v421 = vshrl.u32 %v420, 7
    %v422 = vsub.s32 %v419, %v421
    %v423 = vrot.slane %v409, %v422
    %v424 = vcombine.low %v416, %v423
    %v429 = vmul.f32 %v285, %v373
    %v430 = vmul.f32 %v286, %v390
    %v431 = vmul.f32 %v287, %v407
    %v432 = vmul.f32 %v288, %v424
    %v433 = vld [vmem:[#allocation9] sm:$0xff]
    %v434 = vld [vmem:[#allocation9 + $0x8] sm:$0xff]
    %v437 = vlaneseq
    %v438 = vshrl.u32 %v437, 7
    %v439 = vsub.s32 0, %v438
    %v440 = vrot.slane %v433, %v439
    %v441 = vlaneseq
    %v442 = vshrl.u32 %v441, 7
    %v443 = vsub.s32 1, %v442
    %v444 = vrot.slane %v433, %v443
    %v445 = vlaneseq
    %v446 = vshrl.u32 %v445, 7
    %v447 = vsub.s32 2, %v446
    %v448 = vrot.slane %v433, %v447
    %v449 = vlaneseq
    %v450 = vshrl.u32 %v449, 7
    %v451 = vsub.s32 3, %v450
    %v452 = vrot.slane %v433, %v451
    %v453 = vlaneseq
    %v454 = vshrl.u32 %v453, 7
    %v455 = vsub.s32 4, %v454
    %v456 = vrot.slane %v433, %v455
    %v457 = vlaneseq
    %v458 = vshrl.u32 %v457, 7
    %v459 = vsub.s32 5, %v458
    %v460 = vrot.slane %v433, %v459
    %v461 = vlaneseq
    %v462 = vshrl.u32 %v461, 7
    %v463 = vsub.s32 6, %v462
    %v464 = vrot.slane %v433, %v463
    %v465 = vlaneseq
    %v466 = vshrl.u32 %v465, 7
    %v467 = vsub.s32 7, %v466
    %v468 = vrot.slane %v433, %v467
    %v469 = vlaneseq
    %v470 = vshrl.u32 %v469, 7
    %v471 = vsub.s32 0, %v470
    %v472 = vrot.slane %v434, %v471
    %v473 = vlaneseq
    %v474 = vshrl.u32 %v473, 7
    %v475 = vsub.s32 1, %v474
    %v476 = vrot.slane %v434, %v475
    %v477 = vlaneseq
    %v478 = vshrl.u32 %v477, 7
    %v479 = vsub.s32 2, %v478
    %v480 = vrot.slane %v434, %v479
    %v481 = vlaneseq
    %v482 = vshrl.u32 %v481, 7
    %v483 = vsub.s32 3, %v482
    %v484 = vrot.slane %v434, %v483
    %v485 = vlaneseq
    %v486 = vshrl.u32 %v485, 7
    %v487 = vsub.s32 4, %v486
    %v488 = vrot.slane %v434, %v487
    %v489 = vlaneseq
    %v490 = vshrl.u32 %v489, 7
    %v491 = vsub.s32 5, %v490
    %v492 = vrot.slane %v434, %v491
    %v493 = vlaneseq
    %v494 = vshrl.u32 %v493, 7
    %v495 = vsub.s32 6, %v494
    %v496 = vrot.slane %v434, %v495
    %v497 = vlaneseq
    %v498 = vshrl.u32 %v497, 7
    %v499 = vsub.s32 7, %v498
    %v500 = vrot.slane %v434, %v499
    %v501 = vcombine.low %v440, %v444
    %v502 = vcombine.low %v448, %v452
    %v504 = vunpack.c.l.s4 1983009808
    %v505 = vunpack.c.0.s8 %v504
    %v506 = vlaneseq
    %v507 = vshrl.u32 %v506, 7
    %v508 = vsub.s32 %v505, %v507
    %v509 = vrot.slane %v501, %v508
    %v511 = vunpack.c.l.s4 1983009808
    %v512 = vunpack.c.0.s8 %v511
    %v513 = vlaneseq
    %v514 = vshrl.u32 %v513, 7
    %v515 = vsub.s32 %v512, %v514
    %v516 = vrot.slane %v502, %v515
    %v517 = vcombine.low %v509, %v516
    %v518 = vcombine.low %v456, %v460
    %v519 = vcombine.low %v464, %v468
    %v521 = vunpack.c.l.s4 1983009808
    %v522 = vunpack.c.0.s8 %v521
    %v523 = vlaneseq
    %v524 = vshrl.u32 %v523, 7
    %v525 = vsub.s32 %v522, %v524
    %v526 = vrot.slane %v518, %v525
    %v528 = vunpack.c.l.s4 1983009808
    %v529 = vunpack.c.0.s8 %v528
    %v530 = vlaneseq
    %v531 = vshrl.u32 %v530, 7
    %v532 = vsub.s32 %v529, %v531
    %v533 = vrot.slane %v519, %v532
    %v534 = vcombine.low %v526, %v533
    %v535 = vcombine.low %v472, %v476
    %v536 = vcombine.low %v480, %v484
    %v538 = vunpack.c.l.s4 1983009808
    %v539 = vunpack.c.0.s8 %v538
    %v540 = vlaneseq
    %v541 = vshrl.u32 %v540, 7
    %v542 = vsub.s32 %v539, %v541
    %v543 = vrot.slane %v535, %v542
    %v545 = vunpack.c.l.s4 1983009808
    %v546 = vunpack.c.0.s8 %v545
    %v547 = vlaneseq
    %v548 = vshrl.u32 %v547, 7
    %v549 = vsub.s32 %v546, %v548
    %v550 = vrot.slane %v536, %v549
    %v551 = vcombine.low %v543, %v550
    %v552 = vcombine.low %v488, %v492
    %v553 = vcombine.low %v496, %v500
    %v555 = vunpack.c.l.s4 1983009808
    %v556 = vunpack.c.0.s8 %v555
    %v557 = vlaneseq
    %v558 = vshrl.u32 %v557, 7
    %v559 = vsub.s32 %v556, %v558
    %v560 = vrot.slane %v552, %v559
    %v562 = vunpack.c.l.s4 1983009808
    %v563 = vunpack.c.0.s8 %v562
    %v564 = vlaneseq
    %v565 = vshrl.u32 %v564, 7
    %v566 = vsub.s32 %v563, %v565
    %v567 = vrot.slane %v553, %v566
    %v568 = vcombine.low %v560, %v567
    %v573 = vadd.f32 %v429, %v517
    %v574 = vadd.f32 %v430, %v534
    %v575 = vadd.f32 %v431, %v551
    %v576 = vadd.f32 %v432, %v568
    %v577 = vmax.f32 %v573, 0.0
    %v578 = vmax.f32 %v574, 0.0
    %v579 = vmax.f32 %v575, 0.0
    %v580 = vmax.f32 %v576, 0.0
    %v581 = vld [vmem:[%s3] sm:$0xff]
    %v582 = vld [vmem:[%s3 + $0x8] sm:$0xff]
    %v583 = vld [vmem:[%s3 + $0x10] sm:$0xff]
    %v584 = vld [vmem:[%s3 + $0x18] sm:$0xff]
    %v585 = vld [vmem:[%s3 + $0x20] sm:$0xff]
    %v586 = vld [vmem:[%s3 + $0x28] sm:$0xff]
    %v587 = vld [vmem:[%s3 + $0x30] sm:$0xff]
    %v588 = vld [vmem:[%s3 + $0x38] sm:$0xff]
    %v589 = vld [vmem:[%s3 + $0x40] sm:$0xff]
    %v590 = vld [vmem:[%s3 + $0x48] sm:$0xff]
    %v591 = vld [vmem:[%s3 + $0x50] sm:$0xff]
    %v592 = vld [vmem:[%s3 + $0x58] sm:$0xff]
    %v593 = vld [vmem:[%s3 + $0x60] sm:$0xff]
    %v594 = vld [vmem:[%s3 + $0x68] sm:$0xff]
    %v595 = vld [vmem:[%s3 + $0x70] sm:$0xff]
    %v596 = vld [vmem:[%s3 + $0x78] sm:$0xff]
    %v597 = vld [vmem:[%s3 + $0x80] sm:$0xff]
    %v598 = vld [vmem:[%s3 + $0x88] sm:$0xff]
    %v599 = vld [vmem:[%s3 + $0x90] sm:$0xff]
    %v600 = vld [vmem:[%s3 + $0x98] sm:$0xff]
    %v601 = vld [vmem:[%s3 + $0xa0] sm:$0xff]
    %v602 = vld [vmem:[%s3 + $0xa8] sm:$0xff]
    %v603 = vld [vmem:[%s3 + $0xb0] sm:$0xff]
    %v604 = vld [vmem:[%s3 + $0xb8] sm:$0xff]
    %v605 = vld [vmem:[%s3 + $0xc0] sm:$0xff]
    %v606 = vld [vmem:[%s3 + $0xc8] sm:$0xff]
    %v607 = vld [vmem:[%s3 + $0xd0] sm:$0xff]
    %v608 = vld [vmem:[%s3 + $0xd8] sm:$0xff]
    %v609 = vld [vmem:[%s3 + $0xe0] sm:$0xff]
    %v610 = vld [vmem:[%s3 + $0xe8] sm:$0xff]
    %v611 = vld [vmem:[%s3 + $0xf0] sm:$0xff]
    %v612 = vld [vmem:[%s3 + $0xf8] sm:$0xff]
    %v613 = vld [vmem:[%s3 + $0x100] sm:$0xff]
    %v614 = vld [vmem:[%s3 + $0x108] sm:$0xff]
    %v615 = vld [vmem:[%s3 + $0x110] sm:$0xff]
    %v616 = vld [vmem:[%s3 + $0x118] sm:$0xff]
    %v617 = vld [vmem:[%s3 + $0x120] sm:$0xff]
    %v618 = vld [vmem:[%s3 + $0x128] sm:$0xff]
    %v619 = vld [vmem:[%s3 + $0x130] sm:$0xff]
    %v620 = vld [vmem:[%s3 + $0x138] sm:$0xff]
    %v621 = vld [vmem:[%s3 + $0x140] sm:$0xff]
    %v622 = vld [vmem:[%s3 + $0x148] sm:$0xff]
    %v623 = vld [vmem:[%s3 + $0x150] sm:$0xff]
    %v624 = vld [vmem:[%s3 + $0x158] sm:$0xff]
    %v625 = vld [vmem:[%s3 + $0x160] sm:$0xff]
    %v626 = vld [vmem:[%s3 + $0x168] sm:$0xff]
    %v627 = vld [vmem:[%s3 + $0x170] sm:$0xff]
    %v628 = vld [vmem:[%s3 + $0x178] sm:$0xff]
    %v629 = vld [vmem:[%s3 + $0x180] sm:$0xff]
    %v630 = vld [vmem:[%s3 + $0x188] sm:$0xff]
    %v631 = vld [vmem:[%s3 + $0x190] sm:$0xff]
    %v632 = vld [vmem:[%s3 + $0x198] sm:$0xff]
    %v633 = vld [vmem:[%s3 + $0x1a0] sm:$0xff]
    %v634 = vld [vmem:[%s3 + $0x1a8] sm:$0xff]
    %v635 = vld [vmem:[%s3 + $0x1b0] sm:$0xff]
    %v636 = vld [vmem:[%s3 + $0x1b8] sm:$0xff]
    %v637 = vld [vmem:[%s3 + $0x1c0] sm:$0xff]
    %v638 = vld [vmem:[%s3 + $0x1c8] sm:$0xff]
    %v639 = vld [vmem:[%s3 + $0x1d0] sm:$0xff]
    %v640 = vld [vmem:[%s3 + $0x1d8] sm:$0xff]
    %v641 = vld [vmem:[%s3 + $0x1e0] sm:$0xff]
    %v642 = vld [vmem:[%s3 + $0x1e8] sm:$0xff]
    %v643 = vld [vmem:[%s3 + $0x1f0] sm:$0xff]
    %v644 = vld [vmem:[%s3 + $0x1f8] sm:$0xff]
    %v645 = vld [vmem:[#allocation11] sm:$0x1]
    %v646 = vld [vmem:[#allocation12] sm:$0x1]
    %v648 = vcombine.high %v577, %v577
    %v650 = vunpack.c.l.s4 1983009808
    %v651 = vunpack.c.0.s8 %v650
    %v652 = vlaneseq
    %v653 = vshrl.u32 %v652, 7
    %v654 = vsub.s32 %v651, %v653
    %v655 = vrot.slane %v577, %v654
    %v657 = vunpack.c.l.s4 1983009808
    %v658 = vunpack.c.0.s8 %v657
    %v659 = vlaneseq
    %v660 = vshrl.u32 %v659, 7
    %v661 = vsub.s32 %v658, %v660
    %v662 = vrot.slane %v648, %v661
    %v663 = vcombine.high %v655, %v655
    %v664 = vcombine.high %v662, %v662
    %669 = vmatprep.subr.mxu0 0.0
    %670 = vmatpush1.msra.mxu0 %v581
    %671 = vmatprep.subr.mxu0 0.0
    %672 = vmatpush1.msra.mxu0 %v582
    %673 = vmatprep.subr.mxu0 0.0
    %674 = vmatpush1.msra.mxu0 %v583
    %675 = vmatprep.subr.mxu0 0.0
    %676 = vmatpush1.msra.mxu0 %v584
    %677 = vmatprep.subr.mxu0 0.0
    %678 = vmatpush1.msra.mxu0 %v585
    %679 = vmatprep.subr.mxu0 0.0
    %680 = vmatpush1.msra.mxu0 %v586
    %681 = vmatprep.subr.mxu0 0.0
    %682 = vmatpush1.msra.mxu0 %v587
    %683 = vmatprep.subr.mxu0 0.0
    %684 = vmatpush1.msra.mxu0 %v588
    %685 = vmatprep.subr.mxu0 0.0
    %686 = vmatpush1.msra.mxu0 %v589
    %687 = vmatprep.subr.mxu0 0.0
    %688 = vmatpush1.msra.mxu0 %v590
    %689 = vmatprep.subr.mxu0 0.0
    %690 = vmatpush1.msra.mxu0 %v591
    %691 = vmatprep.subr.mxu0 0.0
    %692 = vmatpush1.msra.mxu0 %v592
    %693 = vmatprep.subr.mxu0 0.0
    %694 = vmatpush1.msra.mxu0 %v593
    %695 = vmatprep.subr.mxu0 0.0
    %696 = vmatpush1.msra.mxu0 %v594
    %697 = vmatprep.subr.mxu0 0.0
    %698 = vmatpush1.msra.mxu0 %v595
    %699 = vmatprep.subr.mxu0 0.0
    %700 = vmatpush1.msra.mxu0 %v596
    %701 = vmatprep.subr.mxu0 0.0
    %702 = vmatpush1.msra.mxu0 %v597
    %703 = vmatprep.subr.mxu0 0.0
    %704 = vmatpush1.msra.mxu0 %v598
    %705 = vmatprep.subr.mxu0 0.0
    %706 = vmatpush1.msra.mxu0 %v599
    %707 = vmatprep.subr.mxu0 0.0
    %708 = vmatpush1.msra.mxu0 %v600
    %709 = vmatprep.subr.mxu0 0.0
    %710 = vmatpush1.msra.mxu0 %v601
    %711 = vmatprep.subr.mxu0 0.0
    %712 = vmatpush1.msra.mxu0 %v602
    %713 = vmatprep.subr.mxu0 0.0
    %714 = vmatpush1.msra.mxu0 %v603
    %715 = vmatprep.subr.mxu0 0.0
    %716 = vmatpush1.msra.mxu0 %v604
    %717 = vmatprep.subr.mxu0 0.0
    %718 = vmatpush1.msra.mxu0 %v605
    %719 = vmatprep.subr.mxu0 0.0
    %720 = vmatpush1.msra.mxu0 %v606
    %721 = vmatprep.subr.mxu0 0.0
    %722 = vmatpush1.msra.mxu0 %v607
    %723 = vmatprep.subr.mxu0 0.0
    %724 = vmatpush1.msra.mxu0 %v608
    %725 = vmatprep.subr.mxu0 0.0
    %726 = vmatpush1.msra.mxu0 %v609
    %727 = vmatprep.subr.mxu0 0.0
    %728 = vmatpush1.msra.mxu0 %v610
    %729 = vmatprep.subr.mxu0 0.0
    %730 = vmatpush1.msra.mxu0 %v611
    %731 = vmatprep.subr.mxu0 0.0
    %732 = vmatpush1.msra.mxu0 %v612
    %733 = vmatprep.mubr.f32.mxu0 %v663
    %734 = vmatmul.mubr.f32.gmra.mrb[0].mxu0 %v655
    %v735 = vpop.f32.mrb[0].mxu0
    %v736 = vadd.f32 0.0, %v735
    %v737 = vpop.f32.mrb[0].mxu0
    %738 = vdwg.mxu0
    %739 = vmatprep.subr.mxu0 0.0
    %740 = vmatpush1.msra.mxu0 %v613
    %741 = vmatprep.subr.mxu0 0.0
    %742 = vmatpush1.msra.mxu0 %v614
    %743 = vmatprep.subr.mxu0 0.0
    %744 = vmatpush1.msra.mxu0 %v615
    %745 = vmatprep.subr.mxu0 0.0
    %746 = vmatpush1.msra.mxu0 %v616
    %747 = vmatprep.subr.mxu0 0.0
    %748 = vmatpush1.msra.mxu0 %v617
    %749 = vmatprep.subr.mxu0 0.0
    %750 = vmatpush1.msra.mxu0 %v618
    %751 = vmatprep.subr.mxu0 0.0
    %752 = vmatpush1.msra.mxu0 %v619
    %753 = vmatprep.subr.mxu0 0.0
    %754 = vmatpush1.msra.mxu0 %v620
    %755 = vmatprep.subr.mxu0 0.0
    %756 = vmatpush1.msra.mxu0 %v621
    %757 = vmatprep.subr.mxu0 0.0
    %758 = vmatpush1.msra.mxu0 %v622
    %759 = vmatprep.subr.mxu0 0.0
    %760 = vmatpush1.msra.mxu0 %v623
    %761 = vmatprep.subr.mxu0 0.0
    %762 = vmatpush1.msra.mxu0 %v624
    %763 = vmatprep.subr.mxu0 0.0
    %764 = vmatpush1.msra.mxu0 %v625
    %765 = vmatprep.subr.mxu0 0.0
    %766 = vmatpush1.msra.mxu0 %v626
    %767 = vmatprep.subr.mxu0 0.0
    %768 = vmatpush1.msra.mxu0 %v627
    %769 = vmatprep.subr.mxu0 0.0
    %770 = vmatpush1.msra.mxu0 %v628
    %771 = vmatprep.subr.mxu0 0.0
    %772 = vmatpush1.msra.mxu0 %v629
    %773 = vmatprep.subr.mxu0 0.0
    %774 = vmatpush1.msra.mxu0 %v630
    %775 = vmatprep.subr.mxu0 0.0
    %776 = vmatpush1.msra.mxu0 %v631
    %777 = vmatprep.subr.mxu0 0.0
    %778 = vmatpush1.msra.mxu0 %v632
    %779 = vmatprep.subr.mxu0 0.0
    %780 = vmatpush1.msra.mxu0 %v633
    %781 = vmatprep.subr.mxu0 0.0
    %782 = vmatpush1.msra.mxu0 %v634
    %783 = vmatprep.subr.mxu0 0.0
    %784 = vmatpush1.msra.mxu0 %v635
    %785 = vmatprep.subr.mxu0 0.0
    %786 = vmatpush1.msra.mxu0 %v636
    %787 = vmatprep.subr.mxu0 0.0
    %788 = vmatpush1.msra.mxu0 %v637
    %789 = vmatprep.subr.mxu0 0.0
    %790 = vmatpush1.msra.mxu0 %v638
    %791 = vmatprep.subr.mxu0 0.0
    %792 = vmatpush1.msra.mxu0 %v639
    %793 = vmatprep.subr.mxu0 0.0
    %794 = vmatpush1.msra.mxu0 %v640
    %795 = vmatprep.subr.mxu0 0.0
    %796 = vmatpush1.msra.mxu0 %v641
    %797 = vmatprep.subr.mxu0 0.0
    %798 = vmatpush1.msra.mxu0 %v642
    %799 = vmatprep.subr.mxu0 0.0
    %800 = vmatpush1.msra.mxu0 %v643
    %801 = vmatprep.subr.mxu0 0.0
    %802 = vmatpush1.msra.mxu0 %v644
    %803 = vmatprep.mubr.f32.mxu0 %v664
    %804 = vmatmul.mubr.f32.gmra.mrb[0].mxu0 %v662
    %v805 = vpop.f32.mrb[0].mxu0
    %v806 = vadd.f32 %v736, %v805
    %v807 = vpop.f32.mrb[0].mxu0
    %808 = vdwg.mxu0
    %v810 = vlaneseq
    %v811 = vshrl.u32 %v810, 7
    %v812 = vsub.s32 0, %v811
    %v813 = vrot.slane %v645, %v812
    %v815 = vmul.f32 %v806, %v813
    %v817 = vlaneseq
    %v818 = vshrl.u32 %v817, 7
    %v819 = vsub.s32 0, %v818
    %v820 = vrot.slane %v646, %v819
    %v822 = vadd.f32 %v815, %v820
    %v823 = vmax.f32 %v822, 0.0
    %v824 = vld [vmem:[#allocation14] sm:$0xff]
    %v825 = vld [vmem:[#allocation14 + $0x8] sm:$0xff]
    %v826 = vld [vmem:[#allocation14 + $0x10] sm:$0xff]
    %v827 = vld [vmem:[#allocation14 + $0x18] sm:$0xff]
    %v828 = vld [vmem:[#allocation14 + $0x20] sm:$0xff]
    %v829 = vld [vmem:[#allocation14 + $0x28] sm:$0xff]
    %v830 = vld [vmem:[#allocation14 + $0x30] sm:$0xff]
    %v831 = vld [vmem:[#allocation14 + $0x38] sm:$0xff]
    %v832 = vld [vmem:[#allocation14 + $0x40] sm:$0xff]
    %v833 = vld [vmem:[#allocation14 + $0x48] sm:$0xff]
    %v834 = vld [vmem:[#allocation14 + $0x50] sm:$0xff]
    %v835 = vld [vmem:[#allocation14 + $0x58] sm:$0xff]
    %v836 = vld [vmem:[#allocation14 + $0x60] sm:$0xff]
    %v837 = vld [vmem:[#allocation14 + $0x68] sm:$0xff]
    %v838 = vld [vmem:[#allocation14 + $0x70] sm:$0xff]
    %v839 = vld [vmem:[#allocation14 + $0x78] sm:$0xff]
    %v841 = vcombine.high %v578, %v578
    %v843 = vunpack.c.l.s4 1983009808
    %v844 = vunpack.c.0.s8 %v843
    %v845 = vlaneseq
    %v846 = vshrl.u32 %v845, 7
    %v847 = vsub.s32 %v844, %v846
    %v848 = vrot.slane %v578, %v847
    %v850 = vunpack.c.l.s4 1983009808
    %v851 = vunpack.c.0.s8 %v850
    %v852 = vlaneseq
    %v853 = vshrl.u32 %v852, 7
    %v854 = vsub.s32 %v851, %v853
    %v855 = vrot.slane %v841, %v854
    %v856 = vcombine.high %v848, %v848
    %v857 = vcombine.high %v855, %v855
    %862 = vmatprep.subr.mxu0 0.0
    %863 = vmatpush1.msra.mxu0 %v581
    %864 = vmatprep.subr.mxu0 0.0
    %865 = vmatpush1.msra.mxu0 %v582
    %866 = vmatprep.subr.mxu0 0.0
    %867 = vmatpush1.msra.mxu0 %v583
    %868 = vmatprep.subr.mxu0 0.0
    %869 = vmatpush1.msra.mxu0 %v584
    %870 = vmatprep.subr.mxu0 0.0
    %871 = vmatpush1.msra.mxu0 %v585
    %872 = vmatprep.subr.mxu0 0.0
    %873 = vmatpush1.msra.mxu0 %v586
    %874 = vmatprep.subr.mxu0 0.0
    %875 = vmatpush1.msra.mxu0 %v587
    %876 = vmatprep.subr.mxu0 0.0
    %877 = vmatpush1.msra.mxu0 %v588
    %878 = vmatprep.subr.mxu0 0.0
    %879 = vmatpush1.msra.mxu0 %v589
    %880 = vmatprep.subr.mxu0 0.0
    %881 = vmatpush1.msra.mxu0 %v590
    %882 = vmatprep.subr.mxu0 0.0
    %883 = vmatpush1.msra.mxu0 %v591
    %884 = vmatprep.subr.mxu0 0.0
    %885 = vmatpush1.msra.mxu0 %v592
    %886 = vmatprep.subr.mxu0 0.0
    %887 = vmatpush1.msra.mxu0 %v593
    %888 = vmatprep.subr.mxu0 0.0
    %889 = vmatpush1.msra.mxu0 %v594
    %890 = vmatprep.subr.mxu0 0.0
    %891 = vmatpush1.msra.mxu0 %v595
    %892 = vmatprep.subr.mxu0 0.0
    %893 = vmatpush1.msra.mxu0 %v596
    %894 = vmatprep.subr.mxu0 0.0
    %895 = vmatpush1.msra.mxu0 %v597
    %896 = vmatprep.subr.mxu0 0.0
    %897 = vmatpush1.msra.mxu0 %v598
    %898 = vmatprep.subr.mxu0 0.0
    %899 = vmatpush1.msra.mxu0 %v599
    %900 = vmatprep.subr.mxu0 0.0
    %901 = vmatpush1.msra.mxu0 %v600
    %902 = vmatprep.subr.mxu0 0.0
    %903 = vmatpush1.msra.mxu0 %v601
    %904 = vmatprep.subr.mxu0 0.0
    %905 = vmatpush1.msra.mxu0 %v602
    %906 = vmatprep.subr.mxu0 0.0
    %907 = vmatpush1.msra.mxu0 %v603
    %908 = vmatprep.subr.mxu0 0.0
    %909 = vmatpush1.msra.mxu0 %v604
    %910 = vmatprep.subr.mxu0 0.0
    %911 = vmatpush1.msra.mxu0 %v605
    %912 = vmatprep.subr.mxu0 0.0
    %913 = vmatpush1.msra.mxu0 %v606
    %914 = vmatprep.subr.mxu0 0.0
    %915 = vmatpush1.msra.mxu0 %v607
    %916 = vmatprep.subr.mxu0 0.0
    %917 = vmatpush1.msra.mxu0 %v608
    %918 = vmatprep.subr.mxu0 0.0
    %919 = vmatpush1.msra.mxu0 %v609
    %920 = vmatprep.subr.mxu0 0.0
    %921 = vmatpush1.msra.mxu0 %v610
    %922 = vmatprep.subr.mxu0 0.0
    %923 = vmatpush1.msra.mxu0 %v611
    %924 = vmatprep.subr.mxu0 0.0
    %925 = vmatpush1.msra.mxu0 %v612
    %926 = vmatprep.mubr.f32.mxu0 %v856
    %927 = vmatmul.mubr.f32.gmra.mrb[0].mxu0 %v848
    %v928 = vpop.f32.mrb[0].mxu0
    %v929 = vadd.f32 0.0, %v928
    %v930 = vpop.f32.mrb[0].mxu0
    %931 = vdwg.mxu0
    %932 = vmatprep.subr.mxu0 0.0
    %933 = vmatpush1.msra.mxu0 %v613
    %934 = vmatprep.subr.mxu0 0.0
    %935 = vmatpush1.msra.mxu0 %v614
    %936 = vmatprep.subr.mxu0 0.0
    %937 = vmatpush1.msra.mxu0 %v615
    %938 = vmatprep.subr.mxu0 0.0
    %939 = vmatpush1.msra.mxu0 %v616
    %940 = vmatprep.subr.mxu0 0.0
    %941 = vmatpush1.msra.mxu0 %v617
    %942 = vmatprep.subr.mxu0 0.0
    %943 = vmatpush1.msra.mxu0 %v618
    %944 = vmatprep.subr.mxu0 0.0
    %945 = vmatpush1.msra.mxu0 %v619
    %946 = vmatprep.subr.mxu0 0.0
    %947 = vmatpush1.msra.mxu0 %v620
    %948 = vmatprep.subr.mxu0 0.0
    %949 = vmatpush1.msra.mxu0 %v621
    %950 = vmatprep.subr.mxu0 0.0
    %951 = vmatpush1.msra.mxu0 %v622
    %952 = vmatprep.subr.mxu0 0.0
    %953 = vmatpush1.msra.mxu0 %v623
    %954 = vmatprep.subr.mxu0 0.0
    %955 = vmatpush1.msra.mxu0 %v624
    %956 = vmatprep.subr.mxu0 0.0
    %957 = vmatpush1.msra.mxu0 %v625
    %958 = vmatprep.subr.mxu0 0.0
    %959 = vmatpush1.msra.mxu0 %v626
    %960 = vmatprep.subr.mxu0 0.0
    %961 = vmatpush1.msra.mxu0 %v627
    %962 = vmatprep.subr.mxu0 0.0
    %963 = vmatpush1.msra.mxu0 %v628
    %964 = vmatprep.subr.mxu0 0.0
    %965 = vmatpush1.msra.mxu0 %v629
    %966 = vmatprep.subr.mxu0 0.0
    %967 = vmatpush1.msra.mxu0 %v630
    %968 = vmatprep.subr.mxu0 0.0
    %969 = vmatpush1.msra.mxu0 %v631
    %970 = vmatprep.subr.mxu0 0.0
    %971 = vmatpush1.msra.mxu0 %v632
    %972 = vmatprep.subr.mxu0 0.0
    %973 = vmatpush1.msra.mxu0 %v633
    %974 = vmatprep.subr.mxu0 0.0
    %975 = vmatpush1.msra.mxu0 %v634
    %976 = vmatprep.subr.mxu0 0.0
    %977 = vmatpush1.msra.mxu0 %v635
    %978 = vmatprep.subr.mxu0 0.0
    %979 = vmatpush1.msra.mxu0 %v636
    %980 = vmatprep.subr.mxu0 0.0
    %981 = vmatpush1.msra.mxu0 %v637
    %982 = vmatprep.subr.mxu0 0.0
    %983 = vmatpush1.msra.mxu0 %v638
    %984 = vmatprep.subr.mxu0 0.0
    %985 = vmatpush1.msra.mxu0 %v639
    %986 = vmatprep.subr.mxu0 0.0
    %987 = vmatpush1.msra.mxu0 %v640
    %988 = vmatprep.subr.mxu0 0.0
    %989 = vmatpush1.msra.mxu0 %v641
    %990 = vmatprep.subr.mxu0 0.0
    %991 = vmatpush1.msra.mxu0 %v642
    %992 = vmatprep.subr.mxu0 0.0
    %993 = vmatpush1.msra.mxu0 %v643
    %994 = vmatprep.subr.mxu0 0.0
    %995 = vmatpush1.msra.mxu0 %v644
    %996 = vmatprep.mubr.f32.mxu0 %v857
    %997 = vmatmul.mubr.f32.gmra.mrb[0].mxu0 %v855
    %v998 = vpop.f32.mrb[0].mxu0
    %v999 = vadd.f32 %v929, %v998
    %v1000 = vpop.f32.mrb[0].mxu0
    %1001 = vdwg.mxu0
    %v1002 = vmul.f32 %v999, %v813
    %v1003 = vadd.f32 %v1002, %v820
    %v1004 = vmax.f32 %v1003, 0.0
    %v1005 = vld [vmem:[#allocation14 + $0x80] sm:$0xff]
    %v1006 = vld [vmem:[#allocation14 + $0x88] sm:$0xff]
    %v1007 = vld [vmem:[#allocation14 + $0x90] sm:$0xff]
    %v1008 = vld [vmem:[#allocation14 + $0x98] sm:$0xff]
    %v1009 = vld [vmem:[#allocation14 + $0xa0] sm:$0xff]
    %v1010 = vld [vmem:[#allocation14 + $0xa8] sm:$0xff]
    %v1011 = vld [vmem:[#allocation14 + $0xb0] sm:$0xff]
    %v1012 = vld [vmem:[#allocation14 + $0xb8] sm:$0xff]
    %v1013 = vld [vmem:[#allocation14 + $0xc0] sm:$0xff]
    %v1014 = vld [vmem:[#allocation14 + $0xc8] sm:$0xff]
    %v1015 = vld [vmem:[#allocation14 + $0xd0] sm:$0xff]
    %v1016 = vld [vmem:[#allocation14 + $0xd8] sm:$0xff]
    %v1017 = vld [vmem:[#allocation14 + $0xe0] sm:$0xff]
    %v1018 = vld [vmem:[#allocation14 + $0xe8] sm:$0xff]
    %v1019 = vld [vmem:[#allocation14 + $0xf0] sm:$0xff]
    %v1020 = vld [vmem:[#allocation14 + $0xf8] sm:$0xff]
    %vm1021 = vcmask 523264
    %v1023 = vsel %vm1021, %v1004, 0
    %1025 = vmatprep.subr.mxu0 %v1006
    %1026 = vmatpush1.msra.mxu0 %v1005
    %1027 = vmatprep.subr.mxu0 %v1008
    %1028 = vmatpush1.msra.mxu0 %v1007
    %1029 = vmatprep.subr.mxu0 %v1010
    %1030 = vmatpush1.msra.mxu0 %v1009
    %1031 = vmatprep.subr.mxu0 %v1012
    %1032 = vmatpush1.msra.mxu0 %v1011
    %1033 = vmatprep.subr.mxu0 %v1014
    %1034 = vmatpush1.msra.mxu0 %v1013
    %1035 = vmatprep.subr.mxu0 %v1016
    %1036 = vmatpush1.msra.mxu0 %v1015
    %1037 = vmatprep.subr.mxu0 %v1018
    %1038 = vmatpush1.msra.mxu0 %v1017
    %1039 = vmatprep.subr.mxu0 %v1020
    %1040 = vmatpush1.msra.mxu0 %v1019
    %1041 = vmatprep.subr.mxu0 0.0
    %1042 = vmatpush1.msra.mxu0 0.0
    %1043 = vmatprep.subr.mxu0 0.0
    %1044 = vmatpush1.msra.mxu0 0.0
    %1045 = vmatprep.subr.mxu0 0.0
    %1046 = vmatpush1.msra.mxu0 0.0
    %1047 = vmatprep.subr.mxu0 0.0
    %1048 = vmatpush1.msra.mxu0 0.0
    %1049 = vmatprep.subr.mxu0 0.0
    %1050 = vmatpush1.msra.mxu0 0.0
    %1051 = vmatprep.subr.mxu0 0.0
    %1052 = vmatpush1.msra.mxu0 0.0
    %1053 = vmatprep.subr.mxu0 0.0
    %1054 = vmatpush1.msra.mxu0 0.0
    %1055 = vmatprep.subr.mxu0 0.0
    %1056 = vmatpush1.msra.mxu0 0.0
    %1057 = vmatprep.subr.mxu0 0.0
    %1058 = vmatpush1.msra.mxu0 0.0
    %1059 = vmatprep.subr.mxu0 0.0
    %1060 = vmatpush1.msra.mxu0 0.0
    %1061 = vmatprep.subr.mxu0 0.0
    %1062 = vmatpush1.msra.mxu0 0.0
    %1063 = vmatprep.subr.mxu0 0.0
    %1064 = vmatpush1.msra.mxu0 0.0
    %1065 = vmatprep.subr.mxu0 0.0
    %1066 = vmatpush1.msra.mxu0 0.0
    %1067 = vmatprep.subr.mxu0 0.0
    %1068 = vmatpush1.msra.mxu0 0.0
    %1069 = vmatprep.subr.mxu0 0.0
    %1070 = vmatpush1.msra.mxu0 0.0
    %1071 = vmatprep.subr.mxu0 0.0
    %1072 = vmatpush1.msra.mxu0 0.0
    %1073 = vmatprep.subr.mxu0 0.0
    %1074 = vmatpush1.msra.mxu0 0.0
    %1075 = vmatprep.subr.mxu0 0.0
    %1076 = vmatpush1.msra.mxu0 0.0
    %1077 = vmatprep.subr.mxu0 0.0
    %1078 = vmatpush1.msra.mxu0 0.0
    %1079 = vmatprep.subr.mxu0 0.0
    %1080 = vmatpush1.msra.mxu0 0.0
    %1081 = vmatprep.subr.mxu0 0.0
    %1082 = vmatpush1.msra.mxu0 0.0
    %1083 = vmatprep.subr.mxu0 0.0
    %1084 = vmatpush1.msra.mxu0 0.0
    %1085 = vmatprep.subr.mxu0 0.0
    %1086 = vmatpush1.msra.mxu0 0.0
    %1087 = vmatprep.subr.mxu0 0.0
    %1088 = vmatpush1.msra.mxu0 0.0
    %1089 = vmatprep.mubr.f32.mxu0 0.0
    %1090 = vmatmul.mubr.f32.gmra.mrb[0].mxu0 %v1023
    %v1091 = vpop.f32.mrb[0].mxu0
    %v1092 = vadd.f32 0.0, %v1091
    %v1093 = vpop.f32.mrb[0].mxu0
    %v1094 = vadd.f32 0.0, %v1093
    %1095 = vdwg.mxu0
    %v1097 = vsel %vm1021, %v823, 0
    %1099 = vmatprep.subr.mxu0 %v825
    %1100 = vmatpush1.msra.mxu0 %v824
    %1101 = vmatprep.subr.mxu0 %v827
    %1102 = vmatpush1.msra.mxu0 %v826
    %1103 = vmatprep.subr.mxu0 %v829
    %1104 = vmatpush1.msra.mxu0 %v828
    %1105 = vmatprep.subr.mxu0 %v831
    %1106 = vmatpush1.msra.mxu0 %v830
    %1107 = vmatprep.subr.mxu0 %v833
    %1108 = vmatpush1.msra.mxu0 %v832
    %1109 = vmatprep.subr.mxu0 %v835
    %1110 = vmatpush1.msra.mxu0 %v834
    %1111 = vmatprep.subr.mxu0 %v837
    %1112 = vmatpush1.msra.mxu0 %v836
    %1113 = vmatprep.subr.mxu0 %v839
    %1114 = vmatpush1.msra.mxu0 %v838
    %1115 = vmatprep.subr.mxu0 0.0
    %1116 = vmatpush1.msra.mxu0 0.0
    %1117 = vmatprep.subr.mxu0 0.0
    %1118 = vmatpush1.msra.mxu0 0.0
    %1119 = vmatprep.subr.mxu0 0.0
    %1120 = vmatpush1.msra.mxu0 0.0
    %1121 = vmatprep.subr.mxu0 0.0
    %1122 = vmatpush1.msra.mxu0 0.0
    %1123 = vmatprep.subr.mxu0 0.0
    %1124 = vmatpush1.msra.mxu0 0.0
    %1125 = vmatprep.subr.mxu0 0.0
    %1126 = vmatpush1.msra.mxu0 0.0
    %1127 = vmatprep.subr.mxu0 0.0
    %1128 = vmatpush1.msra.mxu0 0.0
    %1129 = vmatprep.subr.mxu0 0.0
    %1130 = vmatpush1.msra.mxu0 0.0
    %1131 = vmatprep.subr.mxu0 0.0
    %1132 = vmatpush1.msra.mxu0 0.0
    %1133 = vmatprep.subr.mxu0 0.0
    %1134 = vmatpush1.msra.mxu0 0.0
    %1135 = vmatprep.subr.mxu0 0.0
    %1136 = vmatpush1.msra.mxu0 0.0
    %1137 = vmatprep.subr.mxu0 0.0
    %1138 = vmatpush1.msra.mxu0 0.0
    %1139 = vmatprep.subr.mxu0 0.0
    %1140 = vmatpush1.msra.mxu0 0.0
    %1141 = vmatprep.subr.mxu0 0.0
    %1142 = vmatpush1.msra.mxu0 0.0
    %1143 = vmatprep.subr.mxu0 0.0
    %1144 = vmatpush1.msra.mxu0 0.0
    %1145 = vmatprep.subr.mxu0 0.0
    %1146 = vmatpush1.msra.mxu0 0.0
    %1147 = vmatprep.subr.mxu0 0.0
    %1148 = vmatpush1.msra.mxu0 0.0
    %1149 = vmatprep.subr.mxu0 0.0
    %1150 = vmatpush1.msra.mxu0 0.0
    %1151 = vmatprep.subr.mxu0 0.0
    %1152 = vmatpush1.msra.mxu0 0.0
    %1153 = vmatprep.subr.mxu0 0.0
    %1154 = vmatpush1.msra.mxu0 0.0
    %1155 = vmatprep.subr.mxu0 0.0
    %1156 = vmatpush1.msra.mxu0 0.0
    %1157 = vmatprep.subr.mxu0 0.0
    %1158 = vmatpush1.msra.mxu0 0.0
    %1159 = vmatprep.subr.mxu0 0.0
    %1160 = vmatpush1.msra.mxu0 0.0
    %1161 = vmatprep.subr.mxu0 0.0
    %1162 = vmatpush1.msra.mxu0 0.0
    %1163 = vmatprep.mubr.f32.mxu0 0.0
    %1164 = vmatmul.mubr.f32.gmra.mrb[0].mxu0 %v1097
    %v1165 = vpop.f32.mrb[0].mxu0
    %v1166 = vadd.f32 %v1092, %v1165
    %v1167 = vpop.f32.mrb[0].mxu0
    %v1168 = vadd.f32 %v1094, %v1167
    %1169 = vdwg.mxu0
    %v1171 = vcombine.high %v579, %v579
    %v1173 = vunpack.c.l.s4 1983009808
    %v1174 = vunpack.c.0.s8 %v1173
    %v1175 = vlaneseq
    %v1176 = vshrl.u32 %v1175, 7
    %v1177 = vsub.s32 %v1174, %v1176
    %v1178 = vrot.slane %v579, %v1177
    %v1180 = vunpack.c.l.s4 1983009808
    %v1181 = vunpack.c.0.s8 %v1180
    %v1182 = vlaneseq
    %v1183 = vshrl.u32 %v1182, 7
    %v1184 = vsub.s32 %v1181, %v1183
    %v1185 = vrot.slane %v1171, %v1184
    %v1186 = vcombine.high %v1178, %v1178
    %v1187 = vcombine.high %v1185, %v1185
    %1192 = vmatprep.subr.mxu0 0.0
    %1193 = vmatpush1.msra.mxu0 %v581
    %1194 = vmatprep.subr.mxu0 0.0
    %1195 = vmatpush1.msra.mxu0 %v582
    %1196 = vmatprep.subr.mxu0 0.0
    %1197 = vmatpush1.msra.mxu0 %v583
    %1198 = vmatprep.subr.mxu0 0.0
    %1199 = vmatpush1.msra.mxu0 %v584
    %1200 = vmatprep.subr.mxu0 0.0
    %1201 = vmatpush1.msra.mxu0 %v585
    %1202 = vmatprep.subr.mxu0 0.0
    %1203 = vmatpush1.msra.mxu0 %v586
    %1204 = vmatprep.subr.mxu0 0.0
    %1205 = vmatpush1.msra.mxu0 %v587
    %1206 = vmatprep.subr.mxu0 0.0
    %1207 = vmatpush1.msra.mxu0 %v588
    %1208 = vmatprep.subr.mxu0 0.0
    %1209 = vmatpush1.msra.mxu0 %v589
    %1210 = vmatprep.subr.mxu0 0.0
    %1211 = vmatpush1.msra.mxu0 %v590
    %1212 = vmatprep.subr.mxu0 0.0
    %1213 = vmatpush1.msra.mxu0 %v591
    %1214 = vmatprep.subr.mxu0 0.0
    %1215 = vmatpush1.msra.mxu0 %v592
    %1216 = vmatprep.subr.mxu0 0.0
    %1217 = vmatpush1.msra.mxu0 %v593
    %1218 = vmatprep.subr.mxu0 0.0
    %1219 = vmatpush1.msra.mxu0 %v594
    %1220 = vmatprep.subr.mxu0 0.0
    %1221 = vmatpush1.msra.mxu0 %v595
    %1222 = vmatprep.subr.mxu0 0.0
    %1223 = vmatpush1.msra.mxu0 %v596
    %1224 = vmatprep.subr.mxu0 0.0
    %1225 = vmatpush1.msra.mxu0 %v597
    %1226 = vmatprep.subr.mxu0 0.0
    %1227 = vmatpush1.msra.mxu0 %v598
    %1228 = vmatprep.subr.mxu0 0.0
    %1229 = vmatpush1.msra.mxu0 %v599
    %1230 = vmatprep.subr.mxu0 0.0
    %1231 = vmatpush1.msra.mxu0 %v600
    %1232 = vmatprep.subr.mxu0 0.0
    %1233 = vmatpush1.msra.mxu0 %v601
    %1234 = vmatprep.subr.mxu0 0.0
    %1235 = vmatpush1.msra.mxu0 %v602
    %1236 = vmatprep.subr.mxu0 0.0
    %1237 = vmatpush1.msra.mxu0 %v603
    %1238 = vmatprep.subr.mxu0 0.0
    %1239 = vmatpush1.msra.mxu0 %v604
    %1240 = vmatprep.subr.mxu0 0.0
    %1241 = vmatpush1.msra.mxu0 %v605
    %1242 = vmatprep.subr.mxu0 0.0
    %1243 = vmatpush1.msra.mxu0 %v606
    %1244 = vmatprep.subr.mxu0 0.0
    %1245 = vmatpush1.msra.mxu0 %v607
    %1246 = vmatprep.subr.mxu0 0.0
    %1247 = vmatpush1.msra.mxu0 %v608
    %1248 = vmatprep.subr.mxu0 0.0
    %1249 = vmatpush1.msra.mxu0 %v609
    %1250 = vmatprep.subr.mxu0 0.0
    %1251 = vmatpush1.msra.mxu0 %v610
    %1252 = vmatprep.subr.mxu0 0.0
    %1253 = vmatpush1.msra.mxu0 %v611
    %1254 = vmatprep.subr.mxu0 0.0
    %1255 = vmatpush1.msra.mxu0 %v612
    %1256 = vmatprep.mubr.f32.mxu0 %v1186
    %1257 = vmatmul.mubr.f32.gmra.mrb[0].mxu0 %v1178
    %v1258 = vpop.f32.mrb[0].mxu0
    %v1259 = vadd.f32 0.0, %v1258
    %v1260 = vpop.f32.mrb[0].mxu0
    %1261 = vdwg.mxu0
    %1262 = vmatprep.subr.mxu0 0.0
    %1263 = vmatpush1.msra.mxu0 %v613
    %1264 = vmatprep.subr.mxu0 0.0
    %1265 = vmatpush1.msra.mxu0 %v614
    %1266 = vmatprep.subr.mxu0 0.0
    %1267 = vmatpush1.msra.mxu0 %v615
    %1268 = vmatprep.subr.mxu0 0.0
    %1269 = vmatpush1.msra.mxu0 %v616
    %1270 = vmatprep.subr.mxu0 0.0
    %1271 = vmatpush1.msra.mxu0 %v617
    %1272 = vmatprep.subr.mxu0 0.0
    %1273 = vmatpush1.msra.mxu0 %v618
    %1274 = vmatprep.subr.mxu0 0.0
    %1275 = vmatpush1.msra.mxu0 %v619
    %1276 = vmatprep.subr.mxu0 0.0
    %1277 = vmatpush1.msra.mxu0 %v620
    %1278 = vmatprep.subr.mxu0 0.0
    %1279 = vmatpush1.msra.mxu0 %v621
    %1280 = vmatprep.subr.mxu0 0.0
    %1281 = vmatpush1.msra.mxu0 %v622
    %1282 = vmatprep.subr.mxu0 0.0
    %1283 = vmatpush1.msra.mxu0 %v623
    %1284 = vmatprep.subr.mxu0 0.0
    %1285 = vmatpush1.msra.mxu0 %v624
    %1286 = vmatprep.subr.mxu0 0.0
    %1287 = vmatpush1.msra.mxu0 %v625
    %1288 = vmatprep.subr.mxu0 0.0
    %1289 = vmatpush1.msra.mxu0 %v626
    %1290 = vmatprep.subr.mxu0 0.0
    %1291 = vmatpush1.msra.mxu0 %v627
    %1292 = vmatprep.subr.mxu0 0.0
    %1293 = vmatpush1.msra.mxu0 %v628
    %1294 = vmatprep.subr.mxu0 0.0
    %1295 = vmatpush1.msra.mxu0 %v629
    %1296 = vmatprep.subr.mxu0 0.0
    %1297 = vmatpush1.msra.mxu0 %v630
    %1298 = vmatprep.subr.mxu0 0.0
    %1299 = vmatpush1.msra.mxu0 %v631
    %1300 = vmatprep.subr.mxu0 0.0
    %1301 = vmatpush1.msra.mxu0 %v632
    %1302 = vmatprep.subr.mxu0 0.0
    %1303 = vmatpush1.msra.mxu0 %v633
    %1304 = vmatprep.subr.mxu0 0.0
    %1305 = vmatpush1.msra.mxu0 %v634
    %1306 = vmatprep.subr.mxu0 0.0
    %1307 = vmatpush1.msra.mxu0 %v635
    %1308 = vmatprep.subr.mxu0 0.0
    %1309 = vmatpush1.msra.mxu0 %v636
    %1310 = vmatprep.subr.mxu0 0.0
    %1311 = vmatpush1.msra.mxu0 %v637
    %1312 = vmatprep.subr.mxu0 0.0
    %1313 = vmatpush1.msra.mxu0 %v638
    %1314 = vmatprep.subr.mxu0 0.0
    %1315 = vmatpush1.msra.mxu0 %v639
    %1316 = vmatprep.subr.mxu0 0.0
    %1317 = vmatpush1.msra.mxu0 %v640
    %1318 = vmatprep.subr.mxu0 0.0
    %1319 = vmatpush1.msra.mxu0 %v641
    %1320 = vmatprep.subr.mxu0 0.0
    %1321 = vmatpush1.msra.mxu0 %v642
    %1322 = vmatprep.subr.mxu0 0.0
    %1323 = vmatpush1.msra.mxu0 %v643
    %1324 = vmatprep.subr.mxu0 0.0
    %1325 = vmatpush1.msra.mxu0 %v644
    %1326 = vmatprep.mubr.f32.mxu0 %v1187
    %1327 = vmatmul.mubr.f32.gmra.mrb[0].mxu0 %v1185
    %v1328 = vpop.f32.mrb[0].mxu0
    %v1329 = vadd.f32 %v1259, %v1328
    %v1330 = vpop.f32.mrb[0].mxu0
    %1331 = vdwg.mxu0
    %v1332 = vmul.f32 %v1329, %v813
    %v1333 = vadd.f32 %v1332, %v820
    %v1334 = vmax.f32 %v1333, 0.0
    %v1335 = vld [vmem:[#allocation14 + $0x100] sm:$0xff]
    %v1336 = vld [vmem:[#allocation14 + $0x108] sm:$0xff]
    %v1337 = vld [vmem:[#allocation14 + $0x110] sm:$0xff]
    %v1338 = vld [vmem:[#allocation14 + $0x118] sm:$0xff]
    %v1339 = vld [vmem:[#allocation14 + $0x120] sm:$0xff]
    %v1340 = vld [vmem:[#allocation14 + $0x128] sm:$0xff]
    %v1341 = vld [vmem:[#allocation14 + $0x130] sm:$0xff]
    %v1342 = vld [vmem:[#allocation14 + $0x138] sm:$0xff]
    %v1343 = vld [vmem:[#allocation14 + $0x140] sm:$0xff]
    %v1344 = vld [vmem:[#allocation14 + $0x148] sm:$0xff]
    %v1345 = vld [vmem:[#allocation14 + $0x150] sm:$0xff]
    %v1346 = vld [vmem:[#allocation14 + $0x158] sm:$0xff]
    %v1347 = vld [vmem:[#allocation14 + $0x160] sm:$0xff]
    %v1348 = vld [vmem:[#allocation14 + $0x168] sm:$0xff]
    %v1349 = vld [vmem:[#allocation14 + $0x170] sm:$0xff]
    %v1350 = vld [vmem:[#allocation14 + $0x178] sm:$0xff]
    %v1352 = vsel %vm1021, %v1334, 0
    %1354 = vmatprep.subr.mxu0 %v1336
    %1355 = vmatpush1.msra.mxu0 %v1335
    %1356 = vmatprep.subr.mxu0 %v1338
    %1357 = vmatpush1.msra.mxu0 %v1337
    %1358 = vmatprep.subr.mxu0 %v1340
    %1359 = vmatpush1.msra.mxu0 %v1339
    %1360 = vmatprep.subr.mxu0 %v1342
    %1361 = vmatpush1.msra.mxu0 %v1341
    %1362 = vmatprep.subr.mxu0 %v1344
    %1363 = vmatpush1.msra.mxu0 %v1343
    %1364 = vmatprep.subr.mxu0 %v1346
    %1365 = vmatpush1.msra.mxu0 %v1345
    %1366 = vmatprep.subr.mxu0 %v1348
    %1367 = vmatpush1.msra.mxu0 %v1347
    %1368 = vmatprep.subr.mxu0 %v1350
    %1369 = vmatpush1.msra.mxu0 %v1349
    %1370 = vmatprep.subr.mxu0 0.0
    %1371 = vmatpush1.msra.mxu0 0.0
    %1372 = vmatprep.subr.mxu0 0.0
    %1373 = vmatpush1.msra.mxu0 0.0
    %1374 = vmatprep.subr.mxu0 0.0
    %1375 = vmatpush1.msra.mxu0 0.0
    %1376 = vmatprep.subr.mxu0 0.0
    %1377 = vmatpush1.msra.mxu0 0.0
    %1378 = vmatprep.subr.mxu0 0.0
    %1379 = vmatpush1.msra.mxu0 0.0
    %1380 = vmatprep.subr.mxu0 0.0
    %1381 = vmatpush1.msra.mxu0 0.0
    %1382 = vmatprep.subr.mxu0 0.0
    %1383 = vmatpush1.msra.mxu0 0.0
    %1384 = vmatprep.subr.mxu0 0.0
    %1385 = vmatpush1.msra.mxu0 0.0
    %1386 = vmatprep.subr.mxu0 0.0
    %1387 = vmatpush1.msra.mxu0 0.0
    %1388 = vmatprep.subr.mxu0 0.0
    %1389 = vmatpush1.msra.mxu0 0.0
    %1390 = vmatprep.subr.mxu0 0.0
    %1391 = vmatpush1.msra.mxu0 0.0
    %1392 = vmatprep.subr.mxu0 0.0
    %1393 = vmatpush1.msra.mxu0 0.0
    %1394 = vmatprep.subr.mxu0 0.0
    %1395 = vmatpush1.msra.mxu0 0.0
    %1396 = vmatprep.subr.mxu0 0.0
    %1397 = vmatpush1.msra.mxu0 0.0
    %1398 = vmatprep.subr.mxu0 0.0
    %1399 = vmatpush1.msra.mxu0 0.0
    %1400 = vmatprep.subr.mxu0 0.0
    %1401 = vmatpush1.msra.mxu0 0.0
    %1402 = vmatprep.subr.mxu0 0.0
    %1403 = vmatpush1.msra.mxu0 0.0
    %1404 = vmatprep.subr.mxu0 0.0
    %1405 = vmatpush1.msra.mxu0 0.0
    %1406 = vmatprep.subr.mxu0 0.0
    %1407 = vmatpush1.msra.mxu0 0.0
    %1408 = vmatprep.subr.mxu0 0.0
    %1409 = vmatpush1.msra.mxu0 0.0
    %1410 = vmatprep.subr.mxu0 0.0
    %1411 = vmatpush1.msra.mxu0 0.0
    %1412 = vmatprep.subr.mxu0 0.0
    %1413 = vmatpush1.msra.mxu0 0.0
    %1414 = vmatprep.subr.mxu0 0.0
    %1415 = vmatpush1.msra.mxu0 0.0
    %1416 = vmatprep.subr.mxu0 0.0
    %1417 = vmatpush1.msra.mxu0 0.0
    %1418 = vmatprep.mubr.f32.mxu0 0.0
    %1419 = vmatmul.mubr.f32.gmra.mrb[0].mxu0 %v1352
    %v1420 = vpop.f32.mrb[0].mxu0
    %v1421 = vadd.f32 0.0, %v1420
    %v1422 = vpop.f32.mrb[0].mxu0
    %v1423 = vadd.f32 0.0, %v1422
    %1424 = vdwg.mxu0
    %v1425 = vadd.f32 %v1166, %v1421
    %v1426 = vadd.f32 %v1168, %v1423
    %v1428 = vcombine.high %v580, %v580
    %v1430 = vunpack.c.l.s4 1983009808
    %v1431 = vunpack.c.0.s8 %v1430
    %v1432 = vlaneseq
    %v1433 = vshrl.u32 %v1432, 7
    %v1434 = vsub.s32 %v1431, %v1433
    %v1435 = vrot.slane %v580, %v1434
    %v1437 = vunpack.c.l.s4 1983009808
    %v1438 = vunpack.c.0.s8 %v1437
    %v1439 = vlaneseq
    %v1440 = vshrl.u32 %v1439, 7
    %v1441 = vsub.s32 %v1438, %v1440
    %v1442 = vrot.slane %v1428, %v1441
    %v1443 = vcombine.high %v1435, %v1435
    %v1444 = vcombine.high %v1442, %v1442
    %1449 = vmatprep.subr.mxu0 0.0
    %1450 = vmatpush1.msra.mxu0 %v581
    %1451 = vmatprep.subr.mxu0 0.0
    %1452 = vmatpush1.msra.mxu0 %v582
    %1453 = vmatprep.subr.mxu0 0.0
    %1454 = vmatpush1.msra.mxu0 %v583
    %1455 = vmatprep.subr.mxu0 0.0
    %1456 = vmatpush1.msra.mxu0 %v584
    %1457 = vmatprep.subr.mxu0 0.0
    %1458 = vmatpush1.msra.mxu0 %v585
    %1459 = vmatprep.subr.mxu0 0.0
    %1460 = vmatpush1.msra.mxu0 %v586
    %1461 = vmatprep.subr.mxu0 0.0
    %1462 = vmatpush1.msra.mxu0 %v587
    %1463 = vmatprep.subr.mxu0 0.0
    %1464 = vmatpush1.msra.mxu0 %v588
    %1465 = vmatprep.subr.mxu0 0.0
    %1466 = vmatpush1.msra.mxu0 %v589
    %1467 = vmatprep.subr.mxu0 0.0
    %1468 = vmatpush1.msra.mxu0 %v590
    %1469 = vmatprep.subr.mxu0 0.0
    %1470 = vmatpush1.msra.mxu0 %v591
    %1471 = vmatprep.subr.mxu0 0.0
    %1472 = vmatpush1.msra.mxu0 %v592
    %1473 = vmatprep.subr.mxu0 0.0
    %1474 = vmatpush1.msra.mxu0 %v593
    %1475 = vmatprep.subr.mxu0 0.0
    %1476 = vmatpush1.msra.mxu0 %v594
    %1477 = vmatprep.subr.mxu0 0.0
    %1478 = vmatpush1.msra.mxu0 %v595
    %1479 = vmatprep.subr.mxu0 0.0
    %1480 = vmatpush1.msra.mxu0 %v596
    %1481 = vmatprep.subr.mxu0 0.0
    %1482 = vmatpush1.msra.mxu0 %v597
    %1483 = vmatprep.subr.mxu0 0.0
    %1484 = vmatpush1.msra.mxu0 %v598
    %1485 = vmatprep.subr.mxu0 0.0
    %1486 = vmatpush1.msra.mxu0 %v599
    %1487 = vmatprep.subr.mxu0 0.0
    %1488 = vmatpush1.msra.mxu0 %v600
    %1489 = vmatprep.subr.mxu0 0.0
    %1490 = vmatpush1.msra.mxu0 %v601
    %1491 = vmatprep.subr.mxu0 0.0
    %1492 = vmatpush1.msra.mxu0 %v602
    %1493 = vmatprep.subr.mxu0 0.0
    %1494 = vmatpush1.msra.mxu0 %v603
    %1495 = vmatprep.subr.mxu0 0.0
    %1496 = vmatpush1.msra.mxu0 %v604
    %1497 = vmatprep.subr.mxu0 0.0
    %1498 = vmatpush1.msra.mxu0 %v605
    %1499 = vmatprep.subr.mxu0 0.0
    %1500 = vmatpush1.msra.mxu0 %v606
    %1501 = vmatprep.subr.mxu0 0.0
    %1502 = vmatpush1.msra.mxu0 %v607
    %1503 = vmatprep.subr.mxu0 0.0
    %1504 = vmatpush1.msra.mxu0 %v608
    %1505 = vmatprep.subr.mxu0 0.0
    %1506 = vmatpush1.msra.mxu0 %v609
    %1507 = vmatprep.subr.mxu0 0.0
    %1508 = vmatpush1.msra.mxu0 %v610
    %1509 = vmatprep.subr.mxu0 0.0
    %1510 = vmatpush1.msra.mxu0 %v611
    %1511 = vmatprep.subr.mxu0 0.0
    %1512 = vmatpush1.msra.mxu0 %v612
    %1513 = vmatprep.mubr.f32.mxu0 %v1443
    %1514 = vmatmul.mubr.f32.gmra.mrb[0].mxu0 %v1435
    %v1515 = vpop.f32.mrb[0].mxu0
    %v1516 = vadd.f32 0.0, %v1515
    %v1517 = vpop.f32.mrb[0].mxu0
    %1518 = vdwg.mxu0
    %1519 = vmatprep.subr.mxu0 0.0
    %1520 = vmatpush1.msra.mxu0 %v613
    %1521 = vmatprep.subr.mxu0 0.0
    %1522 = vmatpush1.msra.mxu0 %v614
    %1523 = vmatprep.subr.mxu0 0.0
    %1524 = vmatpush1.msra.mxu0 %v615
    %1525 = vmatprep.subr.mxu0 0.0
    %1526 = vmatpush1.msra.mxu0 %v616
    %1527 = vmatprep.subr.mxu0 0.0
    %1528 = vmatpush1.msra.mxu0 %v617
    %1529 = vmatprep.subr.mxu0 0.0
    %1530 = vmatpush1.msra.mxu0 %v618
    %1531 = vmatprep.subr.mxu0 0.0
    %1532 = vmatpush1.msra.mxu0 %v619
    %1533 = vmatprep.subr.mxu0 0.0
    %1534 = vmatpush1.msra.mxu0 %v620
    %1535 = vmatprep.subr.mxu0 0.0
    %1536 = vmatpush1.msra.mxu0 %v621
    %1537 = vmatprep.subr.mxu0 0.0
    %1538 = vmatpush1.msra.mxu0 %v622
    %1539 = vmatprep.subr.mxu0 0.0
    %1540 = vmatpush1.msra.mxu0 %v623
    %1541 = vmatprep.subr.mxu0 0.0
    %1542 = vmatpush1.msra.mxu0 %v624
    %1543 = vmatprep.subr.mxu0 0.0
    %1544 = vmatpush1.msra.mxu0 %v625
    %1545 = vmatprep.subr.mxu0 0.0
    %1546 = vmatpush1.msra.mxu0 %v626
    %1547 = vmatprep.subr.mxu0 0.0
    %1548 = vmatpush1.msra.mxu0 %v627
    %1549 = vmatprep.subr.mxu0 0.0
    %1550 = vmatpush1.msra.mxu0 %v628
    %1551 = vmatprep.subr.mxu0 0.0
    %1552 = vmatpush1.msra.mxu0 %v629
    %1553 = vmatprep.subr.mxu0 0.0
    %1554 = vmatpush1.msra.mxu0 %v630
    %1555 = vmatprep.subr.mxu0 0.0
    %1556 = vmatpush1.msra.mxu0 %v631
    %1557 = vmatprep.subr.mxu0 0.0
    %1558 = vmatpush1.msra.mxu0 %v632
    %1559 = vmatprep.subr.mxu0 0.0
    %1560 = vmatpush1.msra.mxu0 %v633
    %1561 = vmatprep.subr.mxu0 0.0
    %1562 = vmatpush1.msra.mxu0 %v634
    %1563 = vmatprep.subr.mxu0 0.0
    %1564 = vmatpush1.msra.mxu0 %v635
    %1565 = vmatprep.subr.mxu0 0.0
    %1566 = vmatpush1.msra.mxu0 %v636
    %1567 = vmatprep.subr.mxu0 0.0
    %1568 = vmatpush1.msra.mxu0 %v637
    %1569 = vmatprep.subr.mxu0 0.0
    %1570 = vmatpush1.msra.mxu0 %v638
    %1571 = vmatprep.subr.mxu0 0.0
    %1572 = vmatpush1.msra.mxu0 %v639
    %1573 = vmatprep.subr.mxu0 0.0
    %1574 = vmatpush1.msra.mxu0 %v640
    %1575 = vmatprep.subr.mxu0 0.0
    %1576 = vmatpush1.msra.mxu0 %v641
    %1577 = vmatprep.subr.mxu0 0.0
    %1578 = vmatpush1.msra.mxu0 %v642
    %1579 = vmatprep.subr.mxu0 0.0
    %1580 = vmatpush1.msra.mxu0 %v643
    %1581 = vmatprep.subr.mxu0 0.0
    %1582 = vmatpush1.msra.mxu0 %v644
    %1583 = vmatprep.mubr.f32.mxu0 %v1444
    %1584 = vmatmul.mubr.f32.gmra.mrb[0].mxu0 %v1442
    %v1585 = vpop.f32.mrb[0].mxu0
    %v1586 = vadd.f32 %v1516, %v1585
    %v1587 = vpop.f32.mrb[0].mxu0
    %1588 = vdwg.mxu0
    %v1589 = vmul.f32 %v1586, %v813
    %v1590 = vadd.f32 %v1589, %v820
    %v1591 = vmax.f32 %v1590, 0.0
    %v1592 = vld [vmem:[#allocation14 + $0x180] sm:$0xff]
    %v1593 = vld [vmem:[#allocation14 + $0x188] sm:$0xff]
    %v1594 = vld [vmem:[#allocation14 + $0x190] sm:$0xff]
    %v1595 = vld [vmem:[#allocation14 + $0x198] sm:$0xff]
    %v1596 = vld [vmem:[#allocation14 + $0x1a0] sm:$0xff]
    %v1597 = vld [vmem:[#allocation14 + $0x1a8] sm:$0xff]
    %v1598 = vld [vmem:[#allocation14 + $0x1b0] sm:$0xff]
    %v1599 = vld [vmem:[#allocation14 + $0x1b8] sm:$0xff]
    %v1600 = vld [vmem:[#allocation14 + $0x1c0] sm:$0xff]
    %v1601 = vld [vmem:[#allocation14 + $0x1c8] sm:$0xff]
    %v1602 = vld [vmem:[#allocation14 + $0x1d0] sm:$0xff]
    %v1603 = vld [vmem:[#allocation14 + $0x1d8] sm:$0xff]
    %v1604 = vld [vmem:[#allocation14 + $0x1e0] sm:$0xff]
    %v1605 = vld [vmem:[#allocation14 + $0x1e8] sm:$0xff]
    %v1606 = vld [vmem:[#allocation14 + $0x1f0] sm:$0xff]
    %v1607 = vld [vmem:[#allocation14 + $0x1f8] sm:$0xff]
    %v1609 = vsel %vm1021, %v1591, 0
    %1611 = vmatprep.subr.mxu0 %v1593
    %1612 = vmatpush1.msra.mxu0 %v1592
    %1613 = vmatprep.subr.mxu0 %v1595
    %1614 = vmatpush1.msra.mxu0 %v1594
    %1615 = vmatprep.subr.mxu0 %v1597
    %1616 = vmatpush1.msra.mxu0 %v1596
    %1617 = vmatprep.subr.mxu0 %v1599
    %1618 = vmatpush1.msra.mxu0 %v1598
    %1619 = vmatprep.subr.mxu0 %v1601
    %1620 = vmatpush1.msra.mxu0 %v1600
    %1621 = vmatprep.subr.mxu0 %v1603
    %1622 = vmatpush1.msra.mxu0 %v1602
    %1623 = vmatprep.subr.mxu0 %v1605
    %1624 = vmatpush1.msra.mxu0 %v1604
    %1625 = vmatprep.subr.mxu0 %v1607
    %1626 = vmatpush1.msra.mxu0 %v1606
    %1627 = vmatprep.subr.mxu0 0.0
    %1628 = vmatpush1.msra.mxu0 0.0
    %1629 = vmatprep.subr.mxu0 0.0
    %1630 = vmatpush1.msra.mxu0 0.0
    %1631 = vmatprep.subr.mxu0 0.0
    %1632 = vmatpush1.msra.mxu0 0.0
    %1633 = vmatprep.subr.mxu0 0.0
    %1634 = vmatpush1.msra.mxu0 0.0
    %1635 = vmatprep.subr.mxu0 0.0
    %1636 = vmatpush1.msra.mxu0 0.0
    %1637 = vmatprep.subr.mxu0 0.0
    %1638 = vmatpush1.msra.mxu0 0.0
    %1639 = vmatprep.subr.mxu0 0.0
    %1640 = vmatpush1.msra.mxu0 0.0
    %1641 = vmatprep.subr.mxu0 0.0
    %1642 = vmatpush1.msra.mxu0 0.0
    %1643 = vmatprep.subr.mxu0 0.0
    %1644 = vmatpush1.msra.mxu0 0.0
    %1645 = vmatprep.subr.mxu0 0.0
    %1646 = vmatpush1.msra.mxu0 0.0
    %1647 = vmatprep.subr.mxu0 0.0
    %1648 = vmatpush1.msra.mxu0 0.0
    %1649 = vmatprep.subr.mxu0 0.0
    %1650 = vmatpush1.msra.mxu0 0.0
    %1651 = vmatprep.subr.mxu0 0.0
    %1652 = vmatpush1.msra.mxu0 0.0
    %1653 = vmatprep.subr.mxu0 0.0
    %1654 = vmatpush1.msra.mxu0 0.0
    %1655 = vmatprep.subr.mxu0 0.0
    %1656 = vmatpush1.msra.mxu0 0.0
    %1657 = vmatprep.subr.mxu0 0.0
    %1658 = vmatpush1.msra.mxu0 0.0
    %1659 = vmatprep.subr.mxu0 0.0
    %1660 = vmatpush1.msra.mxu0 0.0
    %1661 = vmatprep.subr.mxu0 0.0
    %1662 = vmatpush1.msra.mxu0 0.0
    %1663 = vmatprep.subr.mxu0 0.0
    %1664 = vmatpush1.msra.mxu0 0.0
    %1665 = vmatprep.subr.mxu0 0.0
    %1666 = vmatpush1.msra.mxu0 0.0
    %1667 = vmatprep.subr.mxu0 0.0
    %1668 = vmatpush1.msra.mxu0 0.0
    %1669 = vmatprep.subr.mxu0 0.0
    %1670 = vmatpush1.msra.mxu0 0.0
    %1671 = vmatprep.subr.mxu0 0.0
    %1672 = vmatpush1.msra.mxu0 0.0
    %1673 = vmatprep.subr.mxu0 0.0
    %1674 = vmatpush1.msra.mxu0 0.0
    %1675 = vmatprep.mubr.f32.mxu0 0.0
    %1676 = vmatmul.mubr.f32.gmra.mrb[0].mxu0 %v1609
    %v1677 = vpop.f32.mrb[0].mxu0
    %v1678 = vadd.f32 0.0, %v1677
    %v1679 = vpop.f32.mrb[0].mxu0
    %v1680 = vadd.f32 0.0, %v1679
    %1681 = vdwg.mxu0
    %v1682 = vadd.f32 %v1425, %v1678
    %v1683 = vadd.f32 %v1426, %v1680
    %v1684 = vld [vmem:[#allocation15] sm:$0x3]
    %v1686 = vlaneseq
    %v1687 = vshrl.u32 %v1686, 7
    %v1688 = vsub.s32 0, %v1687
    %v1689 = vrot.slane %v1684, %v1688
    %v1690 = vlaneseq
    %v1691 = vshrl.u32 %v1690, 7
    %v1692 = vsub.s32 1, %v1691
    %v1693 = vrot.slane %v1684, %v1692
    %v1696 = vadd.f32 %v1682, %v1689
    %v1697 = vadd.f32 %v1683, %v1693
    %v1698 = vld [vmem:[#allocation17] sm:$0x3]
    %v1700 = vlaneseq
    %v1701 = vshrl.u32 %v1700, 7
    %v1702 = vsub.s32 0, %v1701
    %v1703 = vrot.slane %v1698, %v1702
    %v1704 = vlaneseq
    %v1705 = vshrl.u32 %v1704, 7
    %v1706 = vsub.s32 1, %v1705
    %v1707 = vrot.slane %v1698, %v1706
    %v1710 = vmul.f32 %v1696, %v1703
    %v1711 = vmul.f32 %v1697, %v1707
    %v1712 = vld [vmem:[#allocation18] sm:$0x3]
    %v1714 = vlaneseq
    %v1715 = vshrl.u32 %v1714, 7
    %v1716 = vsub.s32 0, %v1715
    %v1717 = vrot.slane %v1712, %v1716
    %v1718 = vlaneseq
    %v1719 = vshrl.u32 %v1718, 7
    %v1720 = vsub.s32 1, %v1719
    %v1721 = vrot.slane %v1712, %v1720
    %v1724 = vadd.f32 %v1710, %v1717
    %v1725 = vadd.f32 %v1711, %v1721
    %v1726 = vmax.f32 %v1724, 0.0
    %v1727 = vmax.f32 %v1725, 0.0
    %s1728 = smul.u32 4, 256
    %s1729 = smul.u32 %s1728, 8
    %s1730 = sshll.u32 %s1729, 4
    %1731 = dma.done [#allocation5], %s1730
    %s1732 = smul.u32 4, 32
    %s1733 = smul.u32 %s1732, 8
    %s1734 = sshll.u32 %s1733, 4
    %1735 = dma.done %s215, %s1734
    %v1740 = vcombine.high %v285, %v285
    %v1742 = vunpack.c.l.s4 1983009808
    %v1743 = vunpack.c.0.s8 %v1742
    %v1744 = vlaneseq
    %v1745 = vshrl.u32 %v1744, 7
    %v1746 = vsub.s32 %v1743, %v1745
    %v1747 = vrot.slane %v285, %v1746
    %v1749 = vunpack.c.l.s4 1983009808
    %v1750 = vunpack.c.0.s8 %v1749
    %v1751 = vlaneseq
    %v1752 = vshrl.u32 %v1751, 7
    %v1753 = vsub.s32 %v1750, %v1752
    %v1754 = vrot.slane %v1740, %v1753
    %v1755 = vcombine.high %v1747, %v1747
    %v1756 = vcombine.high %v1754, %v1754
    %v1757 = vcombine.high %v286, %v286
    %v1759 = vunpack.c.l.s4 1983009808
    %v1760 = vunpack.c.0.s8 %v1759
    %v1761 = vlaneseq
    %v1762 = vshrl.u32 %v1761, 7
    %v1763 = vsub.s32 %v1760, %v1762
    %v1764 = vrot.slane %v286, %v1763
    %v1766 = vunpack.c.l.s4 1983009808
    %v1767 = vunpack.c.0.s8 %v1766
    %v1768 = vlaneseq
    %v1769 = vshrl.u32 %v1768, 7
    %v1770 = vsub.s32 %v1767, %v1769
    %v1771 = vrot.slane %v1757, %v1770
    %v1772 = vcombine.high %v1764, %v1764
    %v1773 = vcombine.high %v1771, %v1771
    %v1774 = vcombine.high %v287, %v287
    %v1776 = vunpack.c.l.s4 1983009808
    %v1777 = vunpack.c.0.s8 %v1776
    %v1778 = vlaneseq
    %v1779 = vshrl.u32 %v1778, 7
    %v1780 = vsub.s32 %v1777, %v1779
    %v1781 = vrot.slane %v287, %v1780
    %v1783 = vunpack.c.l.s4 1983009808
    %v1784 = vunpack.c.0.s8 %v1783
    %v1785 = vlaneseq
    %v1786 = vshrl.u32 %v1785, 7
    %v1787 = vsub.s32 %v1784, %v1786
    %v1788 = vrot.slane %v1774, %v1787
    %v1789 = vcombine.high %v1781, %v1781
    %v1790 = vcombine.high %v1788, %v1788
    %v1791 = vcombine.high %v288, %v288
    %v1793 = vunpack.c.l.s4 1983009808
    %v1794 = vunpack.c.0.s8 %v1793
    %v1795 = vlaneseq
    %v1796 = vshrl.u32 %v1795, 7
    %v1797 = vsub.s32 %v1794, %v1796
    %v1798 = vrot.slane %v288, %v1797
    %v1800 = vunpack.c.l.s4 1983009808
    %v1801 = vunpack.c.0.s8 %v1800
    %v1802 = vlaneseq
    %v1803 = vshrl.u32 %v1802, 7
    %v1804 = vsub.s32 %v1801, %v1803
    %v1805 = vrot.slane %v1791, %v1804
    %v1806 = vcombine.high %v1798, %v1798
    %v1807 = vcombine.high %v1805, %v1805
    %v1824 = vpack.c.bf16 %v1747, %v1747
    %v1825 = vpack.c.bf16 %v1755, %v1755
    %v1826 = vpack.c.bf16 %v1754, %v1754
    %v1827 = vpack.c.bf16 %v1756, %v1756
    %v1828 = vpack.c.bf16 %v1764, %v1764
    %v1829 = vpack.c.bf16 %v1772, %v1772
    %v1830 = vpack.c.bf16 %v1771, %v1771
    %v1831 = vpack.c.bf16 %v1773, %v1773
    %v1832 = vpack.c.bf16 %v1781, %v1781
    %v1833 = vpack.c.bf16 %v1789, %v1789
    %v1834 = vpack.c.bf16 %v1788, %v1788
    %v1835 = vpack.c.bf16 %v1790, %v1790
    %v1836 = vpack.c.bf16 %v1798, %v1798
    %v1837 = vpack.c.bf16 %v1806, %v1806
    %v1838 = vpack.c.bf16 %v1805, %v1805
    %v1839 = vpack.c.bf16 %v1807, %v1807
    %v1840 = vld [vmem:[#allocation2] sm:$0xff]
    %v1841 = vld [vmem:[#allocation2 + $0x8] sm:$0xff]
    %v1842 = vld [vmem:[#allocation2 + $0x10] sm:$0xff]
    %v1843 = vld [vmem:[#allocation2 + $0x18] sm:$0xff]
    %v1844 = vld [vmem:[#allocation2 + $0x20] sm:$0xff]
    %v1845 = vld [vmem:[#allocation2 + $0x28] sm:$0xff]
    %v1846 = vld [vmem:[#allocation2 + $0x30] sm:$0xff]
    %v1847 = vld [vmem:[#allocation2 + $0x38] sm:$0xff]
    %v1848 = vld [vmem:[#allocation2 + $0x40] sm:$0xff]
    %v1849 = vld [vmem:[#allocation2 + $0x48] sm:$0xff]
    %v1850 = vld [vmem:[#allocation2 + $0x50] sm:$0xff]
    %v1851 = vld [vmem:[#allocation2 + $0x58] sm:$0xff]
    %v1852 = vld [vmem:[#allocation2 + $0x60] sm:$0xff]
    %v1853 = vld [vmem:[#allocation2 + $0x68] sm:$0xff]
    %v1854 = vld [vmem:[#allocation2 + $0x70] sm:$0xff]
    %v1855 = vld [vmem:[#allocation2 + $0x78] sm:$0xff]
    %v1856 = vld [vmem:[#allocation2 + $0x80] sm:$0xff]
    %v1857 = vld [vmem:[#allocation2 + $0x88] sm:$0xff]
    %v1858 = vld [vmem:[#allocation2 + $0x90] sm:$0xff]
    %v1859 = vld [vmem:[#allocation2 + $0x98] sm:$0xff]
    %v1860 = vld [vmem:[#allocation2 + $0xa0] sm:$0xff]
    %v1861 = vld [vmem:[#allocation2 + $0xa8] sm:$0xff]
    %v1862 = vld [vmem:[#allocation2 + $0xb0] sm:$0xff]
    %v1863 = vld [vmem:[#allocation2 + $0xb8] sm:$0xff]
    %v1864 = vld [vmem:[#allocation2 + $0xc0] sm:$0xff]
    %v1865 = vld [vmem:[#allocation2 + $0xc8] sm:$0xff]
    %v1866 = vld [vmem:[#allocation2 + $0xd0] sm:$0xff]
    %v1867 = vld [vmem:[#allocation2 + $0xd8] sm:$0xff]
    %v1868 = vld [vmem:[#allocation2 + $0xe0] sm:$0xff]
    %v1869 = vld [vmem:[#allocation2 + $0xe8] sm:$0xff]
    %v1870 = vld [vmem:[#allocation2 + $0xf0] sm:$0xff]
    %v1871 = vld [vmem:[#allocation2 + $0xf8] sm:$0xff]
    %v1872 = vld [vmem:[#allocation2 + $0x100] sm:$0xff]
    %v1873 = vld [vmem:[#allocation2 + $0x108] sm:$0xff]
    %v1874 = vld [vmem:[#allocation2 + $0x110] sm:$0xff]
    %v1875 = vld [vmem:[#allocation2 + $0x118] sm:$0xff]
    %v1876 = vld [vmem:[#allocation2 + $0x120] sm:$0xff]
    %v1877 = vld [vmem:[#allocation2 + $0x128] sm:$0xff]
    %v1878 = vld [vmem:[#allocation2 + $0x130] sm:$0xff]
    %v1879 = vld [vmem:[#allocation2 + $0x138] sm:$0xff]
    %v1880 = vld [vmem:[#allocation2 + $0x140] sm:$0xff]
    %v1881 = vld [vmem:[#allocation2 + $0x148] sm:$0xff]
    %v1882 = vld [vmem:[#allocation2 + $0x150] sm:$0xff]
    %v1883 = vld [vmem:[#allocation2 + $0x158] sm:$0xff]
    %v1884 = vld [vmem:[#allocation2 + $0x160] sm:$0xff]
    %v1885 = vld [vmem:[#allocation2 + $0x168] sm:$0xff]
    %v1886 = vld [vmem:[#allocation2 + $0x170] sm:$0xff]
    %v1887 = vld [vmem:[#allocation2 + $0x178] sm:$0xff]
    %v1888 = vld [vmem:[#allocation2 + $0x180] sm:$0xff]
    %v1889 = vld [vmem:[#allocation2 + $0x188] sm:$0xff]
    %v1890 = vld [vmem:[#allocation2 + $0x190] sm:$0xff]
    %v1891 = vld [vmem:[#allocation2 + $0x198] sm:$0xff]
    %v1892 = vld [vmem:[#allocation2 + $0x1a0] sm:$0xff]
    %v1893 = vld [vmem:[#allocation2 + $0x1a8] sm:$0xff]
    %v1894 = vld [vmem:[#allocation2 + $0x1b0] sm:$0xff]
    %v1895 = vld [vmem:[#allocation2 + $0x1b8] sm:$0xff]
    %v1896 = vld [vmem:[#allocation2 + $0x1c0] sm:$0xff]
    %v1897 = vld [vmem:[#allocation2 + $0x1c8] sm:$0xff]
    %v1898 = vld [vmem:[#allocation2 + $0x1d0] sm:$0xff]
    %v1899 = vld [vmem:[#allocation2 + $0x1d8] sm:$0xff]
    %v1900 = vld [vmem:[#allocation2 + $0x1e0] sm:$0xff]
    %v1901 = vld [vmem:[#allocation2 + $0x1e8] sm:$0xff]
    %v1902 = vld [vmem:[#allocation2 + $0x1f0] sm:$0xff]
    %v1903 = vld [vmem:[#allocation2 + $0x1f8] sm:$0xff]
    %v1904 = vld [vmem:[#allocation2 + $0x200] sm:$0xff]
    %v1905 = vld [vmem:[#allocation2 + $0x208] sm:$0xff]
    %v1906 = vld [vmem:[#allocation2 + $0x210] sm:$0xff]
    %v1907 = vld [vmem:[#allocation2 + $0x218] sm:$0xff]
    %v1908 = vld [vmem:[#allocation2 + $0x220] sm:$0xff]
    %v1909 = vld [vmem:[#allocation2 + $0x228] sm:$0xff]
    %v1910 = vld [vmem:[#allocation2 + $0x230] sm:$0xff]
    %v1911 = vld [vmem:[#allocation2 + $0x238] sm:$0xff]
    %v1912 = vld [vmem:[#allocation2 + $0x240] sm:$0xff]
    %v1913 = vld [vmem:[#allocation2 + $0x248] sm:$0xff]
    %v1914 = vld [vmem:[#allocation2 + $0x250] sm:$0xff]
    %v1915 = vld [vmem:[#allocation2 + $0x258] sm:$0xff]
    %v1916 = vld [vmem:[#allocation2 + $0x260] sm:$0xff]
    %v1917 = vld [vmem:[#allocation2 + $0x268] sm:$0xff]
    %v1918 = vld [vmem:[#allocation2 + $0x270] sm:$0xff]
    %v1919 = vld [vmem:[#allocation2 + $0x278] sm:$0xff]
    %v1920 = vld [vmem:[#allocation2 + $0x280] sm:$0xff]
    %v1921 = vld [vmem:[#allocation2 + $0x288] sm:$0xff]
    %v1922 = vld [vmem:[#allocation2 + $0x290] sm:$0xff]
    %v1923 = vld [vmem:[#allocation2 + $0x298] sm:$0xff]
    %v1924 = vld [vmem:[#allocation2 + $0x2a0] sm:$0xff]
    %v1925 = vld [vmem:[#allocation2 + $0x2a8] sm:$0xff]
    %v1926 = vld [vmem:[#allocation2 + $0x2b0] sm:$0xff]
    %v1927 = vld [vmem:[#allocation2 + $0x2b8] sm:$0xff]
    %v1928 = vld [vmem:[#allocation2 + $0x2c0] sm:$0xff]
    %v1929 = vld [vmem:[#allocation2 + $0x2c8] sm:$0xff]
    %v1930 = vld [vmem:[#allocation2 + $0x2d0] sm:$0xff]
    %v1931 = vld [vmem:[#allocation2 + $0x2d8] sm:$0xff]
    %v1932 = vld [vmem:[#allocation2 + $0x2e0] sm:$0xff]
    %v1933 = vld [vmem:[#allocation2 + $0x2e8] sm:$0xff]
    %v1934 = vld [vmem:[#allocation2 + $0x2f0] sm:$0xff]
    %v1935 = vld [vmem:[#allocation2 + $0x2f8] sm:$0xff]
    %v1936 = vld [vmem:[#allocation2 + $0x300] sm:$0xff]
    %v1937 = vld [vmem:[#allocation2 + $0x308] sm:$0xff]
    %v1938 = vld [vmem:[#allocation2 + $0x310] sm:$0xff]
    %v1939 = vld [vmem:[#allocation2 + $0x318] sm:$0xff]
    %v1940 = vld [vmem:[#allocation2 + $0x320] sm:$0xff]
    %v1941 = vld [vmem:[#allocation2 + $0x328] sm:$0xff]
    %v1942 = vld [vmem:[#allocation2 + $0x330] sm:$0xff]
    %v1943 = vld [vmem:[#allocation2 + $0x338] sm:$0xff]
    %v1944 = vld [vmem:[#allocation2 + $0x340] sm:$0xff]
    %v1945 = vld [vmem:[#allocation2 + $0x348] sm:$0xff]
    %v1946 = vld [vmem:[#allocation2 + $0x350] sm:$0xff]
    %v1947 = vld [vmem:[#allocation2 + $0x358] sm:$0xff]
    %v1948 = vld [vmem:[#allocation2 + $0x360] sm:$0xff]
    %v1949 = vld [vmem:[#allocation2 + $0x368] sm:$0xff]
    %v1950 = vld [vmem:[#allocation2 + $0x370] sm:$0xff]
    %v1951 = vld [vmem:[#allocation2 + $0x378] sm:$0xff]
    %v1952 = vld [vmem:[#allocation2 + $0x380] sm:$0xff]
    %v1953 = vld [vmem:[#allocation2 + $0x388] sm:$0xff]
    %v1954 = vld [vmem:[#allocation2 + $0x390] sm:$0xff]
    %v1955 = vld [vmem:[#allocation2 + $0x398] sm:$0xff]
    %v1956 = vld [vmem:[#allocation2 + $0x3a0] sm:$0xff]
    %v1957 = vld [vmem:[#allocation2 + $0x3a8] sm:$0xff]
    %v1958 = vld [vmem:[#allocation2 + $0x3b0] sm:$0xff]
    %v1959 = vld [vmem:[#allocation2 + $0x3b8] sm:$0xff]
    %v1960 = vld [vmem:[#allocation2 + $0x3c0] sm:$0xff]
    %v1961 = vld [vmem:[#allocation2 + $0x3c8] sm:$0xff]
    %v1962 = vld [vmem:[#allocation2 + $0x3d0] sm:$0xff]
    %v1963 = vld [vmem:[#allocation2 + $0x3d8] sm:$0xff]
    %v1964 = vld [vmem:[#allocation2 + $0x3e0] sm:$0xff]
    %v1965 = vld [vmem:[#allocation2 + $0x3e8] sm:$0xff]
    %v1966 = vld [vmem:[#allocation2 + $0x3f0] sm:$0xff]
    %v1967 = vld [vmem:[#allocation2 + $0x3f8] sm:$0xff]
    %v1968 = vld [vmem:[#allocation2 + $0x400] sm:$0xff]
    %v1969 = vld [vmem:[#allocation2 + $0x408] sm:$0xff]
    %v1970 = vld [vmem:[#allocation2 + $0x410] sm:$0xff]
    %v1971 = vld [vmem:[#allocation2 + $0x418] sm:$0xff]
    %v1972 = vld [vmem:[#allocation2 + $0x420] sm:$0xff]
    %v1973 = vld [vmem:[#allocation2 + $0x428] sm:$0xff]
    %v1974 = vld [vmem:[#allocation2 + $0x430] sm:$0xff]
    %v1975 = vld [vmem:[#allocation2 + $0x438] sm:$0xff]
    %v1976 = vld [vmem:[#allocation2 + $0x440] sm:$0xff]
    %v1977 = vld [vmem:[#allocation2 + $0x448] sm:$0xff]
    %v1978 = vld [vmem:[#allocation2 + $0x450] sm:$0xff]
    %v1979 = vld [vmem:[#allocation2 + $0x458] sm:$0xff]
    %v1980 = vld [vmem:[#allocation2 + $0x460] sm:$0xff]
    %v1981 = vld [vmem:[#allocation2 + $0x468] sm:$0xff]
    %v1982 = vld [vmem:[#allocation2 + $0x470] sm:$0xff]
    %v1983 = vld [vmem:[#allocation2 + $0x478] sm:$0xff]
    %v1984 = vld [vmem:[#allocation2 + $0x480] sm:$0xff]
    %v1985 = vld [vmem:[#allocation2 + $0x488] sm:$0xff]
    %v1986 = vld [vmem:[#allocation2 + $0x490] sm:$0xff]
    %v1987 = vld [vmem:[#allocation2 + $0x498] sm:$0xff]
    %v1988 = vld [vmem:[#allocation2 + $0x4a0] sm:$0xff]
    %v1989 = vld [vmem:[#allocation2 + $0x4a8] sm:$0xff]
    %v1990 = vld [vmem:[#allocation2 + $0x4b0] sm:$0xff]
    %v1991 = vld [vmem:[#allocation2 + $0x4b8] sm:$0xff]
    %v1992 = vld [vmem:[#allocation2 + $0x4c0] sm:$0xff]
    %v1993 = vld [vmem:[#allocation2 + $0x4c8] sm:$0xff]
    %v1994 = vld [vmem:[#allocation2 + $0x4d0] sm:$0xff]
    %v1995 = vld [vmem:[#allocation2 + $0x4d8] sm:$0xff]
    %v1996 = vld [vmem:[#allocation2 + $0x4e0] sm:$0xff]
    %v1997 = vld [vmem:[#allocation2 + $0x4e8] sm:$0xff]
    %v1998 = vld [vmem:[#allocation2 + $0x4f0] sm:$0xff]
    %v1999 = vld [vmem:[#allocation2 + $0x4f8] sm:$0xff]
    %v2000 = vld [vmem:[#allocation2 + $0x500] sm:$0xff]
    %v2001 = vld [vmem:[#allocation2 + $0x508] sm:$0xff]
    %v2002 = vld [vmem:[#allocation2 + $0x510] sm:$0xff]
    %v2003 = vld [vmem:[#allocation2 + $0x518] sm:$0xff]
    %v2004 = vld [vmem:[#allocation2 + $0x520] sm:$0xff]
    %v2005 = vld [vmem:[#allocation2 + $0x528] sm:$0xff]
    %v2006 = vld [vmem:[#allocation2 + $0x530] sm:$0xff]
    %v2007 = vld [vmem:[#allocation2 + $0x538] sm:$0xff]
    %v2008 = vld [vmem:[#allocation2 + $0x540] sm:$0xff]
    %v2009 = vld [vmem:[#allocation2 + $0x548] sm:$0xff]
    %v2010 = vld [vmem:[#allocation2 + $0x550] sm:$0xff]
    %v2011 = vld [vmem:[#allocation2 + $0x558] sm:$0xff]
    %v2012 = vld [vmem:[#allocation2 + $0x560] sm:$0xff]
    %v2013 = vld [vmem:[#allocation2 + $0x568] sm:$0xff]
    %v2014 = vld [vmem:[#allocation2 + $0x570] sm:$0xff]
    %v2015 = vld [vmem:[#allocation2 + $0x578] sm:$0xff]
    %v2016 = vld [vmem:[#allocation2 + $0x580] sm:$0xff]
    %v2017 = vld [vmem:[#allocation2 + $0x588] sm:$0xff]
    %v2018 = vld [vmem:[#allocation2 + $0x590] sm:$0xff]
    %v2019 = vld [vmem:[#allocation2 + $0x598] sm:$0xff]
    %v2020 = vld [vmem:[#allocation2 + $0x5a0] sm:$0xff]
    %v2021 = vld [vmem:[#allocation2 + $0x5a8] sm:$0xff]
    %v2022 = vld [vmem:[#allocation2 + $0x5b0] sm:$0xff]
    %v2023 = vld [vmem:[#allocation2 + $0x5b8] sm:$0xff]
    %v2024 = vld [vmem:[#allocation2 + $0x5c0] sm:$0xff]
    %v2025 = vld [vmem:[#allocation2 + $0x5c8] sm:$0xff]
    %v2026 = vld [vmem:[#allocation2 + $0x5d0] sm:$0xff]
    %v2027 = vld [vmem:[#allocation2 + $0x5d8] sm:$0xff]
    %v2028 = vld [vmem:[#allocation2 + $0x5e0] sm:$0xff]
    %v2029 = vld [vmem:[#allocation2 + $0x5e8] sm:$0xff]
    %v2030 = vld [vmem:[#allocation2 + $0x5f0] sm:$0xff]
    %v2031 = vld [vmem:[#allocation2 + $0x5f8] sm:$0xff]
    %v2032 = vld [vmem:[#allocation2 + $0x600] sm:$0xff]
    %v2033 = vld [vmem:[#allocation2 + $0x608] sm:$0xff]
    %v2034 = vld [vmem:[#allocation2 + $0x610] sm:$0xff]
    %v2035 = vld [vmem:[#allocation2 + $0x618] sm:$0xff]
    %v2036 = vld [vmem:[#allocation2 + $0x620] sm:$0xff]
    %v2037 = vld [vmem:[#allocation2 + $0x628] sm:$0xff]
    %v2038 = vld [vmem:[#allocation2 + $0x630] sm:$0xff]
    %v2039 = vld [vmem:[#allocation2 + $0x638] sm:$0xff]
    %v2040 = vld [vmem:[#allocation2 + $0x640] sm:$0xff]
    %v2041 = vld [vmem:[#allocation2 + $0x648] sm:$0xff]
    %v2042 = vld [vmem:[#allocation2 + $0x650] sm:$0xff]
    %v2043 = vld [vmem:[#allocation2 + $0x658] sm:$0xff]
    %v2044 = vld [vmem:[#allocation2 + $0x660] sm:$0xff]
    %v2045 = vld [vmem:[#allocation2 + $0x668] sm:$0xff]
    %v2046 = vld [vmem:[#allocation2 + $0x670] sm:$0xff]
    %v2047 = vld [vmem:[#allocation2 + $0x678] sm:$0xff]
    %v2048 = vld [vmem:[#allocation2 + $0x680] sm:$0xff]
    %v2049 = vld [vmem:[#allocation2 + $0x688] sm:$0xff]
    %v2050 = vld [vmem:[#allocation2 + $0x690] sm:$0xff]
    %v2051 = vld [vmem:[#allocation2 + $0x698] sm:$0xff]
    %v2052 = vld [vmem:[#allocation2 + $0x6a0] sm:$0xff]
    %v2053 = vld [vmem:[#allocation2 + $0x6a8] sm:$0xff]
    %v2054 = vld [vmem:[#allocation2 + $0x6b0] sm:$0xff]
    %v2055 = vld [vmem:[#allocation2 + $0x6b8] sm:$0xff]
    %v2056 = vld [vmem:[#allocation2 + $0x6c0] sm:$0xff]
    %v2057 = vld [vmem:[#allocation2 + $0x6c8] sm:$0xff]
    %v2058 = vld [vmem:[#allocation2 + $0x6d0] sm:$0xff]
    %v2059 = vld [vmem:[#allocation2 + $0x6d8] sm:$0xff]
    %v2060 = vld [vmem:[#allocation2 + $0x6e0] sm:$0xff]
    %v2061 = vld [vmem:[#allocation2 + $0x6e8] sm:$0xff]
    %v2062 = vld [vmem:[#allocation2 + $0x6f0] sm:$0xff]
    %v2063 = vld [vmem:[#allocation2 + $0x6f8] sm:$0xff]
    %v2064 = vld [vmem:[#allocation2 + $0x700] sm:$0xff]
    %v2065 = vld [vmem:[#allocation2 + $0x708] sm:$0xff]
    %v2066 = vld [vmem:[#allocation2 + $0x710] sm:$0xff]
    %v2067 = vld [vmem:[#allocation2 + $0x718] sm:$0xff]
    %v2068 = vld [vmem:[#allocation2 + $0x720] sm:$0xff]
    %v2069 = vld [vmem:[#allocation2 + $0x728] sm:$0xff]
    %v2070 = vld [vmem:[#allocation2 + $0x730] sm:$0xff]
    %v2071 = vld [vmem:[#allocation2 + $0x738] sm:$0xff]
    %v2072 = vld [vmem:[#allocation2 + $0x740] sm:$0xff]
    %v2073 = vld [vmem:[#allocation2 + $0x748] sm:$0xff]
    %v2074 = vld [vmem:[#allocation2 + $0x750] sm:$0xff]
    %v2075 = vld [vmem:[#allocation2 + $0x758] sm:$0xff]
    %v2076 = vld [vmem:[#allocation2 + $0x760] sm:$0xff]
    %v2077 = vld [vmem:[#allocation2 + $0x768] sm:$0xff]
    %v2078 = vld [vmem:[#allocation2 + $0x770] sm:$0xff]
    %v2079 = vld [vmem:[#allocation2 + $0x778] sm:$0xff]
    %v2080 = vld [vmem:[#allocation2 + $0x780] sm:$0xff]
    %v2081 = vld [vmem:[#allocation2 + $0x788] sm:$0xff]
    %v2082 = vld [vmem:[#allocation2 + $0x790] sm:$0xff]
    %v2083 = vld [vmem:[#allocation2 + $0x798] sm:$0xff]
    %v2084 = vld [vmem:[#allocation2 + $0x7a0] sm:$0xff]
    %v2085 = vld [vmem:[#allocation2 + $0x7a8] sm:$0xff]
    %v2086 = vld [vmem:[#allocation2 + $0x7b0] sm:$0xff]
    %v2087 = vld [vmem:[#allocation2 + $0x7b8] sm:$0xff]
    %v2088 = vld [vmem:[#allocation2 + $0x7c0] sm:$0xff]
    %v2089 = vld [vmem:[#allocation2 + $0x7c8] sm:$0xff]
    %v2090 = vld [vmem:[#allocation2 + $0x7d0] sm:$0xff]
    %v2091 = vld [vmem:[#allocation2 + $0x7d8] sm:$0xff]
    %v2092 = vld [vmem:[#allocation2 + $0x7e0] sm:$0xff]
    %v2093 = vld [vmem:[#allocation2 + $0x7e8] sm:$0xff]
    %v2094 = vld [vmem:[#allocation2 + $0x7f0] sm:$0xff]
    %v2095 = vld [vmem:[#allocation2 + $0x7f8] sm:$0xff]
    %v2096 = vld [vmem:[#allocation2 + $0x800] sm:$0xff]
    %v2097 = vld [vmem:[#allocation2 + $0x808] sm:$0xff]
    %v2098 = vld [vmem:[#allocation2 + $0x810] sm:$0xff]
    %v2099 = vld [vmem:[#allocation2 + $0x818] sm:$0xff]
    %v2100 = vld [vmem:[#allocation2 + $0x820] sm:$0xff]
    %v2101 = vld [vmem:[#allocation2 + $0x828] sm:$0xff]
    %v2102 = vld [vmem:[#allocation2 + $0x830] sm:$0xff]
    %v2103 = vld [vmem:[#allocation2 + $0x838] sm:$0xff]
    %v2104 = vld [vmem:[#allocation2 + $0x840] sm:$0xff]
    %v2105 = vld [vmem:[#allocation2 + $0x848] sm:$0xff]
    %v2106 = vld [vmem:[#allocation2 + $0x850] sm:$0xff]
    %v2107 = vld [vmem:[#allocation2 + $0x858] sm:$0xff]
    %v2108 = vld [vmem:[#allocation2 + $0x860] sm:$0xff]
    %v2109 = vld [vmem:[#allocation2 + $0x868] sm:$0xff]
    %v2110 = vld [vmem:[#allocation2 + $0x870] sm:$0xff]
    %v2111 = vld [vmem:[#allocation2 + $0x878] sm:$0xff]
    %v2112 = vld [vmem:[#allocation2 + $0x880] sm:$0xff]
    %v2113 = vld [vmem:[#allocation2 + $0x888] sm:$0xff]
    %v2114 = vld [vmem:[#allocation2 + $0x890] sm:$0xff]
    %v2115 = vld [vmem:[#allocation2 + $0x898] sm:$0xff]
    %v2116 = vld [vmem:[#allocation2 + $0x8a0] sm:$0xff]
    %v2117 = vld [vmem:[#allocation2 + $0x8a8] sm:$0xff]
    %v2118 = vld [vmem:[#allocation2 + $0x8b0] sm:$0xff]
    %v2119 = vld [vmem:[#allocation2 + $0x8b8] sm:$0xff]
    %v2120 = vld [vmem:[#allocation2 + $0x8c0] sm:$0xff]
    %v2121 = vld [vmem:[#allocation2 + $0x8c8] sm:$0xff]
    %v2122 = vld [vmem:[#allocation2 + $0x8d0] sm:$0xff]
    %v2123 = vld [vmem:[#allocation2 + $0x8d8] sm:$0xff]
    %v2124 = vld [vmem:[#allocation2 + $0x8e0] sm:$0xff]
    %v2125 = vld [vmem:[#allocation2 + $0x8e8] sm:$0xff]
    %v2126 = vld [vmem:[#allocation2 + $0x8f0] sm:$0xff]
    %v2127 = vld [vmem:[#allocation2 + $0x8f8] sm:$0xff]
    %v2128 = vld [vmem:[#allocation2 + $0x900] sm:$0xff]
    %v2129 = vld [vmem:[#allocation2 + $0x908] sm:$0xff]
    %v2130 = vld [vmem:[#allocation2 + $0x910] sm:$0xff]
    %v2131 = vld [vmem:[#allocation2 + $0x918] sm:$0xff]
    %v2132 = vld [vmem:[#allocation2 + $0x920] sm:$0xff]
    %v2133 = vld [vmem:[#allocation2 + $0x928] sm:$0xff]
    %v2134 = vld [vmem:[#allocation2 + $0x930] sm:$0xff]
    %v2135 = vld [vmem:[#allocation2 + $0x938] sm:$0xff]
    %v2136 = vld [vmem:[#allocation2 + $0x940] sm:$0xff]
    %v2137 = vld [vmem:[#allocation2 + $0x948] sm:$0xff]
    %v2138 = vld [vmem:[#allocation2 + $0x950] sm:$0xff]
    %v2139 = vld [vmem:[#allocation2 + $0x958] sm:$0xff]
    %v2140 = vld [vmem:[#allocation2 + $0x960] sm:$0xff]
    %v2141 = vld [vmem:[#allocation2 + $0x968] sm:$0xff]
    %v2142 = vld [vmem:[#allocation2 + $0x970] sm:$0xff]
    %v2143 = vld [vmem:[#allocation2 + $0x978] sm:$0xff]
    %v2144 = vld [vmem:[#allocation2 + $0x980] sm:$0xff]
    %v2145 = vld [vmem:[#allocation2 + $0x988] sm:$0xff]
    %v2146 = vld [vmem:[#allocation2 + $0x990] sm:$0xff]
    %v2147 = vld [vmem:[#allocation2 + $0x998] sm:$0xff]
    %v2148 = vld [vmem:[#allocation2 + $0x9a0] sm:$0xff]
    %v2149 = vld [vmem:[#allocation2 + $0x9a8] sm:$0xff]
    %v2150 = vld [vmem:[#allocation2 + $0x9b0] sm:$0xff]
    %v2151 = vld [vmem:[#allocation2 + $0x9b8] sm:$0xff]
    %v2152 = vld [vmem:[#allocation2 + $0x9c0] sm:$0xff]
    %v2153 = vld [vmem:[#allocation2 + $0x9c8] sm:$0xff]
    %v2154 = vld [vmem:[#allocation2 + $0x9d0] sm:$0xff]
    %v2155 = vld [vmem:[#allocation2 + $0x9d8] sm:$0xff]
    %v2156 = vld [vmem:[#allocation2 + $0x9e0] sm:$0xff]
    %v2157 = vld [vmem:[#allocation2 + $0x9e8] sm:$0xff]
    %v2158 = vld [vmem:[#allocation2 + $0x9f0] sm:$0xff]
    %v2159 = vld [vmem:[#allocation2 + $0x9f8] sm:$0xff]
    %v2160 = vld [vmem:[#allocation2 + $0xa00] sm:$0xff]
    %v2161 = vld [vmem:[#allocation2 + $0xa08] sm:$0xff]
    %v2162 = vld [vmem:[#allocation2 + $0xa10] sm:$0xff]
    %v2163 = vld [vmem:[#allocation2 + $0xa18] sm:$0xff]
    %v2164 = vld [vmem:[#allocation2 + $0xa20] sm:$0xff]
    %v2165 = vld [vmem:[#allocation2 + $0xa28] sm:$0xff]
    %v2166 = vld [vmem:[#allocation2 + $0xa30] sm:$0xff]
    %v2167 = vld [vmem:[#allocation2 + $0xa38] sm:$0xff]
    %v2168 = vld [vmem:[#allocation2 + $0xa40] sm:$0xff]
    %v2169 = vld [vmem:[#allocation2 + $0xa48] sm:$0xff]
    %v2170 = vld [vmem:[#allocation2 + $0xa50] sm:$0xff]
    %v2171 = vld [vmem:[#allocation2 + $0xa58] sm:$0xff]
    %v2172 = vld [vmem:[#allocation2 + $0xa60] sm:$0xff]
    %v2173 = vld [vmem:[#allocation2 + $0xa68] sm:$0xff]
    %v2174 = vld [vmem:[#allocation2 + $0xa70] sm:$0xff]
    %v2175 = vld [vmem:[#allocation2 + $0xa78] sm:$0xff]
    %v2176 = vld [vmem:[#allocation2 + $0xa80] sm:$0xff]
    %v2177 = vld [vmem:[#allocation2 + $0xa88] sm:$0xff]
    %v2178 = vld [vmem:[#allocation2 + $0xa90] sm:$0xff]
    %v2179 = vld [vmem:[#allocation2 + $0xa98] sm:$0xff]
    %v2180 = vld [vmem:[#allocation2 + $0xaa0] sm:$0xff]
    %v2181 = vld [vmem:[#allocation2 + $0xaa8] sm:$0xff]
    %v2182 = vld [vmem:[#allocation2 + $0xab0] sm:$0xff]
    %v2183 = vld [vmem:[#allocation2 + $0xab8] sm:$0xff]
    %v2184 = vld [vmem:[#allocation2 + $0xac0] sm:$0xff]
    %v2185 = vld [vmem:[#allocation2 + $0xac8] sm:$0xff]
    %v2186 = vld [vmem:[#allocation2 + $0xad0] sm:$0xff]
    %v2187 = vld [vmem:[#allocation2 + $0xad8] sm:$0xff]
    %v2188 = vld [vmem:[#allocation2 + $0xae0] sm:$0xff]
    %v2189 = vld [vmem:[#allocation2 + $0xae8] sm:$0xff]
    %v2190 = vld [vmem:[#allocation2 + $0xaf0] sm:$0xff]
    %v2191 = vld [vmem:[#allocation2 + $0xaf8] sm:$0xff]
    %v2192 = vld [vmem:[#allocation2 + $0xb00] sm:$0xff]
    %v2193 = vld [vmem:[#allocation2 + $0xb08] sm:$0xff]
    %v2194 = vld [vmem:[#allocation2 + $0xb10] sm:$0xff]
    %v2195 = vld [vmem:[#allocation2 + $0xb18] sm:$0xff]
    %v2196 = vld [vmem:[#allocation2 + $0xb20] sm:$0xff]
    %v2197 = vld [vmem:[#allocation2 + $0xb28] sm:$0xff]
    %v2198 = vld [vmem:[#allocation2 + $0xb30] sm:$0xff]
    %v2199 = vld [vmem:[#allocation2 + $0xb38] sm:$0xff]
    %v2200 = vld [vmem:[#allocation2 + $0xb40] sm:$0xff]
    %v2201 = vld [vmem:[#allocation2 + $0xb48] sm:$0xff]
    %v2202 = vld [vmem:[#allocation2 + $0xb50] sm:$0xff]
    %v2203 = vld [vmem:[#allocation2 + $0xb58] sm:$0xff]
    %v2204 = vld [vmem:[#allocation2 + $0xb60] sm:$0xff]
    %v2205 = vld [vmem:[#allocation2 + $0xb68] sm:$0xff]
    %v2206 = vld [vmem:[#allocation2 + $0xb70] sm:$0xff]
    %v2207 = vld [vmem:[#allocation2 + $0xb78] sm:$0xff]
    %v2208 = vld [vmem:[#allocation2 + $0xb80] sm:$0xff]
    %v2209 = vld [vmem:[#allocation2 + $0xb88] sm:$0xff]
    %v2210 = vld [vmem:[#allocation2 + $0xb90] sm:$0xff]
    %v2211 = vld [vmem:[#allocation2 + $0xb98] sm:$0xff]
    %v2212 = vld [vmem:[#allocation2 + $0xba0] sm:$0xff]
    %v2213 = vld [vmem:[#allocation2 + $0xba8] sm:$0xff]
    %v2214 = vld [vmem:[#allocation2 + $0xbb0] sm:$0xff]
    %v2215 = vld [vmem:[#allocation2 + $0xbb8] sm:$0xff]
    %v2216 = vld [vmem:[#allocation2 + $0xbc0] sm:$0xff]
    %v2217 = vld [vmem:[#allocation2 + $0xbc8] sm:$0xff]
    %v2218 = vld [vmem:[#allocation2 + $0xbd0] sm:$0xff]
    %v2219 = vld [vmem:[#allocation2 + $0xbd8] sm:$0xff]
    %v2220 = vld [vmem:[#allocation2 + $0xbe0] sm:$0xff]
    %v2221 = vld [vmem:[#allocation2 + $0xbe8] sm:$0xff]
    %v2222 = vld [vmem:[#allocation2 + $0xbf0] sm:$0xff]
    %v2223 = vld [vmem:[#allocation2 + $0xbf8] sm:$0xff]
    %v2224 = vld [vmem:[#allocation2 + $0xc00] sm:$0xff]
    %v2225 = vld [vmem:[#allocation2 + $0xc08] sm:$0xff]
    %v2226 = vld [vmem:[#allocation2 + $0xc10] sm:$0xff]
    %v2227 = vld [vmem:[#allocation2 + $0xc18] sm:$0xff]
    %v2228 = vld [vmem:[#allocation2 + $0xc20] sm:$0xff]
    %v2229 = vld [vmem:[#allocation2 + $0xc28] sm:$0xff]
    %v2230 = vld [vmem:[#allocation2 + $0xc30] sm:$0xff]
    %v2231 = vld [vmem:[#allocation2 + $0xc38] sm:$0xff]
    %v2232 = vld [vmem:[#allocation2 + $0xc40] sm:$0xff]
    %v2233 = vld [vmem:[#allocation2 + $0xc48] sm:$0xff]
    %v2234 = vld [vmem:[#allocation2 + $0xc50] sm:$0xff]
    %v2235 = vld [vmem:[#allocation2 + $0xc58] sm:$0xff]
    %v2236 = vld [vmem:[#allocation2 + $0xc60] sm:$0xff]
    %v2237 = vld [vmem:[#allocation2 + $0xc68] sm:$0xff]
    %v2238 = vld [vmem:[#allocation2 + $0xc70] sm:$0xff]
    %v2239 = vld [vmem:[#allocation2 + $0xc78] sm:$0xff]
    %v2240 = vld [vmem:[#allocation2 + $0xc80] sm:$0xff]
    %v2241 = vld [vmem:[#allocation2 + $0xc88] sm:$0xff]
    %v2242 = vld [vmem:[#allocation2 + $0xc90] sm:$0xff]
    %v2243 = vld [vmem:[#allocation2 + $0xc98] sm:$0xff]
    %v2244 = vld [vmem:[#allocation2 + $0xca0] sm:$0xff]
    %v2245 = vld [vmem:[#allocation2 + $0xca8] sm:$0xff]
    %v2246 = vld [vmem:[#allocation2 + $0xcb0] sm:$0xff]
    %v2247 = vld [vmem:[#allocation2 + $0xcb8] sm:$0xff]
    %v2248 = vld [vmem:[#allocation2 + $0xcc0] sm:$0xff]
    %v2249 = vld [vmem:[#allocation2 + $0xcc8] sm:$0xff]
    %v2250 = vld [vmem:[#allocation2 + $0xcd0] sm:$0xff]
    %v2251 = vld [vmem:[#allocation2 + $0xcd8] sm:$0xff]
    %v2252 = vld [vmem:[#allocation2 + $0xce0] sm:$0xff]
    %v2253 = vld [vmem:[#allocation2 + $0xce8] sm:$0xff]
    %v2254 = vld [vmem:[#allocation2 + $0xcf0] sm:$0xff]
    %v2255 = vld [vmem:[#allocation2 + $0xcf8] sm:$0xff]
    %v2256 = vld [vmem:[#allocation2 + $0xd00] sm:$0xff]
    %v2257 = vld [vmem:[#allocation2 + $0xd08] sm:$0xff]
    %v2258 = vld [vmem:[#allocation2 + $0xd10] sm:$0xff]
    %v2259 = vld [vmem:[#allocation2 + $0xd18] sm:$0xff]
    %v2260 = vld [vmem:[#allocation2 + $0xd20] sm:$0xff]
    %v2261 = vld [vmem:[#allocation2 + $0xd28] sm:$0xff]
    %v2262 = vld [vmem:[#allocation2 + $0xd30] sm:$0xff]
    %v2263 = vld [vmem:[#allocation2 + $0xd38] sm:$0xff]
    %v2264 = vld [vmem:[#allocation2 + $0xd40] sm:$0xff]
    %v2265 = vld [vmem:[#allocation2 + $0xd48] sm:$0xff]
    %v2266 = vld [vmem:[#allocation2 + $0xd50] sm:$0xff]
    %v2267 = vld [vmem:[#allocation2 + $0xd58] sm:$0xff]
    %v2268 = vld [vmem:[#allocation2 + $0xd60] sm:$0xff]
    %v2269 = vld [vmem:[#allocation2 + $0xd68] sm:$0xff]
    %v2270 = vld [vmem:[#allocation2 + $0xd70] sm:$0xff]
    %v2271 = vld [vmem:[#allocation2 + $0xd78] sm:$0xff]
    %v2272 = vld [vmem:[#allocation2 + $0xd80] sm:$0xff]
    %v2273 = vld [vmem:[#allocation2 + $0xd88] sm:$0xff]
    %v2274 = vld [vmem:[#allocation2 + $0xd90] sm:$0xff]
    %v2275 = vld [vmem:[#allocation2 + $0xd98] sm:$0xff]
    %v2276 = vld [vmem:[#allocation2 + $0xda0] sm:$0xff]
    %v2277 = vld [vmem:[#allocation2 + $0xda8] sm:$0xff]
    %v2278 = vld [vmem:[#allocation2 + $0xdb0] sm:$0xff]
    %v2279 = vld [vmem:[#allocation2 + $0xdb8] sm:$0xff]
    %v2280 = vld [vmem:[#allocation2 + $0xdc0] sm:$0xff]
    %v2281 = vld [vmem:[#allocation2 + $0xdc8] sm:$0xff]
    %v2282 = vld [vmem:[#allocation2 + $0xdd0] sm:$0xff]
    %v2283 = vld [vmem:[#allocation2 + $0xdd8] sm:$0xff]
    %v2284 = vld [vmem:[#allocation2 + $0xde0] sm:$0xff]
    %v2285 = vld [vmem:[#allocation2 + $0xde8] sm:$0xff]
    %v2286 = vld [vmem:[#allocation2 + $0xdf0] sm:$0xff]
    %v2287 = vld [vmem:[#allocation2 + $0xdf8] sm:$0xff]
    %v2288 = vld [vmem:[#allocation2 + $0xe00] sm:$0xff]
    %v2289 = vld [vmem:[#allocation2 + $0xe08] sm:$0xff]
    %v2290 = vld [vmem:[#allocation2 + $0xe10] sm:$0xff]
    %v2291 = vld [vmem:[#allocation2 + $0xe18] sm:$0xff]
    %v2292 = vld [vmem:[#allocation2 + $0xe20] sm:$0xff]
    %v2293 = vld [vmem:[#allocation2 + $0xe28] sm:$0xff]
    %v2294 = vld [vmem:[#allocation2 + $0xe30] sm:$0xff]
    %v2295 = vld [vmem:[#allocation2 + $0xe38] sm:$0xff]
    %v2296 = vld [vmem:[#allocation2 + $0xe40] sm:$0xff]
    %v2297 = vld [vmem:[#allocation2 + $0xe48] sm:$0xff]
    %v2298 = vld [vmem:[#allocation2 + $0xe50] sm:$0xff]
    %v2299 = vld [vmem:[#allocation2 + $0xe58] sm:$0xff]
    %v2300 = vld [vmem:[#allocation2 + $0xe60] sm:$0xff]
    %v2301 = vld [vmem:[#allocation2 + $0xe68] sm:$0xff]
    %v2302 = vld [vmem:[#allocation2 + $0xe70] sm:$0xff]
    %v2303 = vld [vmem:[#allocation2 + $0xe78] sm:$0xff]
    %v2304 = vld [vmem:[#allocation2 + $0xe80] sm:$0xff]
    %v2305 = vld [vmem:[#allocation2 + $0xe88] sm:$0xff]
    %v2306 = vld [vmem:[#allocation2 + $0xe90] sm:$0xff]
    %v2307 = vld [vmem:[#allocation2 + $0xe98] sm:$0xff]
    %v2308 = vld [vmem:[#allocation2 + $0xea0] sm:$0xff]
    %v2309 = vld [vmem:[#allocation2 + $0xea8] sm:$0xff]
    %v2310 = vld [vmem:[#allocation2 + $0xeb0] sm:$0xff]
    %v2311 = vld [vmem:[#allocation2 + $0xeb8] sm:$0xff]
    %v2312 = vld [vmem:[#allocation2 + $0xec0] sm:$0xff]
    %v2313 = vld [vmem:[#allocation2 + $0xec8] sm:$0xff]
    %v2314 = vld [vmem:[#allocation2 + $0xed0] sm:$0xff]
    %v2315 = vld [vmem:[#allocation2 + $0xed8] sm:$0xff]
    %v2316 = vld [vmem:[#allocation2 + $0xee0] sm:$0xff]
    %v2317 = vld [vmem:[#allocation2 + $0xee8] sm:$0xff]
    %v2318 = vld [vmem:[#allocation2 + $0xef0] sm:$0xff]
    %v2319 = vld [vmem:[#allocation2 + $0xef8] sm:$0xff]
    %v2320 = vld [vmem:[#allocation2 + $0xf00] sm:$0xff]
    %v2321 = vld [vmem:[#allocation2 + $0xf08] sm:$0xff]
    %v2322 = vld [vmem:[#allocation2 + $0xf10] sm:$0xff]
    %v2323 = vld [vmem:[#allocation2 + $0xf18] sm:$0xff]
    %v2324 = vld [vmem:[#allocation2 + $0xf20] sm:$0xff]
    %v2325 = vld [vmem:[#allocation2 + $0xf28] sm:$0xff]
    %v2326 = vld [vmem:[#allocation2 + $0xf30] sm:$0xff]
    %v2327 = vld [vmem:[#allocation2 + $0xf38] sm:$0xff]
    %v2328 = vld [vmem:[#allocation2 + $0xf40] sm:$0xff]
    %v2329 = vld [vmem:[#allocation2 + $0xf48] sm:$0xff]
    %v2330 = vld [vmem:[#allocation2 + $0xf50] sm:$0xff]
    %v2331 = vld [vmem:[#allocation2 + $0xf58] sm:$0xff]
    %v2332 = vld [vmem:[#allocation2 + $0xf60] sm:$0xff]
    %v2333 = vld [vmem:[#allocation2 + $0xf68] sm:$0xff]
    %v2334 = vld [vmem:[#allocation2 + $0xf70] sm:$0xff]
    %v2335 = vld [vmem:[#allocation2 + $0xf78] sm:$0xff]
    %v2336 = vld [vmem:[#allocation2 + $0xf80] sm:$0xff]
    %v2337 = vld [vmem:[#allocation2 + $0xf88] sm:$0xff]
    %v2338 = vld [vmem:[#allocation2 + $0xf90] sm:$0xff]
    %v2339 = vld [vmem:[#allocation2 + $0xf98] sm:$0xff]
    %v2340 = vld [vmem:[#allocation2 + $0xfa0] sm:$0xff]
    %v2341 = vld [vmem:[#allocation2 + $0xfa8] sm:$0xff]
    %v2342 = vld [vmem:[#allocation2 + $0xfb0] sm:$0xff]
    %v2343 = vld [vmem:[#allocation2 + $0xfb8] sm:$0xff]
    %v2344 = vld [vmem:[#allocation2 + $0xfc0] sm:$0xff]
    %v2345 = vld [vmem:[#allocation2 + $0xfc8] sm:$0xff]
    %v2346 = vld [vmem:[#allocation2 + $0xfd0] sm:$0xff]
    %v2347 = vld [vmem:[#allocation2 + $0xfd8] sm:$0xff]
    %v2348 = vld [vmem:[#allocation2 + $0xfe0] sm:$0xff]
    %v2349 = vld [vmem:[#allocation2 + $0xfe8] sm:$0xff]
    %v2350 = vld [vmem:[#allocation2 + $0xff0] sm:$0xff]
    %v2351 = vld [vmem:[#allocation2 + $0xff8] sm:$0xff]
    %v2352 = vld [vmem:[#allocation2 + $0x1000] sm:$0xff]
    %v2353 = vld [vmem:[#allocation2 + $0x1008] sm:$0xff]
    %v2354 = vld [vmem:[#allocation2 + $0x1010] sm:$0xff]
    %v2355 = vld [vmem:[#allocation2 + $0x1018] sm:$0xff]
    %v2356 = vld [vmem:[#allocation2 + $0x1020] sm:$0xff]
    %v2357 = vld [vmem:[#allocation2 + $0x1028] sm:$0xff]
    %v2358 = vld [vmem:[#allocation2 + $0x1030] sm:$0xff]
    %v2359 = vld [vmem:[#allocation2 + $0x1038] sm:$0xff]
    %v2360 = vld [vmem:[#allocation2 + $0x1040] sm:$0xff]
    %v2361 = vld [vmem:[#allocation2 + $0x1048] sm:$0xff]
    %v2362 = vld [vmem:[#allocation2 + $0x1050] sm:$0xff]
    %v2363 = vld [vmem:[#allocation2 + $0x1058] sm:$0xff]
    %v2364 = vld [vmem:[#allocation2 + $0x1060] sm:$0xff]
    %v2365 = vld [vmem:[#allocation2 + $0x1068] sm:$0xff]
    %v2366 = vld [vmem:[#allocation2 + $0x1070] sm:$0xff]
    %v2367 = vld [vmem:[#allocation2 + $0x1078] sm:$0xff]
    %v2368 = vld [vmem:[#allocation2 + $0x1080] sm:$0xff]
    %v2369 = vld [vmem:[#allocation2 + $0x1088] sm:$0xff]
    %v2370 = vld [vmem:[#allocation2 + $0x1090] sm:$0xff]
    %v2371 = vld [vmem:[#allocation2 + $0x1098] sm:$0xff]
    %v2372 = vld [vmem:[#allocation2 + $0x10a0] sm:$0xff]
    %v2373 = vld [vmem:[#allocation2 + $0x10a8] sm:$0xff]
    %v2374 = vld [vmem:[#allocation2 + $0x10b0] sm:$0xff]
    %v2375 = vld [vmem:[#allocation2 + $0x10b8] sm:$0xff]
    %v2376 = vld [vmem:[#allocation2 + $0x10c0] sm:$0xff]
    %v2377 = vld [vmem:[#allocation2 + $0x10c8] sm:$0xff]
    %v2378 = vld [vmem:[#allocation2 + $0x10d0] sm:$0xff]
    %v2379 = vld [vmem:[#allocation2 + $0x10d8] sm:$0xff]
    %v2380 = vld [vmem:[#allocation2 + $0x10e0] sm:$0xff]
    %v2381 = vld [vmem:[#allocation2 + $0x10e8] sm:$0xff]
    %v2382 = vld [vmem:[#allocation2 + $0x10f0] sm:$0xff]
    %v2383 = vld [vmem:[#allocation2 + $0x10f8] sm:$0xff]
    %v2384 = vld [vmem:[#allocation2 + $0x1100] sm:$0xff]
    %v2385 = vld [vmem:[#allocation2 + $0x1108] sm:$0xff]
    %v2386 = vld [vmem:[#allocation2 + $0x1110] sm:$0xff]
    %v2387 = vld [vmem:[#allocation2 + $0x1118] sm:$0xff]
    %v2388 = vld [vmem:[#allocation2 + $0x1120] sm:$0xff]
    %v2389 = vld [vmem:[#allocation2 + $0x1128] sm:$0xff]
    %v2390 = vld [vmem:[#allocation2 + $0x1130] sm:$0xff]
    %v2391 = vld [vmem:[#allocation2 + $0x1138] sm:$0xff]
    %v2392 = vld [vmem:[#allocation2 + $0x1140] sm:$0xff]
    %v2393 = vld [vmem:[#allocation2 + $0x1148] sm:$0xff]
    %v2394 = vld [vmem:[#allocation2 + $0x1150] sm:$0xff]
    %v2395 = vld [vmem:[#allocation2 + $0x1158] sm:$0xff]
    %v2396 = vld [vmem:[#allocation2 + $0x1160] sm:$0xff]
    %v2397 = vld [vmem:[#allocation2 + $0x1168] sm:$0xff]
    %v2398 = vld [vmem:[#allocation2 + $0x1170] sm:$0xff]
    %v2399 = vld [vmem:[#allocation2 + $0x1178] sm:$0xff]
    %v2400 = vld [vmem:[#allocation2 + $0x1180] sm:$0xff]
    %v2401 = vld [vmem:[#allocation2 + $0x1188] sm:$0xff]
    %v2402 = vld [vmem:[#allocation2 + $0x1190] sm:$0xff]
    %v2403 = vld [vmem:[#allocation2 + $0x1198] sm:$0xff]
    %v2404 = vld [vmem:[#allocation2 + $0x11a0] sm:$0xff]
    %v2405 = vld [vmem:[#allocation2 + $0x11a8] sm:$0xff]
    %v2406 = vld [vmem:[#allocation2 + $0x11b0] sm:$0xff]
    %v2407 = vld [vmem:[#allocation2 + $0x11b8] sm:$0xff]
    %v2408 = vld [vmem:[#allocation2 + $0x11c0] sm:$0xff]
    %v2409 = vld [vmem:[#allocation2 + $0x11c8] sm:$0xff]
    %v2410 = vld [vmem:[#allocation2 + $0x11d0] sm:$0xff]
    %v2411 = vld [vmem:[#allocation2 + $0x11d8] sm:$0xff]
    %v2412 = vld [vmem:[#allocation2 + $0x11e0] sm:$0xff]
    %v2413 = vld [vmem:[#allocation2 + $0x11e8] sm:$0xff]
    %v2414 = vld [vmem:[#allocation2 + $0x11f0] sm:$0xff]
    %v2415 = vld [vmem:[#allocation2 + $0x11f8] sm:$0xff]
    %v2416 = vld [vmem:[#allocation2 + $0x1200] sm:$0xff]
    %v2417 = vld [vmem:[#allocation2 + $0x1208] sm:$0xff]
    %v2418 = vld [vmem:[#allocation2 + $0x1210] sm:$0xff]
    %v2419 = vld [vmem:[#allocation2 + $0x1218] sm:$0xff]
    %v2420 = vld [vmem:[#allocation2 + $0x1220] sm:$0xff]
    %v2421 = vld [vmem:[#allocation2 + $0x1228] sm:$0xff]
    %v2422 = vld [vmem:[#allocation2 + $0x1230] sm:$0xff]
    %v2423 = vld [vmem:[#allocation2 + $0x1238] sm:$0xff]
    %v2424 = vld [vmem:[#allocation2 + $0x1240] sm:$0xff]
    %v2425 = vld [vmem:[#allocation2 + $0x1248] sm:$0xff]
    %v2426 = vld [vmem:[#allocation2 + $0x1250] sm:$0xff]
    %v2427 = vld [vmem:[#allocation2 + $0x1258] sm:$0xff]
    %v2428 = vld [vmem:[#allocation2 + $0x1260] sm:$0xff]
    %v2429 = vld [vmem:[#allocation2 + $0x1268] sm:$0xff]
    %v2430 = vld [vmem:[#allocation2 + $0x1270] sm:$0xff]
    %v2431 = vld [vmem:[#allocation2 + $0x1278] sm:$0xff]
    %v2432 = vld [vmem:[#allocation2 + $0x1280] sm:$0xff]
    %v2433 = vld [vmem:[#allocation2 + $0x1288] sm:$0xff]
    %v2434 = vld [vmem:[#allocation2 + $0x1290] sm:$0xff]
    %v2435 = vld [vmem:[#allocation2 + $0x1298] sm:$0xff]
    %v2436 = vld [vmem:[#allocation2 + $0x12a0] sm:$0xff]
    %v2437 = vld [vmem:[#allocation2 + $0x12a8] sm:$0xff]
    %v2438 = vld [vmem:[#allocation2 + $0x12b0] sm:$0xff]
    %v2439 = vld [vmem:[#allocation2 + $0x12b8] sm:$0xff]
    %v2440 = vld [vmem:[#allocation2 + $0x12c0] sm:$0xff]
    %v2441 = vld [vmem:[#allocation2 + $0x12c8] sm:$0xff]
    %v2442 = vld [vmem:[#allocation2 + $0x12d0] sm:$0xff]
    %v2443 = vld [vmem:[#allocation2 + $0x12d8] sm:$0xff]
    %v2444 = vld [vmem:[#allocation2 + $0x12e0] sm:$0xff]
    %v2445 = vld [vmem:[#allocation2 + $0x12e8] sm:$0xff]
    %v2446 = vld [vmem:[#allocation2 + $0x12f0] sm:$0xff]
    %v2447 = vld [vmem:[#allocation2 + $0x12f8] sm:$0xff]
    %v2448 = vld [vmem:[#allocation2 + $0x1300] sm:$0xff]
    %v2449 = vld [vmem:[#allocation2 + $0x1308] sm:$0xff]
    %v2450 = vld [vmem:[#allocation2 + $0x1310] sm:$0xff]
    %v2451 = vld [vmem:[#allocation2 + $0x1318] sm:$0xff]
    %v2452 = vld [vmem:[#allocation2 + $0x1320] sm:$0xff]
    %v2453 = vld [vmem:[#allocation2 + $0x1328] sm:$0xff]
    %v2454 = vld [vmem:[#allocation2 + $0x1330] sm:$0xff]
    %v2455 = vld [vmem:[#allocation2 + $0x1338] sm:$0xff]
    %v2456 = vld [vmem:[#allocation2 + $0x1340] sm:$0xff]
    %v2457 = vld [vmem:[#allocation2 + $0x1348] sm:$0xff]
    %v2458 = vld [vmem:[#allocation2 + $0x1350] sm:$0xff]
    %v2459 = vld [vmem:[#allocation2 + $0x1358] sm:$0xff]
    %v2460 = vld [vmem:[#allocation2 + $0x1360] sm:$0xff]
    %v2461 = vld [vmem:[#allocation2 + $0x1368] sm:$0xff]
    %v2462 = vld [vmem:[#allocation2 + $0x1370] sm:$0xff]
    %v2463 = vld [vmem:[#allocation2 + $0x1378] sm:$0xff]
    %v2464 = vld [vmem:[#allocation2 + $0x1380] sm:$0xff]
    %v2465 = vld [vmem:[#allocation2 + $0x1388] sm:$0xff]
    %v2466 = vld [vmem:[#allocation2 + $0x1390] sm:$0xff]
    %v2467 = vld [vmem:[#allocation2 + $0x1398] sm:$0xff]
    %v2468 = vld [vmem:[#allocation2 + $0x13a0] sm:$0xff]
    %v2469 = vld [vmem:[#allocation2 + $0x13a8] sm:$0xff]
    %v2470 = vld [vmem:[#allocation2 + $0x13b0] sm:$0xff]
    %v2471 = vld [vmem:[#allocation2 + $0x13b8] sm:$0xff]
    %v2472 = vld [vmem:[#allocation2 + $0x13c0] sm:$0xff]
    %v2473 = vld [vmem:[#allocation2 + $0x13c8] sm:$0xff]
    %v2474 = vld [vmem:[#allocation2 + $0x13d0] sm:$0xff]
    %v2475 = vld [vmem:[#allocation2 + $0x13d8] sm:$0xff]
    %v2476 = vld [vmem:[#allocation2 + $0x13e0] sm:$0xff]
    %v2477 = vld [vmem:[#allocation2 + $0x13e8] sm:$0xff]
    %v2478 = vld [vmem:[#allocation2 + $0x13f0] sm:$0xff]
    %v2479 = vld [vmem:[#allocation2 + $0x13f8] sm:$0xff]
    %v2480 = vld [vmem:[#allocation2 + $0x1400] sm:$0xff]
    %v2481 = vld [vmem:[#allocation2 + $0x1408] sm:$0xff]
    %v2482 = vld [vmem:[#allocation2 + $0x1410] sm:$0xff]
    %v2483 = vld [vmem:[#allocation2 + $0x1418] sm:$0xff]
    %v2484 = vld [vmem:[#allocation2 + $0x1420] sm:$0xff]
    %v2485 = vld [vmem:[#allocation2 + $0x1428] sm:$0xff]
    %v2486 = vld [vmem:[#allocation2 + $0x1430] sm:$0xff]
    %v2487 = vld [vmem:[#allocation2 + $0x1438] sm:$0xff]
    %v2488 = vld [vmem:[#allocation2 + $0x1440] sm:$0xff]
    %v2489 = vld [vmem:[#allocation2 + $0x1448] sm:$0xff]
    %v2490 = vld [vmem:[#allocation2 + $0x1450] sm:$0xff]
    %v2491 = vld [vmem:[#allocation2 + $0x1458] sm:$0xff]
    %v2492 = vld [vmem:[#allocation2 + $0x1460] sm:$0xff]
    %v2493 = vld [vmem:[#allocation2 + $0x1468] sm:$0xff]
    %v2494 = vld [vmem:[#allocation2 + $0x1470] sm:$0xff]
    %v2495 = vld [vmem:[#allocation2 + $0x1478] sm:$0xff]
    %v2496 = vld [vmem:[#allocation2 + $0x1480] sm:$0xff]
    %v2497 = vld [vmem:[#allocation2 + $0x1488] sm:$0xff]
    %v2498 = vld [vmem:[#allocation2 + $0x1490] sm:$0xff]
    %v2499 = vld [vmem:[#allocation2 + $0x1498] sm:$0xff]
    %v2500 = vld [vmem:[#allocation2 + $0x14a0] sm:$0xff]
    %v2501 = vld [vmem:[#allocation2 + $0x14a8] sm:$0xff]
    %v2502 = vld [vmem:[#allocation2 + $0x14b0] sm:$0xff]
    %v2503 = vld [vmem:[#allocation2 + $0x14b8] sm:$0xff]
    %v2504 = vld [vmem:[#allocation2 + $0x14c0] sm:$0xff]
    %v2505 = vld [vmem:[#allocation2 + $0x14c8] sm:$0xff]
    %v2506 = vld [vmem:[#allocation2 + $0x14d0] sm:$0xff]
    %v2507 = vld [vmem:[#allocation2 + $0x14d8] sm:$0xff]
    %v2508 = vld [vmem:[#allocation2 + $0x14e0] sm:$0xff]
    %v2509 = vld [vmem:[#allocation2 + $0x14e8] sm:$0xff]
    %v2510 = vld [vmem:[#allocation2 + $0x14f0] sm:$0xff]
    %v2511 = vld [vmem:[#allocation2 + $0x14f8] sm:$0xff]
    %v2512 = vld [vmem:[#allocation2 + $0x1500] sm:$0xff]
    %v2513 = vld [vmem:[#allocation2 + $0x1508] sm:$0xff]
    %v2514 = vld [vmem:[#allocation2 + $0x1510] sm:$0xff]
    %v2515 = vld [vmem:[#allocation2 + $0x1518] sm:$0xff]
    %v2516 = vld [vmem:[#allocation2 + $0x1520] sm:$0xff]
    %v2517 = vld [vmem:[#allocation2 + $0x1528] sm:$0xff]
    %v2518 = vld [vmem:[#allocation2 + $0x1530] sm:$0xff]
    %v2519 = vld [vmem:[#allocation2 + $0x1538] sm:$0xff]
    %v2520 = vld [vmem:[#allocation2 + $0x1540] sm:$0xff]
    %v2521 = vld [vmem:[#allocation2 + $0x1548] sm:$0xff]
    %v2522 = vld [vmem:[#allocation2 + $0x1550] sm:$0xff]
    %v2523 = vld [vmem:[#allocation2 + $0x1558] sm:$0xff]
    %v2524 = vld [vmem:[#allocation2 + $0x1560] sm:$0xff]
    %v2525 = vld [vmem:[#allocation2 + $0x1568] sm:$0xff]
    %v2526 = vld [vmem:[#allocation2 + $0x1570] sm:$0xff]
    %v2527 = vld [vmem:[#allocation2 + $0x1578] sm:$0xff]
    %v2528 = vld [vmem:[#allocation2 + $0x1580] sm:$0xff]
    %v2529 = vld [vmem:[#allocation2 + $0x1588] sm:$0xff]
    %v2530 = vld [vmem:[#allocation2 + $0x1590] sm:$0xff]
    %v2531 = vld [vmem:[#allocation2 + $0x1598] sm:$0xff]
    %v2532 = vld [vmem:[#allocation2 + $0x15a0] sm:$0xff]
    %v2533 = vld [vmem:[#allocation2 + $0x15a8] sm:$0xff]
    %v2534 = vld [vmem:[#allocation2 + $0x15b0] sm:$0xff]
    %v2535 = vld [vmem:[#allocation2 + $0x15b8] sm:$0xff]
    %v2536 = vld [vmem:[#allocation2 + $0x15c0] sm:$0xff]
    %v2537 = vld [vmem:[#allocation2 + $0x15c8] sm:$0xff]
    %v2538 = vld [vmem:[#allocation2 + $0x15d0] sm:$0xff]
    %v2539 = vld [vmem:[#allocation2 + $0x15d8] sm:$0xff]
    %v2540 = vld [vmem:[#allocation2 + $0x15e0] sm:$0xff]
    %v2541 = vld [vmem:[#allocation2 + $0x15e8] sm:$0xff]
    %v2542 = vld [vmem:[#allocation2 + $0x15f0] sm:$0xff]
    %v2543 = vld [vmem:[#allocation2 + $0x15f8] sm:$0xff]
    %v2544 = vld [vmem:[#allocation2 + $0x1600] sm:$0xff]
    %v2545 = vld [vmem:[#allocation2 + $0x1608] sm:$0xff]
    %v2546 = vld [vmem:[#allocation2 + $0x1610] sm:$0xff]
    %v2547 = vld [vmem:[#allocation2 + $0x1618] sm:$0xff]
    %v2548 = vld [vmem:[#allocation2 + $0x1620] sm:$0xff]
    %v2549 = vld [vmem:[#allocation2 + $0x1628] sm:$0xff]
    %v2550 = vld [vmem:[#allocation2 + $0x1630] sm:$0xff]
    %v2551 = vld [vmem:[#allocation2 + $0x1638] sm:$0xff]
    %v2552 = vld [vmem:[#allocation2 + $0x1640] sm:$0xff]
    %v2553 = vld [vmem:[#allocation2 + $0x1648] sm:$0xff]
    %v2554 = vld [vmem:[#allocation2 + $0x1650] sm:$0xff]
    %v2555 = vld [vmem:[#allocation2 + $0x1658] sm:$0xff]
    %v2556 = vld [vmem:[#allocation2 + $0x1660] sm:$0xff]
    %v2557 = vld [vmem:[#allocation2 + $0x1668] sm:$0xff]
    %v2558 = vld [vmem:[#allocation2 + $0x1670] sm:$0xff]
    %v2559 = vld [vmem:[#allocation2 + $0x1678] sm:$0xff]
    %v2560 = vld [vmem:[#allocation2 + $0x1680] sm:$0xff]
    %v2561 = vld [vmem:[#allocation2 + $0x1688] sm:$0xff]
    %v2562 = vld [vmem:[#allocation2 + $0x1690] sm:$0xff]
    %v2563 = vld [vmem:[#allocation2 + $0x1698] sm:$0xff]
    %v2564 = vld [vmem:[#allocation2 + $0x16a0] sm:$0xff]
    %v2565 = vld [vmem:[#allocation2 + $0x16a8] sm:$0xff]
    %v2566 = vld [vmem:[#allocation2 + $0x16b0] sm:$0xff]
    %v2567 = vld [vmem:[#allocation2 + $0x16b8] sm:$0xff]
    %v2568 = vld [vmem:[#allocation2 + $0x16c0] sm:$0xff]
    %v2569 = vld [vmem:[#allocation2 + $0x16c8] sm:$0xff]
    %v2570 = vld [vmem:[#allocation2 + $0x16d0] sm:$0xff]
    %v2571 = vld [vmem:[#allocation2 + $0x16d8] sm:$0xff]
    %v2572 = vld [vmem:[#allocation2 + $0x16e0] sm:$0xff]
    %v2573 = vld [vmem:[#allocation2 + $0x16e8] sm:$0xff]
    %v2574 = vld [vmem:[#allocation2 + $0x16f0] sm:$0xff]
    %v2575 = vld [vmem:[#allocation2 + $0x16f8] sm:$0xff]
    %v2576 = vld [vmem:[#allocation2 + $0x1700] sm:$0xff]
    %v2577 = vld [vmem:[#allocation2 + $0x1708] sm:$0xff]
    %v2578 = vld [vmem:[#allocation2 + $0x1710] sm:$0xff]
    %v2579 = vld [vmem:[#allocation2 + $0x1718] sm:$0xff]
    %v2580 = vld [vmem:[#allocation2 + $0x1720] sm:$0xff]
    %v2581 = vld [vmem:[#allocation2 + $0x1728] sm:$0xff]
    %v2582 = vld [vmem:[#allocation2 + $0x1730] sm:$0xff]
    %v2583 = vld [vmem:[#allocation2 + $0x1738] sm:$0xff]
    %v2584 = vld [vmem:[#allocation2 + $0x1740] sm:$0xff]
    %v2585 = vld [vmem:[#allocation2 + $0x1748] sm:$0xff]
    %v2586 = vld [vmem:[#allocation2 + $0x1750] sm:$0xff]
    %v2587 = vld [vmem:[#allocation2 + $0x1758] sm:$0xff]
    %v2588 = vld [vmem:[#allocation2 + $0x1760] sm:$0xff]
    %v2589 = vld [vmem:[#allocation2 + $0x1768] sm:$0xff]
    %v2590 = vld [vmem:[#allocation2 + $0x1770] sm:$0xff]
    %v2591 = vld [vmem:[#allocation2 + $0x1778] sm:$0xff]
    %v2592 = vld [vmem:[#allocation2 + $0x1780] sm:$0xff]
    %v2593 = vld [vmem:[#allocation2 + $0x1788] sm:$0xff]
    %v2594 = vld [vmem:[#allocation2 + $0x1790] sm:$0xff]
    %v2595 = vld [vmem:[#allocation2 + $0x1798] sm:$0xff]
    %v2596 = vld [vmem:[#allocation2 + $0x17a0] sm:$0xff]
    %v2597 = vld [vmem:[#allocation2 + $0x17a8] sm:$0xff]
    %v2598 = vld [vmem:[#allocation2 + $0x17b0] sm:$0xff]
    %v2599 = vld [vmem:[#allocation2 + $0x17b8] sm:$0xff]
    %v2600 = vld [vmem:[#allocation2 + $0x17c0] sm:$0xff]
    %v2601 = vld [vmem:[#allocation2 + $0x17c8] sm:$0xff]
    %v2602 = vld [vmem:[#allocation2 + $0x17d0] sm:$0xff]
    %v2603 = vld [vmem:[#allocation2 + $0x17d8] sm:$0xff]
    %v2604 = vld [vmem:[#allocation2 + $0x17e0] sm:$0xff]
    %v2605 = vld [vmem:[#allocation2 + $0x17e8] sm:$0xff]
    %v2606 = vld [vmem:[#allocation2 + $0x17f0] sm:$0xff]
    %v2607 = vld [vmem:[#allocation2 + $0x17f8] sm:$0xff]
    %v2608 = vld [vmem:[#allocation2 + $0x1800] sm:$0xff]
    %v2609 = vld [vmem:[#allocation2 + $0x1808] sm:$0xff]
    %v2610 = vld [vmem:[#allocation2 + $0x1810] sm:$0xff]
    %v2611 = vld [vmem:[#allocation2 + $0x1818] sm:$0xff]
    %v2612 = vld [vmem:[#allocation2 + $0x1820] sm:$0xff]
    %v2613 = vld [vmem:[#allocation2 + $0x1828] sm:$0xff]
    %v2614 = vld [vmem:[#allocation2 + $0x1830] sm:$0xff]
    %v2615 = vld [vmem:[#allocation2 + $0x1838] sm:$0xff]
    %v2616 = vld [vmem:[#allocation2 + $0x1840] sm:$0xff]
    %v2617 = vld [vmem:[#allocation2 + $0x1848] sm:$0xff]
    %v2618 = vld [vmem:[#allocation2 + $0x1850] sm:$0xff]
    %v2619 = vld [vmem:[#allocation2 + $0x1858] sm:$0xff]
    %v2620 = vld [vmem:[#allocation2 + $0x1860] sm:$0xff]
    %v2621 = vld [vmem:[#allocation2 + $0x1868] sm:$0xff]
    %v2622 = vld [vmem:[#allocation2 + $0x1870] sm:$0xff]
    %v2623 = vld [vmem:[#allocation2 + $0x1878] sm:$0xff]
    %v2624 = vld [vmem:[#allocation2 + $0x1880] sm:$0xff]
    %v2625 = vld [vmem:[#allocation2 + $0x1888] sm:$0xff]
    %v2626 = vld [vmem:[#allocation2 + $0x1890] sm:$0xff]
    %v2627 = vld [vmem:[#allocation2 + $0x1898] sm:$0xff]
    %v2628 = vld [vmem:[#allocation2 + $0x18a0] sm:$0xff]
    %v2629 = vld [vmem:[#allocation2 + $0x18a8] sm:$0xff]
    %v2630 = vld [vmem:[#allocation2 + $0x18b0] sm:$0xff]
    %v2631 = vld [vmem:[#allocation2 + $0x18b8] sm:$0xff]
    %v2632 = vld [vmem:[#allocation2 + $0x18c0] sm:$0xff]
    %v2633 = vld [vmem:[#allocation2 + $0x18c8] sm:$0xff]
    %v2634 = vld [vmem:[#allocation2 + $0x18d0] sm:$0xff]
    %v2635 = vld [vmem:[#allocation2 + $0x18d8] sm:$0xff]
    %v2636 = vld [vmem:[#allocation2 + $0x18e0] sm:$0xff]
    %v2637 = vld [vmem:[#allocation2 + $0x18e8] sm:$0xff]
    %v2638 = vld [vmem:[#allocation2 + $0x18f0] sm:$0xff]
    %v2639 = vld [vmem:[#allocation2 + $0x18f8] sm:$0xff]
    %v2640 = vld [vmem:[#allocation2 + $0x1900] sm:$0xff]
    %v2641 = vld [vmem:[#allocation2 + $0x1908] sm:$0xff]
    %v2642 = vld [vmem:[#allocation2 + $0x1910] sm:$0xff]
    %v2643 = vld [vmem:[#allocation2 + $0x1918] sm:$0xff]
    %v2644 = vld [vmem:[#allocation2 + $0x1920] sm:$0xff]
    %v2645 = vld [vmem:[#allocation2 + $0x1928] sm:$0xff]
    %v2646 = vld [vmem:[#allocation2 + $0x1930] sm:$0xff]
    %v2647 = vld [vmem:[#allocation2 + $0x1938] sm:$0xff]
    %v2648 = vld [vmem:[#allocation2 + $0x1940] sm:$0xff]
    %v2649 = vld [vmem:[#allocation2 + $0x1948] sm:$0xff]
    %v2650 = vld [vmem:[#allocation2 + $0x1950] sm:$0xff]
    %v2651 = vld [vmem:[#allocation2 + $0x1958] sm:$0xff]
    %v2652 = vld [vmem:[#allocation2 + $0x1960] sm:$0xff]
    %v2653 = vld [vmem:[#allocation2 + $0x1968] sm:$0xff]
    %v2654 = vld [vmem:[#allocation2 + $0x1970] sm:$0xff]
    %v2655 = vld [vmem:[#allocation2 + $0x1978] sm:$0xff]
    %v2656 = vld [vmem:[#allocation2 + $0x1980] sm:$0xff]
    %v2657 = vld [vmem:[#allocation2 + $0x1988] sm:$0xff]
    %v2658 = vld [vmem:[#allocation2 + $0x1990] sm:$0xff]
    %v2659 = vld [vmem:[#allocation2 + $0x1998] sm:$0xff]
    %v2660 = vld [vmem:[#allocation2 + $0x19a0] sm:$0xff]
    %v2661 = vld [vmem:[#allocation2 + $0x19a8] sm:$0xff]
    %v2662 = vld [vmem:[#allocation2 + $0x19b0] sm:$0xff]
    %v2663 = vld [vmem:[#allocation2 + $0x19b8] sm:$0xff]
    %v2664 = vld [vmem:[#allocation2 + $0x19c0] sm:$0xff]
    %v2665 = vld [vmem:[#allocation2 + $0x19c8] sm:$0xff]
    %v2666 = vld [vmem:[#allocation2 + $0x19d0] sm:$0xff]
    %v2667 = vld [vmem:[#allocation2 + $0x19d8] sm:$0xff]
    %v2668 = vld [vmem:[#allocation2 + $0x19e0] sm:$0xff]
    %v2669 = vld [vmem:[#allocation2 + $0x19e8] sm:$0xff]
    %v2670 = vld [vmem:[#allocation2 + $0x19f0] sm:$0xff]
    %v2671 = vld [vmem:[#allocation2 + $0x19f8] sm:$0xff]
    %v2672 = vld [vmem:[#allocation2 + $0x1a00] sm:$0xff]
    %v2673 = vld [vmem:[#allocation2 + $0x1a08] sm:$0xff]
    %v2674 = vld [vmem:[#allocation2 + $0x1a10] sm:$0xff]
    %v2675 = vld [vmem:[#allocation2 + $0x1a18] sm:$0xff]
    %v2676 = vld [vmem:[#allocation2 + $0x1a20] sm:$0xff]
    %v2677 = vld [vmem:[#allocation2 + $0x1a28] sm:$0xff]
    %v2678 = vld [vmem:[#allocation2 + $0x1a30] sm:$0xff]
    %v2679 = vld [vmem:[#allocation2 + $0x1a38] sm:$0xff]
    %v2680 = vld [vmem:[#allocation2 + $0x1a40] sm:$0xff]
    %v2681 = vld [vmem:[#allocation2 + $0x1a48] sm:$0xff]
    %v2682 = vld [vmem:[#allocation2 + $0x1a50] sm:$0xff]
    %v2683 = vld [vmem:[#allocation2 + $0x1a58] sm:$0xff]
    %v2684 = vld [vmem:[#allocation2 + $0x1a60] sm:$0xff]
    %v2685 = vld [vmem:[#allocation2 + $0x1a68] sm:$0xff]
    %v2686 = vld [vmem:[#allocation2 + $0x1a70] sm:$0xff]
    %v2687 = vld [vmem:[#allocation2 + $0x1a78] sm:$0xff]
    %v2688 = vld [vmem:[#allocation2 + $0x1a80] sm:$0xff]
    %v2689 = vld [vmem:[#allocation2 + $0x1a88] sm:$0xff]
    %v2690 = vld [vmem:[#allocation2 + $0x1a90] sm:$0xff]
    %v2691 = vld [vmem:[#allocation2 + $0x1a98] sm:$0xff]
    %v2692 = vld [vmem:[#allocation2 + $0x1aa0] sm:$0xff]
    %v2693 = vld [vmem:[#allocation2 + $0x1aa8] sm:$0xff]
    %v2694 = vld [vmem:[#allocation2 + $0x1ab0] sm:$0xff]
    %v2695 = vld [vmem:[#allocation2 + $0x1ab8] sm:$0xff]
    %v2696 = vld [vmem:[#allocation2 + $0x1ac0] sm:$0xff]
    %v2697 = vld [vmem:[#allocation2 + $0x1ac8] sm:$0xff]
    %v2698 = vld [vmem:[#allocation2 + $0x1ad0] sm:$0xff]
    %v2699 = vld [vmem:[#allocation2 + $0x1ad8] sm:$0xff]
    %v2700 = vld [vmem:[#allocation2 + $0x1ae0] sm:$0xff]
    %v2701 = vld [vmem:[#allocation2 + $0x1ae8] sm:$0xff]
    %v2702 = vld [vmem:[#allocation2 + $0x1af0] sm:$0xff]
    %v2703 = vld [vmem:[#allocation2 + $0x1af8] sm:$0xff]
    %v2704 = vld [vmem:[#allocation2 + $0x1b00] sm:$0xff]
    %v2705 = vld [vmem:[#allocation2 + $0x1b08] sm:$0xff]
    %v2706 = vld [vmem:[#allocation2 + $0x1b10] sm:$0xff]
    %v2707 = vld [vmem:[#allocation2 + $0x1b18] sm:$0xff]
    %v2708 = vld [vmem:[#allocation2 + $0x1b20] sm:$0xff]
    %v2709 = vld [vmem:[#allocation2 + $0x1b28] sm:$0xff]
    %v2710 = vld [vmem:[#allocation2 + $0x1b30] sm:$0xff]
    %v2711 = vld [vmem:[#allocation2 + $0x1b38] sm:$0xff]
    %v2712 = vld [vmem:[#allocation2 + $0x1b40] sm:$0xff]
    %v2713 = vld [vmem:[#allocation2 + $0x1b48] sm:$0xff]
    %v2714 = vld [vmem:[#allocation2 + $0x1b50] sm:$0xff]
    %v2715 = vld [vmem:[#allocation2 + $0x1b58] sm:$0xff]
    %v2716 = vld [vmem:[#allocation2 + $0x1b60] sm:$0xff]
    %v2717 = vld [vmem:[#allocation2 + $0x1b68] sm:$0xff]
    %v2718 = vld [vmem:[#allocation2 + $0x1b70] sm:$0xff]
    %v2719 = vld [vmem:[#allocation2 + $0x1b78] sm:$0xff]
    %v2720 = vld [vmem:[#allocation2 + $0x1b80] sm:$0xff]
    %v2721 = vld [vmem:[#allocation2 + $0x1b88] sm:$0xff]
    %v2722 = vld [vmem:[#allocation2 + $0x1b90] sm:$0xff]
    %v2723 = vld [vmem:[#allocation2 + $0x1b98] sm:$0xff]
    %v2724 = vld [vmem:[#allocation2 + $0x1ba0] sm:$0xff]
    %v2725 = vld [vmem:[#allocation2 + $0x1ba8] sm:$0xff]
    %v2726 = vld [vmem:[#allocation2 + $0x1bb0] sm:$0xff]
    %v2727 = vld [vmem:[#allocation2 + $0x1bb8] sm:$0xff]
    %v2728 = vld [vmem:[#allocation2 + $0x1bc0] sm:$0xff]
    %v2729 = vld [vmem:[#allocation2 + $0x1bc8] sm:$0xff]
    %v2730 = vld [vmem:[#allocation2 + $0x1bd0] sm:$0xff]
    %v2731 = vld [vmem:[#allocation2 + $0x1bd8] sm:$0xff]
    %v2732 = vld [vmem:[#allocation2 + $0x1be0] sm:$0xff]
    %v2733 = vld [vmem:[#allocation2 + $0x1be8] sm:$0xff]
    %v2734 = vld [vmem:[#allocation2 + $0x1bf0] sm:$0xff]
    %v2735 = vld [vmem:[#allocation2 + $0x1bf8] sm:$0xff]
    %v2736 = vld [vmem:[#allocation2 + $0x1c00] sm:$0xff]
    %v2737 = vld [vmem:[#allocation2 + $0x1c08] sm:$0xff]
    %v2738 = vld [vmem:[#allocation2 + $0x1c10] sm:$0xff]
    %v2739 = vld [vmem:[#allocation2 + $0x1c18] sm:$0xff]
    %v2740 = vld [vmem:[#allocation2 + $0x1c20] sm:$0xff]
    %v2741 = vld [vmem:[#allocation2 + $0x1c28] sm:$0xff]
    %v2742 = vld [vmem:[#allocation2 + $0x1c30] sm:$0xff]
    %v2743 = vld [vmem:[#allocation2 + $0x1c38] sm:$0xff]
    %v2744 = vld [vmem:[#allocation2 + $0x1c40] sm:$0xff]
    %v2745 = vld [vmem:[#allocation2 + $0x1c48] sm:$0xff]
    %v2746 = vld [vmem:[#allocation2 + $0x1c50] sm:$0xff]
    %v2747 = vld [vmem:[#allocation2 + $0x1c58] sm:$0xff]
    %v2748 = vld [vmem:[#allocation2 + $0x1c60] sm:$0xff]
    %v2749 = vld [vmem:[#allocation2 + $0x1c68] sm:$0xff]
    %v2750 = vld [vmem:[#allocation2 + $0x1c70] sm:$0xff]
    %v2751 = vld [vmem:[#allocation2 + $0x1c78] sm:$0xff]
    %v2752 = vld [vmem:[#allocation2 + $0x1c80] sm:$0xff]
    %v2753 = vld [vmem:[#allocation2 + $0x1c88] sm:$0xff]
    %v2754 = vld [vmem:[#allocation2 + $0x1c90] sm:$0xff]
    %v2755 = vld [vmem:[#allocation2 + $0x1c98] sm:$0xff]
    %v2756 = vld [vmem:[#allocation2 + $0x1ca0] sm:$0xff]
    %v2757 = vld [vmem:[#allocation2 + $0x1ca8] sm:$0xff]
    %v2758 = vld [vmem:[#allocation2 + $0x1cb0] sm:$0xff]
    %v2759 = vld [vmem:[#allocation2 + $0x1cb8] sm:$0xff]
    %v2760 = vld [vmem:[#allocation2 + $0x1cc0] sm:$0xff]
    %v2761 = vld [vmem:[#allocation2 + $0x1cc8] sm:$0xff]
    %v2762 = vld [vmem:[#allocation2 + $0x1cd0] sm:$0xff]
    %v2763 = vld [vmem:[#allocation2 + $0x1cd8] sm:$0xff]
    %v2764 = vld [vmem:[#allocation2 + $0x1ce0] sm:$0xff]
    %v2765 = vld [vmem:[#allocation2 + $0x1ce8] sm:$0xff]
    %v2766 = vld [vmem:[#allocation2 + $0x1cf0] sm:$0xff]
    %v2767 = vld [vmem:[#allocation2 + $0x1cf8] sm:$0xff]
    %v2768 = vld [vmem:[#allocation2 + $0x1d00] sm:$0xff]
    %v2769 = vld [vmem:[#allocation2 + $0x1d08] sm:$0xff]
    %v2770 = vld [vmem:[#allocation2 + $0x1d10] sm:$0xff]
    %v2771 = vld [vmem:[#allocation2 + $0x1d18] sm:$0xff]
    %v2772 = vld [vmem:[#allocation2 + $0x1d20] sm:$0xff]
    %v2773 = vld [vmem:[#allocation2 + $0x1d28] sm:$0xff]
    %v2774 = vld [vmem:[#allocation2 + $0x1d30] sm:$0xff]
    %v2775 = vld [vmem:[#allocation2 + $0x1d38] sm:$0xff]
    %v2776 = vld [vmem:[#allocation2 + $0x1d40] sm:$0xff]
    %v2777 = vld [vmem:[#allocation2 + $0x1d48] sm:$0xff]
    %v2778 = vld [vmem:[#allocation2 + $0x1d50] sm:$0xff]
    %v2779 = vld [vmem:[#allocation2 + $0x1d58] sm:$0xff]
    %v2780 = vld [vmem:[#allocation2 + $0x1d60] sm:$0xff]
    %v2781 = vld [vmem:[#allocation2 + $0x1d68] sm:$0xff]
    %v2782 = vld [vmem:[#allocation2 + $0x1d70] sm:$0xff]
    %v2783 = vld [vmem:[#allocation2 + $0x1d78] sm:$0xff]
    %v2784 = vld [vmem:[#allocation2 + $0x1d80] sm:$0xff]
    %v2785 = vld [vmem:[#allocation2 + $0x1d88] sm:$0xff]
    %v2786 = vld [vmem:[#allocation2 + $0x1d90] sm:$0xff]
    %v2787 = vld [vmem:[#allocation2 + $0x1d98] sm:$0xff]
    %v2788 = vld [vmem:[#allocation2 + $0x1da0] sm:$0xff]
    %v2789 = vld [vmem:[#allocation2 + $0x1da8] sm:$0xff]
    %v2790 = vld [vmem:[#allocation2 + $0x1db0] sm:$0xff]
    %v2791 = vld [vmem:[#allocation2 + $0x1db8] sm:$0xff]
    %v2792 = vld [vmem:[#allocation2 + $0x1dc0] sm:$0xff]
    %v2793 = vld [vmem:[#allocation2 + $0x1dc8] sm:$0xff]
    %v2794 = vld [vmem:[#allocation2 + $0x1dd0] sm:$0xff]
    %v2795 = vld [vmem:[#allocation2 + $0x1dd8] sm:$0xff]
    %v2796 = vld [vmem:[#allocation2 + $0x1de0] sm:$0xff]
    %v2797 = vld [vmem:[#allocation2 + $0x1de8] sm:$0xff]
    %v2798 = vld [vmem:[#allocation2 + $0x1df0] sm:$0xff]
    %v2799 = vld [vmem:[#allocation2 + $0x1df8] sm:$0xff]
    %v2800 = vld [vmem:[#allocation2 + $0x1e00] sm:$0xff]
    %v2801 = vld [vmem:[#allocation2 + $0x1e08] sm:$0xff]
    %v2802 = vld [vmem:[#allocation2 + $0x1e10] sm:$0xff]
    %v2803 = vld [vmem:[#allocation2 + $0x1e18] sm:$0xff]
    %v2804 = vld [vmem:[#allocation2 + $0x1e20] sm:$0xff]
    %v2805 = vld [vmem:[#allocation2 + $0x1e28] sm:$0xff]
    %v2806 = vld [vmem:[#allocation2 + $0x1e30] sm:$0xff]
    %v2807 = vld [vmem:[#allocation2 + $0x1e38] sm:$0xff]
    %v2808 = vld [vmem:[#allocation2 + $0x1e40] sm:$0xff]
    %v2809 = vld [vmem:[#allocation2 + $0x1e48] sm:$0xff]
    %v2810 = vld [vmem:[#allocation2 + $0x1e50] sm:$0xff]
    %v2811 = vld [vmem:[#allocation2 + $0x1e58] sm:$0xff]
    %v2812 = vld [vmem:[#allocation2 + $0x1e60] sm:$0xff]
    %v2813 = vld [vmem:[#allocation2 + $0x1e68] sm:$0xff]
    %v2814 = vld [vmem:[#allocation2 + $0x1e70] sm:$0xff]
    %v2815 = vld [vmem:[#allocation2 + $0x1e78] sm:$0xff]
    %v2816 = vld [vmem:[#allocation2 + $0x1e80] sm:$0xff]
    %v2817 = vld [vmem:[#allocation2 + $0x1e88] sm:$0xff]
    %v2818 = vld [vmem:[#allocation2 + $0x1e90] sm:$0xff]
    %v2819 = vld [vmem:[#allocation2 + $0x1e98] sm:$0xff]
    %v2820 = vld [vmem:[#allocation2 + $0x1ea0] sm:$0xff]
    %v2821 = vld [vmem:[#allocation2 + $0x1ea8] sm:$0xff]
    %v2822 = vld [vmem:[#allocation2 + $0x1eb0] sm:$0xff]
    %v2823 = vld [vmem:[#allocation2 + $0x1eb8] sm:$0xff]
    %v2824 = vld [vmem:[#allocation2 + $0x1ec0] sm:$0xff]
    %v2825 = vld [vmem:[#allocation2 + $0x1ec8] sm:$0xff]
    %v2826 = vld [vmem:[#allocation2 + $0x1ed0] sm:$0xff]
    %v2827 = vld [vmem:[#allocation2 + $0x1ed8] sm:$0xff]
    %v2828 = vld [vmem:[#allocation2 + $0x1ee0] sm:$0xff]
    %v2829 = vld [vmem:[#allocation2 + $0x1ee8] sm:$0xff]
    %v2830 = vld [vmem:[#allocation2 + $0x1ef0] sm:$0xff]
    %v2831 = vld [vmem:[#allocation2 + $0x1ef8] sm:$0xff]
    %v2832 = vld [vmem:[#allocation2 + $0x1f00] sm:$0xff]
    %v2833 = vld [vmem:[#allocation2 + $0x1f08] sm:$0xff]
    %v2834 = vld [vmem:[#allocation2 + $0x1f10] sm:$0xff]
    %v2835 = vld [vmem:[#allocation2 + $0x1f18] sm:$0xff]
    %v2836 = vld [vmem:[#allocation2 + $0x1f20] sm:$0xff]
    %v2837 = vld [vmem:[#allocation2 + $0x1f28] sm:$0xff]
    %v2838 = vld [vmem:[#allocation2 + $0x1f30] sm:$0xff]
    %v2839 = vld [vmem:[#allocation2 + $0x1f38] sm:$0xff]
    %v2840 = vld [vmem:[#allocation2 + $0x1f40] sm:$0xff]
    %v2841 = vld [vmem:[#allocation2 + $0x1f48] sm:$0xff]
    %v2842 = vld [vmem:[#allocation2 + $0x1f50] sm:$0xff]
    %v2843 = vld [vmem:[#allocation2 + $0x1f58] sm:$0xff]
    %v2844 = vld [vmem:[#allocation2 + $0x1f60] sm:$0xff]
    %v2845 = vld [vmem:[#allocation2 + $0x1f68] sm:$0xff]
    %v2846 = vld [vmem:[#allocation2 + $0x1f70] sm:$0xff]
    %v2847 = vld [vmem:[#allocation2 + $0x1f78] sm:$0xff]
    %v2848 = vld [vmem:[#allocation2 + $0x1f80] sm:$0xff]
    %v2849 = vld [vmem:[#allocation2 + $0x1f88] sm:$0xff]
    %v2850 = vld [vmem:[#allocation2 + $0x1f90] sm:$0xff]
    %v2851 = vld [vmem:[#allocation2 + $0x1f98] sm:$0xff]
    %v2852 = vld [vmem:[#allocation2 + $0x1fa0] sm:$0xff]
    %v2853 = vld [vmem:[#allocation2 + $0x1fa8] sm:$0xff]
    %v2854 = vld [vmem:[#allocation2 + $0x1fb0] sm:$0xff]
    %v2855 = vld [vmem:[#allocation2 + $0x1fb8] sm:$0xff]
    %v2856 = vld [vmem:[#allocation2 + $0x1fc0] sm:$0xff]
    %v2857 = vld [vmem:[#allocation2 + $0x1fc8] sm:$0xff]
    %v2858 = vld [vmem:[#allocation2 + $0x1fd0] sm:$0xff]
    %v2859 = vld [vmem:[#allocation2 + $0x1fd8] sm:$0xff]
    %v2860 = vld [vmem:[#allocation2 + $0x1fe0] sm:$0xff]
    %v2861 = vld [vmem:[#allocation2 + $0x1fe8] sm:$0xff]
    %v2862 = vld [vmem:[#allocation2 + $0x1ff0] sm:$0xff]
    %v2863 = vld [vmem:[#allocation2 + $0x1ff8] sm:$0xff]
    %v2864 = vpack.c.bf16 %v1726, %v1726
    %v2865 = vpack.c.bf16 %v1727, %v1727
    %v2866 = vld [vmem:[#allocation3] sm:$0xff]
    %v2867 = vld [vmem:[#allocation3 + $0x8] sm:$0xff]
    %v2868 = vld [vmem:[#allocation3 + $0x10] sm:$0xff]
    %v2869 = vld [vmem:[#allocation3 + $0x18] sm:$0xff]
    %v2870 = vld [vmem:[#allocation3 + $0x20] sm:$0xff]
    %v2871 = vld [vmem:[#allocation3 + $0x28] sm:$0xff]
    %v2872 = vld [vmem:[#allocation3 + $0x30] sm:$0xff]
    %v2873 = vld [vmem:[#allocation3 + $0x38] sm:$0xff]
    %v2874 = vld [vmem:[#allocation3 + $0x40] sm:$0xff]
    %v2875 = vld [vmem:[#allocation3 + $0x48] sm:$0xff]
    %v2876 = vld [vmem:[#allocation3 + $0x50] sm:$0xff]
    %v2877 = vld [vmem:[#allocation3 + $0x58] sm:$0xff]
    %v2878 = vld [vmem:[#allocation3 + $0x60] sm:$0xff]
    %v2879 = vld [vmem:[#allocation3 + $0x68] sm:$0xff]
    %v2880 = vld [vmem:[#allocation3 + $0x70] sm:$0xff]
    %v2881 = vld [vmem:[#allocation3 + $0x78] sm:$0xff]
    %v2882 = vld [vmem:[#allocation3 + $0x80] sm:$0xff]
    %v2883 = vld [vmem:[#allocation3 + $0x88] sm:$0xff]
    %v2884 = vld [vmem:[#allocation3 + $0x90] sm:$0xff]
    %v2885 = vld [vmem:[#allocation3 + $0x98] sm:$0xff]
    %v2886 = vld [vmem:[#allocation3 + $0xa0] sm:$0xff]
    %v2887 = vld [vmem:[#allocation3 + $0xa8] sm:$0xff]
    %v2888 = vld [vmem:[#allocation3 + $0xb0] sm:$0xff]
    %v2889 = vld [vmem:[#allocation3 + $0xb8] sm:$0xff]
    %v2890 = vld [vmem:[#allocation3 + $0xc0] sm:$0xff]
    %v2891 = vld [vmem:[#allocation3 + $0xc8] sm:$0xff]
    %v2892 = vld [vmem:[#allocation3 + $0xd0] sm:$0xff]
    %v2893 = vld [vmem:[#allocation3 + $0xd8] sm:$0xff]
    %v2894 = vld [vmem:[#allocation3 + $0xe0] sm:$0xff]
    %v2895 = vld [vmem:[#allocation3 + $0xe8] sm:$0xff]
    %v2896 = vld [vmem:[#allocation3 + $0xf0] sm:$0xff]
    %v2897 = vld [vmem:[#allocation3 + $0xf8] sm:$0xff]
    %v2898 = vld [vmem:[#allocation3 + $0x100] sm:$0xff]
    %v2899 = vld [vmem:[#allocation3 + $0x108] sm:$0xff]
    %v2900 = vld [vmem:[#allocation3 + $0x110] sm:$0xff]
    %v2901 = vld [vmem:[#allocation3 + $0x118] sm:$0xff]
    %v2902 = vld [vmem:[#allocation3 + $0x120] sm:$0xff]
    %v2903 = vld [vmem:[#allocation3 + $0x128] sm:$0xff]
    %v2904 = vld [vmem:[#allocation3 + $0x130] sm:$0xff]
    %v2905 = vld [vmem:[#allocation3 + $0x138] sm:$0xff]
    %v2906 = vld [vmem:[#allocation3 + $0x140] sm:$0xff]
    %v2907 = vld [vmem:[#allocation3 + $0x148] sm:$0xff]
    %v2908 = vld [vmem:[#allocation3 + $0x150] sm:$0xff]
    %v2909 = vld [vmem:[#allocation3 + $0x158] sm:$0xff]
    %v2910 = vld [vmem:[#allocation3 + $0x160] sm:$0xff]
    %v2911 = vld [vmem:[#allocation3 + $0x168] sm:$0xff]
    %v2912 = vld [vmem:[#allocation3 + $0x170] sm:$0xff]
    %v2913 = vld [vmem:[#allocation3 + $0x178] sm:$0xff]
    %v2914 = vld [vmem:[#allocation3 + $0x180] sm:$0xff]
    %v2915 = vld [vmem:[#allocation3 + $0x188] sm:$0xff]
    %v2916 = vld [vmem:[#allocation3 + $0x190] sm:$0xff]
    %v2917 = vld [vmem:[#allocation3 + $0x198] sm:$0xff]
    %v2918 = vld [vmem:[#allocation3 + $0x1a0] sm:$0xff]
    %v2919 = vld [vmem:[#allocation3 + $0x1a8] sm:$0xff]
    %v2920 = vld [vmem:[#allocation3 + $0x1b0] sm:$0xff]
    %v2921 = vld [vmem:[#allocation3 + $0x1b8] sm:$0xff]
    %v2922 = vld [vmem:[#allocation3 + $0x1c0] sm:$0xff]
    %v2923 = vld [vmem:[#allocation3 + $0x1c8] sm:$0xff]
    %v2924 = vld [vmem:[#allocation3 + $0x1d0] sm:$0xff]
    %v2925 = vld [vmem:[#allocation3 + $0x1d8] sm:$0xff]
    %v2926 = vld [vmem:[#allocation3 + $0x1e0] sm:$0xff]
    %v2927 = vld [vmem:[#allocation3 + $0x1e8] sm:$0xff]
    %v2928 = vld [vmem:[#allocation3 + $0x1f0] sm:$0xff]
    %v2929 = vld [vmem:[#allocation3 + $0x1f8] sm:$0xff]
    %v2930 = vld [vmem:[#allocation3 + $0x200] sm:$0xff]
    %v2931 = vld [vmem:[#allocation3 + $0x208] sm:$0xff]
    %v2932 = vld [vmem:[#allocation3 + $0x210] sm:$0xff]
    %v2933 = vld [vmem:[#allocation3 + $0x218] sm:$0xff]
    %v2934 = vld [vmem:[#allocation3 + $0x220] sm:$0xff]
    %v2935 = vld [vmem:[#allocation3 + $0x228] sm:$0xff]
    %v2936 = vld [vmem:[#allocation3 + $0x230] sm:$0xff]
    %v2937 = vld [vmem:[#allocation3 + $0x238] sm:$0xff]
    %v2938 = vld [vmem:[#allocation3 + $0x240] sm:$0xff]
    %v2939 = vld [vmem:[#allocation3 + $0x248] sm:$0xff]
    %v2940 = vld [vmem:[#allocation3 + $0x250] sm:$0xff]
    %v2941 = vld [vmem:[#allocation3 + $0x258] sm:$0xff]
    %v2942 = vld [vmem:[#allocation3 + $0x260] sm:$0xff]
    %v2943 = vld [vmem:[#allocation3 + $0x268] sm:$0xff]
    %v2944 = vld [vmem:[#allocation3 + $0x270] sm:$0xff]
    %v2945 = vld [vmem:[#allocation3 + $0x278] sm:$0xff]
    %v2946 = vld [vmem:[#allocation3 + $0x280] sm:$0xff]
    %v2947 = vld [vmem:[#allocation3 + $0x288] sm:$0xff]
    %v2948 = vld [vmem:[#allocation3 + $0x290] sm:$0xff]
    %v2949 = vld [vmem:[#allocation3 + $0x298] sm:$0xff]
    %v2950 = vld [vmem:[#allocation3 + $0x2a0] sm:$0xff]
    %v2951 = vld [vmem:[#allocation3 + $0x2a8] sm:$0xff]
    %v2952 = vld [vmem:[#allocation3 + $0x2b0] sm:$0xff]
    %v2953 = vld [vmem:[#allocation3 + $0x2b8] sm:$0xff]
    %v2954 = vld [vmem:[#allocation3 + $0x2c0] sm:$0xff]
    %v2955 = vld [vmem:[#allocation3 + $0x2c8] sm:$0xff]
    %v2956 = vld [vmem:[#allocation3 + $0x2d0] sm:$0xff]
    %v2957 = vld [vmem:[#allocation3 + $0x2d8] sm:$0xff]
    %v2958 = vld [vmem:[#allocation3 + $0x2e0] sm:$0xff]
    %v2959 = vld [vmem:[#allocation3 + $0x2e8] sm:$0xff]
    %v2960 = vld [vmem:[#allocation3 + $0x2f0] sm:$0xff]
    %v2961 = vld [vmem:[#allocation3 + $0x2f8] sm:$0xff]
    %v2962 = vld [vmem:[#allocation3 + $0x300] sm:$0xff]
    %v2963 = vld [vmem:[#allocation3 + $0x308] sm:$0xff]
    %v2964 = vld [vmem:[#allocation3 + $0x310] sm:$0xff]
    %v2965 = vld [vmem:[#allocation3 + $0x318] sm:$0xff]
    %v2966 = vld [vmem:[#allocation3 + $0x320] sm:$0xff]
    %v2967 = vld [vmem:[#allocation3 + $0x328] sm:$0xff]
    %v2968 = vld [vmem:[#allocation3 + $0x330] sm:$0xff]
    %v2969 = vld [vmem:[#allocation3 + $0x338] sm:$0xff]
    %v2970 = vld [vmem:[#allocation3 + $0x340] sm:$0xff]
    %v2971 = vld [vmem:[#allocation3 + $0x348] sm:$0xff]
    %v2972 = vld [vmem:[#allocation3 + $0x350] sm:$0xff]
    %v2973 = vld [vmem:[#allocation3 + $0x358] sm:$0xff]
    %v2974 = vld [vmem:[#allocation3 + $0x360] sm:$0xff]
    %v2975 = vld [vmem:[#allocation3 + $0x368] sm:$0xff]
    %v2976 = vld [vmem:[#allocation3 + $0x370] sm:$0xff]
    %v2977 = vld [vmem:[#allocation3 + $0x378] sm:$0xff]
    %v2978 = vld [vmem:[#allocation3 + $0x380] sm:$0xff]
    %v2979 = vld [vmem:[#allocation3 + $0x388] sm:$0xff]
    %v2980 = vld [vmem:[#allocation3 + $0x390] sm:$0xff]
    %v2981 = vld [vmem:[#allocation3 + $0x398] sm:$0xff]
    %v2982 = vld [vmem:[#allocation3 + $0x3a0] sm:$0xff]
    %v2983 = vld [vmem:[#allocation3 + $0x3a8] sm:$0xff]
    %v2984 = vld [vmem:[#allocation3 + $0x3b0] sm:$0xff]
    %v2985 = vld [vmem:[#allocation3 + $0x3b8] sm:$0xff]
    %v2986 = vld [vmem:[#allocation3 + $0x3c0] sm:$0xff]
    %v2987 = vld [vmem:[#allocation3 + $0x3c8] sm:$0xff]
    %v2988 = vld [vmem:[#allocation3 + $0x3d0] sm:$0xff]
    %v2989 = vld [vmem:[#allocation3 + $0x3d8] sm:$0xff]
    %v2990 = vld [vmem:[#allocation3 + $0x3e0] sm:$0xff]
    %v2991 = vld [vmem:[#allocation3 + $0x3e8] sm:$0xff]
    %v2992 = vld [vmem:[#allocation3 + $0x3f0] sm:$0xff]
    %v2993 = vld [vmem:[#allocation3 + $0x3f8] sm:$0xff]
    %2994 = vmatprep.subr.bf16.mxu0 %v2867
    %2995 = vmatpush1.bf16.msra.mxu0 %v2866
    %2996 = vmatprep.subr.bf16.mxu0 %v2875
    %2997 = vmatpush1.bf16.msra.mxu0 %v2874
    %2998 = vmatprep.subr.bf16.mxu0 %v2883
    %2999 = vmatpush1.bf16.msra.mxu0 %v2882
    %3000 = vmatprep.subr.bf16.mxu0 %v2891
    %3001 = vmatpush1.bf16.msra.mxu0 %v2890
    %3002 = vmatprep.subr.bf16.mxu0 %v2899
    %3003 = vmatpush1.bf16.msra.mxu0 %v2898
    %3004 = vmatprep.subr.bf16.mxu0 %v2907
    %3005 = vmatpush1.bf16.msra.mxu0 %v2906
    %3006 = vmatprep.subr.bf16.mxu0 %v2915
    %3007 = vmatpush1.bf16.msra.mxu0 %v2914
    %3008 = vmatprep.subr.bf16.mxu0 %v2923
    %3009 = vmatpush1.bf16.msra.mxu0 %v2922
    %3010 = vmatprep.subr.bf16.mxu0 %v2931
    %3011 = vmatpush1.bf16.msra.mxu0 %v2930
    %3012 = vmatprep.subr.bf16.mxu0 %v2939
    %3013 = vmatpush1.bf16.msra.mxu0 %v2938
    %3014 = vmatprep.subr.bf16.mxu0 %v2947
    %3015 = vmatpush1.bf16.msra.mxu0 %v2946
    %3016 = vmatprep.subr.bf16.mxu0 %v2955
    %3017 = vmatpush1.bf16.msra.mxu0 %v2954
    %3018 = vmatprep.subr.bf16.mxu0 %v2963
    %3019 = vmatpush1.bf16.msra.mxu0 %v2962
    %3020 = vmatprep.subr.bf16.mxu0 %v2971
    %3021 = vmatpush1.bf16.msra.mxu0 %v2970
    %3022 = vmatprep.subr.bf16.mxu0 %v2979
    %3023 = vmatpush1.bf16.msra.mxu0 %v2978
    %3024 = vmatprep.subr.bf16.mxu0 %v2987
    %3025 = vmatpush1.bf16.msra.mxu0 %v2986
    %3026 = vmatprep.mubr.bf16.mxu0 %v2865
    %3027 = vmatmul.mubr.bf16.gmra.mrb[0].mxu0 %v2864
    %v3028 = vpop.f32.mrb[0].mxu0
    %v3029 = vadd.f32 0.0, %v3028
    %v3030 = vpop.f32.mrb[0].mxu0
    %v3031 = vadd.f32 0.0, %v3030
    %v3032 = vpop.f32.mrb[0].mxu0
    %v3033 = vpop.f32.mrb[0].mxu0
    %3034 = vdwg.mxu0
    %3035 = vmatprep.subr.bf16.mxu0 %v2869
    %3036 = vmatpush1.bf16.msra.mxu0 %v2868
    %3037 = vmatprep.subr.bf16.mxu0 %v2877
    %3038 = vmatpush1.bf16.msra.mxu0 %v2876
    %3039 = vmatprep.subr.bf16.mxu0 %v2885
    %3040 = vmatpush1.bf16.msra.mxu0 %v2884
    %3041 = vmatprep.subr.bf16.mxu0 %v2893
    %3042 = vmatpush1.bf16.msra.mxu0 %v2892
    %3043 = vmatprep.subr.bf16.mxu0 %v2901
    %3044 = vmatpush1.bf16.msra.mxu0 %v2900
    %3045 = vmatprep.subr.bf16.mxu0 %v2909
    %3046 = vmatpush1.bf16.msra.mxu0 %v2908
    %3047 = vmatprep.subr.bf16.mxu0 %v2917
    %3048 = vmatpush1.bf16.msra.mxu0 %v2916
    %3049 = vmatprep.subr.bf16.mxu0 %v2925
    %3050 = vmatpush1.bf16.msra.mxu0 %v2924
    %3051 = vmatprep.subr.bf16.mxu0 %v2933
    %3052 = vmatpush1.bf16.msra.mxu0 %v2932
    %3053 = vmatprep.subr.bf16.mxu0 %v2941
    %3054 = vmatpush1.bf16.msra.mxu0 %v2940
    %3055 = vmatprep.subr.bf16.mxu0 %v2949
    %3056 = vmatpush1.bf16.msra.mxu0 %v2948
    %3057 = vmatprep.subr.bf16.mxu0 %v2957
    %3058 = vmatpush1.bf16.msra.mxu0 %v2956
    %3059 = vmatprep.subr.bf16.mxu0 %v2965
    %3060 = vmatpush1.bf16.msra.mxu0 %v2964
    %3061 = vmatprep.subr.bf16.mxu0 %v2973
    %3062 = vmatpush1.bf16.msra.mxu0 %v2972
    %3063 = vmatprep.subr.bf16.mxu0 %v2981
    %3064 = vmatpush1.bf16.msra.mxu0 %v2980
    %3065 = vmatprep.subr.bf16.mxu0 %v2989
    %3066 = vmatpush1.bf16.msra.mxu0 %v2988
    %3067 = vmatprep.mubr.bf16.mxu0 %v2865
    %3068 = vmatmul.mubr.bf16.gmra.mrb[0].mxu0 %v2864
    %v3069 = vpop.f32.mrb[0].mxu0
    %v3070 = vadd.f32 0.0, %v3069
    %v3071 = vpop.f32.mrb[0].mxu0
    %v3072 = vadd.f32 0.0, %v3071
    %v3073 = vpop.f32.mrb[0].mxu0
    %v3074 = vpop.f32.mrb[0].mxu0
    %3075 = vdwg.mxu0
    %3076 = vmatprep.subr.bf16.mxu0 %v2871
    %3077 = vmatpush1.bf16.msra.mxu0 %v2870
    %3078 = vmatprep.subr.bf16.mxu0 %v2879
    %3079 = vmatpush1.bf16.msra.mxu0 %v2878
    %3080 = vmatprep.subr.bf16.mxu0 %v2887
    %3081 = vmatpush1.bf16.msra.mxu0 %v2886
    %3082 = vmatprep.subr.bf16.mxu0 %v2895
    %3083 = vmatpush1.bf16.msra.mxu0 %v2894
    %3084 = vmatprep.subr.bf16.mxu0 %v2903
    %3085 = vmatpush1.bf16.msra.mxu0 %v2902
    %3086 = vmatprep.subr.bf16.mxu0 %v2911
    %3087 = vmatpush1.bf16.msra.mxu0 %v2910
    %3088 = vmatprep.subr.bf16.mxu0 %v2919
    %3089 = vmatpush1.bf16.msra.mxu0 %v2918
    %3090 = vmatprep.subr.bf16.mxu0 %v2927
    %3091 = vmatpush1.bf16.msra.mxu0 %v2926
    %3092 = vmatprep.subr.bf16.mxu0 %v2935
    %3093 = vmatpush1.bf16.msra.mxu0 %v2934
    %3094 = vmatprep.subr.bf16.mxu0 %v2943
    %3095 = vmatpush1.bf16.msra.mxu0 %v2942
    %3096 = vmatprep.subr.bf16.mxu0 %v2951
    %3097 = vmatpush1.bf16.msra.mxu0 %v2950
    %3098 = vmatprep.subr.bf16.mxu0 %v2959
    %3099 = vmatpush1.bf16.msra.mxu0 %v2958
    %3100 = vmatprep.subr.bf16.mxu0 %v2967
    %3101 = vmatpush1.bf16.msra.mxu0 %v2966
    %3102 = vmatprep.subr.bf16.mxu0 %v2975
    %3103 = vmatpush1.bf16.msra.mxu0 %v2974
    %3104 = vmatprep.subr.bf16.mxu0 %v2983
    %3105 = vmatpush1.bf16.msra.mxu0 %v2982
    %3106 = vmatprep.subr.bf16.mxu0 %v2991
    %3107 = vmatpush1.bf16.msra.mxu0 %v2990
    %3108 = vmatprep.mubr.bf16.mxu0 %v2865
    %3109 = vmatmul.mubr.bf16.gmra.mrb[0].mxu0 %v2864
    %v3110 = vpop.f32.mrb[0].mxu0
    %v3111 = vadd.f32 0.0, %v3110
    %v3112 = vpop.f32.mrb[0].mxu0
    %v3113 = vadd.f32 0.0, %v3112
    %v3114 = vpop.f32.mrb[0].mxu0
    %v3115 = vpop.f32.mrb[0].mxu0
    %3116 = vdwg.mxu0
    %3117 = vmatprep.subr.bf16.mxu0 %v2873
    %3118 = vmatpush1.bf16.msra.mxu0 %v2872
    %3119 = vmatprep.subr.bf16.mxu0 %v2881
    %3120 = vmatpush1.bf16.msra.mxu0 %v2880
    %3121 = vmatprep.subr.bf16.mxu0 %v2889
    %3122 = vmatpush1.bf16.msra.mxu0 %v2888
    %3123 = vmatprep.subr.bf16.mxu0 %v2897
    %3124 = vmatpush1.bf16.msra.mxu0 %v2896
    %3125 = vmatprep.subr.bf16.mxu0 %v2905
    %3126 = vmatpush1.bf16.msra.mxu0 %v2904
    %3127 = vmatprep.subr.bf16.mxu0 %v2913
    %3128 = vmatpush1.bf16.msra.mxu0 %v2912
    %3129 = vmatprep.subr.bf16.mxu0 %v2921
    %3130 = vmatpush1.bf16.msra.mxu0 %v2920
    %3131 = vmatprep.subr.bf16.mxu0 %v2929
    %3132 = vmatpush1.bf16.msra.mxu0 %v2928
    %3133 = vmatprep.subr.bf16.mxu0 %v2937
    %3134 = vmatpush1.bf16.msra.mxu0 %v2936
    %3135 = vmatprep.subr.bf16.mxu0 %v2945
    %3136 = vmatpush1.bf16.msra.mxu0 %v2944
    %3137 = vmatprep.subr.bf16.mxu0 %v2953
    %3138 = vmatpush1.bf16.msra.mxu0 %v2952
    %3139 = vmatprep.subr.bf16.mxu0 %v2961
    %3140 = vmatpush1.bf16.msra.mxu0 %v2960
    %3141 = vmatprep.subr.bf16.mxu0 %v2969
    %3142 = vmatpush1.bf16.msra.mxu0 %v2968
    %3143 = vmatprep.subr.bf16.mxu0 %v2977
    %3144 = vmatpush1.bf16.msra.mxu0 %v2976
    %3145 = vmatprep.subr.bf16.mxu0 %v2985
    %3146 = vmatpush1.bf16.msra.mxu0 %v2984
    %3147 = vmatprep.subr.bf16.mxu0 %v2993
    %3148 = vmatpush1.bf16.msra.mxu0 %v2992
    %3149 = vmatprep.mubr.bf16.mxu0 %v2865
    %3150 = vmatmul.mubr.bf16.gmra.mrb[0].mxu0 %v2864
    %v3151 = vpop.f32.mrb[0].mxu0
    %v3152 = vadd.f32 0.0, %v3151
    %v3153 = vpop.f32.mrb[0].mxu0
    %v3154 = vadd.f32 0.0, %v3153
    %v3155 = vpop.f32.mrb[0].mxu0
    %v3156 = vpop.f32.mrb[0].mxu0
    %3157 = vdwg.mxu0
    %3158 = vmatprep.subr.bf16.mxu0 %v1841
    %3159 = vmatpush1.bf16.msra.mxu0 %v1840
    %3160 = vmatprep.subr.bf16.mxu0 %v1849
    %3161 = vmatpush1.bf16.msra.mxu0 %v1848
    %3162 = vmatprep.subr.bf16.mxu0 %v1857
    %3163 = vmatpush1.bf16.msra.mxu0 %v1856
    %3164 = vmatprep.subr.bf16.mxu0 %v1865
    %3165 = vmatpush1.bf16.msra.mxu0 %v1864
    %3166 = vmatprep.subr.bf16.mxu0 %v1873
    %3167 = vmatpush1.bf16.msra.mxu0 %v1872
    %3168 = vmatprep.subr.bf16.mxu0 %v1881
    %3169 = vmatpush1.bf16.msra.mxu0 %v1880
    %3170 = vmatprep.subr.bf16.mxu0 %v1889
    %3171 = vmatpush1.bf16.msra.mxu0 %v1888
    %3172 = vmatprep.subr.bf16.mxu0 %v1897
    %3173 = vmatpush1.bf16.msra.mxu0 %v1896
    %3174 = vmatprep.subr.bf16.mxu0 %v1905
    %3175 = vmatpush1.bf16.msra.mxu0 %v1904
    %3176 = vmatprep.subr.bf16.mxu0 %v1913
    %3177 = vmatpush1.bf16.msra.mxu0 %v1912
    %3178 = vmatprep.subr.bf16.mxu0 %v1921
    %3179 = vmatpush1.bf16.msra.mxu0 %v1920
    %3180 = vmatprep.subr.bf16.mxu0 %v1929
    %3181 = vmatpush1.bf16.msra.mxu0 %v1928
    %3182 = vmatprep.subr.bf16.mxu0 %v1937
    %3183 = vmatpush1.bf16.msra.mxu0 %v1936
    %3184 = vmatprep.subr.bf16.mxu0 %v1945
    %3185 = vmatpush1.bf16.msra.mxu0 %v1944
    %3186 = vmatprep.subr.bf16.mxu0 %v1953
    %3187 = vmatpush1.bf16.msra.mxu0 %v1952
    %3188 = vmatprep.subr.bf16.mxu0 %v1961
    %3189 = vmatpush1.bf16.msra.mxu0 %v1960
    %3190 = vmatprep.mubr.bf16.mxu0 %v1825
    %3191 = vmatmul.mubr.bf16.gmra.mrb[0].mxu0 %v1824
    %v3192 = vpop.f32.mrb[0].mxu0
    %v3193 = vadd.f32 %v3029, %v3192
    %v3194 = vpop.f32.mrb[0].mxu0
    %v3195 = vadd.f32 %v3031, %v3194
    %v3196 = vpop.f32.mrb[0].mxu0
    %v3197 = vpop.f32.mrb[0].mxu0
    %3198 = vdwg.mxu0
    %3199 = vmatprep.subr.bf16.mxu0 %v1969
    %3200 = vmatpush1.bf16.msra.mxu0 %v1968
    %3201 = vmatprep.subr.bf16.mxu0 %v1977
    %3202 = vmatpush1.bf16.msra.mxu0 %v1976
    %3203 = vmatprep.subr.bf16.mxu0 %v1985
    %3204 = vmatpush1.bf16.msra.mxu0 %v1984
    %3205 = vmatprep.subr.bf16.mxu0 %v1993
    %3206 = vmatpush1.bf16.msra.mxu0 %v1992
    %3207 = vmatprep.subr.bf16.mxu0 %v2001
    %3208 = vmatpush1.bf16.msra.mxu0 %v2000
    %3209 = vmatprep.subr.bf16.mxu0 %v2009
    %3210 = vmatpush1.bf16.msra.mxu0 %v2008
    %3211 = vmatprep.subr.bf16.mxu0 %v2017
    %3212 = vmatpush1.bf16.msra.mxu0 %v2016
    %3213 = vmatprep.subr.bf16.mxu0 %v2025
    %3214 = vmatpush1.bf16.msra.mxu0 %v2024
    %3215 = vmatprep.subr.bf16.mxu0 %v2033
    %3216 = vmatpush1.bf16.msra.mxu0 %v2032
    %3217 = vmatprep.subr.bf16.mxu0 %v2041
    %3218 = vmatpush1.bf16.msra.mxu0 %v2040
    %3219 = vmatprep.subr.bf16.mxu0 %v2049
    %3220 = vmatpush1.bf16.msra.mxu0 %v2048
    %3221 = vmatprep.subr.bf16.mxu0 %v2057
    %3222 = vmatpush1.bf16.msra.mxu0 %v2056
    %3223 = vmatprep.subr.bf16.mxu0 %v2065
    %3224 = vmatpush1.bf16.msra.mxu0 %v2064
    %3225 = vmatprep.subr.bf16.mxu0 %v2073
    %3226 = vmatpush1.bf16.msra.mxu0 %v2072
    %3227 = vmatprep.subr.bf16.mxu0 %v2081
    %3228 = vmatpush1.bf16.msra.mxu0 %v2080
    %3229 = vmatprep.subr.bf16.mxu0 %v2089
    %3230 = vmatpush1.bf16.msra.mxu0 %v2088
    %3231 = vmatprep.mubr.bf16.mxu0 %v1827
    %3232 = vmatmul.mubr.bf16.gmra.mrb[0].mxu0 %v1826
    %v3233 = vpop.f32.mrb[0].mxu0
    %v3234 = vadd.f32 %v3193, %v3233
    %v3235 = vpop.f32.mrb[0].mxu0
    %v3236 = vadd.f32 %v3195, %v3235
    %v3237 = vpop.f32.mrb[0].mxu0
    %v3238 = vpop.f32.mrb[0].mxu0
    %3239 = vdwg.mxu0
    %3240 = vmatprep.subr.bf16.mxu0 %v2097
    %3241 = vmatpush1.bf16.msra.mxu0 %v2096
    %3242 = vmatprep.subr.bf16.mxu0 %v2105
    %3243 = vmatpush1.bf16.msra.mxu0 %v2104
    %3244 = vmatprep.subr.bf16.mxu0 %v2113
    %3245 = vmatpush1.bf16.msra.mxu0 %v2112
    %3246 = vmatprep.subr.bf16.mxu0 %v2121
    %3247 = vmatpush1.bf16.msra.mxu0 %v2120
    %3248 = vmatprep.subr.bf16.mxu0 %v2129
    %3249 = vmatpush1.bf16.msra.mxu0 %v2128
    %3250 = vmatprep.subr.bf16.mxu0 %v2137
    %3251 = vmatpush1.bf16.msra.mxu0 %v2136
    %3252 = vmatprep.subr.bf16.mxu0 %v2145
    %3253 = vmatpush1.bf16.msra.mxu0 %v2144
    %3254 = vmatprep.subr.bf16.mxu0 %v2153
    %3255 = vmatpush1.bf16.msra.mxu0 %v2152
    %3256 = vmatprep.subr.bf16.mxu0 %v2161
    %3257 = vmatpush1.bf16.msra.mxu0 %v2160
    %3258 = vmatprep.subr.bf16.mxu0 %v2169
    %3259 = vmatpush1.bf16.msra.mxu0 %v2168
    %3260 = vmatprep.subr.bf16.mxu0 %v2177
    %3261 = vmatpush1.bf16.msra.mxu0 %v2176
    %3262 = vmatprep.subr.bf16.mxu0 %v2185
    %3263 = vmatpush1.bf16.msra.mxu0 %v2184
    %3264 = vmatprep.subr.bf16.mxu0 %v2193
    %3265 = vmatpush1.bf16.msra.mxu0 %v2192
    %3266 = vmatprep.subr.bf16.mxu0 %v2201
    %3267 = vmatpush1.bf16.msra.mxu0 %v2200
    %3268 = vmatprep.subr.bf16.mxu0 %v2209
    %3269 = vmatpush1.bf16.msra.mxu0 %v2208
    %3270 = vmatprep.subr.bf16.mxu0 %v2217
    %3271 = vmatpush1.bf16.msra.mxu0 %v2216
    %3272 = vmatprep.mubr.bf16.mxu0 %v1829
    %3273 = vmatmul.mubr.bf16.gmra.mrb[0].mxu0 %v1828
    %v3274 = vpop.f32.mrb[0].mxu0
    %v3275 = vadd.f32 %v3234, %v3274
    %v3276 = vpop.f32.mrb[0].mxu0
    %v3277 = vadd.f32 %v3236, %v3276
    %v3278 = vpop.f32.mrb[0].mxu0
    %v3279 = vpop.f32.mrb[0].mxu0
    %3280 = vdwg.mxu0
    %3281 = vmatprep.subr.bf16.mxu0 %v2225
    %3282 = vmatpush1.bf16.msra.mxu0 %v2224
    %3283 = vmatprep.subr.bf16.mxu0 %v2233
    %3284 = vmatpush1.bf16.msra.mxu0 %v2232
    %3285 = vmatprep.subr.bf16.mxu0 %v2241
    %3286 = vmatpush1.bf16.msra.mxu0 %v2240
    %3287 = vmatprep.subr.bf16.mxu0 %v2249
    %3288 = vmatpush1.bf16.msra.mxu0 %v2248
    %3289 = vmatprep.subr.bf16.mxu0 %v2257
    %3290 = vmatpush1.bf16.msra.mxu0 %v2256
    %3291 = vmatprep.subr.bf16.mxu0 %v2265
    %3292 = vmatpush1.bf16.msra.mxu0 %v2264
    %3293 = vmatprep.subr.bf16.mxu0 %v2273
    %3294 = vmatpush1.bf16.msra.mxu0 %v2272
    %3295 = vmatprep.subr.bf16.mxu0 %v2281
    %3296 = vmatpush1.bf16.msra.mxu0 %v2280
    %3297 = vmatprep.subr.bf16.mxu0 %v2289
    %3298 = vmatpush1.bf16.msra.mxu0 %v2288
    %3299 = vmatprep.subr.bf16.mxu0 %v2297
    %3300 = vmatpush1.bf16.msra.mxu0 %v2296
    %3301 = vmatprep.subr.bf16.mxu0 %v2305
    %3302 = vmatpush1.bf16.msra.mxu0 %v2304
    %3303 = vmatprep.subr.bf16.mxu0 %v2313
    %3304 = vmatpush1.bf16.msra.mxu0 %v2312
    %3305 = vmatprep.subr.bf16.mxu0 %v2321
    %3306 = vmatpush1.bf16.msra.mxu0 %v2320
    %3307 = vmatprep.subr.bf16.mxu0 %v2329
    %3308 = vmatpush1.bf16.msra.mxu0 %v2328
    %3309 = vmatprep.subr.bf16.mxu0 %v2337
    %3310 = vmatpush1.bf16.msra.mxu0 %v2336
    %3311 = vmatprep.subr.bf16.mxu0 %v2345
    %3312 = vmatpush1.bf16.msra.mxu0 %v2344
    %3313 = vmatprep.mubr.bf16.mxu0 %v1831
    %3314 = vmatmul.mubr.bf16.gmra.mrb[0].mxu0 %v1830
    %v3315 = vpop.f32.mrb[0].mxu0
    %v3316 = vadd.f32 %v3275, %v3315
    %v3317 = vpop.f32.mrb[0].mxu0
    %v3318 = vadd.f32 %v3277, %v3317
    %v3319 = vpop.f32.mrb[0].mxu0
    %v3320 = vpop.f32.mrb[0].mxu0
    %3321 = vdwg.mxu0
    %3322 = vmatprep.subr.bf16.mxu0 %v2353
    %3323 = vmatpush1.bf16.msra.mxu0 %v2352
    %3324 = vmatprep.subr.bf16.mxu0 %v2361
    %3325 = vmatpush1.bf16.msra.mxu0 %v2360
    %3326 = vmatprep.subr.bf16.mxu0 %v2369
    %3327 = vmatpush1.bf16.msra.mxu0 %v2368
    %3328 = vmatprep.subr.bf16.mxu0 %v2377
    %3329 = vmatpush1.bf16.msra.mxu0 %v2376
    %3330 = vmatprep.subr.bf16.mxu0 %v2385
    %3331 = vmatpush1.bf16.msra.mxu0 %v2384
    %3332 = vmatprep.subr.bf16.mxu0 %v2393
    %3333 = vmatpush1.bf16.msra.mxu0 %v2392
    %3334 = vmatprep.subr.bf16.mxu0 %v2401
    %3335 = vmatpush1.bf16.msra.mxu0 %v2400
    %3336 = vmatprep.subr.bf16.mxu0 %v2409
    %3337 = vmatpush1.bf16.msra.mxu0 %v2408
    %3338 = vmatprep.subr.bf16.mxu0 %v2417
    %3339 = vmatpush1.bf16.msra.mxu0 %v2416
    %3340 = vmatprep.subr.bf16.mxu0 %v2425
    %3341 = vmatpush1.bf16.msra.mxu0 %v2424
    %3342 = vmatprep.subr.bf16.mxu0 %v2433
    %3343 = vmatpush1.bf16.msra.mxu0 %v2432
    %3344 = vmatprep.subr.bf16.mxu0 %v2441
    %3345 = vmatpush1.bf16.msra.mxu0 %v2440
    %3346 = vmatprep.subr.bf16.mxu0 %v2449
    %3347 = vmatpush1.bf16.msra.mxu0 %v2448
    %3348 = vmatprep.subr.bf16.mxu0 %v2457
    %3349 = vmatpush1.bf16.msra.mxu0 %v2456
    %3350 = vmatprep.subr.bf16.mxu0 %v2465
    %3351 = vmatpush1.bf16.msra.mxu0 %v2464
    %3352 = vmatprep.subr.bf16.mxu0 %v2473
    %3353 = vmatpush1.bf16.msra.mxu0 %v2472
    %3354 = vmatprep.mubr.bf16.mxu0 %v1833
    %3355 = vmatmul.mubr.bf16.gmra.mrb[0].mxu0 %v1832
    %v3356 = vpop.f32.mrb[0].mxu0
    %v3357 = vadd.f32 %v3316, %v3356
    %v3358 = vpop.f32.mrb[0].mxu0
    %v3359 = vadd.f32 %v3318, %v3358
    %v3360 = vpop.f32.mrb[0].mxu0
    %v3361 = vpop.f32.mrb[0].mxu0
    %3362 = vdwg.mxu0
    %3363 = vmatprep.subr.bf16.mxu0 %v2481
    %3364 = vmatpush1.bf16.msra.mxu0 %v2480
    %3365 = vmatprep.subr.bf16.mxu0 %v2489
    %3366 = vmatpush1.bf16.msra.mxu0 %v2488
    %3367 = vmatprep.subr.bf16.mxu0 %v2497
    %3368 = vmatpush1.bf16.msra.mxu0 %v2496
    %3369 = vmatprep.subr.bf16.mxu0 %v2505
    %3370 = vmatpush1.bf16.msra.mxu0 %v2504
    %3371 = vmatprep.subr.bf16.mxu0 %v2513
    %3372 = vmatpush1.bf16.msra.mxu0 %v2512
    %3373 = vmatprep.subr.bf16.mxu0 %v2521
    %3374 = vmatpush1.bf16.msra.mxu0 %v2520
    %3375 = vmatprep.subr.bf16.mxu0 %v2529
    %3376 = vmatpush1.bf16.msra.mxu0 %v2528
    %3377 = vmatprep.subr.bf16.mxu0 %v2537
    %3378 = vmatpush1.bf16.msra.mxu0 %v2536
    %3379 = vmatprep.subr.bf16.mxu0 %v2545
    %3380 = vmatpush1.bf16.msra.mxu0 %v2544
    %3381 = vmatprep.subr.bf16.mxu0 %v2553
    %3382 = vmatpush1.bf16.msra.mxu0 %v2552
    %3383 = vmatprep.subr.bf16.mxu0 %v2561
    %3384 = vmatpush1.bf16.msra.mxu0 %v2560
    %3385 = vmatprep.subr.bf16.mxu0 %v2569
    %3386 = vmatpush1.bf16.msra.mxu0 %v2568
    %3387 = vmatprep.subr.bf16.mxu0 %v2577
    %3388 = vmatpush1.bf16.msra.mxu0 %v2576
    %3389 = vmatprep.subr.bf16.mxu0 %v2585
    %3390 = vmatpush1.bf16.msra.mxu0 %v2584
    %3391 = vmatprep.subr.bf16.mxu0 %v2593
    %3392 = vmatpush1.bf16.msra.mxu0 %v2592
    %3393 = vmatprep.subr.bf16.mxu0 %v2601
    %3394 = vmatpush1.bf16.msra.mxu0 %v2600
    %3395 = vmatprep.mubr.bf16.mxu0 %v1835
    %3396 = vmatmul.mubr.bf16.gmra.mrb[0].mxu0 %v1834
    %v3397 = vpop.f32.mrb[0].mxu0
    %v3398 = vadd.f32 %v3357, %v3397
    %v3399 = vpop.f32.mrb[0].mxu0
    %v3400 = vadd.f32 %v3359, %v3399
    %v3401 = vpop.f32.mrb[0].mxu0
    %v3402 = vpop.f32.mrb[0].mxu0
    %3403 = vdwg.mxu0
    %3404 = vmatprep.subr.bf16.mxu0 %v2609
    %3405 = vmatpush1.bf16.msra.mxu0 %v2608
    %3406 = vmatprep.subr.bf16.mxu0 %v2617
    %3407 = vmatpush1.bf16.msra.mxu0 %v2616
    %3408 = vmatprep.subr.bf16.mxu0 %v2625
    %3409 = vmatpush1.bf16.msra.mxu0 %v2624
    %3410 = vmatprep.subr.bf16.mxu0 %v2633
    %3411 = vmatpush1.bf16.msra.mxu0 %v2632
    %3412 = vmatprep.subr.bf16.mxu0 %v2641
    %3413 = vmatpush1.bf16.msra.mxu0 %v2640
    %3414 = vmatprep.subr.bf16.mxu0 %v2649
    %3415 = vmatpush1.bf16.msra.mxu0 %v2648
    %3416 = vmatprep.subr.bf16.mxu0 %v2657
    %3417 = vmatpush1.bf16.msra.mxu0 %v2656
    %3418 = vmatprep.subr.bf16.mxu0 %v2665
    %3419 = vmatpush1.bf16.msra.mxu0 %v2664
    %3420 = vmatprep.subr.bf16.mxu0 %v2673
    %3421 = vmatpush1.bf16.msra.mxu0 %v2672
    %3422 = vmatprep.subr.bf16.mxu0 %v2681
    %3423 = vmatpush1.bf16.msra.mxu0 %v2680
    %3424 = vmatprep.subr.bf16.mxu0 %v2689
    %3425 = vmatpush1.bf16.msra.mxu0 %v2688
    %3426 = vmatprep.subr.bf16.mxu0 %v2697
    %3427 = vmatpush1.bf16.msra.mxu0 %v2696
    %3428 = vmatprep.subr.bf16.mxu0 %v2705
    %3429 = vmatpush1.bf16.msra.mxu0 %v2704
    %3430 = vmatprep.subr.bf16.mxu0 %v2713
    %3431 = vmatpush1.bf16.msra.mxu0 %v2712
    %3432 = vmatprep.subr.bf16.mxu0 %v2721
    %3433 = vmatpush1.bf16.msra.mxu0 %v2720
    %3434 = vmatprep.subr.bf16.mxu0 %v2729
    %3435 = vmatpush1.bf16.msra.mxu0 %v2728
    %3436 = vmatprep.mubr.bf16.mxu0 %v1837
    %3437 = vmatmul.mubr.bf16.gmra.mrb[0].mxu0 %v1836
    %v3438 = vpop.f32.mrb[0].mxu0
    %v3439 = vadd.f32 %v3398, %v3438
    %v3440 = vpop.f32.mrb[0].mxu0
    %v3441 = vadd.f32 %v3400, %v3440
    %v3442 = vpop.f32.mrb[0].mxu0
    %v3443 = vpop.f32.mrb[0].mxu0
    %3444 = vdwg.mxu0
    %3445 = vmatprep.subr.bf16.mxu0 %v2737
    %3446 = vmatpush1.bf16.msra.mxu0 %v2736
    %3447 = vmatprep.subr.bf16.mxu0 %v2745
    %3448 = vmatpush1.bf16.msra.mxu0 %v2744
    %3449 = vmatprep.subr.bf16.mxu0 %v2753
    %3450 = vmatpush1.bf16.msra.mxu0 %v2752
    %3451 = vmatprep.subr.bf16.mxu0 %v2761
    %3452 = vmatpush1.bf16.msra.mxu0 %v2760
    %3453 = vmatprep.subr.bf16.mxu0 %v2769
    %3454 = vmatpush1.bf16.msra.mxu0 %v2768
    %3455 = vmatprep.subr.bf16.mxu0 %v2777
    %3456 = vmatpush1.bf16.msra.mxu0 %v2776
    %3457 = vmatprep.subr.bf16.mxu0 %v2785
    %3458 = vmatpush1.bf16.msra.mxu0 %v2784
    %3459 = vmatprep.subr.bf16.mxu0 %v2793
    %3460 = vmatpush1.bf16.msra.mxu0 %v2792
    %3461 = vmatprep.subr.bf16.mxu0 %v2801
    %3462 = vmatpush1.bf16.msra.mxu0 %v2800
    %3463 = vmatprep.subr.bf16.mxu0 %v2809
    %3464 = vmatpush1.bf16.msra.mxu0 %v2808
    %3465 = vmatprep.subr.bf16.mxu0 %v2817
    %3466 = vmatpush1.bf16.msra.mxu0 %v2816
    %3467 = vmatprep.subr.bf16.mxu0 %v2825
    %3468 = vmatpush1.bf16.msra.mxu0 %v2824
    %3469 = vmatprep.subr.bf16.mxu0 %v2833
    %3470 = vmatpush1.bf16.msra.mxu0 %v2832
    %3471 = vmatprep.subr.bf16.mxu0 %v2841
    %3472 = vmatpush1.bf16.msra.mxu0 %v2840
    %3473 = vmatprep.subr.bf16.mxu0 %v2849
    %3474 = vmatpush1.bf16.msra.mxu0 %v2848
    %3475 = vmatprep.subr.bf16.mxu0 %v2857
    %3476 = vmatpush1.bf16.msra.mxu0 %v2856
    %3477 = vmatprep.mubr.bf16.mxu0 %v1839
    %3478 = vmatmul.mubr.bf16.gmra.mrb[0].mxu0 %v1838
    %v3479 = vpop.f32.mrb[0].mxu0
    %v3480 = vadd.f32 %v3439, %v3479
    %v3481 = vpop.f32.mrb[0].mxu0
    %v3482 = vadd.f32 %v3441, %v3481
    %v3483 = vpop.f32.mrb[0].mxu0
    %v3484 = vpop.f32.mrb[0].mxu0
    %3485 = vdwg.mxu0
    %3486 = vmatprep.subr.bf16.mxu0 %v1843
    %3487 = vmatpush1.bf16.msra.mxu0 %v1842
    %3488 = vmatprep.subr.bf16.mxu0 %v1851
    %3489 = vmatpush1.bf16.msra.mxu0 %v1850
    %3490 = vmatprep.subr.bf16.mxu0 %v1859
    %3491 = vmatpush1.bf16.msra.mxu0 %v1858
    %3492 = vmatprep.subr.bf16.mxu0 %v1867
    %3493 = vmatpush1.bf16.msra.mxu0 %v1866
    %3494 = vmatprep.subr.bf16.mxu0 %v1875
    %3495 = vmatpush1.bf16.msra.mxu0 %v1874
    %3496 = vmatprep.subr.bf16.mxu0 %v1883
    %3497 = vmatpush1.bf16.msra.mxu0 %v1882
    %3498 = vmatprep.subr.bf16.mxu0 %v1891
    %3499 = vmatpush1.bf16.msra.mxu0 %v1890
    %3500 = vmatprep.subr.bf16.mxu0 %v1899
    %3501 = vmatpush1.bf16.msra.mxu0 %v1898
    %3502 = vmatprep.subr.bf16.mxu0 %v1907
    %3503 = vmatpush1.bf16.msra.mxu0 %v1906
    %3504 = vmatprep.subr.bf16.mxu0 %v1915
    %3505 = vmatpush1.bf16.msra.mxu0 %v1914
    %3506 = vmatprep.subr.bf16.mxu0 %v1923
    %3507 = vmatpush1.bf16.msra.mxu0 %v1922
    %3508 = vmatprep.subr.bf16.mxu0 %v1931
    %3509 = vmatpush1.bf16.msra.mxu0 %v1930
    %3510 = vmatprep.subr.bf16.mxu0 %v1939
    %3511 = vmatpush1.bf16.msra.mxu0 %v1938
    %3512 = vmatprep.subr.bf16.mxu0 %v1947
    %3513 = vmatpush1.bf16.msra.mxu0 %v1946
    %3514 = vmatprep.subr.bf16.mxu0 %v1955
    %3515 = vmatpush1.bf16.msra.mxu0 %v1954
    %3516 = vmatprep.subr.bf16.mxu0 %v1963
    %3517 = vmatpush1.bf16.msra.mxu0 %v1962
    %3518 = vmatprep.mubr.bf16.mxu0 %v1825
    %3519 = vmatmul.mubr.bf16.gmra.mrb[0].mxu0 %v1824
    %v3520 = vpop.f32.mrb[0].mxu0
    %v3521 = vadd.f32 %v3070, %v3520
    %v3522 = vpop.f32.mrb[0].mxu0
    %v3523 = vadd.f32 %v3072, %v3522
    %v3524 = vpop.f32.mrb[0].mxu0
    %v3525 = vpop.f32.mrb[0].mxu0
    %3526 = vdwg.mxu0
    %3527 = vmatprep.subr.bf16.mxu0 %v1971
    %3528 = vmatpush1.bf16.msra.mxu0 %v1970
    %3529 = vmatprep.subr.bf16.mxu0 %v1979
    %3530 = vmatpush1.bf16.msra.mxu0 %v1978
    %3531 = vmatprep.subr.bf16.mxu0 %v1987
    %3532 = vmatpush1.bf16.msra.mxu0 %v1986
    %3533 = vmatprep.subr.bf16.mxu0 %v1995
    %3534 = vmatpush1.bf16.msra.mxu0 %v1994
    %3535 = vmatprep.subr.bf16.mxu0 %v2003
    %3536 = vmatpush1.bf16.msra.mxu0 %v2002
    %3537 = vmatprep.subr.bf16.mxu0 %v2011
    %3538 = vmatpush1.bf16.msra.mxu0 %v2010
    %3539 = vmatprep.subr.bf16.mxu0 %v2019
    %3540 = vmatpush1.bf16.msra.mxu0 %v2018
    %3541 = vmatprep.subr.bf16.mxu0 %v2027
    %3542 = vmatpush1.bf16.msra.mxu0 %v2026
    %3543 = vmatprep.subr.bf16.mxu0 %v2035
    %3544 = vmatpush1.bf16.msra.mxu0 %v2034
    %3545 = vmatprep.subr.bf16.mxu0 %v2043
    %3546 = vmatpush1.bf16.msra.mxu0 %v2042
    %3547 = vmatprep.subr.bf16.mxu0 %v2051
    %3548 = vmatpush1.bf16.msra.mxu0 %v2050
    %3549 = vmatprep.subr.bf16.mxu0 %v2059
    %3550 = vmatpush1.bf16.msra.mxu0 %v2058
    %3551 = vmatprep.subr.bf16.mxu0 %v2067
    %3552 = vmatpush1.bf16.msra.mxu0 %v2066
    %3553 = vmatprep.subr.bf16.mxu0 %v2075
    %3554 = vmatpush1.bf16.msra.mxu0 %v2074
    %3555 = vmatprep.subr.bf16.mxu0 %v2083
    %3556 = vmatpush1.bf16.msra.mxu0 %v2082
    %3557 = vmatprep.subr.bf16.mxu0 %v2091
    %3558 = vmatpush1.bf16.msra.mxu0 %v2090
    %3559 = vmatprep.mubr.bf16.mxu0 %v1827
    %3560 = vmatmul.mubr.bf16.gmra.mrb[0].mxu0 %v1826
    %v3561 = vpop.f32.mrb[0].mxu0
    %v3562 = vadd.f32 %v3521, %v3561
    %v3563 = vpop.f32.mrb[0].mxu0
    %v3564 = vadd.f32 %v3523, %v3563
    %v3565 = vpop.f32.mrb[0].mxu0
    %v3566 = vpop.f32.mrb[0].mxu0
    %3567 = vdwg.mxu0
    %3568 = vmatprep.subr.bf16.mxu0 %v2099
    %3569 = vmatpush1.bf16.msra.mxu0 %v2098
    %3570 = vmatprep.subr.bf16.mxu0 %v2107
    %3571 = vmatpush1.bf16.msra.mxu0 %v2106
    %3572 = vmatprep.subr.bf16.mxu0 %v2115
    %3573 = vmatpush1.bf16.msra.mxu0 %v2114
    %3574 = vmatprep.subr.bf16.mxu0 %v2123
    %3575 = vmatpush1.bf16.msra.mxu0 %v2122
    %3576 = vmatprep.subr.bf16.mxu0 %v2131
    %3577 = vmatpush1.bf16.msra.mxu0 %v2130
    %3578 = vmatprep.subr.bf16.mxu0 %v2139
    %3579 = vmatpush1.bf16.msra.mxu0 %v2138
    %3580 = vmatprep.subr.bf16.mxu0 %v2147
    %3581 = vmatpush1.bf16.msra.mxu0 %v2146
    %3582 = vmatprep.subr.bf16.mxu0 %v2155
    %3583 = vmatpush1.bf16.msra.mxu0 %v2154
    %3584 = vmatprep.subr.bf16.mxu0 %v2163
    %3585 = vmatpush1.bf16.msra.mxu0 %v2162
    %3586 = vmatprep.subr.bf16.mxu0 %v2171
    %3587 = vmatpush1.bf16.msra.mxu0 %v2170
    %3588 = vmatprep.subr.bf16.mxu0 %v2179
    %3589 = vmatpush1.bf16.msra.mxu0 %v2178
    %3590 = vmatprep.subr.bf16.mxu0 %v2187
    %3591 = vmatpush1.bf16.msra.mxu0 %v2186
    %3592 = vmatprep.subr.bf16.mxu0 %v2195
    %3593 = vmatpush1.bf16.msra.mxu0 %v2194
    %3594 = vmatprep.subr.bf16.mxu0 %v2203
    %3595 = vmatpush1.bf16.msra.mxu0 %v2202
    %3596 = vmatprep.subr.bf16.mxu0 %v2211
    %3597 = vmatpush1.bf16.msra.mxu0 %v2210
    %3598 = vmatprep.subr.bf16.mxu0 %v2219
    %3599 = vmatpush1.bf16.msra.mxu0 %v2218
    %3600 = vmatprep.mubr.bf16.mxu0 %v1829
    %3601 = vmatmul.mubr.bf16.gmra.mrb[0].mxu0 %v1828
    %v3602 = vpop.f32.mrb[0].mxu0
    %v3603 = vadd.f32 %v3562, %v3602
    %v3604 = vpop.f32.mrb[0].mxu0
    %v3605 = vadd.f32 %v3564, %v3604
    %v3606 = vpop.f32.mrb[0].mxu0
    %v3607 = vpop.f32.mrb[0].mxu0
    %3608 = vdwg.mxu0
    %3609 = vmatprep.subr.bf16.mxu0 %v2227
    %3610 = vmatpush1.bf16.msra.mxu0 %v2226
    %3611 = vmatprep.subr.bf16.mxu0 %v2235
    %3612 = vmatpush1.bf16.msra.mxu0 %v2234
    %3613 = vmatprep.subr.bf16.mxu0 %v2243
    %3614 = vmatpush1.bf16.msra.mxu0 %v2242
    %3615 = vmatprep.subr.bf16.mxu0 %v2251
    %3616 = vmatpush1.bf16.msra.mxu0 %v2250
    %3617 = vmatprep.subr.bf16.mxu0 %v2259
    %3618 = vmatpush1.bf16.msra.mxu0 %v2258
    %3619 = vmatprep.subr.bf16.mxu0 %v2267
    %3620 = vmatpush1.bf16.msra.mxu0 %v2266
    %3621 = vmatprep.subr.bf16.mxu0 %v2275
    %3622 = vmatpush1.bf16.msra.mxu0 %v2274
    %3623 = vmatprep.subr.bf16.mxu0 %v2283
    %3624 = vmatpush1.bf16.msra.mxu0 %v2282
    %3625 = vmatprep.subr.bf16.mxu0 %v2291
    %3626 = vmatpush1.bf16.msra.mxu0 %v2290
    %3627 = vmatprep.subr.bf16.mxu0 %v2299
    %3628 = vmatpush1.bf16.msra.mxu0 %v2298
    %3629 = vmatprep.subr.bf16.mxu0 %v2307
    %3630 = vmatpush1.bf16.msra.mxu0 %v2306
    %3631 = vmatprep.subr.bf16.mxu0 %v2315
    %3632 = vmatpush1.bf16.msra.mxu0 %v2314
    %3633 = vmatprep.subr.bf16.mxu0 %v2323
    %3634 = vmatpush1.bf16.msra.mxu0 %v2322
    %3635 = vmatprep.subr.bf16.mxu0 %v2331
    %3636 = vmatpush1.bf16.msra.mxu0 %v2330
    %3637 = vmatprep.subr.bf16.mxu0 %v2339
    %3638 = vmatpush1.bf16.msra.mxu0 %v2338
    %3639 = vmatprep.subr.bf16.mxu0 %v2347
    %3640 = vmatpush1.bf16.msra.mxu0 %v2346
    %3641 = vmatprep.mubr.bf16.mxu0 %v1831
    %3642 = vmatmul.mubr.bf16.gmra.mrb[0].mxu0 %v1830
    %v3643 = vpop.f32.mrb[0].mxu0
    %v3644 = vadd.f32 %v3603, %v3643
    %v3645 = vpop.f32.mrb[0].mxu0
    %v3646 = vadd.f32 %v3605, %v3645
    %v3647 = vpop.f32.mrb[0].mxu0
    %v3648 = vpop.f32.mrb[0].mxu0
    %3649 = vdwg.mxu0
    %3650 = vmatprep.subr.bf16.mxu0 %v2355
    %3651 = vmatpush1.bf16.msra.mxu0 %v2354
    %3652 = vmatprep.subr.bf16.mxu0 %v2363
    %3653 = vmatpush1.bf16.msra.mxu0 %v2362
    %3654 = vmatprep.subr.bf16.mxu0 %v2371
    %3655 = vmatpush1.bf16.msra.mxu0 %v2370
    %3656 = vmatprep.subr.bf16.mxu0 %v2379
    %3657 = vmatpush1.bf16.msra.mxu0 %v2378
    %3658 = vmatprep.subr.bf16.mxu0 %v2387
    %3659 = vmatpush1.bf16.msra.mxu0 %v2386
    %3660 = vmatprep.subr.bf16.mxu0 %v2395
    %3661 = vmatpush1.bf16.msra.mxu0 %v2394
    %3662 = vmatprep.subr.bf16.mxu0 %v2403
    %3663 = vmatpush1.bf16.msra.mxu0 %v2402
    %3664 = vmatprep.subr.bf16.mxu0 %v2411
    %3665 = vmatpush1.bf16.msra.mxu0 %v2410
    %3666 = vmatprep.subr.bf16.mxu0 %v2419
    %3667 = vmatpush1.bf16.msra.mxu0 %v2418
    %3668 = vmatprep.subr.bf16.mxu0 %v2427
    %3669 = vmatpush1.bf16.msra.mxu0 %v2426
    %3670 = vmatprep.subr.bf16.mxu0 %v2435
    %3671 = vmatpush1.bf16.msra.mxu0 %v2434
    %3672 = vmatprep.subr.bf16.mxu0 %v2443
    %3673 = vmatpush1.bf16.msra.mxu0 %v2442
    %3674 = vmatprep.subr.bf16.mxu0 %v2451
    %3675 = vmatpush1.bf16.msra.mxu0 %v2450
    %3676 = vmatprep.subr.bf16.mxu0 %v2459
    %3677 = vmatpush1.bf16.msra.mxu0 %v2458
    %3678 = vmatprep.subr.bf16.mxu0 %v2467
    %3679 = vmatpush1.bf16.msra.mxu0 %v2466
    %3680 = vmatprep.subr.bf16.mxu0 %v2475
    %3681 = vmatpush1.bf16.msra.mxu0 %v2474
    %3682 = vmatprep.mubr.bf16.mxu0 %v1833
    %3683 = vmatmul.mubr.bf16.gmra.mrb[0].mxu0 %v1832
    %v3684 = vpop.f32.mrb[0].mxu0
    %v3685 = vadd.f32 %v3644, %v3684
    %v3686 = vpop.f32.mrb[0].mxu0
    %v3687 = vadd.f32 %v3646, %v3686
    %v3688 = vpop.f32.mrb[0].mxu0
    %v3689 = vpop.f32.mrb[0].mxu0
    %3690 = vdwg.mxu0
    %3691 = vmatprep.subr.bf16.mxu0 %v2483
    %3692 = vmatpush1.bf16.msra.mxu0 %v2482
    %3693 = vmatprep.subr.bf16.mxu0 %v2491
    %3694 = vmatpush1.bf16.msra.mxu0 %v2490
    %3695 = vmatprep.subr.bf16.mxu0 %v2499
    %3696 = vmatpush1.bf16.msra.mxu0 %v2498
    %3697 = vmatprep.subr.bf16.mxu0 %v2507
    %3698 = vmatpush1.bf16.msra.mxu0 %v2506
    %3699 = vmatprep.subr.bf16.mxu0 %v2515
    %3700 = vmatpush1.bf16.msra.mxu0 %v2514
    %3701 = vmatprep.subr.bf16.mxu0 %v2523
    %3702 = vmatpush1.bf16.msra.mxu0 %v2522
    %3703 = vmatprep.subr.bf16.mxu0 %v2531
    %3704 = vmatpush1.bf16.msra.mxu0 %v2530
    %3705 = vmatprep.subr.bf16.mxu0 %v2539
    %3706 = vmatpush1.bf16.msra.mxu0 %v2538
    %3707 = vmatprep.subr.bf16.mxu0 %v2547
    %3708 = vmatpush1.bf16.msra.mxu0 %v2546
    %3709 = vmatprep.subr.bf16.mxu0 %v2555
    %3710 = vmatpush1.bf16.msra.mxu0 %v2554
    %3711 = vmatprep.subr.bf16.mxu0 %v2563
    %3712 = vmatpush1.bf16.msra.mxu0 %v2562
    %3713 = vmatprep.subr.bf16.mxu0 %v2571
    %3714 = vmatpush1.bf16.msra.mxu0 %v2570
    %3715 = vmatprep.subr.bf16.mxu0 %v2579
    %3716 = vmatpush1.bf16.msra.mxu0 %v2578
    %3717 = vmatprep.subr.bf16.mxu0 %v2587
    %3718 = vmatpush1.bf16.msra.mxu0 %v2586
    %3719 = vmatprep.subr.bf16.mxu0 %v2595
    %3720 = vmatpush1.bf16.msra.mxu0 %v2594
    %3721 = vmatprep.subr.bf16.mxu0 %v2603
    %3722 = vmatpush1.bf16.msra.mxu0 %v2602
    %3723 = vmatprep.mubr.bf16.mxu0 %v1835
    %3724 = vmatmul.mubr.bf16.gmra.mrb[0].mxu0 %v1834
    %v3725 = vpop.f32.mrb[0].mxu0
    %v3726 = vadd.f32 %v3685, %v3725
    %v3727 = vpop.f32.mrb[0].mxu0
    %v3728 = vadd.f32 %v3687, %v3727
    %v3729 = vpop.f32.mrb[0].mxu0
    %v3730 = vpop.f32.mrb[0].mxu0
    %3731 = vdwg.mxu0
    %3732 = vmatprep.subr.bf16.mxu0 %v2611
    %3733 = vmatpush1.bf16.msra.mxu0 %v2610
    %3734 = vmatprep.subr.bf16.mxu0 %v2619
    %3735 = vmatpush1.bf16.msra.mxu0 %v2618
    %3736 = vmatprep.subr.bf16.mxu0 %v2627
    %3737 = vmatpush1.bf16.msra.mxu0 %v2626
    %3738 = vmatprep.subr.bf16.mxu0 %v2635
    %3739 = vmatpush1.bf16.msra.mxu0 %v2634
    %3740 = vmatprep.subr.bf16.mxu0 %v2643
    %3741 = vmatpush1.bf16.msra.mxu0 %v2642
    %3742 = vmatprep.subr.bf16.mxu0 %v2651
    %3743 = vmatpush1.bf16.msra.mxu0 %v2650
    %3744 = vmatprep.subr.bf16.mxu0 %v2659
    %3745 = vmatpush1.bf16.msra.mxu0 %v2658
    %3746 = vmatprep.subr.bf16.mxu0 %v2667
    %3747 = vmatpush1.bf16.msra.mxu0 %v2666
    %3748 = vmatprep.subr.bf16.mxu0 %v2675
    %3749 = vmatpush1.bf16.msra.mxu0 %v2674
    %3750 = vmatprep.subr.bf16.mxu0 %v2683
    %3751 = vmatpush1.bf16.msra.mxu0 %v2682
    %3752 = vmatprep.subr.bf16.mxu0 %v2691
    %3753 = vmatpush1.bf16.msra.mxu0 %v2690
    %3754 = vmatprep.subr.bf16.mxu0 %v2699
    %3755 = vmatpush1.bf16.msra.mxu0 %v2698
    %3756 = vmatprep.subr.bf16.mxu0 %v2707
    %3757 = vmatpush1.bf16.msra.mxu0 %v2706
    %3758 = vmatprep.subr.bf16.mxu0 %v2715
    %3759 = vmatpush1.bf16.msra.mxu0 %v2714
    %3760 = vmatprep.subr.bf16.mxu0 %v2723
    %3761 = vmatpush1.bf16.msra.mxu0 %v2722
    %3762 = vmatprep.subr.bf16.mxu0 %v2731
    %3763 = vmatpush1.bf16.msra.mxu0 %v2730
    %3764 = vmatprep.mubr.bf16.mxu0 %v1837
    %3765 = vmatmul.mubr.bf16.gmra.mrb[0].mxu0 %v1836
    %v3766 = vpop.f32.mrb[0].mxu0
    %v3767 = vadd.f32 %v3726, %v3766
    %v3768 = vpop.f32.mrb[0].mxu0
    %v3769 = vadd.f32 %v3728, %v3768
    %v3770 = vpop.f32.mrb[0].mxu0
    %v3771 = vpop.f32.mrb[0].mxu0
    %3772 = vdwg.mxu0
    %3773 = vmatprep.subr.bf16.mxu0 %v2739
    %3774 = vmatpush1.bf16.msra.mxu0 %v2738
    %3775 = vmatprep.subr.bf16.mxu0 %v2747
    %3776 = vmatpush1.bf16.msra.mxu0 %v2746
    %3777 = vmatprep.subr.bf16.mxu0 %v2755
    %3778 = vmatpush1.bf16.msra.mxu0 %v2754
    %3779 = vmatprep.subr.bf16.mxu0 %v2763
    %3780 = vmatpush1.bf16.msra.mxu0 %v2762
    %3781 = vmatprep.subr.bf16.mxu0 %v2771
    %3782 = vmatpush1.bf16.msra.mxu0 %v2770
    %3783 = vmatprep.subr.bf16.mxu0 %v2779
    %3784 = vmatpush1.bf16.msra.mxu0 %v2778
    %3785 = vmatprep.subr.bf16.mxu0 %v2787
    %3786 = vmatpush1.bf16.msra.mxu0 %v2786
    %3787 = vmatprep.subr.bf16.mxu0 %v2795
    %3788 = vmatpush1.bf16.msra.mxu0 %v2794
    %3789 = vmatprep.subr.bf16.mxu0 %v2803
    %3790 = vmatpush1.bf16.msra.mxu0 %v2802
    %3791 = vmatprep.subr.bf16.mxu0 %v2811
    %3792 = vmatpush1.bf16.msra.mxu0 %v2810
    %3793 = vmatprep.subr.bf16.mxu0 %v2819
    %3794 = vmatpush1.bf16.msra.mxu0 %v2818
    %3795 = vmatprep.subr.bf16.mxu0 %v2827
    %3796 = vmatpush1.bf16.msra.mxu0 %v2826
    %3797 = vmatprep.subr.bf16.mxu0 %v2835
    %3798 = vmatpush1.bf16.msra.mxu0 %v2834
    %3799 = vmatprep.subr.bf16.mxu0 %v2843
    %3800 = vmatpush1.bf16.msra.mxu0 %v2842
    %3801 = vmatprep.subr.bf16.mxu0 %v2851
    %3802 = vmatpush1.bf16.msra.mxu0 %v2850
    %3803 = vmatprep.subr.bf16.mxu0 %v2859
    %3804 = vmatpush1.bf16.msra.mxu0 %v2858
    %3805 = vmatprep.mubr.bf16.mxu0 %v1839
    %3806 = vmatmul.mubr.bf16.gmra.mrb[0].mxu0 %v1838
    %v3807 = vpop.f32.mrb[0].mxu0
    %v3808 = vadd.f32 %v3767, %v3807
    %v3809 = vpop.f32.mrb[0].mxu0
    %v3810 = vadd.f32 %v3769, %v3809
    %v3811 = vpop.f32.mrb[0].mxu0
    %v3812 = vpop.f32.mrb[0].mxu0
    %3813 = vdwg.mxu0
    %3814 = vmatprep.subr.bf16.mxu0 %v1845
    %3815 = vmatpush1.bf16.msra.mxu0 %v1844
    %3816 = vmatprep.subr.bf16.mxu0 %v1853
    %3817 = vmatpush1.bf16.msra.mxu0 %v1852
    %3818 = vmatprep.subr.bf16.mxu0 %v1861
    %3819 = vmatpush1.bf16.msra.mxu0 %v1860
    %3820 = vmatprep.subr.bf16.mxu0 %v1869
    %3821 = vmatpush1.bf16.msra.mxu0 %v1868
    %3822 = vmatprep.subr.bf16.mxu0 %v1877
    %3823 = vmatpush1.bf16.msra.mxu0 %v1876
    %3824 = vmatprep.subr.bf16.mxu0 %v1885
    %3825 = vmatpush1.bf16.msra.mxu0 %v1884
    %3826 = vmatprep.subr.bf16.mxu0 %v1893
    %3827 = vmatpush1.bf16.msra.mxu0 %v1892
    %3828 = vmatprep.subr.bf16.mxu0 %v1901
    %3829 = vmatpush1.bf16.msra.mxu0 %v1900
    %3830 = vmatprep.subr.bf16.mxu0 %v1909
    %3831 = vmatpush1.bf16.msra.mxu0 %v1908
    %3832 = vmatprep.subr.bf16.mxu0 %v1917
    %3833 = vmatpush1.bf16.msra.mxu0 %v1916
    %3834 = vmatprep.subr.bf16.mxu0 %v1925
    %3835 = vmatpush1.bf16.msra.mxu0 %v1924
    %3836 = vmatprep.subr.bf16.mxu0 %v1933
    %3837 = vmatpush1.bf16.msra.mxu0 %v1932
    %3838 = vmatprep.subr.bf16.mxu0 %v1941
    %3839 = vmatpush1.bf16.msra.mxu0 %v1940
    %3840 = vmatprep.subr.bf16.mxu0 %v1949
    %3841 = vmatpush1.bf16.msra.mxu0 %v1948
    %3842 = vmatprep.subr.bf16.mxu0 %v1957
    %3843 = vmatpush1.bf16.msra.mxu0 %v1956
    %3844 = vmatprep.subr.bf16.mxu0 %v1965
    %3845 = vmatpush1.bf16.msra.mxu0 %v1964
    %3846 = vmatprep.mubr.bf16.mxu0 %v1825
    %3847 = vmatmul.mubr.bf16.gmra.mrb[0].mxu0 %v1824
    %v3848 = vpop.f32.mrb[0].mxu0
    %v3849 = vadd.f32 %v3111, %v3848
    %v3850 = vpop.f32.mrb[0].mxu0
    %v3851 = vadd.f32 %v3113, %v3850
    %v3852 = vpop.f32.mrb[0].mxu0
    %v3853 = vpop.f32.mrb[0].mxu0
    %3854 = vdwg.mxu0
    %3855 = vmatprep.subr.bf16.mxu0 %v1973
    %3856 = vmatpush1.bf16.msra.mxu0 %v1972
    %3857 = vmatprep.subr.bf16.mxu0 %v1981
    %3858 = vmatpush1.bf16.msra.mxu0 %v1980
    %3859 = vmatprep.subr.bf16.mxu0 %v1989
    %3860 = vmatpush1.bf16.msra.mxu0 %v1988
    %3861 = vmatprep.subr.bf16.mxu0 %v1997
    %3862 = vmatpush1.bf16.msra.mxu0 %v1996
    %3863 = vmatprep.subr.bf16.mxu0 %v2005
    %3864 = vmatpush1.bf16.msra.mxu0 %v2004
    %3865 = vmatprep.subr.bf16.mxu0 %v2013
    %3866 = vmatpush1.bf16.msra.mxu0 %v2012
    %3867 = vmatprep.subr.bf16.mxu0 %v2021
    %3868 = vmatpush1.bf16.msra.mxu0 %v2020
    %3869 = vmatprep.subr.bf16.mxu0 %v2029
    %3870 = vmatpush1.bf16.msra.mxu0 %v2028
    %3871 = vmatprep.subr.bf16.mxu0 %v2037
    %3872 = vmatpush1.bf16.msra.mxu0 %v2036
    %3873 = vmatprep.subr.bf16.mxu0 %v2045
    %3874 = vmatpush1.bf16.msra.mxu0 %v2044
    %3875 = vmatprep.subr.bf16.mxu0 %v2053
    %3876 = vmatpush1.bf16.msra.mxu0 %v2052
    %3877 = vmatprep.subr.bf16.mxu0 %v2061
    %3878 = vmatpush1.bf16.msra.mxu0 %v2060
    %3879 = vmatprep.subr.bf16.mxu0 %v2069
    %3880 = vmatpush1.bf16.msra.mxu0 %v2068
    %3881 = vmatprep.subr.bf16.mxu0 %v2077
    %3882 = vmatpush1.bf16.msra.mxu0 %v2076
    %3883 = vmatprep.subr.bf16.mxu0 %v2085
    %3884 = vmatpush1.bf16.msra.mxu0 %v2084
    %3885 = vmatprep.subr.bf16.mxu0 %v2093
    %3886 = vmatpush1.bf16.msra.mxu0 %v2092
    %3887 = vmatprep.mubr.bf16.mxu0 %v1827
    %3888 = vmatmul.mubr.bf16.gmra.mrb[0].mxu0 %v1826
    %v3889 = vpop.f32.mrb[0].mxu0
    %v3890 = vadd.f32 %v3849, %v3889
    %v3891 = vpop.f32.mrb[0].mxu0
    %v3892 = vadd.f32 %v3851, %v3891
    %v3893 = vpop.f32.mrb[0].mxu0
    %v3894 = vpop.f32.mrb[0].mxu0
    %3895 = vdwg.mxu0
    %3896 = vmatprep.subr.bf16.mxu0 %v2101
    %3897 = vmatpush1.bf16.msra.mxu0 %v2100
    %3898 = vmatprep.subr.bf16.mxu0 %v2109
    %3899 = vmatpush1.bf16.msra.mxu0 %v2108
    %3900 = vmatprep.subr.bf16.mxu0 %v2117
    %3901 = vmatpush1.bf16.msra.mxu0 %v2116
    %3902 = vmatprep.subr.bf16.mxu0 %v2125
    %3903 = vmatpush1.bf16.msra.mxu0 %v2124
    %3904 = vmatprep.subr.bf16.mxu0 %v2133
    %3905 = vmatpush1.bf16.msra.mxu0 %v2132
    %3906 = vmatprep.subr.bf16.mxu0 %v2141
    %3907 = vmatpush1.bf16.msra.mxu0 %v2140
    %3908 = vmatprep.subr.bf16.mxu0 %v2149
    %3909 = vmatpush1.bf16.msra.mxu0 %v2148
    %3910 = vmatprep.subr.bf16.mxu0 %v2157
    %3911 = vmatpush1.bf16.msra.mxu0 %v2156
    %3912 = vmatprep.subr.bf16.mxu0 %v2165
    %3913 = vmatpush1.bf16.msra.mxu0 %v2164
    %3914 = vmatprep.subr.bf16.mxu0 %v2173
    %3915 = vmatpush1.bf16.msra.mxu0 %v2172
    %3916 = vmatprep.subr.bf16.mxu0 %v2181
    %3917 = vmatpush1.bf16.msra.mxu0 %v2180
    %3918 = vmatprep.subr.bf16.mxu0 %v2189
    %3919 = vmatpush1.bf16.msra.mxu0 %v2188
    %3920 = vmatprep.subr.bf16.mxu0 %v2197
    %3921 = vmatpush1.bf16.msra.mxu0 %v2196
    %3922 = vmatprep.subr.bf16.mxu0 %v2205
    %3923 = vmatpush1.bf16.msra.mxu0 %v2204
    %3924 = vmatprep.subr.bf16.mxu0 %v2213
    %3925 = vmatpush1.bf16.msra.mxu0 %v2212
    %3926 = vmatprep.subr.bf16.mxu0 %v2221
    %3927 = vmatpush1.bf16.msra.mxu0 %v2220
    %3928 = vmatprep.mubr.bf16.mxu0 %v1829
    %3929 = vmatmul.mubr.bf16.gmra.mrb[0].mxu0 %v1828
    %v3930 = vpop.f32.mrb[0].mxu0
    %v3931 = vadd.f32 %v3890, %v3930
    %v3932 = vpop.f32.mrb[0].mxu0
    %v3933 = vadd.f32 %v3892, %v3932
    %v3934 = vpop.f32.mrb[0].mxu0
    %v3935 = vpop.f32.mrb[0].mxu0
    %3936 = vdwg.mxu0
    %3937 = vmatprep.subr.bf16.mxu0 %v2229
    %3938 = vmatpush1.bf16.msra.mxu0 %v2228
    %3939 = vmatprep.subr.bf16.mxu0 %v2237
    %3940 = vmatpush1.bf16.msra.mxu0 %v2236
    %3941 = vmatprep.subr.bf16.mxu0 %v2245
    %3942 = vmatpush1.bf16.msra.mxu0 %v2244
    %3943 = vmatprep.subr.bf16.mxu0 %v2253
    %3944 = vmatpush1.bf16.msra.mxu0 %v2252
    %3945 = vmatprep.subr.bf16.mxu0 %v2261
    %3946 = vmatpush1.bf16.msra.mxu0 %v2260
    %3947 = vmatprep.subr.bf16.mxu0 %v2269
    %3948 = vmatpush1.bf16.msra.mxu0 %v2268
    %3949 = vmatprep.subr.bf16.mxu0 %v2277
    %3950 = vmatpush1.bf16.msra.mxu0 %v2276
    %3951 = vmatprep.subr.bf16.mxu0 %v2285
    %3952 = vmatpush1.bf16.msra.mxu0 %v2284
    %3953 = vmatprep.subr.bf16.mxu0 %v2293
    %3954 = vmatpush1.bf16.msra.mxu0 %v2292
    %3955 = vmatprep.subr.bf16.mxu0 %v2301
    %3956 = vmatpush1.bf16.msra.mxu0 %v2300
    %3957 = vmatprep.subr.bf16.mxu0 %v2309
    %3958 = vmatpush1.bf16.msra.mxu0 %v2308
    %3959 = vmatprep.subr.bf16.mxu0 %v2317
    %3960 = vmatpush1.bf16.msra.mxu0 %v2316
    %3961 = vmatprep.subr.bf16.mxu0 %v2325
    %3962 = vmatpush1.bf16.msra.mxu0 %v2324
    %3963 = vmatprep.subr.bf16.mxu0 %v2333
    %3964 = vmatpush1.bf16.msra.mxu0 %v2332
    %3965 = vmatprep.subr.bf16.mxu0 %v2341
    %3966 = vmatpush1.bf16.msra.mxu0 %v2340
    %3967 = vmatprep.subr.bf16.mxu0 %v2349
    %3968 = vmatpush1.bf16.msra.mxu0 %v2348
    %3969 = vmatprep.mubr.bf16.mxu0 %v1831
    %3970 = vmatmul.mubr.bf16.gmra.mrb[0].mxu0 %v1830
    %v3971 = vpop.f32.mrb[0].mxu0
    %v3972 = vadd.f32 %v3931, %v3971
    %v3973 = vpop.f32.mrb[0].mxu0
    %v3974 = vadd.f32 %v3933, %v3973
    %v3975 = vpop.f32.mrb[0].mxu0
    %v3976 = vpop.f32.mrb[0].mxu0
    %3977 = vdwg.mxu0
    %3978 = vmatprep.subr.bf16.mxu0 %v2357
    %3979 = vmatpush1.bf16.msra.mxu0 %v2356
    %3980 = vmatprep.subr.bf16.mxu0 %v2365
    %3981 = vmatpush1.bf16.msra.mxu0 %v2364
    %3982 = vmatprep.subr.bf16.mxu0 %v2373
    %3983 = vmatpush1.bf16.msra.mxu0 %v2372
    %3984 = vmatprep.subr.bf16.mxu0 %v2381
    %3985 = vmatpush1.bf16.msra.mxu0 %v2380
    %3986 = vmatprep.subr.bf16.mxu0 %v2389
    %3987 = vmatpush1.bf16.msra.mxu0 %v2388
    %3988 = vmatprep.subr.bf16.mxu0 %v2397
    %3989 = vmatpush1.bf16.msra.mxu0 %v2396
    %3990 = vmatprep.subr.bf16.mxu0 %v2405
    %3991 = vmatpush1.bf16.msra.mxu0 %v2404
    %3992 = vmatprep.subr.bf16.mxu0 %v2413
    %3993 = vmatpush1.bf16.msra.mxu0 %v2412
    %3994 = vmatprep.subr.bf16.mxu0 %v2421
    %3995 = vmatpush1.bf16.msra.mxu0 %v2420
    %3996 = vmatprep.subr.bf16.mxu0 %v2429
    %3997 = vmatpush1.bf16.msra.mxu0 %v2428
    %3998 = vmatprep.subr.bf16.mxu0 %v2437
    %3999 = vmatpush1.bf16.msra.mxu0 %v2436
    %4000 = vmatprep.subr.bf16.mxu0 %v2445
    %4001 = vmatpush1.bf16.msra.mxu0 %v2444
    %4002 = vmatprep.subr.bf16.mxu0 %v2453
    %4003 = vmatpush1.bf16.msra.mxu0 %v2452
    %4004 = vmatprep.subr.bf16.mxu0 %v2461
    %4005 = vmatpush1.bf16.msra.mxu0 %v2460
    %4006 = vmatprep.subr.bf16.mxu0 %v2469
    %4007 = vmatpush1.bf16.msra.mxu0 %v2468
    %4008 = vmatprep.subr.bf16.mxu0 %v2477
    %4009 = vmatpush1.bf16.msra.mxu0 %v2476
    %4010 = vmatprep.mubr.bf16.mxu0 %v1833
    %4011 = vmatmul.mubr.bf16.gmra.mrb[0].mxu0 %v1832
    %v4012 = vpop.f32.mrb[0].mxu0
    %v4013 = vadd.f32 %v3972, %v4012
    %v4014 = vpop.f32.mrb[0].mxu0
    %v4015 = vadd.f32 %v3974, %v4014
    %v4016 = vpop.f32.mrb[0].mxu0
    %v4017 = vpop.f32.mrb[0].mxu0
    %4018 = vdwg.mxu0
    %4019 = vmatprep.subr.bf16.mxu0 %v2485
    %4020 = vmatpush1.bf16.msra.mxu0 %v2484
    %4021 = vmatprep.subr.bf16.mxu0 %v2493
    %4022 = vmatpush1.bf16.msra.mxu0 %v2492
    %4023 = vmatprep.subr.bf16.mxu0 %v2501
    %4024 = vmatpush1.bf16.msra.mxu0 %v2500
    %4025 = vmatprep.subr.bf16.mxu0 %v2509
    %4026 = vmatpush1.bf16.msra.mxu0 %v2508
    %4027 = vmatprep.subr.bf16.mxu0 %v2517
    %4028 = vmatpush1.bf16.msra.mxu0 %v2516
    %4029 = vmatprep.subr.bf16.mxu0 %v2525
    %4030 = vmatpush1.bf16.msra.mxu0 %v2524
    %4031 = vmatprep.subr.bf16.mxu0 %v2533
    %4032 = vmatpush1.bf16.msra.mxu0 %v2532
    %4033 = vmatprep.subr.bf16.mxu0 %v2541
    %4034 = vmatpush1.bf16.msra.mxu0 %v2540
    %4035 = vmatprep.subr.bf16.mxu0 %v2549
    %4036 = vmatpush1.bf16.msra.mxu0 %v2548
    %4037 = vmatprep.subr.bf16.mxu0 %v2557
    %4038 = vmatpush1.bf16.msra.mxu0 %v2556
    %4039 = vmatprep.subr.bf16.mxu0 %v2565
    %4040 = vmatpush1.bf16.msra.mxu0 %v2564
    %4041 = vmatprep.subr.bf16.mxu0 %v2573
    %4042 = vmatpush1.bf16.msra.mxu0 %v2572
    %4043 = vmatprep.subr.bf16.mxu0 %v2581
    %4044 = vmatpush1.bf16.msra.mxu0 %v2580
    %4045 = vmatprep.subr.bf16.mxu0 %v2589
    %4046 = vmatpush1.bf16.msra.mxu0 %v2588
    %4047 = vmatprep.subr.bf16.mxu0 %v2597
    %4048 = vmatpush1.bf16.msra.mxu0 %v2596
    %4049 = vmatprep.subr.bf16.mxu0 %v2605
    %4050 = vmatpush1.bf16.msra.mxu0 %v2604
    %4051 = vmatprep.mubr.bf16.mxu0 %v1835
    %4052 = vmatmul.mubr.bf16.gmra.mrb[0].mxu0 %v1834
    %v4053 = vpop.f32.mrb[0].mxu0
    %v4054 = vadd.f32 %v4013, %v4053
    %v4055 = vpop.f32.mrb[0].mxu0
    %v4056 = vadd.f32 %v4015, %v4055
    %v4057 = vpop.f32.mrb[0].mxu0
    %v4058 = vpop.f32.mrb[0].mxu0
    %4059 = vdwg.mxu0
    %4060 = vmatprep.subr.bf16.mxu0 %v2613
    %4061 = vmatpush1.bf16.msra.mxu0 %v2612
    %4062 = vmatprep.subr.bf16.mxu0 %v2621
    %4063 = vmatpush1.bf16.msra.mxu0 %v2620
    %4064 = vmatprep.subr.bf16.mxu0 %v2629
    %4065 = vmatpush1.bf16.msra.mxu0 %v2628
    %4066 = vmatprep.subr.bf16.mxu0 %v2637
    %4067 = vmatpush1.bf16.msra.mxu0 %v2636
    %4068 = vmatprep.subr.bf16.mxu0 %v2645
    %4069 = vmatpush1.bf16.msra.mxu0 %v2644
    %4070 = vmatprep.subr.bf16.mxu0 %v2653
    %4071 = vmatpush1.bf16.msra.mxu0 %v2652
    %4072 = vmatprep.subr.bf16.mxu0 %v2661
    %4073 = vmatpush1.bf16.msra.mxu0 %v2660
    %4074 = vmatprep.subr.bf16.mxu0 %v2669
    %4075 = vmatpush1.bf16.msra.mxu0 %v2668
    %4076 = vmatprep.subr.bf16.mxu0 %v2677
    %4077 = vmatpush1.bf16.msra.mxu0 %v2676
    %4078 = vmatprep.subr.bf16.mxu0 %v2685
    %4079 = vmatpush1.bf16.msra.mxu0 %v2684
    %4080 = vmatprep.subr.bf16.mxu0 %v2693
    %4081 = vmatpush1.bf16.msra.mxu0 %v2692
    %4082 = vmatprep.subr.bf16.mxu0 %v2701
    %4083 = vmatpush1.bf16.msra.mxu0 %v2700
    %4084 = vmatprep.subr.bf16.mxu0 %v2709
    %4085 = vmatpush1.bf16.msra.mxu0 %v2708
    %4086 = vmatprep.subr.bf16.mxu0 %v2717
    %4087 = vmatpush1.bf16.msra.mxu0 %v2716
    %4088 = vmatprep.subr.bf16.mxu0 %v2725
    %4089 = vmatpush1.bf16.msra.mxu0 %v2724
    %4090 = vmatprep.subr.bf16.mxu0 %v2733
    %4091 = vmatpush1.bf16.msra.mxu0 %v2732
    %4092 = vmatprep.mubr.bf16.mxu0 %v1837
    %4093 = vmatmul.mubr.bf16.gmra.mrb[0].mxu0 %v1836
    %v4094 = vpop.f32.mrb[0].mxu0
    %v4095 = vadd.f32 %v4054, %v4094
    %v4096 = vpop.f32.mrb[0].mxu0
    %v4097 = vadd.f32 %v4056, %v4096
    %v4098 = vpop.f32.mrb[0].mxu0
    %v4099 = vpop.f32.mrb[0].mxu0
    %4100 = vdwg.mxu0
    %4101 = vmatprep.subr.bf16.mxu0 %v2741
    %4102 = vmatpush1.bf16.msra.mxu0 %v2740
    %4103 = vmatprep.subr.bf16.mxu0 %v2749
    %4104 = vmatpush1.bf16.msra.mxu0 %v2748
    %4105 = vmatprep.subr.bf16.mxu0 %v2757
    %4106 = vmatpush1.bf16.msra.mxu0 %v2756
    %4107 = vmatprep.subr.bf16.mxu0 %v2765
    %4108 = vmatpush1.bf16.msra.mxu0 %v2764
    %4109 = vmatprep.subr.bf16.mxu0 %v2773
    %4110 = vmatpush1.bf16.msra.mxu0 %v2772
    %4111 = vmatprep.subr.bf16.mxu0 %v2781
    %4112 = vmatpush1.bf16.msra.mxu0 %v2780
    %4113 = vmatprep.subr.bf16.mxu0 %v2789
    %4114 = vmatpush1.bf16.msra.mxu0 %v2788
    %4115 = vmatprep.subr.bf16.mxu0 %v2797
    %4116 = vmatpush1.bf16.msra.mxu0 %v2796
    %4117 = vmatprep.subr.bf16.mxu0 %v2805
    %4118 = vmatpush1.bf16.msra.mxu0 %v2804
    %4119 = vmatprep.subr.bf16.mxu0 %v2813
    %4120 = vmatpush1.bf16.msra.mxu0 %v2812
    %4121 = vmatprep.subr.bf16.mxu0 %v2821
    %4122 = vmatpush1.bf16.msra.mxu0 %v2820
    %4123 = vmatprep.subr.bf16.mxu0 %v2829
    %4124 = vmatpush1.bf16.msra.mxu0 %v2828
    %4125 = vmatprep.subr.bf16.mxu0 %v2837
    %4126 = vmatpush1.bf16.msra.mxu0 %v2836
    %4127 = vmatprep.subr.bf16.mxu0 %v2845
    %4128 = vmatpush1.bf16.msra.mxu0 %v2844
    %4129 = vmatprep.subr.bf16.mxu0 %v2853
    %4130 = vmatpush1.bf16.msra.mxu0 %v2852
    %4131 = vmatprep.subr.bf16.mxu0 %v2861
    %4132 = vmatpush1.bf16.msra.mxu0 %v2860
    %4133 = vmatprep.mubr.bf16.mxu0 %v1839
    %4134 = vmatmul.mubr.bf16.gmra.mrb[0].mxu0 %v1838
    %v4135 = vpop.f32.mrb[0].mxu0
    %v4136 = vadd.f32 %v4095, %v4135
    %v4137 = vpop.f32.mrb[0].mxu0
    %v4138 = vadd.f32 %v4097, %v4137
    %v4139 = vpop.f32.mrb[0].mxu0
    %v4140 = vpop.f32.mrb[0].mxu0
    %4141 = vdwg.mxu0
    %4142 = vmatprep.subr.bf16.mxu0 %v1847
    %4143 = vmatpush1.bf16.msra.mxu0 %v1846
    %4144 = vmatprep.subr.bf16.mxu0 %v1855
    %4145 = vmatpush1.bf16.msra.mxu0 %v1854
    %4146 = vmatprep.subr.bf16.mxu0 %v1863
    %4147 = vmatpush1.bf16.msra.mxu0 %v1862
    %4148 = vmatprep.subr.bf16.mxu0 %v1871
    %4149 = vmatpush1.bf16.msra.mxu0 %v1870
    %4150 = vmatprep.subr.bf16.mxu0 %v1879
    %4151 = vmatpush1.bf16.msra.mxu0 %v1878
    %4152 = vmatprep.subr.bf16.mxu0 %v1887
    %4153 = vmatpush1.bf16.msra.mxu0 %v1886
    %4154 = vmatprep.subr.bf16.mxu0 %v1895
    %4155 = vmatpush1.bf16.msra.mxu0 %v1894
    %4156 = vmatprep.subr.bf16.mxu0 %v1903
    %4157 = vmatpush1.bf16.msra.mxu0 %v1902
    %4158 = vmatprep.subr.bf16.mxu0 %v1911
    %4159 = vmatpush1.bf16.msra.mxu0 %v1910
    %4160 = vmatprep.subr.bf16.mxu0 %v1919
    %4161 = vmatpush1.bf16.msra.mxu0 %v1918
    %4162 = vmatprep.subr.bf16.mxu0 %v1927
    %4163 = vmatpush1.bf16.msra.mxu0 %v1926
    %4164 = vmatprep.subr.bf16.mxu0 %v1935
    %4165 = vmatpush1.bf16.msra.mxu0 %v1934
    %4166 = vmatprep.subr.bf16.mxu0 %v1943
    %4167 = vmatpush1.bf16.msra.mxu0 %v1942
    %4168 = vmatprep.subr.bf16.mxu0 %v1951
    %4169 = vmatpush1.bf16.msra.mxu0 %v1950
    %4170 = vmatprep.subr.bf16.mxu0 %v1959
    %4171 = vmatpush1.bf16.msra.mxu0 %v1958
    %4172 = vmatprep.subr.bf16.mxu0 %v1967
    %4173 = vmatpush1.bf16.msra.mxu0 %v1966
    %4174 = vmatprep.mubr.bf16.mxu0 %v1825
    %4175 = vmatmul.mubr.bf16.gmra.mrb[0].mxu0 %v1824
    %v4176 = vpop.f32.mrb[0].mxu0
    %v4177 = vadd.f32 %v3152, %v4176
    %v4178 = vpop.f32.mrb[0].mxu0
    %v4179 = vadd.f32 %v3154, %v4178
    %v4180 = vpop.f32.mrb[0].mxu0
    %v4181 = vpop.f32.mrb[0].mxu0
    %4182 = vdwg.mxu0
    %4183 = vmatprep.subr.bf16.mxu0 %v1975
    %4184 = vmatpush1.bf16.msra.mxu0 %v1974
    %4185 = vmatprep.subr.bf16.mxu0 %v1983
    %4186 = vmatpush1.bf16.msra.mxu0 %v1982
    %4187 = vmatprep.subr.bf16.mxu0 %v1991
    %4188 = vmatpush1.bf16.msra.mxu0 %v1990
    %4189 = vmatprep.subr.bf16.mxu0 %v1999
    %4190 = vmatpush1.bf16.msra.mxu0 %v1998
    %4191 = vmatprep.subr.bf16.mxu0 %v2007
    %4192 = vmatpush1.bf16.msra.mxu0 %v2006
    %4193 = vmatprep.subr.bf16.mxu0 %v2015
    %4194 = vmatpush1.bf16.msra.mxu0 %v2014
    %4195 = vmatprep.subr.bf16.mxu0 %v2023
    %4196 = vmatpush1.bf16.msra.mxu0 %v2022
    %4197 = vmatprep.subr.bf16.mxu0 %v2031
    %4198 = vmatpush1.bf16.msra.mxu0 %v2030
    %4199 = vmatprep.subr.bf16.mxu0 %v2039
    %4200 = vmatpush1.bf16.msra.mxu0 %v2038
    %4201 = vmatprep.subr.bf16.mxu0 %v2047
    %4202 = vmatpush1.bf16.msra.mxu0 %v2046
    %4203 = vmatprep.subr.bf16.mxu0 %v2055
    %4204 = vmatpush1.bf16.msra.mxu0 %v2054
    %4205 = vmatprep.subr.bf16.mxu0 %v2063
    %4206 = vmatpush1.bf16.msra.mxu0 %v2062
    %4207 = vmatprep.subr.bf16.mxu0 %v2071
    %4208 = vmatpush1.bf16.msra.mxu0 %v2070
    %4209 = vmatprep.subr.bf16.mxu0 %v2079
    %4210 = vmatpush1.bf16.msra.mxu0 %v2078
    %4211 = vmatprep.subr.bf16.mxu0 %v2087
    %4212 = vmatpush1.bf16.msra.mxu0 %v2086
    %4213 = vmatprep.subr.bf16.mxu0 %v2095
    %4214 = vmatpush1.bf16.msra.mxu0 %v2094
    %4215 = vmatprep.mubr.bf16.mxu0 %v1827
    %4216 = vmatmul.mubr.bf16.gmra.mrb[0].mxu0 %v1826
    %v4217 = vpop.f32.mrb[0].mxu0
    %v4218 = vadd.f32 %v4177, %v4217
    %v4219 = vpop.f32.mrb[0].mxu0
    %v4220 = vadd.f32 %v4179, %v4219
    %v4221 = vpop.f32.mrb[0].mxu0
    %v4222 = vpop.f32.mrb[0].mxu0
    %4223 = vdwg.mxu0
    %4224 = vmatprep.subr.bf16.mxu0 %v2103
    %4225 = vmatpush1.bf16.msra.mxu0 %v2102
    %4226 = vmatprep.subr.bf16.mxu0 %v2111
    %4227 = vmatpush1.bf16.msra.mxu0 %v2110
    %4228 = vmatprep.subr.bf16.mxu0 %v2119
    %4229 = vmatpush1.bf16.msra.mxu0 %v2118
    %4230 = vmatprep.subr.bf16.mxu0 %v2127
    %4231 = vmatpush1.bf16.msra.mxu0 %v2126
    %4232 = vmatprep.subr.bf16.mxu0 %v2135
    %4233 = vmatpush1.bf16.msra.mxu0 %v2134
    %4234 = vmatprep.subr.bf16.mxu0 %v2143
    %4235 = vmatpush1.bf16.msra.mxu0 %v2142
    %4236 = vmatprep.subr.bf16.mxu0 %v2151
    %4237 = vmatpush1.bf16.msra.mxu0 %v2150
    %4238 = vmatprep.subr.bf16.mxu0 %v2159
    %4239 = vmatpush1.bf16.msra.mxu0 %v2158
    %4240 = vmatprep.subr.bf16.mxu0 %v2167
    %4241 = vmatpush1.bf16.msra.mxu0 %v2166
    %4242 = vmatprep.subr.bf16.mxu0 %v2175
    %4243 = vmatpush1.bf16.msra.mxu0 %v2174
    %4244 = vmatprep.subr.bf16.mxu0 %v2183
    %4245 = vmatpush1.bf16.msra.mxu0 %v2182
    %4246 = vmatprep.subr.bf16.mxu0 %v2191
    %4247 = vmatpush1.bf16.msra.mxu0 %v2190
    %4248 = vmatprep.subr.bf16.mxu0 %v2199
    %4249 = vmatpush1.bf16.msra.mxu0 %v2198
    %4250 = vmatprep.subr.bf16.mxu0 %v2207
    %4251 = vmatpush1.bf16.msra.mxu0 %v2206
    %4252 = vmatprep.subr.bf16.mxu0 %v2215
    %4253 = vmatpush1.bf16.msra.mxu0 %v2214
    %4254 = vmatprep.subr.bf16.mxu0 %v2223
    %4255 = vmatpush1.bf16.msra.mxu0 %v2222
    %4256 = vmatprep.mubr.bf16.mxu0 %v1829
    %4257 = vmatmul.mubr.bf16.gmra.mrb[0].mxu0 %v1828
    %v4258 = vpop.f32.mrb[0].mxu0
    %v4259 = vadd.f32 %v4218, %v4258
    %v4260 = vpop.f32.mrb[0].mxu0
    %v4261 = vadd.f32 %v4220, %v4260
    %v4262 = vpop.f32.mrb[0].mxu0
    %v4263 = vpop.f32.mrb[0].mxu0
    %4264 = vdwg.mxu0
    %4265 = vmatprep.subr.bf16.mxu0 %v2231
    %4266 = vmatpush1.bf16.msra.mxu0 %v2230
    %4267 = vmatprep.subr.bf16.mxu0 %v2239
    %4268 = vmatpush1.bf16.msra.mxu0 %v2238
    %4269 = vmatprep.subr.bf16.mxu0 %v2247
    %4270 = vmatpush1.bf16.msra.mxu0 %v2246
    %4271 = vmatprep.subr.bf16.mxu0 %v2255
    %4272 = vmatpush1.bf16.msra.mxu0 %v2254
    %4273 = vmatprep.subr.bf16.mxu0 %v2263
    %4274 = vmatpush1.bf16.msra.mxu0 %v2262
    %4275 = vmatprep.subr.bf16.mxu0 %v2271
    %4276 = vmatpush1.bf16.msra.mxu0 %v2270
    %4277 = vmatprep.subr.bf16.mxu0 %v2279
    %4278 = vmatpush1.bf16.msra.mxu0 %v2278
    %4279 = vmatprep.subr.bf16.mxu0 %v2287
    %4280 = vmatpush1.bf16.msra.mxu0 %v2286
    %4281 = vmatprep.subr.bf16.mxu0 %v2295
    %4282 = vmatpush1.bf16.msra.mxu0 %v2294
    %4283 = vmatprep.subr.bf16.mxu0 %v2303
    %4284 = vmatpush1.bf16.msra.mxu0 %v2302
    %4285 = vmatprep.subr.bf16.mxu0 %v2311
    %4286 = vmatpush1.bf16.msra.mxu0 %v2310
    %4287 = vmatprep.subr.bf16.mxu0 %v2319
    %4288 = vmatpush1.bf16.msra.mxu0 %v2318
    %4289 = vmatprep.subr.bf16.mxu0 %v2327
    %4290 = vmatpush1.bf16.msra.mxu0 %v2326
    %4291 = vmatprep.subr.bf16.mxu0 %v2335
    %4292 = vmatpush1.bf16.msra.mxu0 %v2334
    %4293 = vmatprep.subr.bf16.mxu0 %v2343
    %4294 = vmatpush1.bf16.msra.mxu0 %v2342
    %4295 = vmatprep.subr.bf16.mxu0 %v2351
    %4296 = vmatpush1.bf16.msra.mxu0 %v2350
    %4297 = vmatprep.mubr.bf16.mxu0 %v1831
    %4298 = vmatmul.mubr.bf16.gmra.mrb[0].mxu0 %v1830
    %v4299 = vpop.f32.mrb[0].mxu0
    %v4300 = vadd.f32 %v4259, %v4299
    %v4301 = vpop.f32.mrb[0].mxu0
    %v4302 = vadd.f32 %v4261, %v4301
    %v4303 = vpop.f32.mrb[0].mxu0
    %v4304 = vpop.f32.mrb[0].mxu0
    %4305 = vdwg.mxu0
    %4306 = vmatprep.subr.bf16.mxu0 %v2359
    %4307 = vmatpush1.bf16.msra.mxu0 %v2358
    %4308 = vmatprep.subr.bf16.mxu0 %v2367
    %4309 = vmatpush1.bf16.msra.mxu0 %v2366
    %4310 = vmatprep.subr.bf16.mxu0 %v2375
    %4311 = vmatpush1.bf16.msra.mxu0 %v2374
    %4312 = vmatprep.subr.bf16.mxu0 %v2383
    %4313 = vmatpush1.bf16.msra.mxu0 %v2382
    %4314 = vmatprep.subr.bf16.mxu0 %v2391
    %4315 = vmatpush1.bf16.msra.mxu0 %v2390
    %4316 = vmatprep.subr.bf16.mxu0 %v2399
    %4317 = vmatpush1.bf16.msra.mxu0 %v2398
    %4318 = vmatprep.subr.bf16.mxu0 %v2407
    %4319 = vmatpush1.bf16.msra.mxu0 %v2406
    %4320 = vmatprep.subr.bf16.mxu0 %v2415
    %4321 = vmatpush1.bf16.msra.mxu0 %v2414
    %4322 = vmatprep.subr.bf16.mxu0 %v2423
    %4323 = vmatpush1.bf16.msra.mxu0 %v2422
    %4324 = vmatprep.subr.bf16.mxu0 %v2431
    %4325 = vmatpush1.bf16.msra.mxu0 %v2430
    %4326 = vmatprep.subr.bf16.mxu0 %v2439
    %4327 = vmatpush1.bf16.msra.mxu0 %v2438
    %4328 = vmatprep.subr.bf16.mxu0 %v2447
    %4329 = vmatpush1.bf16.msra.mxu0 %v2446
    %4330 = vmatprep.subr.bf16.mxu0 %v2455
    %4331 = vmatpush1.bf16.msra.mxu0 %v2454
    %4332 = vmatprep.subr.bf16.mxu0 %v2463
    %4333 = vmatpush1.bf16.msra.mxu0 %v2462
    %4334 = vmatprep.subr.bf16.mxu0 %v2471
    %4335 = vmatpush1.bf16.msra.mxu0 %v2470
    %4336 = vmatprep.subr.bf16.mxu0 %v2479
    %4337 = vmatpush1.bf16.msra.mxu0 %v2478
    %4338 = vmatprep.mubr.bf16.mxu0 %v1833
    %4339 = vmatmul.mubr.bf16.gmra.mrb[0].mxu0 %v1832
    %v4340 = vpop.f32.mrb[0].mxu0
    %v4341 = vadd.f32 %v4300, %v4340
    %v4342 = vpop.f32.mrb[0].mxu0
    %v4343 = vadd.f32 %v4302, %v4342
    %v4344 = vpop.f32.mrb[0].mxu0
    %v4345 = vpop.f32.mrb[0].mxu0
    %4346 = vdwg.mxu0
    %4347 = vmatprep.subr.bf16.mxu0 %v2487
    %4348 = vmatpush1.bf16.msra.mxu0 %v2486
    %4349 = vmatprep.subr.bf16.mxu0 %v2495
    %4350 = vmatpush1.bf16.msra.mxu0 %v2494
    %4351 = vmatprep.subr.bf16.mxu0 %v2503
    %4352 = vmatpush1.bf16.msra.mxu0 %v2502
    %4353 = vmatprep.subr.bf16.mxu0 %v2511
    %4354 = vmatpush1.bf16.msra.mxu0 %v2510
    %4355 = vmatprep.subr.bf16.mxu0 %v2519
    %4356 = vmatpush1.bf16.msra.mxu0 %v2518
    %4357 = vmatprep.subr.bf16.mxu0 %v2527
    %4358 = vmatpush1.bf16.msra.mxu0 %v2526
    %4359 = vmatprep.subr.bf16.mxu0 %v2535
    %4360 = vmatpush1.bf16.msra.mxu0 %v2534
    %4361 = vmatprep.subr.bf16.mxu0 %v2543
    %4362 = vmatpush1.bf16.msra.mxu0 %v2542
    %4363 = vmatprep.subr.bf16.mxu0 %v2551
    %4364 = vmatpush1.bf16.msra.mxu0 %v2550
    %4365 = vmatprep.subr.bf16.mxu0 %v2559
    %4366 = vmatpush1.bf16.msra.mxu0 %v2558
    %4367 = vmatprep.subr.bf16.mxu0 %v2567
    %4368 = vmatpush1.bf16.msra.mxu0 %v2566
    %4369 = vmatprep.subr.bf16.mxu0 %v2575
    %4370 = vmatpush1.bf16.msra.mxu0 %v2574
    %4371 = vmatprep.subr.bf16.mxu0 %v2583
    %4372 = vmatpush1.bf16.msra.mxu0 %v2582
    %4373 = vmatprep.subr.bf16.mxu0 %v2591
    %4374 = vmatpush1.bf16.msra.mxu0 %v2590
    %4375 = vmatprep.subr.bf16.mxu0 %v2599
    %4376 = vmatpush1.bf16.msra.mxu0 %v2598
    %4377 = vmatprep.subr.bf16.mxu0 %v2607
    %4378 = vmatpush1.bf16.msra.mxu0 %v2606
    %4379 = vmatprep.mubr.bf16.mxu0 %v1835
    %4380 = vmatmul.mubr.bf16.gmra.mrb[0].mxu0 %v1834
    %v4381 = vpop.f32.mrb[0].mxu0
    %v4382 = vadd.f32 %v4341, %v4381
    %v4383 = vpop.f32.mrb[0].mxu0
    %v4384 = vadd.f32 %v4343, %v4383
    %v4385 = vpop.f32.mrb[0].mxu0
    %v4386 = vpop.f32.mrb[0].mxu0
    %4387 = vdwg.mxu0
    %4388 = vmatprep.subr.bf16.mxu0 %v2615
    %4389 = vmatpush1.bf16.msra.mxu0 %v2614
    %4390 = vmatprep.subr.bf16.mxu0 %v2623
    %4391 = vmatpush1.bf16.msra.mxu0 %v2622
    %4392 = vmatprep.subr.bf16.mxu0 %v2631
    %4393 = vmatpush1.bf16.msra.mxu0 %v2630
    %4394 = vmatprep.subr.bf16.mxu0 %v2639
    %4395 = vmatpush1.bf16.msra.mxu0 %v2638
    %4396 = vmatprep.subr.bf16.mxu0 %v2647
    %4397 = vmatpush1.bf16.msra.mxu0 %v2646
    %4398 = vmatprep.subr.bf16.mxu0 %v2655
    %4399 = vmatpush1.bf16.msra.mxu0 %v2654
    %4400 = vmatprep.subr.bf16.mxu0 %v2663
    %4401 = vmatpush1.bf16.msra.mxu0 %v2662
    %4402 = vmatprep.subr.bf16.mxu0 %v2671
    %4403 = vmatpush1.bf16.msra.mxu0 %v2670
    %4404 = vmatprep.subr.bf16.mxu0 %v2679
    %4405 = vmatpush1.bf16.msra.mxu0 %v2678
    %4406 = vmatprep.subr.bf16.mxu0 %v2687
    %4407 = vmatpush1.bf16.msra.mxu0 %v2686
    %4408 = vmatprep.subr.bf16.mxu0 %v2695
    %4409 = vmatpush1.bf16.msra.mxu0 %v2694
    %4410 = vmatprep.subr.bf16.mxu0 %v2703
    %4411 = vmatpush1.bf16.msra.mxu0 %v2702
    %4412 = vmatprep.subr.bf16.mxu0 %v2711
    %4413 = vmatpush1.bf16.msra.mxu0 %v2710
    %4414 = vmatprep.subr.bf16.mxu0 %v2719
    %4415 = vmatpush1.bf16.msra.mxu0 %v2718
    %4416 = vmatprep.subr.bf16.mxu0 %v2727
    %4417 = vmatpush1.bf16.msra.mxu0 %v2726
    %4418 = vmatprep.subr.bf16.mxu0 %v2735
    %4419 = vmatpush1.bf16.msra.mxu0 %v2734
    %4420 = vmatprep.mubr.bf16.mxu0 %v1837
    %4421 = vmatmul.mubr.bf16.gmra.mrb[0].mxu0 %v1836
    %v4422 = vpop.f32.mrb[0].mxu0
    %v4423 = vadd.f32 %v4382, %v4422
    %v4424 = vpop.f32.mrb[0].mxu0
    %v4425 = vadd.f32 %v4384, %v4424
    %v4426 = vpop.f32.mrb[0].mxu0
    %v4427 = vpop.f32.mrb[0].mxu0
    %4428 = vdwg.mxu0
    %4429 = vmatprep.subr.bf16.mxu0 %v2743
    %4430 = vmatpush1.bf16.msra.mxu0 %v2742
    %4431 = vmatprep.subr.bf16.mxu0 %v2751
    %4432 = vmatpush1.bf16.msra.mxu0 %v2750
    %4433 = vmatprep.subr.bf16.mxu0 %v2759
    %4434 = vmatpush1.bf16.msra.mxu0 %v2758
    %4435 = vmatprep.subr.bf16.mxu0 %v2767
    %4436 = vmatpush1.bf16.msra.mxu0 %v2766
    %4437 = vmatprep.subr.bf16.mxu0 %v2775
    %4438 = vmatpush1.bf16.msra.mxu0 %v2774
    %4439 = vmatprep.subr.bf16.mxu0 %v2783
    %4440 = vmatpush1.bf16.msra.mxu0 %v2782
    %4441 = vmatprep.subr.bf16.mxu0 %v2791
    %4442 = vmatpush1.bf16.msra.mxu0 %v2790
    %4443 = vmatprep.subr.bf16.mxu0 %v2799
    %4444 = vmatpush1.bf16.msra.mxu0 %v2798
    %4445 = vmatprep.subr.bf16.mxu0 %v2807
    %4446 = vmatpush1.bf16.msra.mxu0 %v2806
    %4447 = vmatprep.subr.bf16.mxu0 %v2815
    %4448 = vmatpush1.bf16.msra.mxu0 %v2814
    %4449 = vmatprep.subr.bf16.mxu0 %v2823
    %4450 = vmatpush1.bf16.msra.mxu0 %v2822
    %4451 = vmatprep.subr.bf16.mxu0 %v2831
    %4452 = vmatpush1.bf16.msra.mxu0 %v2830
    %4453 = vmatprep.subr.bf16.mxu0 %v2839
    %4454 = vmatpush1.bf16.msra.mxu0 %v2838
    %4455 = vmatprep.subr.bf16.mxu0 %v2847
    %4456 = vmatpush1.bf16.msra.mxu0 %v2846
    %4457 = vmatprep.subr.bf16.mxu0 %v2855
    %4458 = vmatpush1.bf16.msra.mxu0 %v2854
    %4459 = vmatprep.subr.bf16.mxu0 %v2863
    %4460 = vmatpush1.bf16.msra.mxu0 %v2862
    %4461 = vmatprep.mubr.bf16.mxu0 %v1839
    %4462 = vmatmul.mubr.bf16.gmra.mrb[0].mxu0 %v1838
    %v4463 = vpop.f32.mrb[0].mxu0
    %v4464 = vadd.f32 %v4423, %v4463
    %v4465 = vpop.f32.mrb[0].mxu0
    %v4466 = vadd.f32 %v4425, %v4465
    %v4467 = vpop.f32.mrb[0].mxu0
    %v4468 = vpop.f32.mrb[0].mxu0
    %4469 = vdwg.mxu0
    %v4470 = vld [vmem:[#allocation20] sm:$0xff]
    %v4472 = vlaneseq
    %v4473 = vshrl.u32 %v4472, 7
    %v4474 = vsub.s32 0, %v4473
    %v4475 = vrot.slane %v4470, %v4474
    %v4476 = vlaneseq
    %v4477 = vshrl.u32 %v4476, 7
    %v4478 = vsub.s32 1, %v4477
    %v4479 = vrot.slane %v4470, %v4478
    %v4480 = vlaneseq
    %v4481 = vshrl.u32 %v4480, 7
    %v4482 = vsub.s32 2, %v4481
    %v4483 = vrot.slane %v4470, %v4482
    %v4484 = vlaneseq
    %v4485 = vshrl.u32 %v4484, 7
    %v4486 = vsub.s32 3, %v4485
    %v4487 = vrot.slane %v4470, %v4486
    %v4488 = vlaneseq
    %v4489 = vshrl.u32 %v4488, 7
    %v4490 = vsub.s32 4, %v4489
    %v4491 = vrot.slane %v4470, %v4490
    %v4492 = vlaneseq
    %v4493 = vshrl.u32 %v4492, 7
    %v4494 = vsub.s32 5, %v4493
    %v4495 = vrot.slane %v4470, %v4494
    %v4496 = vlaneseq
    %v4497 = vshrl.u32 %v4496, 7
    %v4498 = vsub.s32 6, %v4497
    %v4499 = vrot.slane %v4470, %v4498
    %v4500 = vlaneseq
    %v4501 = vshrl.u32 %v4500, 7
    %v4502 = vsub.s32 7, %v4501
    %v4503 = vrot.slane %v4470, %v4502
    %v4512 = vadd.f32 %v3480, %v4475
    %v4513 = vadd.f32 %v3482, %v4479
    %v4514 = vadd.f32 %v3808, %v4483
    %v4515 = vadd.f32 %v3810, %v4487
    %v4516 = vadd.f32 %v4136, %v4491
    %v4517 = vadd.f32 %v4138, %v4495
    %v4518 = vadd.f32 %v4464, %v4499
    %v4519 = vadd.f32 %v4466, %v4503
    %v4520 = vmax.f32 %v4512, 0.0
    %v4521 = vmax.f32 %v4513, 0.0
    %v4522 = vmax.f32 %v4514, 0.0
    %v4523 = vmax.f32 %v4515, 0.0
    %v4524 = vmax.f32 %v4516, 0.0
    %v4525 = vmax.f32 %v4517, 0.0
    %v4526 = vmax.f32 %v4518, 0.0
    %v4527 = vmax.f32 %v4519, 0.0
    %s4528 = smul.u32 4, 128
    %s4529 = smul.u32 %s4528, 4
    %s4530 = sshll.u32 %s4529, 4
    %4531 = dma.done %s250, %s4530
    %v4532 = vpack.c.bf16 %v4520, %v4520
    %v4533 = vpack.c.bf16 %v4521, %v4521
    %v4534 = vpack.c.bf16 %v4522, %v4522
    %v4535 = vpack.c.bf16 %v4523, %v4523
    %v4536 = vpack.c.bf16 %v4524, %v4524
    %v4537 = vpack.c.bf16 %v4525, %v4525
    %v4538 = vpack.c.bf16 %v4526, %v4526
    %v4539 = vpack.c.bf16 %v4527, %v4527
    %v4540 = vld [vmem:[#allocation4] sm:$0xff]
    %v4541 = vld [vmem:[#allocation4 + $0x8] sm:$0xff]
    %v4542 = vld [vmem:[#allocation4 + $0x10] sm:$0xff]
    %v4543 = vld [vmem:[#allocation4 + $0x18] sm:$0xff]
    %v4544 = vld [vmem:[#allocation4 + $0x20] sm:$0xff]
    %v4545 = vld [vmem:[#allocation4 + $0x28] sm:$0xff]
    %v4546 = vld [vmem:[#allocation4 + $0x30] sm:$0xff]
    %v4547 = vld [vmem:[#allocation4 + $0x38] sm:$0xff]
    %v4548 = vld [vmem:[#allocation4 + $0x40] sm:$0xff]
    %v4549 = vld [vmem:[#allocation4 + $0x48] sm:$0xff]
    %v4550 = vld [vmem:[#allocation4 + $0x50] sm:$0xff]
    %v4551 = vld [vmem:[#allocation4 + $0x58] sm:$0xff]
    %v4552 = vld [vmem:[#allocation4 + $0x60] sm:$0xff]
    %v4553 = vld [vmem:[#allocation4 + $0x68] sm:$0xff]
    %v4554 = vld [vmem:[#allocation4 + $0x70] sm:$0xff]
    %v4555 = vld [vmem:[#allocation4 + $0x78] sm:$0xff]
    %v4556 = vld [vmem:[#allocation4 + $0x80] sm:$0xff]
    %v4557 = vld [vmem:[#allocation4 + $0x88] sm:$0xff]
    %v4558 = vld [vmem:[#allocation4 + $0x90] sm:$0xff]
    %v4559 = vld [vmem:[#allocation4 + $0x98] sm:$0xff]
    %v4560 = vld [vmem:[#allocation4 + $0xa0] sm:$0xff]
    %v4561 = vld [vmem:[#allocation4 + $0xa8] sm:$0xff]
    %v4562 = vld [vmem:[#allocation4 + $0xb0] sm:$0xff]
    %v4563 = vld [vmem:[#allocation4 + $0xb8] sm:$0xff]
    %v4564 = vld [vmem:[#allocation4 + $0xc0] sm:$0xff]
    %v4565 = vld [vmem:[#allocation4 + $0xc8] sm:$0xff]
    %v4566 = vld [vmem:[#allocation4 + $0xd0] sm:$0xff]
    %v4567 = vld [vmem:[#allocation4 + $0xd8] sm:$0xff]
    %v4568 = vld [vmem:[#allocation4 + $0xe0] sm:$0xff]
    %v4569 = vld [vmem:[#allocation4 + $0xe8] sm:$0xff]
    %v4570 = vld [vmem:[#allocation4 + $0xf0] sm:$0xff]
    %v4571 = vld [vmem:[#allocation4 + $0xf8] sm:$0xff]
    %v4572 = vld [vmem:[#allocation4 + $0x100] sm:$0xff]
    %v4573 = vld [vmem:[#allocation4 + $0x108] sm:$0xff]
    %v4574 = vld [vmem:[#allocation4 + $0x110] sm:$0xff]
    %v4575 = vld [vmem:[#allocation4 + $0x118] sm:$0xff]
    %v4576 = vld [vmem:[#allocation4 + $0x120] sm:$0xff]
    %v4577 = vld [vmem:[#allocation4 + $0x128] sm:$0xff]
    %v4578 = vld [vmem:[#allocation4 + $0x130] sm:$0xff]
    %v4579 = vld [vmem:[#allocation4 + $0x138] sm:$0xff]
    %v4580 = vld [vmem:[#allocation4 + $0x140] sm:$0xff]
    %v4581 = vld [vmem:[#allocation4 + $0x148] sm:$0xff]
    %v4582 = vld [vmem:[#allocation4 + $0x150] sm:$0xff]
    %v4583 = vld [vmem:[#allocation4 + $0x158] sm:$0xff]
    %v4584 = vld [vmem:[#allocation4 + $0x160] sm:$0xff]
    %v4585 = vld [vmem:[#allocation4 + $0x168] sm:$0xff]
    %v4586 = vld [vmem:[#allocation4 + $0x170] sm:$0xff]
    %v4587 = vld [vmem:[#allocation4 + $0x178] sm:$0xff]
    %v4588 = vld [vmem:[#allocation4 + $0x180] sm:$0xff]
    %v4589 = vld [vmem:[#allocation4 + $0x188] sm:$0xff]
    %v4590 = vld [vmem:[#allocation4 + $0x190] sm:$0xff]
    %v4591 = vld [vmem:[#allocation4 + $0x198] sm:$0xff]
    %v4592 = vld [vmem:[#allocation4 + $0x1a0] sm:$0xff]
    %v4593 = vld [vmem:[#allocation4 + $0x1a8] sm:$0xff]
    %v4594 = vld [vmem:[#allocation4 + $0x1b0] sm:$0xff]
    %v4595 = vld [vmem:[#allocation4 + $0x1b8] sm:$0xff]
    %v4596 = vld [vmem:[#allocation4 + $0x1c0] sm:$0xff]
    %v4597 = vld [vmem:[#allocation4 + $0x1c8] sm:$0xff]
    %v4598 = vld [vmem:[#allocation4 + $0x1d0] sm:$0xff]
    %v4599 = vld [vmem:[#allocation4 + $0x1d8] sm:$0xff]
    %v4600 = vld [vmem:[#allocation4 + $0x1e0] sm:$0xff]
    %v4601 = vld [vmem:[#allocation4 + $0x1e8] sm:$0xff]
    %v4602 = vld [vmem:[#allocation4 + $0x1f0] sm:$0xff]
    %v4603 = vld [vmem:[#allocation4 + $0x1f8] sm:$0xff]
    %v4604 = vld [vmem:[#allocation4 + $0x200] sm:$0xff]
    %v4605 = vld [vmem:[#allocation4 + $0x208] sm:$0xff]
    %v4606 = vld [vmem:[#allocation4 + $0x210] sm:$0xff]
    %v4607 = vld [vmem:[#allocation4 + $0x218] sm:$0xff]
    %v4608 = vld [vmem:[#allocation4 + $0x220] sm:$0xff]
    %v4609 = vld [vmem:[#allocation4 + $0x228] sm:$0xff]
    %v4610 = vld [vmem:[#allocation4 + $0x230] sm:$0xff]
    %v4611 = vld [vmem:[#allocation4 + $0x238] sm:$0xff]
    %v4612 = vld [vmem:[#allocation4 + $0x240] sm:$0xff]
    %v4613 = vld [vmem:[#allocation4 + $0x248] sm:$0xff]
    %v4614 = vld [vmem:[#allocation4 + $0x250] sm:$0xff]
    %v4615 = vld [vmem:[#allocation4 + $0x258] sm:$0xff]
    %v4616 = vld [vmem:[#allocation4 + $0x260] sm:$0xff]
    %v4617 = vld [vmem:[#allocation4 + $0x268] sm:$0xff]
    %v4618 = vld [vmem:[#allocation4 + $0x270] sm:$0xff]
    %v4619 = vld [vmem:[#allocation4 + $0x278] sm:$0xff]
    %v4620 = vld [vmem:[#allocation4 + $0x280] sm:$0xff]
    %v4621 = vld [vmem:[#allocation4 + $0x288] sm:$0xff]
    %v4622 = vld [vmem:[#allocation4 + $0x290] sm:$0xff]
    %v4623 = vld [vmem:[#allocation4 + $0x298] sm:$0xff]
    %v4624 = vld [vmem:[#allocation4 + $0x2a0] sm:$0xff]
    %v4625 = vld [vmem:[#allocation4 + $0x2a8] sm:$0xff]
    %v4626 = vld [vmem:[#allocation4 + $0x2b0] sm:$0xff]
    %v4627 = vld [vmem:[#allocation4 + $0x2b8] sm:$0xff]
    %v4628 = vld [vmem:[#allocation4 + $0x2c0] sm:$0xff]
    %v4629 = vld [vmem:[#allocation4 + $0x2c8] sm:$0xff]
    %v4630 = vld [vmem:[#allocation4 + $0x2d0] sm:$0xff]
    %v4631 = vld [vmem:[#allocation4 + $0x2d8] sm:$0xff]
    %v4632 = vld [vmem:[#allocation4 + $0x2e0] sm:$0xff]
    %v4633 = vld [vmem:[#allocation4 + $0x2e8] sm:$0xff]
    %v4634 = vld [vmem:[#allocation4 + $0x2f0] sm:$0xff]
    %v4635 = vld [vmem:[#allocation4 + $0x2f8] sm:$0xff]
    %v4636 = vld [vmem:[#allocation4 + $0x300] sm:$0xff]
    %v4637 = vld [vmem:[#allocation4 + $0x308] sm:$0xff]
    %v4638 = vld [vmem:[#allocation4 + $0x310] sm:$0xff]
    %v4639 = vld [vmem:[#allocation4 + $0x318] sm:$0xff]
    %v4640 = vld [vmem:[#allocation4 + $0x320] sm:$0xff]
    %v4641 = vld [vmem:[#allocation4 + $0x328] sm:$0xff]
    %v4642 = vld [vmem:[#allocation4 + $0x330] sm:$0xff]
    %v4643 = vld [vmem:[#allocation4 + $0x338] sm:$0xff]
    %v4644 = vld [vmem:[#allocation4 + $0x340] sm:$0xff]
    %v4645 = vld [vmem:[#allocation4 + $0x348] sm:$0xff]
    %v4646 = vld [vmem:[#allocation4 + $0x350] sm:$0xff]
    %v4647 = vld [vmem:[#allocation4 + $0x358] sm:$0xff]
    %v4648 = vld [vmem:[#allocation4 + $0x360] sm:$0xff]
    %v4649 = vld [vmem:[#allocation4 + $0x368] sm:$0xff]
    %v4650 = vld [vmem:[#allocation4 + $0x370] sm:$0xff]
    %v4651 = vld [vmem:[#allocation4 + $0x378] sm:$0xff]
    %v4652 = vld [vmem:[#allocation4 + $0x380] sm:$0xff]
    %v4653 = vld [vmem:[#allocation4 + $0x388] sm:$0xff]
    %v4654 = vld [vmem:[#allocation4 + $0x390] sm:$0xff]
    %v4655 = vld [vmem:[#allocation4 + $0x398] sm:$0xff]
    %v4656 = vld [vmem:[#allocation4 + $0x3a0] sm:$0xff]
    %v4657 = vld [vmem:[#allocation4 + $0x3a8] sm:$0xff]
    %v4658 = vld [vmem:[#allocation4 + $0x3b0] sm:$0xff]
    %v4659 = vld [vmem:[#allocation4 + $0x3b8] sm:$0xff]
    %v4660 = vld [vmem:[#allocation4 + $0x3c0] sm:$0xff]
    %v4661 = vld [vmem:[#allocation4 + $0x3c8] sm:$0xff]
    %v4662 = vld [vmem:[#allocation4 + $0x3d0] sm:$0xff]
    %v4663 = vld [vmem:[#allocation4 + $0x3d8] sm:$0xff]
    %v4664 = vld [vmem:[#allocation4 + $0x3e0] sm:$0xff]
    %v4665 = vld [vmem:[#allocation4 + $0x3e8] sm:$0xff]
    %v4666 = vld [vmem:[#allocation4 + $0x3f0] sm:$0xff]
    %v4667 = vld [vmem:[#allocation4 + $0x3f8] sm:$0xff]
    %v4668 = vld [vmem:[#allocation4 + $0x400] sm:$0xff]
    %v4669 = vld [vmem:[#allocation4 + $0x408] sm:$0xff]
    %v4670 = vld [vmem:[#allocation4 + $0x410] sm:$0xff]
    %v4671 = vld [vmem:[#allocation4 + $0x418] sm:$0xff]
    %v4672 = vld [vmem:[#allocation4 + $0x420] sm:$0xff]
    %v4673 = vld [vmem:[#allocation4 + $0x428] sm:$0xff]
    %v4674 = vld [vmem:[#allocation4 + $0x430] sm:$0xff]
    %v4675 = vld [vmem:[#allocation4 + $0x438] sm:$0xff]
    %v4676 = vld [vmem:[#allocation4 + $0x440] sm:$0xff]
    %v4677 = vld [vmem:[#allocation4 + $0x448] sm:$0xff]
    %v4678 = vld [vmem:[#allocation4 + $0x450] sm:$0xff]
    %v4679 = vld [vmem:[#allocation4 + $0x458] sm:$0xff]
    %v4680 = vld [vmem:[#allocation4 + $0x460] sm:$0xff]
    %v4681 = vld [vmem:[#allocation4 + $0x468] sm:$0xff]
    %v4682 = vld [vmem:[#allocation4 + $0x470] sm:$0xff]
    %v4683 = vld [vmem:[#allocation4 + $0x478] sm:$0xff]
    %v4684 = vld [vmem:[#allocation4 + $0x480] sm:$0xff]
    %v4685 = vld [vmem:[#allocation4 + $0x488] sm:$0xff]
    %v4686 = vld [vmem:[#allocation4 + $0x490] sm:$0xff]
    %v4687 = vld [vmem:[#allocation4 + $0x498] sm:$0xff]
    %v4688 = vld [vmem:[#allocation4 + $0x4a0] sm:$0xff]
    %v4689 = vld [vmem:[#allocation4 + $0x4a8] sm:$0xff]
    %v4690 = vld [vmem:[#allocation4 + $0x4b0] sm:$0xff]
    %v4691 = vld [vmem:[#allocation4 + $0x4b8] sm:$0xff]
    %v4692 = vld [vmem:[#allocation4 + $0x4c0] sm:$0xff]
    %v4693 = vld [vmem:[#allocation4 + $0x4c8] sm:$0xff]
    %v4694 = vld [vmem:[#allocation4 + $0x4d0] sm:$0xff]
    %v4695 = vld [vmem:[#allocation4 + $0x4d8] sm:$0xff]
    %v4696 = vld [vmem:[#allocation4 + $0x4e0] sm:$0xff]
    %v4697 = vld [vmem:[#allocation4 + $0x4e8] sm:$0xff]
    %v4698 = vld [vmem:[#allocation4 + $0x4f0] sm:$0xff]
    %v4699 = vld [vmem:[#allocation4 + $0x4f8] sm:$0xff]
    %v4700 = vld [vmem:[#allocation4 + $0x500] sm:$0xff]
    %v4701 = vld [vmem:[#allocation4 + $0x508] sm:$0xff]
    %v4702 = vld [vmem:[#allocation4 + $0x510] sm:$0xff]
    %v4703 = vld [vmem:[#allocation4 + $0x518] sm:$0xff]
    %v4704 = vld [vmem:[#allocation4 + $0x520] sm:$0xff]
    %v4705 = vld [vmem:[#allocation4 + $0x528] sm:$0xff]
    %v4706 = vld [vmem:[#allocation4 + $0x530] sm:$0xff]
    %v4707 = vld [vmem:[#allocation4 + $0x538] sm:$0xff]
    %v4708 = vld [vmem:[#allocation4 + $0x540] sm:$0xff]
    %v4709 = vld [vmem:[#allocation4 + $0x548] sm:$0xff]
    %v4710 = vld [vmem:[#allocation4 + $0x550] sm:$0xff]
    %v4711 = vld [vmem:[#allocation4 + $0x558] sm:$0xff]
    %v4712 = vld [vmem:[#allocation4 + $0x560] sm:$0xff]
    %v4713 = vld [vmem:[#allocation4 + $0x568] sm:$0xff]
    %v4714 = vld [vmem:[#allocation4 + $0x570] sm:$0xff]
    %v4715 = vld [vmem:[#allocation4 + $0x578] sm:$0xff]
    %v4716 = vld [vmem:[#allocation4 + $0x580] sm:$0xff]
    %v4717 = vld [vmem:[#allocation4 + $0x588] sm:$0xff]
    %v4718 = vld [vmem:[#allocation4 + $0x590] sm:$0xff]
    %v4719 = vld [vmem:[#allocation4 + $0x598] sm:$0xff]
    %v4720 = vld [vmem:[#allocation4 + $0x5a0] sm:$0xff]
    %v4721 = vld [vmem:[#allocation4 + $0x5a8] sm:$0xff]
    %v4722 = vld [vmem:[#allocation4 + $0x5b0] sm:$0xff]
    %v4723 = vld [vmem:[#allocation4 + $0x5b8] sm:$0xff]
    %v4724 = vld [vmem:[#allocation4 + $0x5c0] sm:$0xff]
    %v4725 = vld [vmem:[#allocation4 + $0x5c8] sm:$0xff]
    %v4726 = vld [vmem:[#allocation4 + $0x5d0] sm:$0xff]
    %v4727 = vld [vmem:[#allocation4 + $0x5d8] sm:$0xff]
    %v4728 = vld [vmem:[#allocation4 + $0x5e0] sm:$0xff]
    %v4729 = vld [vmem:[#allocation4 + $0x5e8] sm:$0xff]
    %v4730 = vld [vmem:[#allocation4 + $0x5f0] sm:$0xff]
    %v4731 = vld [vmem:[#allocation4 + $0x5f8] sm:$0xff]
    %v4732 = vld [vmem:[#allocation4 + $0x600] sm:$0xff]
    %v4733 = vld [vmem:[#allocation4 + $0x608] sm:$0xff]
    %v4734 = vld [vmem:[#allocation4 + $0x610] sm:$0xff]
    %v4735 = vld [vmem:[#allocation4 + $0x618] sm:$0xff]
    %v4736 = vld [vmem:[#allocation4 + $0x620] sm:$0xff]
    %v4737 = vld [vmem:[#allocation4 + $0x628] sm:$0xff]
    %v4738 = vld [vmem:[#allocation4 + $0x630] sm:$0xff]
    %v4739 = vld [vmem:[#allocation4 + $0x638] sm:$0xff]
    %v4740 = vld [vmem:[#allocation4 + $0x640] sm:$0xff]
    %v4741 = vld [vmem:[#allocation4 + $0x648] sm:$0xff]
    %v4742 = vld [vmem:[#allocation4 + $0x650] sm:$0xff]
    %v4743 = vld [vmem:[#allocation4 + $0x658] sm:$0xff]
    %v4744 = vld [vmem:[#allocation4 + $0x660] sm:$0xff]
    %v4745 = vld [vmem:[#allocation4 + $0x668] sm:$0xff]
    %v4746 = vld [vmem:[#allocation4 + $0x670] sm:$0xff]
    %v4747 = vld [vmem:[#allocation4 + $0x678] sm:$0xff]
    %v4748 = vld [vmem:[#allocation4 + $0x680] sm:$0xff]
    %v4749 = vld [vmem:[#allocation4 + $0x688] sm:$0xff]
    %v4750 = vld [vmem:[#allocation4 + $0x690] sm:$0xff]
    %v4751 = vld [vmem:[#allocation4 + $0x698] sm:$0xff]
    %v4752 = vld [vmem:[#allocation4 + $0x6a0] sm:$0xff]
    %v4753 = vld [vmem:[#allocation4 + $0x6a8] sm:$0xff]
    %v4754 = vld [vmem:[#allocation4 + $0x6b0] sm:$0xff]
    %v4755 = vld [vmem:[#allocation4 + $0x6b8] sm:$0xff]
    %v4756 = vld [vmem:[#allocation4 + $0x6c0] sm:$0xff]
    %v4757 = vld [vmem:[#allocation4 + $0x6c8] sm:$0xff]
    %v4758 = vld [vmem:[#allocation4 + $0x6d0] sm:$0xff]
    %v4759 = vld [vmem:[#allocation4 + $0x6d8] sm:$0xff]
    %v4760 = vld [vmem:[#allocation4 + $0x6e0] sm:$0xff]
    %v4761 = vld [vmem:[#allocation4 + $0x6e8] sm:$0xff]
    %v4762 = vld [vmem:[#allocation4 + $0x6f0] sm:$0xff]
    %v4763 = vld [vmem:[#allocation4 + $0x6f8] sm:$0xff]
    %v4764 = vld [vmem:[#allocation4 + $0x700] sm:$0xff]
    %v4765 = vld [vmem:[#allocation4 + $0x708] sm:$0xff]
    %v4766 = vld [vmem:[#allocation4 + $0x710] sm:$0xff]
    %v4767 = vld [vmem:[#allocation4 + $0x718] sm:$0xff]
    %v4768 = vld [vmem:[#allocation4 + $0x720] sm:$0xff]
    %v4769 = vld [vmem:[#allocation4 + $0x728] sm:$0xff]
    %v4770 = vld [vmem:[#allocation4 + $0x730] sm:$0xff]
    %v4771 = vld [vmem:[#allocation4 + $0x738] sm:$0xff]
    %v4772 = vld [vmem:[#allocation4 + $0x740] sm:$0xff]
    %v4773 = vld [vmem:[#allocation4 + $0x748] sm:$0xff]
    %v4774 = vld [vmem:[#allocation4 + $0x750] sm:$0xff]
    %v4775 = vld [vmem:[#allocation4 + $0x758] sm:$0xff]
    %v4776 = vld [vmem:[#allocation4 + $0x760] sm:$0xff]
    %v4777 = vld [vmem:[#allocation4 + $0x768] sm:$0xff]
    %v4778 = vld [vmem:[#allocation4 + $0x770] sm:$0xff]
    %v4779 = vld [vmem:[#allocation4 + $0x778] sm:$0xff]
    %v4780 = vld [vmem:[#allocation4 + $0x780] sm:$0xff]
    %v4781 = vld [vmem:[#allocation4 + $0x788] sm:$0xff]
    %v4782 = vld [vmem:[#allocation4 + $0x790] sm:$0xff]
    %v4783 = vld [vmem:[#allocation4 + $0x798] sm:$0xff]
    %v4784 = vld [vmem:[#allocation4 + $0x7a0] sm:$0xff]
    %v4785 = vld [vmem:[#allocation4 + $0x7a8] sm:$0xff]
    %v4786 = vld [vmem:[#allocation4 + $0x7b0] sm:$0xff]
    %v4787 = vld [vmem:[#allocation4 + $0x7b8] sm:$0xff]
    %v4788 = vld [vmem:[#allocation4 + $0x7c0] sm:$0xff]
    %v4789 = vld [vmem:[#allocation4 + $0x7c8] sm:$0xff]
    %v4790 = vld [vmem:[#allocation4 + $0x7d0] sm:$0xff]
    %v4791 = vld [vmem:[#allocation4 + $0x7d8] sm:$0xff]
    %v4792 = vld [vmem:[#allocation4 + $0x7e0] sm:$0xff]
    %v4793 = vld [vmem:[#allocation4 + $0x7e8] sm:$0xff]
    %v4794 = vld [vmem:[#allocation4 + $0x7f0] sm:$0xff]
    %v4795 = vld [vmem:[#allocation4 + $0x7f8] sm:$0xff]
    %v4796 = vld [vmem:[#allocation21] sm:$0xf]
    %v4798 = vlaneseq
    %v4799 = vshrl.u32 %v4798, 7
    %v4800 = vsub.s32 0, %v4799
    %v4801 = vrot.slane %v4796, %v4800
    %v4802 = vlaneseq
    %v4803 = vshrl.u32 %v4802, 7
    %v4804 = vsub.s32 1, %v4803
    %v4805 = vrot.slane %v4796, %v4804
    %v4806 = vlaneseq
    %v4807 = vshrl.u32 %v4806, 7
    %v4808 = vsub.s32 2, %v4807
    %v4809 = vrot.slane %v4796, %v4808
    %v4810 = vlaneseq
    %v4811 = vshrl.u32 %v4810, 7
    %v4812 = vsub.s32 3, %v4811
    %v4813 = vrot.slane %v4796, %v4812
    %4818 = vmatprep.subr.bf16.mxu0 %v4541
    %4819 = vmatpush1.bf16.msra.mxu0 %v4540
    %4820 = vmatprep.subr.bf16.mxu0 %v4545
    %4821 = vmatpush1.bf16.msra.mxu0 %v4544
    %4822 = vmatprep.subr.bf16.mxu0 %v4549
    %4823 = vmatpush1.bf16.msra.mxu0 %v4548
    %4824 = vmatprep.subr.bf16.mxu0 %v4553
    %4825 = vmatpush1.bf16.msra.mxu0 %v4552
    %4826 = vmatprep.subr.bf16.mxu0 %v4557
    %4827 = vmatpush1.bf16.msra.mxu0 %v4556
    %4828 = vmatprep.subr.bf16.mxu0 %v4561
    %4829 = vmatpush1.bf16.msra.mxu0 %v4560
    %4830 = vmatprep.subr.bf16.mxu0 %v4565
    %4831 = vmatpush1.bf16.msra.mxu0 %v4564
    %4832 = vmatprep.subr.bf16.mxu0 %v4569
    %4833 = vmatpush1.bf16.msra.mxu0 %v4568
    %4834 = vmatprep.subr.bf16.mxu0 %v4573
    %4835 = vmatpush1.bf16.msra.mxu0 %v4572
    %4836 = vmatprep.subr.bf16.mxu0 %v4577
    %4837 = vmatpush1.bf16.msra.mxu0 %v4576
    %4838 = vmatprep.subr.bf16.mxu0 %v4581
    %4839 = vmatpush1.bf16.msra.mxu0 %v4580
    %4840 = vmatprep.subr.bf16.mxu0 %v4585
    %4841 = vmatpush1.bf16.msra.mxu0 %v4584
    %4842 = vmatprep.subr.bf16.mxu0 %v4589
    %4843 = vmatpush1.bf16.msra.mxu0 %v4588
    %4844 = vmatprep.subr.bf16.mxu0 %v4593
    %4845 = vmatpush1.bf16.msra.mxu0 %v4592
    %4846 = vmatprep.subr.bf16.mxu0 %v4597
    %4847 = vmatpush1.bf16.msra.mxu0 %v4596
    %4848 = vmatprep.subr.bf16.mxu0 %v4601
    %4849 = vmatpush1.bf16.msra.mxu0 %v4600
    %4850 = vmatprep.mubr.bf16.mxu0 %v4533
    %4851 = vmatmul.mubr.bf16.gmra.mrb[0].mxu0 %v4532
    %v4852 = vpop.f32.mrb[0].mxu0
    %v4853 = vadd.f32 %v4801, %v4852
    %v4854 = vpop.f32.mrb[0].mxu0
    %v4855 = vadd.f32 %v4805, %v4854
    %v4856 = vpop.f32.mrb[0].mxu0
    %v4857 = vpop.f32.mrb[0].mxu0
    %4858 = vdwg.mxu0
    %4859 = vmatprep.subr.bf16.mxu0 %v4605
    %4860 = vmatpush1.bf16.msra.mxu0 %v4604
    %4861 = vmatprep.subr.bf16.mxu0 %v4609
    %4862 = vmatpush1.bf16.msra.mxu0 %v4608
    %4863 = vmatprep.subr.bf16.mxu0 %v4613
    %4864 = vmatpush1.bf16.msra.mxu0 %v4612
    %4865 = vmatprep.subr.bf16.mxu0 %v4617
    %4866 = vmatpush1.bf16.msra.mxu0 %v4616
    %4867 = vmatprep.subr.bf16.mxu0 %v4621
    %4868 = vmatpush1.bf16.msra.mxu0 %v4620
    %4869 = vmatprep.subr.bf16.mxu0 %v4625
    %4870 = vmatpush1.bf16.msra.mxu0 %v4624
    %4871 = vmatprep.subr.bf16.mxu0 %v4629
    %4872 = vmatpush1.bf16.msra.mxu0 %v4628
    %4873 = vmatprep.subr.bf16.mxu0 %v4633
    %4874 = vmatpush1.bf16.msra.mxu0 %v4632
    %4875 = vmatprep.subr.bf16.mxu0 %v4637
    %4876 = vmatpush1.bf16.msra.mxu0 %v4636
    %4877 = vmatprep.subr.bf16.mxu0 %v4641
    %4878 = vmatpush1.bf16.msra.mxu0 %v4640
    %4879 = vmatprep.subr.bf16.mxu0 %v4645
    %4880 = vmatpush1.bf16.msra.mxu0 %v4644
    %4881 = vmatprep.subr.bf16.mxu0 %v4649
    %4882 = vmatpush1.bf16.msra.mxu0 %v4648
    %4883 = vmatprep.subr.bf16.mxu0 %v4653
    %4884 = vmatpush1.bf16.msra.mxu0 %v4652
    %4885 = vmatprep.subr.bf16.mxu0 %v4657
    %4886 = vmatpush1.bf16.msra.mxu0 %v4656
    %4887 = vmatprep.subr.bf16.mxu0 %v4661
    %4888 = vmatpush1.bf16.msra.mxu0 %v4660
    %4889 = vmatprep.subr.bf16.mxu0 %v4665
    %4890 = vmatpush1.bf16.msra.mxu0 %v4664
    %4891 = vmatprep.mubr.bf16.mxu0 %v4535
    %4892 = vmatmul.mubr.bf16.gmra.mrb[0].mxu0 %v4534
    %v4893 = vpop.f32.mrb[0].mxu0
    %v4894 = vadd.f32 %v4853, %v4893
    %v4895 = vpop.f32.mrb[0].mxu0
    %v4896 = vadd.f32 %v4855, %v4895
    %v4897 = vpop.f32.mrb[0].mxu0
    %v4898 = vpop.f32.mrb[0].mxu0
    %4899 = vdwg.mxu0
    %4900 = vmatprep.subr.bf16.mxu0 %v4669
    %4901 = vmatpush1.bf16.msra.mxu0 %v4668
    %4902 = vmatprep.subr.bf16.mxu0 %v4673
    %4903 = vmatpush1.bf16.msra.mxu0 %v4672
    %4904 = vmatprep.subr.bf16.mxu0 %v4677
    %4905 = vmatpush1.bf16.msra.mxu0 %v4676
    %4906 = vmatprep.subr.bf16.mxu0 %v4681
    %4907 = vmatpush1.bf16.msra.mxu0 %v4680
    %4908 = vmatprep.subr.bf16.mxu0 %v4685
    %4909 = vmatpush1.bf16.msra.mxu0 %v4684
    %4910 = vmatprep.subr.bf16.mxu0 %v4689
    %4911 = vmatpush1.bf16.msra.mxu0 %v4688
    %4912 = vmatprep.subr.bf16.mxu0 %v4693
    %4913 = vmatpush1.bf16.msra.mxu0 %v4692
    %4914 = vmatprep.subr.bf16.mxu0 %v4697
    %4915 = vmatpush1.bf16.msra.mxu0 %v4696
    %4916 = vmatprep.subr.bf16.mxu0 %v4701
    %4917 = vmatpush1.bf16.msra.mxu0 %v4700
    %4918 = vmatprep.subr.bf16.mxu0 %v4705
    %4919 = vmatpush1.bf16.msra.mxu0 %v4704
    %4920 = vmatprep.subr.bf16.mxu0 %v4709
    %4921 = vmatpush1.bf16.msra.mxu0 %v4708
    %4922 = vmatprep.subr.bf16.mxu0 %v4713
    %4923 = vmatpush1.bf16.msra.mxu0 %v4712
    %4924 = vmatprep.subr.bf16.mxu0 %v4717
    %4925 = vmatpush1.bf16.msra.mxu0 %v4716
    %4926 = vmatprep.subr.bf16.mxu0 %v4721
    %4927 = vmatpush1.bf16.msra.mxu0 %v4720
    %4928 = vmatprep.subr.bf16.mxu0 %v4725
    %4929 = vmatpush1.bf16.msra.mxu0 %v4724
    %4930 = vmatprep.subr.bf16.mxu0 %v4729
    %4931 = vmatpush1.bf16.msra.mxu0 %v4728
    %4932 = vmatprep.mubr.bf16.mxu0 %v4537
    %4933 = vmatmul.mubr.bf16.gmra.mrb[0].mxu0 %v4536
    %v4934 = vpop.f32.mrb[0].mxu0
    %v4935 = vadd.f32 %v4894, %v4934
    %v4936 = vpop.f32.mrb[0].mxu0
    %v4937 = vadd.f32 %v4896, %v4936
    %v4938 = vpop.f32.mrb[0].mxu0
    %v4939 = vpop.f32.mrb[0].mxu0
    %4940 = vdwg.mxu0
    %4941 = vmatprep.subr.bf16.mxu0 %v4733
    %4942 = vmatpush1.bf16.msra.mxu0 %v4732
    %4943 = vmatprep.subr.bf16.mxu0 %v4737
    %4944 = vmatpush1.bf16.msra.mxu0 %v4736
    %4945 = vmatprep.subr.bf16.mxu0 %v4741
    %4946 = vmatpush1.bf16.msra.mxu0 %v4740
    %4947 = vmatprep.subr.bf16.mxu0 %v4745
    %4948 = vmatpush1.bf16.msra.mxu0 %v4744
    %4949 = vmatprep.subr.bf16.mxu0 %v4749
    %4950 = vmatpush1.bf16.msra.mxu0 %v4748
    %4951 = vmatprep.subr.bf16.mxu0 %v4753
    %4952 = vmatpush1.bf16.msra.mxu0 %v4752
    %4953 = vmatprep.subr.bf16.mxu0 %v4757
    %4954 = vmatpush1.bf16.msra.mxu0 %v4756
    %4955 = vmatprep.subr.bf16.mxu0 %v4761
    %4956 = vmatpush1.bf16.msra.mxu0 %v4760
    %4957 = vmatprep.subr.bf16.mxu0 %v4765
    %4958 = vmatpush1.bf16.msra.mxu0 %v4764
    %4959 = vmatprep.subr.bf16.mxu0 %v4769
    %4960 = vmatpush1.bf16.msra.mxu0 %v4768
    %4961 = vmatprep.subr.bf16.mxu0 %v4773
    %4962 = vmatpush1.bf16.msra.mxu0 %v4772
    %4963 = vmatprep.subr.bf16.mxu0 %v4777
    %4964 = vmatpush1.bf16.msra.mxu0 %v4776
    %4965 = vmatprep.subr.bf16.mxu0 %v4781
    %4966 = vmatpush1.bf16.msra.mxu0 %v4780
    %4967 = vmatprep.subr.bf16.mxu0 %v4785
    %4968 = vmatpush1.bf16.msra.mxu0 %v4784
    %4969 = vmatprep.subr.bf16.mxu0 %v4789
    %4970 = vmatpush1.bf16.msra.mxu0 %v4788
    %4971 = vmatprep.subr.bf16.mxu0 %v4793
    %4972 = vmatpush1.bf16.msra.mxu0 %v4792
    %4973 = vmatprep.mubr.bf16.mxu0 %v4539
    %4974 = vmatmul.mubr.bf16.gmra.mrb[0].mxu0 %v4538
    %v4975 = vpop.f32.mrb[0].mxu0
    %v4976 = vadd.f32 %v4935, %v4975
    %v4977 = vpop.f32.mrb[0].mxu0
    %v4978 = vadd.f32 %v4937, %v4977
    %v4979 = vpop.f32.mrb[0].mxu0
    %v4980 = vpop.f32.mrb[0].mxu0
    %4981 = vdwg.mxu0
    %4982 = vmatprep.subr.bf16.mxu0 %v4543
    %4983 = vmatpush1.bf16.msra.mxu0 %v4542
    %4984 = vmatprep.subr.bf16.mxu0 %v4547
    %4985 = vmatpush1.bf16.msra.mxu0 %v4546
    %4986 = vmatprep.subr.bf16.mxu0 %v4551
    %4987 = vmatpush1.bf16.msra.mxu0 %v4550
    %4988 = vmatprep.subr.bf16.mxu0 %v4555
    %4989 = vmatpush1.bf16.msra.mxu0 %v4554
    %4990 = vmatprep.subr.bf16.mxu0 %v4559
    %4991 = vmatpush1.bf16.msra.mxu0 %v4558
    %4992 = vmatprep.subr.bf16.mxu0 %v4563
    %4993 = vmatpush1.bf16.msra.mxu0 %v4562
    %4994 = vmatprep.subr.bf16.mxu0 %v4567
    %4995 = vmatpush1.bf16.msra.mxu0 %v4566
    %4996 = vmatprep.subr.bf16.mxu0 %v4571
    %4997 = vmatpush1.bf16.msra.mxu0 %v4570
    %4998 = vmatprep.subr.bf16.mxu0 %v4575
    %4999 = vmatpush1.bf16.msra.mxu0 %v4574
    %5000 = vmatprep.subr.bf16.mxu0 %v4579
    %5001 = vmatpush1.bf16.msra.mxu0 %v4578
    %5002 = vmatprep.subr.bf16.mxu0 %v4583
    %5003 = vmatpush1.bf16.msra.mxu0 %v4582
    %5004 = vmatprep.subr.bf16.mxu0 %v4587
    %5005 = vmatpush1.bf16.msra.mxu0 %v4586
    %5006 = vmatprep.subr.bf16.mxu0 %v4591
    %5007 = vmatpush1.bf16.msra.mxu0 %v4590
    %5008 = vmatprep.subr.bf16.mxu0 %v4595
    %5009 = vmatpush1.bf16.msra.mxu0 %v4594
    %5010 = vmatprep.subr.bf16.mxu0 %v4599
    %5011 = vmatpush1.bf16.msra.mxu0 %v4598
    %5012 = vmatprep.subr.bf16.mxu0 %v4603
    %5013 = vmatpush1.bf16.msra.mxu0 %v4602
    %5014 = vmatprep.mubr.bf16.mxu0 %v4533
    %5015 = vmatmul.mubr.bf16.gmra.mrb[0].mxu0 %v4532
    %v5016 = vpop.f32.mrb[0].mxu0
    %v5017 = vadd.f32 %v4809, %v5016
    %v5018 = vpop.f32.mrb[0].mxu0
    %v5019 = vadd.f32 %v4813, %v5018
    %v5020 = vpop.f32.mrb[0].mxu0
    %v5021 = vpop.f32.mrb[0].mxu0
    %5022 = vdwg.mxu0
    %5023 = vmatprep.subr.bf16.mxu0 %v4607
    %5024 = vmatpush1.bf16.msra.mxu0 %v4606
    %5025 = vmatprep.subr.bf16.mxu0 %v4611
    %5026 = vmatpush1.bf16.msra.mxu0 %v4610
    %5027 = vmatprep.subr.bf16.mxu0 %v4615
    %5028 = vmatpush1.bf16.msra.mxu0 %v4614
    %5029 = vmatprep.subr.bf16.mxu0 %v4619
    %5030 = vmatpush1.bf16.msra.mxu0 %v4618
    %5031 = vmatprep.subr.bf16.mxu0 %v4623
    %5032 = vmatpush1.bf16.msra.mxu0 %v4622
    %5033 = vmatprep.subr.bf16.mxu0 %v4627
    %5034 = vmatpush1.bf16.msra.mxu0 %v4626
    %5035 = vmatprep.subr.bf16.mxu0 %v4631
    %5036 = vmatpush1.bf16.msra.mxu0 %v4630
    %5037 = vmatprep.subr.bf16.mxu0 %v4635
    %5038 = vmatpush1.bf16.msra.mxu0 %v4634
    %5039 = vmatprep.subr.bf16.mxu0 %v4639
    %5040 = vmatpush1.bf16.msra.mxu0 %v4638
    %5041 = vmatprep.subr.bf16.mxu0 %v4643
    %5042 = vmatpush1.bf16.msra.mxu0 %v4642
    %5043 = vmatprep.subr.bf16.mxu0 %v4647
    %5044 = vmatpush1.bf16.msra.mxu0 %v4646
    %5045 = vmatprep.subr.bf16.mxu0 %v4651
    %5046 = vmatpush1.bf16.msra.mxu0 %v4650
    %5047 = vmatprep.subr.bf16.mxu0 %v4655
    %5048 = vmatpush1.bf16.msra.mxu0 %v4654
    %5049 = vmatprep.subr.bf16.mxu0 %v4659
    %5050 = vmatpush1.bf16.msra.mxu0 %v4658
    %5051 = vmatprep.subr.bf16.mxu0 %v4663
    %5052 = vmatpush1.bf16.msra.mxu0 %v4662
    %5053 = vmatprep.subr.bf16.mxu0 %v4667
    %5054 = vmatpush1.bf16.msra.mxu0 %v4666
    %5055 = vmatprep.mubr.bf16.mxu0 %v4535
    %5056 = vmatmul.mubr.bf16.gmra.mrb[0].mxu0 %v4534
    %v5057 = vpop.f32.mrb[0].mxu0
    %v5058 = vadd.f32 %v5017, %v5057
    %v5059 = vpop.f32.mrb[0].mxu0
    %v5060 = vadd.f32 %v5019, %v5059
    %v5061 = vpop.f32.mrb[0].mxu0
    %v5062 = vpop.f32.mrb[0].mxu0
    %5063 = vdwg.mxu0
    %5064 = vmatprep.subr.bf16.mxu0 %v4671
    %5065 = vmatpush1.bf16.msra.mxu0 %v4670
    %5066 = vmatprep.subr.bf16.mxu0 %v4675
    %5067 = vmatpush1.bf16.msra.mxu0 %v4674
    %5068 = vmatprep.subr.bf16.mxu0 %v4679
    %5069 = vmatpush1.bf16.msra.mxu0 %v4678
    %5070 = vmatprep.subr.bf16.mxu0 %v4683
    %5071 = vmatpush1.bf16.msra.mxu0 %v4682
    %5072 = vmatprep.subr.bf16.mxu0 %v4687
    %5073 = vmatpush1.bf16.msra.mxu0 %v4686
    %5074 = vmatprep.subr.bf16.mxu0 %v4691
    %5075 = vmatpush1.bf16.msra.mxu0 %v4690
    %5076 = vmatprep.subr.bf16.mxu0 %v4695
    %5077 = vmatpush1.bf16.msra.mxu0 %v4694
    %5078 = vmatprep.subr.bf16.mxu0 %v4699
    %5079 = vmatpush1.bf16.msra.mxu0 %v4698
    %5080 = vmatprep.subr.bf16.mxu0 %v4703
    %5081 = vmatpush1.bf16.msra.mxu0 %v4702
    %5082 = vmatprep.subr.bf16.mxu0 %v4707
    %5083 = vmatpush1.bf16.msra.mxu0 %v4706
    %5084 = vmatprep.subr.bf16.mxu0 %v4711
    %5085 = vmatpush1.bf16.msra.mxu0 %v4710
    %5086 = vmatprep.subr.bf16.mxu0 %v4715
    %5087 = vmatpush1.bf16.msra.mxu0 %v4714
    %5088 = vmatprep.subr.bf16.mxu0 %v4719
    %5089 = vmatpush1.bf16.msra.mxu0 %v4718
    %5090 = vmatprep.subr.bf16.mxu0 %v4723
    %5091 = vmatpush1.bf16.msra.mxu0 %v4722
    %5092 = vmatprep.subr.bf16.mxu0 %v4727
    %5093 = vmatpush1.bf16.msra.mxu0 %v4726
    %5094 = vmatprep.subr.bf16.mxu0 %v4731
    %5095 = vmatpush1.bf16.msra.mxu0 %v4730
    %5096 = vmatprep.mubr.bf16.mxu0 %v4537
    %5097 = vmatmul.mubr.bf16.gmra.mrb[0].mxu0 %v4536
    %v5098 = vpop.f32.mrb[0].mxu0
    %v5099 = vadd.f32 %v5058, %v5098
    %v5100 = vpop.f32.mrb[0].mxu0
    %v5101 = vadd.f32 %v5060, %v5100
    %v5102 = vpop.f32.mrb[0].mxu0
    %v5103 = vpop.f32.mrb[0].mxu0
    %5104 = vdwg.mxu0
    %5105 = vmatprep.subr.bf16.mxu0 %v4735
    %5106 = vmatpush1.bf16.msra.mxu0 %v4734
    %5107 = vmatprep.subr.bf16.mxu0 %v4739
    %5108 = vmatpush1.bf16.msra.mxu0 %v4738
    %5109 = vmatprep.subr.bf16.mxu0 %v4743
    %5110 = vmatpush1.bf16.msra.mxu0 %v4742
    %5111 = vmatprep.subr.bf16.mxu0 %v4747
    %5112 = vmatpush1.bf16.msra.mxu0 %v4746
    %5113 = vmatprep.subr.bf16.mxu0 %v4751
    %5114 = vmatpush1.bf16.msra.mxu0 %v4750
    %5115 = vmatprep.subr.bf16.mxu0 %v4755
    %5116 = vmatpush1.bf16.msra.mxu0 %v4754
    %5117 = vmatprep.subr.bf16.mxu0 %v4759
    %5118 = vmatpush1.bf16.msra.mxu0 %v4758
    %5119 = vmatprep.subr.bf16.mxu0 %v4763
    %5120 = vmatpush1.bf16.msra.mxu0 %v4762
    %5121 = vmatprep.subr.bf16.mxu0 %v4767
    %5122 = vmatpush1.bf16.msra.mxu0 %v4766
    %5123 = vmatprep.subr.bf16.mxu0 %v4771
    %5124 = vmatpush1.bf16.msra.mxu0 %v4770
    %5125 = vmatprep.subr.bf16.mxu0 %v4775
    %5126 = vmatpush1.bf16.msra.mxu0 %v4774
    %5127 = vmatprep.subr.bf16.mxu0 %v4779
    %5128 = vmatpush1.bf16.msra.mxu0 %v4778
    %5129 = vmatprep.subr.bf16.mxu0 %v4783
    %5130 = vmatpush1.bf16.msra.mxu0 %v4782
    %5131 = vmatprep.subr.bf16.mxu0 %v4787
    %5132 = vmatpush1.bf16.msra.mxu0 %v4786
    %5133 = vmatprep.subr.bf16.mxu0 %v4791
    %5134 = vmatpush1.bf16.msra.mxu0 %v4790
    %5135 = vmatprep.subr.bf16.mxu0 %v4795
    %5136 = vmatpush1.bf16.msra.mxu0 %v4794
    %5137 = vmatprep.mubr.bf16.mxu0 %v4539
    %5138 = vmatmul.mubr.bf16.gmra.mrb[0].mxu0 %v4538
    %v5139 = vpop.f32.mrb[0].mxu0
    %v5140 = vadd.f32 %v5099, %v5139
    %v5141 = vpop.f32.mrb[0].mxu0
    %v5142 = vadd.f32 %v5101, %v5141
    %v5143 = vpop.f32.mrb[0].mxu0
    %v5144 = vpop.f32.mrb[0].mxu0
    %5145 = vdwg.mxu0
    %v5146 = vmax.f32 %v4976, 0.0
    %v5147 = vmax.f32 %v4978, 0.0
    %v5148 = vmax.f32 %v5140, 0.0
    %v5149 = vmax.f32 %v5142, 0.0
    %v5150 = vld [vmem:[%s13] sm:$0xff]
    %v5151 = vld [vmem:[%s13 + $0x8] sm:$0xff]
    %v5152 = vld [vmem:[%s13 + $0x10] sm:$0xff]
    %v5153 = vld [vmem:[%s13 + $0x18] sm:$0xff]
    %v5154 = vld [vmem:[%s13 + $0x20] sm:$0xff]
    %v5155 = vld [vmem:[%s13 + $0x28] sm:$0xff]
    %v5156 = vld [vmem:[%s13 + $0x30] sm:$0xff]
    %v5157 = vld [vmem:[%s13 + $0x38] sm:$0xff]
    %v5158 = vld [vmem:[%s13 + $0x40] sm:$0xff]
    %v5159 = vld [vmem:[%s13 + $0x48] sm:$0xff]
    %v5160 = vld [vmem:[%s13 + $0x50] sm:$0xff]
    %v5161 = vld [vmem:[%s13 + $0x58] sm:$0xff]
    %v5162 = vld [vmem:[%s13 + $0x60] sm:$0xff]
    %v5163 = vld [vmem:[%s13 + $0x68] sm:$0xff]
    %v5164 = vld [vmem:[%s13 + $0x70] sm:$0xff]
    %v5165 = vld [vmem:[%s13 + $0x78] sm:$0xff]
    %v5166 = vld [vmem:[%s13 + $0x80] sm:$0xff]
    %v5167 = vld [vmem:[%s13 + $0x88] sm:$0xff]
    %v5168 = vld [vmem:[%s13 + $0x90] sm:$0xff]
    %v5169 = vld [vmem:[%s13 + $0x98] sm:$0xff]
    %v5170 = vld [vmem:[%s13 + $0xa0] sm:$0xff]
    %v5171 = vld [vmem:[%s13 + $0xa8] sm:$0xff]
    %v5172 = vld [vmem:[%s13 + $0xb0] sm:$0xff]
    %v5173 = vld [vmem:[%s13 + $0xb8] sm:$0xff]
    %v5174 = vld [vmem:[%s13 + $0xc0] sm:$0xff]
    %v5175 = vld [vmem:[%s13 + $0xc8] sm:$0xff]
    %v5176 = vld [vmem:[%s13 + $0xd0] sm:$0xff]
    %v5177 = vld [vmem:[%s13 + $0xd8] sm:$0xff]
    %v5178 = vld [vmem:[%s13 + $0xe0] sm:$0xff]
    %v5179 = vld [vmem:[%s13 + $0xe8] sm:$0xff]
    %v5180 = vld [vmem:[%s13 + $0xf0] sm:$0xff]
    %v5181 = vld [vmem:[%s13 + $0xf8] sm:$0xff]
    %v5182 = vld [vmem:[%s13 + $0x100] sm:$0xff]
    %v5183 = vld [vmem:[%s13 + $0x108] sm:$0xff]
    %v5184 = vld [vmem:[%s13 + $0x110] sm:$0xff]
    %v5185 = vld [vmem:[%s13 + $0x118] sm:$0xff]
    %v5186 = vld [vmem:[%s13 + $0x120] sm:$0xff]
    %v5187 = vld [vmem:[%s13 + $0x128] sm:$0xff]
    %v5188 = vld [vmem:[%s13 + $0x130] sm:$0xff]
    %v5189 = vld [vmem:[%s13 + $0x138] sm:$0xff]
    %v5190 = vld [vmem:[%s13 + $0x140] sm:$0xff]
    %v5191 = vld [vmem:[%s13 + $0x148] sm:$0xff]
    %v5192 = vld [vmem:[%s13 + $0x150] sm:$0xff]
    %v5193 = vld [vmem:[%s13 + $0x158] sm:$0xff]
    %v5194 = vld [vmem:[%s13 + $0x160] sm:$0xff]
    %v5195 = vld [vmem:[%s13 + $0x168] sm:$0xff]
    %v5196 = vld [vmem:[%s13 + $0x170] sm:$0xff]
    %v5197 = vld [vmem:[%s13 + $0x178] sm:$0xff]
    %v5198 = vld [vmem:[%s13 + $0x180] sm:$0xff]
    %v5199 = vld [vmem:[%s13 + $0x188] sm:$0xff]
    %v5200 = vld [vmem:[%s13 + $0x190] sm:$0xff]
    %v5201 = vld [vmem:[%s13 + $0x198] sm:$0xff]
    %v5202 = vld [vmem:[%s13 + $0x1a0] sm:$0xff]
    %v5203 = vld [vmem:[%s13 + $0x1a8] sm:$0xff]
    %v5204 = vld [vmem:[%s13 + $0x1b0] sm:$0xff]
    %v5205 = vld [vmem:[%s13 + $0x1b8] sm:$0xff]
    %v5206 = vld [vmem:[%s13 + $0x1c0] sm:$0xff]
    %v5207 = vld [vmem:[%s13 + $0x1c8] sm:$0xff]
    %v5208 = vld [vmem:[%s13 + $0x1d0] sm:$0xff]
    %v5209 = vld [vmem:[%s13 + $0x1d8] sm:$0xff]
    %v5210 = vld [vmem:[%s13 + $0x1e0] sm:$0xff]
    %v5211 = vld [vmem:[%s13 + $0x1e8] sm:$0xff]
    %v5212 = vld [vmem:[%s13 + $0x1f0] sm:$0xff]
    %v5213 = vld [vmem:[%s13 + $0x1f8] sm:$0xff]
    %v5214 = vld [vmem:[#allocation23] sm:$0x1]
    %v5216 = vlaneseq
    %v5217 = vshrl.u32 %v5216, 7
    %v5218 = vsub.s32 0, %v5217
    %v5219 = vrot.slane %v5214, %v5218
    %5221 = vmatprep.subr.mxu0 0.0
    %5222 = vmatpush1.msra.mxu0 %v5150
    %5223 = vmatprep.subr.mxu0 0.0
    %5224 = vmatpush1.msra.mxu0 %v5151
    %5225 = vmatprep.subr.mxu0 0.0
    %5226 = vmatpush1.msra.mxu0 %v5152
    %5227 = vmatprep.subr.mxu0 0.0
    %5228 = vmatpush1.msra.mxu0 %v5153
    %5229 = vmatprep.subr.mxu0 0.0
    %5230 = vmatpush1.msra.mxu0 %v5154
    %5231 = vmatprep.subr.mxu0 0.0
    %5232 = vmatpush1.msra.mxu0 %v5155
    %5233 = vmatprep.subr.mxu0 0.0
    %5234 = vmatpush1.msra.mxu0 %v5156
    %5235 = vmatprep.subr.mxu0 0.0
    %5236 = vmatpush1.msra.mxu0 %v5157
    %5237 = vmatprep.subr.mxu0 0.0
    %5238 = vmatpush1.msra.mxu0 %v5158
    %5239 = vmatprep.subr.mxu0 0.0
    %5240 = vmatpush1.msra.mxu0 %v5159
    %5241 = vmatprep.subr.mxu0 0.0
    %5242 = vmatpush1.msra.mxu0 %v5160
    %5243 = vmatprep.subr.mxu0 0.0
    %5244 = vmatpush1.msra.mxu0 %v5161
    %5245 = vmatprep.subr.mxu0 0.0
    %5246 = vmatpush1.msra.mxu0 %v5162
    %5247 = vmatprep.subr.mxu0 0.0
    %5248 = vmatpush1.msra.mxu0 %v5163
    %5249 = vmatprep.subr.mxu0 0.0
    %5250 = vmatpush1.msra.mxu0 %v5164
    %5251 = vmatprep.subr.mxu0 0.0
    %5252 = vmatpush1.msra.mxu0 %v5165
    %5253 = vmatprep.subr.mxu0 0.0
    %5254 = vmatpush1.msra.mxu0 %v5166
    %5255 = vmatprep.subr.mxu0 0.0
    %5256 = vmatpush1.msra.mxu0 %v5167
    %5257 = vmatprep.subr.mxu0 0.0
    %5258 = vmatpush1.msra.mxu0 %v5168
    %5259 = vmatprep.subr.mxu0 0.0
    %5260 = vmatpush1.msra.mxu0 %v5169
    %5261 = vmatprep.subr.mxu0 0.0
    %5262 = vmatpush1.msra.mxu0 %v5170
    %5263 = vmatprep.subr.mxu0 0.0
    %5264 = vmatpush1.msra.mxu0 %v5171
    %5265 = vmatprep.subr.mxu0 0.0
    %5266 = vmatpush1.msra.mxu0 %v5172
    %5267 = vmatprep.subr.mxu0 0.0
    %5268 = vmatpush1.msra.mxu0 %v5173
    %5269 = vmatprep.subr.mxu0 0.0
    %5270 = vmatpush1.msra.mxu0 %v5174
    %5271 = vmatprep.subr.mxu0 0.0
    %5272 = vmatpush1.msra.mxu0 %v5175
    %5273 = vmatprep.subr.mxu0 0.0
    %5274 = vmatpush1.msra.mxu0 %v5176
    %5275 = vmatprep.subr.mxu0 0.0
    %5276 = vmatpush1.msra.mxu0 %v5177
    %5277 = vmatprep.subr.mxu0 0.0
    %5278 = vmatpush1.msra.mxu0 %v5178
    %5279 = vmatprep.subr.mxu0 0.0
    %5280 = vmatpush1.msra.mxu0 %v5179
    %5281 = vmatprep.subr.mxu0 0.0
    %5282 = vmatpush1.msra.mxu0 %v5180
    %5283 = vmatprep.subr.mxu0 0.0
    %5284 = vmatpush1.msra.mxu0 %v5181
    %5285 = vmatprep.mubr.f32.mxu0 %v5147
    %5286 = vmatmul.mubr.f32.gmra.mrb[0].mxu0 %v5146
    %v5287 = vpop.f32.mrb[0].mxu0
    %v5288 = vadd.f32 %v5219, %v5287
    %v5289 = vpop.f32.mrb[0].mxu0
    %5290 = vdwg.mxu0
    %5291 = vmatprep.subr.mxu0 0.0
    %5292 = vmatpush1.msra.mxu0 %v5182
    %5293 = vmatprep.subr.mxu0 0.0
    %5294 = vmatpush1.msra.mxu0 %v5183
    %5295 = vmatprep.subr.mxu0 0.0
    %5296 = vmatpush1.msra.mxu0 %v5184
    %5297 = vmatprep.subr.mxu0 0.0
    %5298 = vmatpush1.msra.mxu0 %v5185
    %5299 = vmatprep.subr.mxu0 0.0
    %5300 = vmatpush1.msra.mxu0 %v5186
    %5301 = vmatprep.subr.mxu0 0.0
    %5302 = vmatpush1.msra.mxu0 %v5187
    %5303 = vmatprep.subr.mxu0 0.0
    %5304 = vmatpush1.msra.mxu0 %v5188
    %5305 = vmatprep.subr.mxu0 0.0
    %5306 = vmatpush1.msra.mxu0 %v5189
    %5307 = vmatprep.subr.mxu0 0.0
    %5308 = vmatpush1.msra.mxu0 %v5190
    %5309 = vmatprep.subr.mxu0 0.0
    %5310 = vmatpush1.msra.mxu0 %v5191
    %5311 = vmatprep.subr.mxu0 0.0
    %5312 = vmatpush1.msra.mxu0 %v5192
    %5313 = vmatprep.subr.mxu0 0.0
    %5314 = vmatpush1.msra.mxu0 %v5193
    %5315 = vmatprep.subr.mxu0 0.0
    %5316 = vmatpush1.msra.mxu0 %v5194
    %5317 = vmatprep.subr.mxu0 0.0
    %5318 = vmatpush1.msra.mxu0 %v5195
    %5319 = vmatprep.subr.mxu0 0.0
    %5320 = vmatpush1.msra.mxu0 %v5196
    %5321 = vmatprep.subr.mxu0 0.0
    %5322 = vmatpush1.msra.mxu0 %v5197
    %5323 = vmatprep.subr.mxu0 0.0
    %5324 = vmatpush1.msra.mxu0 %v5198
    %5325 = vmatprep.subr.mxu0 0.0
    %5326 = vmatpush1.msra.mxu0 %v5199
    %5327 = vmatprep.subr.mxu0 0.0
    %5328 = vmatpush1.msra.mxu0 %v5200
    %5329 = vmatprep.subr.mxu0 0.0
    %5330 = vmatpush1.msra.mxu0 %v5201
    %5331 = vmatprep.subr.mxu0 0.0
    %5332 = vmatpush1.msra.mxu0 %v5202
    %5333 = vmatprep.subr.mxu0 0.0
    %5334 = vmatpush1.msra.mxu0 %v5203
    %5335 = vmatprep.subr.mxu0 0.0
    %5336 = vmatpush1.msra.mxu0 %v5204
    %5337 = vmatprep.subr.mxu0 0.0
    %5338 = vmatpush1.msra.mxu0 %v5205
    %5339 = vmatprep.subr.mxu0 0.0
    %5340 = vmatpush1.msra.mxu0 %v5206
    %5341 = vmatprep.subr.mxu0 0.0
    %5342 = vmatpush1.msra.mxu0 %v5207
    %5343 = vmatprep.subr.mxu0 0.0
    %5344 = vmatpush1.msra.mxu0 %v5208
    %5345 = vmatprep.subr.mxu0 0.0
    %5346 = vmatpush1.msra.mxu0 %v5209
    %5347 = vmatprep.subr.mxu0 0.0
    %5348 = vmatpush1.msra.mxu0 %v5210
    %5349 = vmatprep.subr.mxu0 0.0
    %5350 = vmatpush1.msra.mxu0 %v5211
    %5351 = vmatprep.subr.mxu0 0.0
    %5352 = vmatpush1.msra.mxu0 %v5212
    %5353 = vmatprep.subr.mxu0 0.0
    %5354 = vmatpush1.msra.mxu0 %v5213
    %5355 = vmatprep.mubr.f32.mxu0 %v5149
    %5356 = vmatmul.mubr.f32.gmra.mrb[0].mxu0 %v5148
    %v5357 = vpop.f32.mrb[0].mxu0
    %v5358 = vadd.f32 %v5288, %v5357
    %v5359 = vpop.f32.mrb[0].mxu0
    %5360 = vdwg.mxu0
    %vm5361 = vcmask 74752
    %5362 = vst.msk [vmem:[#allocation24] sm:$0x3] %vm5361, %v5358
    // Predicated region
    $region102: #{bottleneck_forward.1} parent=1 // pred_check
      _
    $region103: #{bottleneck_forward.1} parent=1 // pred_check_branch
      %5364 = sbr.rel (0) target = $region105
    $region104: #{bottleneck_forward.1} parent=1 // pred_region
      %s5366 = ssub.s32 32, 32
      %5367 = vsyncadd [#allocation8], %s5366
      %s5369 = sshll.u32 [#allocation24], 4
      %s5370 = int_to_ptr.vmem [resolvable:$true] %s5369
      %5372 = dma.vmem_to_hbm [thread:$0]  %s5370, 32, %s17, [#allocation8]
    $region105: #{bottleneck_forward.1} parent=1 // pred_fallthru
      _
    // Predicated region
    $region106: #{bottleneck_forward.1} parent=1 // pred_check
      _
    $region107: #{bottleneck_forward.1} parent=1 // pred_check_branch
      %5374 = sbr.rel (0) target = $region109
    $region108: #{bottleneck_forward.1} parent=1 // pred_region
      %5375 = dma.done [#allocation8], 32
    $region109: #{bottleneck_forward.1} parent=1 // pred_fallthru
      _
    %5376 = vsyncpa [#allocation7], 1
    %5377 = vsyncpa [#allocation10], 1
    %5378 = vsyncpa [#allocation13], 1
    %5379 = vsyncpa [#allocation16], 1
    %5380 = vsyncpa [#allocation19], 1
    %5381 = vsyncpa [#allocation22], 1
    %5382 = vsyncpa [#allocation8], 1
  %5383 = vsyncmov [#allocation5]
  %s5384 = vpop.sfrf %5383
  %p5385 = scmp.eq.s32.totalorder %s5384, 0
  %p5386 = pneg %p5385
  %5388 = shalt.err (%p5386)
  %s5389 = scalar_lea.sflag [#allocation5], 1
  %5390 = vsyncmov %s5389
  %s5391 = vpop.sfrf %5390
  %p5392 = scmp.eq.s32.totalorder %s5391, 0
  %p5393 = pneg %p5392
  %5395 = shalt.err (%p5393)
  %s5396 = scalar_lea.sflag [#allocation5], 2
  %5397 = vsyncmov %s5396
  %s5398 = vpop.sfrf %5397
  %p5399 = scmp.eq.s32.totalorder %s5398, 0
  %p5400 = pneg %p5399
  %5402 = shalt.err (%p5400)

</llo_original>
